<compile_context>
chip_gen: v6e
topology: v6e:2x2x1
jax: 0.10.0
libtpu: 0.0.40
codegen_flags: <defaults>
</compile_context>

<pallas_src>
import math

import jax
import jax.numpy as jnp
import numpy as np
from jax import lax
from jax.experimental import pallas as pl
from jax.experimental.pallas import tpu as pltpu


def _round_up(v, m):
    return ((v + m - 1) // m) * m


# --------------------------------------------------------------------------
# Kernel: whole network for one batch tile; batch on the lane axis.
# Matmul operands bf16, accumulation / bias / relu / tanh in f32.
# --------------------------------------------------------------------------
def _image_controller_kernel(x_ref,
                             g1_ref, b1_ref,        # conv1 (+ folded diff concat) as GEMM
                             g2_ref, b2_ref,        # conv2 as GEMM
                             wf1_ref, bf1_ref,
                             wf2_ref, bf2_ref,
                             wf3_ref, bf3_ref,
                             wo_ref, bo_ref,
                             o_ref):
    x = x_ref[...]                                                  # (nr_img*H*W, TB) bf16

    # conv1 (with the difference-image construction folded in) + ReLU
    h = jnp.dot(g1_ref[...], x, preferred_element_type=jnp.float32) + b1_ref[...]
    h = jnp.maximum(h, 0.0)                                         # (10*H1*W1, TB) f32

    # conv2 + ReLU  (rows already in (channel, y, x) order == PyTorch flatten order)
    h = jnp.dot(g2_ref[...], h.astype(jnp.bfloat16),
                preferred_element_type=jnp.float32) + b2_ref[...]
    h = jnp.maximum(h, 0.0)                                         # (flat_img_size, TB)

    # fully connected stack with tanh activations (EUP); matmul inputs in bf16.
    h = jnp.tanh(jnp.dot(wf1_ref[...], h.astype(jnp.bfloat16),
                         preferred_element_type=jnp.float32) + bf1_ref[...])
    h = jnp.tanh(jnp.dot(wf2_ref[...], h.astype(jnp.bfloat16),
                         preferred_element_type=jnp.float32) + bf2_ref[...])
    h = jnp.tanh(jnp.dot(wf3_ref[...], h.astype(jnp.bfloat16),
                         preferred_element_type=jnp.float32) + bf3_ref[...])
    h = jnp.tanh(jnp.dot(wo_ref[...], h.astype(jnp.bfloat16),
                         preferred_element_type=jnp.float32) + bo_ref[...])

    o_ref[...] = h.astype(o_ref.dtype)                              # (out_size, TB)


# --------------------------------------------------------------------------
# One-time weight preparation (hoisted out of the per-step forward).
# --------------------------------------------------------------------------
def _conv_as_gemm_matrix(w, in_h, in_w):
    """Lower a VALID, stride-1 Conv2d weight (OC, IC, KH, KW) to a dense matrix G of
    shape (OC*OH*OW, IC*in_h*in_w) so that G @ flat_input == flat_conv_output,
    with both flattenings in (channel, y, x) order (PyTorch .reshape order)."""
    oc_n, ic_n, kh_n, kw_n = w.shape
    out_h = in_h - kh_n + 1
    out_w = in_w - kw_n + 1
    oc = jnp.arange(oc_n).reshape(oc_n, 1, 1, 1, 1, 1)
    ic = jnp.arange(ic_n).reshape(1, ic_n, 1, 1, 1, 1)
    kh = jnp.arange(kh_n).reshape(1, 1, kh_n, 1, 1, 1)
    kw = jnp.arange(kw_n).reshape(1, 1, 1, kw_n, 1, 1)
    oy = jnp.arange(out_h).reshape(1, 1, 1, 1, out_h, 1)
    ox = jnp.arange(out_w).reshape(1, 1, 1, 1, 1, out_w)
    full = (oc_n, ic_n, kh_n, kw_n, out_h, out_w)
    rows = jnp.broadcast_to(oc * (out_h * out_w) + oy * out_w + ox, full).ravel()
    cols = jnp.broadcast_to(ic * (in_h * in_w) + (oy + kh) * in_w + (ox + kw), full).ravel()
    vals = jnp.broadcast_to(w[:, :, :, :, None, None], full).ravel()
    g = jnp.zeros((oc_n * out_h * out_w, ic_n * in_h * in_w), jnp.float32)
    return g.at[rows, cols].add(vals)


def prepare_params(params, img_height, img_width, nr_img):
    """One-time weight preprocessing:
      * fold the "append difference images" concat into conv1's input channels,
      * lower both VALID convs to dense GEMM matrices,
      * broadcast conv biases over their spatial grids,
      * cast matmul operands to bf16 (biases stay f32).
    Returns a flat tuple consumed by image_controller_net_forward."""
    w1, b1 = params["conv1"]
    w2, b2 = params["conv2"]
    wf1, bf1 = params["fc1"]
    wf2, bf2 = params["fc2"]
    wf3, bf3 = params["fc3"]
    w_out, b_out = params["fc_out"]

    out_h1, out_w1 = img_height - 4, img_width - 4     # conv1 output spatial (5x5 VALID)
    out_h2, out_w2 = out_h1 - 2, out_w1 - 2            # conv2 output spatial (3x3 VALID)

    # Fold "append difference images" into conv1's weights (exactly linear):
    # sub channel c < nr_img is image[:, c]; channel nr_img+j is image[:, j+1] - image[:, j].
    w1f = w1.astype(jnp.float32)
    w1_eff = w1f[:, :nr_img]
    w1_eff = w1_eff.at[:, 1:].add(w1f[:, nr_img:])
    w1_eff = w1_eff.at[:, :nr_img - 1].add(-w1f[:, nr_img:])

    # TODO(synk): for images much larger than 16x16, replace the dense folded g1 with a
    # banded per-output-row decomposition (cuts the ~5x zero-MAC overhead and the
    # (H*W)^2 VMEM growth); at 16x16 the dense GEMM is the right call.
    g1 = _conv_as_gemm_matrix(w1_eff, img_height, img_width)          # (10*H1*W1, nr_img*H*W)
    g2 = _conv_as_gemm_matrix(w2.astype(jnp.float32), out_h1, out_w1)  # (2*H2*W2, 10*H1*W1)
    b1c = jnp.repeat(b1.astype(jnp.float32), out_h1 * out_w1)[:, None]
    b2c = jnp.repeat(b2.astype(jnp.float32), out_h2 * out_w2)[:, None]

    bf16 = jnp.bfloat16
    return (
        g1.astype(bf16), b1c,
        g2.astype(bf16), b2c,
        wf1.astype(bf16), bf1.astype(jnp.float32)[:, None],
        wf2.astype(bf16), bf2.astype(jnp.float32)[:, None],
        wf3.astype(bf16), bf3.astype(jnp.float32)[:, None],
        w_out.astype(bf16), b_out.astype(jnp.float32)[:, None],
    )


# --------------------------------------------------------------------------
# Forward wrapper.
# --------------------------------------------------------------------------
def _vmem_tile_bytes(shape, dtype):
    """Padded VMEM footprint of one 2-D buffer (sublane pad 8/16, lane pad 128)."""
    r, c = shape
    itemsize = np.dtype(dtype).itemsize
    sublane = max(8, 32 // itemsize)
    return _round_up(r, sublane) * _round_up(c, 128) * itemsize


def image_controller_net_forward(image, prepared, *, batch_tile=256):
    """image: (B, nr_img, H, W).  prepared: output of prepare_params()."""
    weights = list(prepared)
    g1, g2 = weights[0], weights[2]
    w_out = weights[10]
    out_size = w_out.shape[0]
    f_in = g1.shape[1]

    B = image.shape[0]
    assert math.prod(image.shape[1:]) == f_in

    # Batch on the lane axis, padded to >=128 lanes so all loads/stores are unmasked and
    # MXU columns are fully used even for tiny batches; pick the tile so B>128 gives >=2
    # grid steps (the "parallel" axis can then shard across v7x's 2 TensorCores).
    batch_tile = max(128, _round_up(batch_tile, 128))
    tb = min(batch_tile, max(128, _round_up(pl.cdiv(B, 2), 128)))
    b_pad = _round_up(B, tb)
    # TODO(synk): on v5e with very large B, avoid this wrapper-side transpose (extra HBM
    # round trip of the input) by feeding (tb, f_in) blocks and contracting in-kernel.
    x = image.astype(jnp.bfloat16).reshape(B, f_in).T                 # (f_in, B) bf16
    if b_pad != B:
        x = jnp.pad(x, ((0, 0), (0, b_pad - B)))
    grid = (b_pad // tb,)

    # x / out are pipelined (double-buffered) over batch tiles; the weights use constant
    # index maps + Buffered(1): DMA'd once, held single-buffered across all grid steps.
    resident_specs = [
        pl.BlockSpec(w.shape, lambda i: (0, 0), pipeline_mode=pl.Buffered(1))
        for w in weights
    ]
    in_specs = [pl.BlockSpec((f_in, tb), lambda i: (0, i))] + resident_specs
    out_specs = pl.BlockSpec((out_size, tb), lambda i: (0, i))

    # VMEM budget from actual (padded) buffer sums; weights counted twice as safety
    # margin, capped to v7x's 64 MiB physical VMEM.
    weight_vmem = sum(_vmem_tile_bytes(w.shape, w.dtype) for w in weights)
    io_vmem = 2 * (_vmem_tile_bytes((f_in, tb), jnp.bfloat16)
                   + _vmem_tile_bytes((out_size, tb), jnp.float32))
    interm_vmem = 4 * _vmem_tile_bytes((g1.shape[0], tb), jnp.float32)
    vmem_limit = 2 * weight_vmem + io_vmem + interm_vmem + (4 << 20)
    vmem_limit = max(16 << 20, min(vmem_limit, 64 << 20))

    matmul_elems = sum(int(weights[i].size) for i in (0, 2, 4, 6, 8, 10))
    flops = 2 * b_pad * matmul_elems
    transcendentals = b_pad * (64 + 64 + 32 + out_size)
    bytes_accessed = (int(x.size) * 2 + out_size * b_pad * 4
                      + sum(int(w.size) * np.dtype(w.dtype).itemsize for w in weights))

    out = pl.pallas_call(
        _image_controller_kernel,
        out_shape=jax.ShapeDtypeStruct((out_size, b_pad), jnp.float32),
        grid_spec=pltpu.PrefetchScalarGridSpec(
            num_scalar_prefetch=0,
            grid=grid,
            in_specs=in_specs,
            out_specs=out_specs,
        ),
        compiler_params=pltpu.CompilerParams(
            dimension_semantics=("parallel",),
            vmem_limit_bytes=int(vmem_limit),
        ),
        cost_estimate=pl.CostEstimate(
            flops=int(flops),
            transcendentals=int(transcendentals),
            bytes_accessed=int(bytes_accessed),
        ),
    )(x, *weights)

    return out[:, :B].T                                               # (B, out_size)


# --------------------------------------------------------------------------
# Reference (literal translation of the PyTorch module) and parameter init.
# --------------------------------------------------------------------------
def init_params(key, img_height, img_width, out_size=1, nr_img=5):
    flat = 2 * (img_height - 6) * (img_width - 6)
    layer_shapes = {
        "conv1": (10, 2 * nr_img - 1, 5, 5),
        "conv2": (2, 10, 3, 3),
        "fc1": (64, flat),
        "fc2": (64, 64),
        "fc3": (32, 64),
        "fc_out": (out_size, 32),
    }
    params = {}
    for name, shape in layer_shapes.items():
        key, k_w, k_b = jax.random.split(key, 3)
        fan_in = math.prod(shape[1:])
        bound = 1.0 / math.sqrt(fan_in)
        w = jax.random.uniform(k_w, shape, jnp.float32, -bound, bound)
        b = jax.random.uniform(k_b, (shape[0],), jnp.float32, -bound, bound)
        params[name] = (w, b)
    return params


def reference_forward(image, params):
    w1, b1 = params["conv1"]
    w2, b2 = params["conv2"]
    wf1, bf1 = params["fc1"]
    wf2, bf2 = params["fc2"]
    wf3, bf3 = params["fc3"]
    w_out, b_out = params["fc_out"]

    img = image.astype(jnp.float32)
    diffs = img[:, 1:] - img[:, :-1]
    sub = jnp.concatenate([img, diffs], axis=1)

    dn = ("NCHW", "OIHW", "NCHW")
    hp = lax.Precision.HIGHEST
    c1 = lax.conv_general_dilated(sub, w1, (1, 1), "VALID", dimension_numbers=dn, precision=hp)
    c1 = jnp.maximum(c1 + b1[None, :, None, None], 0.0)
    c2 = lax.conv_general_dilated(c1, w2, (1, 1), "VALID", dimension_numbers=dn, precision=hp)
    c2 = jnp.maximum(c2 + b2[None, :, None, None], 0.0)

    h = c2.reshape(c2.shape[0], -1)
    h = jnp.tanh(jnp.dot(h, wf1.T, precision=hp) + bf1)
    h = jnp.tanh(jnp.dot(h, wf2.T, precision=hp) + bf2)
    h = jnp.tanh(jnp.dot(h, wf3.T, precision=hp) + bf3)
    h = jnp.tanh(jnp.dot(h, w_out.T, precision=hp) + b_out)
    return h


if __name__ == "__main__":
    img_h = img_w = 16
    out_size = 1
    nr_img = 5
    batch = 2

    key = jax.random.PRNGKey(0)
    key, k_img = jax.random.split(key)
    image = jax.random.normal(k_img, (batch, nr_img, img_h, img_w), jnp.float32)
    params = init_params(key, img_h, img_w, out_size=out_size, nr_img=nr_img)

    # One-time weight preparation, hoisted out of the forward step.
    prepared = prepare_params(params, img_h, img_w, nr_img)
    prepared = jax.tree_util.tree_map(lambda a: a.block_until_ready(), prepared)

    fwd = jax.jit(image_controller_net_forward)
    out = jax.block_until_ready(fwd(image, prepared))

    ref = reference_forward(image, params)
    assert out.shape == (batch, out_size)
    max_err = float(jnp.max(jnp.abs(out - ref)))
    assert jnp.allclose(out, ref, atol=2e-2, rtol=2e-2), max_err

    print("KERNEL_OK")
</pallas_src>

<mosaic_0001>
module attributes {stable_mosaic.version = 11 : i64} {
  func.func @_image_controller_kernel(%arg0: i32, %arg1: memref<1280x128xbf16, #tpu.memory_space<vmem>>, %arg2: memref<1440x1280xbf16, #tpu.memory_space<vmem>>, %arg3: memref<1440x1xf32, #tpu.memory_space<vmem>>, %arg4: memref<200x1440xbf16, #tpu.memory_space<vmem>>, %arg5: memref<200x1xf32, #tpu.memory_space<vmem>>, %arg6: memref<64x200xbf16, #tpu.memory_space<vmem>>, %arg7: memref<64x1xf32, #tpu.memory_space<vmem>>, %arg8: memref<64x64xbf16, #tpu.memory_space<vmem>>, %arg9: memref<64x1xf32, #tpu.memory_space<vmem>>, %arg10: memref<32x64xbf16, #tpu.memory_space<vmem>>, %arg11: memref<32x1xf32, #tpu.memory_space<vmem>>, %arg12: memref<1x32xbf16, #tpu.memory_space<vmem>>, %arg13: memref<1x1xf32, #tpu.memory_space<vmem>>, %arg14: memref<1x128xf32, #tpu.memory_space<vmem>>) attributes {dimension_semantics = [#tpu.dimension_semantics<parallel>], iteration_bounds = array<i64: 1>, scalar_prefetch = 0 : i64, scratch_operands = 0 : i64, tpu.core_type = #tpu.core_type<tc>, window_params = [{transform_indices = @transform_0, window_bounds = array<i64: 1280, 128>}, {pipeline_mode = #tpu.pipeline_mode<synchronous>, transform_indices = @transform_1, window_bounds = array<i64: 1440, 1280>}, {pipeline_mode = #tpu.pipeline_mode<synchronous>, transform_indices = @transform_2, window_bounds = array<i64: 1440, 1>}, {pipeline_mode = #tpu.pipeline_mode<synchronous>, transform_indices = @transform_3, window_bounds = array<i64: 200, 1440>}, {pipeline_mode = #tpu.pipeline_mode<synchronous>, transform_indices = @transform_4, window_bounds = array<i64: 200, 1>}, {pipeline_mode = #tpu.pipeline_mode<synchronous>, transform_indices = @transform_5, window_bounds = array<i64: 64, 200>}, {pipeline_mode = #tpu.pipeline_mode<synchronous>, transform_indices = @transform_6, window_bounds = array<i64: 64, 1>}, {pipeline_mode = #tpu.pipeline_mode<synchronous>, transform_indices = @transform_7, window_bounds = array<i64: 64, 64>}, {pipeline_mode = #tpu.pipeline_mode<synchronous>, transform_indices = @transform_8, window_bounds = array<i64: 64, 1>}, {pipeline_mode = #tpu.pipeline_mode<synchronous>, transform_indices = @transform_9, window_bounds = array<i64: 32, 64>}, {pipeline_mode = #tpu.pipeline_mode<synchronous>, transform_indices = @transform_10, window_bounds = array<i64: 32, 1>}, {pipeline_mode = #tpu.pipeline_mode<synchronous>, transform_indices = @transform_11, window_bounds = array<i64: 1, 32>}, {pipeline_mode = #tpu.pipeline_mode<synchronous>, transform_indices = @transform_12, window_bounds = array<i64: 1, 1>}, {transform_indices = @transform_13, window_bounds = array<i64: 1, 128>}]} {
    %c0 = arith.constant 0 : index
    %c0_0 = arith.constant 0 : index
    %0 = vector.load %arg1[%c0, %c0_0] : memref<1280x128xbf16, #tpu.memory_space<vmem>>, vector<1280x128xbf16>
    %c0_1 = arith.constant 0 : index
    %c0_2 = arith.constant 0 : index
    %1 = vector.load %arg2[%c0_1, %c0_2] : memref<1440x1280xbf16, #tpu.memory_space<vmem>>, vector<1440x1280xbf16>
    %cst = arith.constant dense<0.000000e+00> : vector<1440x128xf32>
    %2 = tpu.matmul %1, %0, %cst {dimension_numbers = #tpu.dot_dimension_numbers<[1], [0], [0], [1], [0, 0, 1, 1], [], []>} : vector<1440x1280xbf16>, vector<1280x128xbf16>, vector<1440x128xf32> -> vector<1440x128xf32>
    %c0_3 = arith.constant 0 : index
    %c0_4 = arith.constant 0 : index
    %3 = vector.load %arg3[%c0_3, %c0_4] : memref<1440x1xf32, #tpu.memory_space<vmem>>, vector<1440x1xf32>
    %4 = vector.broadcast %3 : vector<1440x1xf32> to vector<1440x128xf32>
    %5 = arith.addf %2, %4 : vector<1440x128xf32>
    %cst_5 = arith.constant 0.000000e+00 : f32
    %6 = vector.broadcast %cst_5 : f32 to vector<1440x128xf32>
    %7 = arith.maximumf %5, %6 : vector<1440x128xf32>
    %c0_6 = arith.constant 0 : index
    %c0_7 = arith.constant 0 : index
    %8 = vector.load %arg4[%c0_6, %c0_7] : memref<200x1440xbf16, #tpu.memory_space<vmem>>, vector<200x1440xbf16>
    %9 = arith.truncf %7 : vector<1440x128xf32> to vector<1440x128xbf16>
    %cst_8 = arith.constant dense<0.000000e+00> : vector<200x128xf32>
    %10 = tpu.matmul %8, %9, %cst_8 {dimension_numbers = #tpu.dot_dimension_numbers<[1], [0], [0], [1], [0, 0, 1, 1], [], []>} : vector<200x1440xbf16>, vector<1440x128xbf16>, vector<200x128xf32> -> vector<200x128xf32>
    %c0_9 = arith.constant 0 : index
    %c0_10 = arith.constant 0 : index
    %11 = vector.load %arg5[%c0_9, %c0_10] : memref<200x1xf32, #tpu.memory_space<vmem>>, vector<200x1xf32>
    %12 = vector.broadcast %11 : vector<200x1xf32> to vector<200x128xf32>
    %13 = arith.addf %10, %12 : vector<200x128xf32>
    %cst_11 = arith.constant 0.000000e+00 : f32
    %14 = vector.broadcast %cst_11 : f32 to vector<200x128xf32>
    %15 = arith.maximumf %13, %14 : vector<200x128xf32>
    %c0_12 = arith.constant 0 : index
    %c0_13 = arith.constant 0 : index
    %16 = vector.load %arg6[%c0_12, %c0_13] : memref<64x200xbf16, #tpu.memory_space<vmem>>, vector<64x200xbf16>
    %17 = arith.truncf %15 : vector<200x128xf32> to vector<200x128xbf16>
    %cst_14 = arith.constant dense<0.000000e+00> : vector<64x128xf32>
    %18 = tpu.matmul %16, %17, %cst_14 {dimension_numbers = #tpu.dot_dimension_numbers<[1], [0], [0], [1], [0, 0, 1, 1], [], []>} : vector<64x200xbf16>, vector<200x128xbf16>, vector<64x128xf32> -> vector<64x128xf32>
    %c0_15 = arith.constant 0 : index
    %c0_16 = arith.constant 0 : index
    %19 = vector.load %arg7[%c0_15, %c0_16] : memref<64x1xf32, #tpu.memory_space<vmem>>, vector<64x1xf32>
    %20 = vector.broadcast %19 : vector<64x1xf32> to vector<64x128xf32>
    %21 = arith.addf %18, %20 : vector<64x128xf32>
    %22 = math.tanh %21 : vector<64x128xf32>
    %c0_17 = arith.constant 0 : index
    %c0_18 = arith.constant 0 : index
    %23 = vector.load %arg8[%c0_17, %c0_18] : memref<64x64xbf16, #tpu.memory_space<vmem>>, vector<64x64xbf16>
    %24 = arith.truncf %22 : vector<64x128xf32> to vector<64x128xbf16>
    %cst_19 = arith.constant dense<0.000000e+00> : vector<64x128xf32>
    %25 = tpu.matmul %23, %24, %cst_19 {dimension_numbers = #tpu.dot_dimension_numbers<[1], [0], [0], [1], [0, 0, 1, 1], [], []>} : vector<64x64xbf16>, vector<64x128xbf16>, vector<64x128xf32> -> vector<64x128xf32>
    %c0_20 = arith.constant 0 : index
    %c0_21 = arith.constant 0 : index
    %26 = vector.load %arg9[%c0_20, %c0_21] : memref<64x1xf32, #tpu.memory_space<vmem>>, vector<64x1xf32>
    %27 = vector.broadcast %26 : vector<64x1xf32> to vector<64x128xf32>
    %28 = arith.addf %25, %27 : vector<64x128xf32>
    %29 = math.tanh %28 : vector<64x128xf32>
    %c0_22 = arith.constant 0 : index
    %c0_23 = arith.constant 0 : index
    %30 = vector.load %arg10[%c0_22, %c0_23] : memref<32x64xbf16, #tpu.memory_space<vmem>>, vector<32x64xbf16>
    %31 = arith.truncf %29 : vector<64x128xf32> to vector<64x128xbf16>
    %cst_24 = arith.constant dense<0.000000e+00> : vector<32x128xf32>
    %32 = tpu.matmul %30, %31, %cst_24 {dimension_numbers = #tpu.dot_dimension_numbers<[1], [0], [0], [1], [0, 0, 1, 1], [], []>} : vector<32x64xbf16>, vector<64x128xbf16>, vector<32x128xf32> -> vector<32x128xf32>
    %c0_25 = arith.constant 0 : index
    %c0_26 = arith.constant 0 : index
    %33 = vector.load %arg11[%c0_25, %c0_26] : memref<32x1xf32, #tpu.memory_space<vmem>>, vector<32x1xf32>
    %34 = vector.broadcast %33 : vector<32x1xf32> to vector<32x128xf32>
    %35 = arith.addf %32, %34 : vector<32x128xf32>
    %36 = math.tanh %35 : vector<32x128xf32>
    %c0_27 = arith.constant 0 : index
    %c0_28 = arith.constant 0 : index
    %37 = vector.load %arg12[%c0_27, %c0_28] : memref<1x32xbf16, #tpu.memory_space<vmem>>, vector<1x32xbf16>
    %38 = arith.truncf %36 : vector<32x128xf32> to vector<32x128xbf16>
    %cst_29 = arith.constant dense<0.000000e+00> : vector<1x128xf32>
    %39 = tpu.matmul %37, %38, %cst_29 {dimension_numbers = #tpu.dot_dimension_numbers<[1], [0], [0], [1], [0, 0, 1, 1], [], []>} : vector<1x32xbf16>, vector<32x128xbf16>, vector<1x128xf32> -> vector<1x128xf32>
    %c0_30 = arith.constant 0 : index
    %c0_31 = arith.constant 0 : index
    %40 = vector.load %arg13[%c0_30, %c0_31] : memref<1x1xf32, #tpu.memory_space<vmem>>, vector<1x1xf32>
    %41 = vector.broadcast %40 : vector<1x1xf32> to vector<1x128xf32>
    %42 = arith.addf %39, %41 : vector<1x128xf32>
    %43 = math.tanh %42 : vector<1x128xf32>
    %c0_32 = arith.constant 0 : index
    %c0_33 = arith.constant 0 : index
    %44 = vector.load %arg14[%c0_32, %c0_33] : memref<1x128xf32, #tpu.memory_space<vmem>>, vector<1x128xf32>
    tpu.vector_store %arg14[%c0_32, %c0_33], %43 {strides = array<i32>} : memref<1x128xf32, #tpu.memory_space<vmem>>, vector<1x128xf32>,
    return
  }
  func.func @transform_0(%arg0: i32) -> (i32, i32) {
    %c0_i32 = arith.constant 0 : i32
    %c0_i32_0 = arith.constant 0 : i32
    return %c0_i32, %arg0 : i32, i32
  }
  func.func @transform_1(%arg0: i32) -> (i32, i32) {
    %c0_i32 = arith.constant 0 : i32
    %c0_i32_0 = arith.constant 0 : i32
    %c0_i32_1 = arith.constant 0 : i32
    return %c0_i32, %c0_i32_0 : i32, i32
  }
  func.func @transform_2(%arg0: i32) -> (i32, i32) {
    %c0_i32 = arith.constant 0 : i32
    %c0_i32_0 = arith.constant 0 : i32
    %c0_i32_1 = arith.constant 0 : i32
    return %c0_i32, %c0_i32_0 : i32, i32
  }
  func.func @transform_3(%arg0: i32) -> (i32, i32) {
    %c0_i32 = arith.constant 0 : i32
    %c0_i32_0 = arith.constant 0 : i32
    %c0_i32_1 = arith.constant 0 : i32
    return %c0_i32, %c0_i32_0 : i32, i32
  }
  func.func @transform_4(%arg0: i32) -> (i32, i32) {
    %c0_i32 = arith.constant 0 : i32
    %c0_i32_0 = arith.constant 0 : i32
    %c0_i32_1 = arith.constant 0 : i32
    return %c0_i32, %c0_i32_0 : i32, i32
  }
  func.func @transform_5(%arg0: i32) -> (i32, i32) {
    %c0_i32 = arith.constant 0 : i32
    %c0_i32_0 = arith.constant 0 : i32
    %c0_i32_1 = arith.constant 0 : i32
    return %c0_i32, %c0_i32_0 : i32, i32
  }
  func.func @transform_6(%arg0: i32) -> (i32, i32) {
    %c0_i32 = arith.constant 0 : i32
    %c0_i32_0 = arith.constant 0 : i32
    %c0_i32_1 = arith.constant 0 : i32
    return %c0_i32, %c0_i32_0 : i32, i32
  }
  func.func @transform_7(%arg0: i32) -> (i32, i32) {
    %c0_i32 = arith.constant 0 : i32
    %c0_i32_0 = arith.constant 0 : i32
    %c0_i32_1 = arith.constant 0 : i32
    return %c0_i32, %c0_i32_0 : i32, i32
  }
  func.func @transform_8(%arg0: i32) -> (i32, i32) {
    %c0_i32 = arith.constant 0 : i32
    %c0_i32_0 = arith.constant 0 : i32
    %c0_i32_1 = arith.constant 0 : i32
    return %c0_i32, %c0_i32_0 : i32, i32
  }
  func.func @transform_9(%arg0: i32) -> (i32, i32) {
    %c0_i32 = arith.constant 0 : i32
    %c0_i32_0 = arith.constant 0 : i32
    %c0_i32_1 = arith.constant 0 : i32
    return %c0_i32, %c0_i32_0 : i32, i32
  }
  func.func @transform_10(%arg0: i32) -> (i32, i32) {
    %c0_i32 = arith.constant 0 : i32
    %c0_i32_0 = arith.constant 0 : i32
    %c0_i32_1 = arith.constant 0 : i32
    return %c0_i32, %c0_i32_0 : i32, i32
  }
  func.func @transform_11(%arg0: i32) -> (i32, i32) {
    %c0_i32 = arith.constant 0 : i32
    %c0_i32_0 = arith.constant 0 : i32
    %c0_i32_1 = arith.constant 0 : i32
    return %c0_i32, %c0_i32_0 : i32, i32
  }
  func.func @transform_12(%arg0: i32) -> (i32, i32) {
    %c0_i32 = arith.constant 0 : i32
    %c0_i32_0 = arith.constant 0 : i32
    %c0_i32_1 = arith.constant 0 : i32
    return %c0_i32, %c0_i32_0 : i32, i32
  }
  func.func @transform_13(%arg0: i32) -> (i32, i32) {
    %c0_i32 = arith.constant 0 : i32
    %c0_i32_0 = arith.constant 0 : i32
    return %c0_i32, %arg0 : i32, i32
  }
}

</mosaic_0001>

<llo_original>
// kernel: image_controller_net_forward.1
$region0: #{image_controller_net_forward.1}
  #allocation0 [shape = 'u32[]', space=smem, size = 0x4, offset = 0x4, fixed_abs, tag = 'smem constant byte address 0x4 - core index']
  #allocation1 [shape = 'u32[144,128]{1,0:T(1,128)}', space=vmem, size = 0x12000, scoped, tag = 'internal scratch']
  #allocation2 [shape = 'f32[1,1]{1,0:T(1,128)S(1)}', space=vmem, size = 0x200, scoped, tag = 'scoped memory for image_controller_net_forward.1']
  %s0 = inlined_call_operand.vmem [shape: bf16[1280,128], index: 0, kind: input, shape index: {}]
  %s1 = inlined_call_operand.hbm [shape: bf16[1440,1280], index: 1, kind: input, shape index: {}]
  %s2 = inlined_call_operand.vmem [shape: f32[1440,1], index: 2, kind: input, shape index: {}]
  %s3 = inlined_call_operand.hbm [shape: bf16[200,1440], index: 3, kind: input, shape index: {}]
  %s4 = inlined_call_operand.vmem [shape: f32[200,1], index: 4, kind: input, shape index: {}]
  %s5 = inlined_call_operand.hbm [shape: bf16[64,200], index: 5, kind: input, shape index: {}]
  %s6 = inlined_call_operand.vmem [shape: f32[64,1], index: 6, kind: input, shape index: {}]
  %s7 = inlined_call_operand.hbm [shape: bf16[64,64], index: 7, kind: input, shape index: {}]
  %s8 = inlined_call_operand.vmem [shape: f32[64,1], index: 8, kind: input, shape index: {}]
  %s9 = inlined_call_operand.hbm [shape: bf16[32,64], index: 9, kind: input, shape index: {}]
  %s10 = inlined_call_operand.vmem [shape: f32[32,1], index: 10, kind: input, shape index: {}]
  %s11 = inlined_call_operand.hbm [shape: bf16[1,32], index: 11, kind: input, shape index: {}]
  %s12 = inlined_call_operand.<no memory space> [shape: f32[1,1], index: 12, kind: input, shape index: {}]
  %s13 = inlined_call_operand.vmem [shape: f32[1,128], index: 13, kind: output, shape index: {}]
  %s14 = sld [smem:[#allocation0]]
  $region86: #{image_controller_net_forward.1} parent=0
    _
  %s16 = ssub.s32 1, %s14
  %s17 = scalar_select 0, %s16, %s14
  %v18 = vstv %s12
  %19 = vst [vmem:[#allocation2] sm:$0x1] %v18
  $region1: #{image_controller_net_forward.1} parent=0
    #allocation3 [shape = 'u8[3686400]{0}', space=vmem, size = 0x384000, scoped, tag = 'input window, operand 1, single buffered']
    #allocation4 [shape = 's32[1]{0}', space=sflag, size = 0x4, scoped, tag = 'scoped memory for image_controller_net_forward.1']
    #allocation5 [shape = 'u8[614400]{0}', space=vmem, size = 0x96000, scoped, tag = 'input window, operand 3, single buffered']
    #allocation6 [shape = 's32[1]{0}', space=sflag, size = 0x4, scoped, tag = 'scoped memory for image_controller_net_forward.1']
    #allocation7 [shape = 'u8[32768]{0}', space=vmem, size = 0x8000, scoped, tag = 'input window, operand 5, single buffered']
    #allocation8 [shape = 'u8[16384]{0}', space=vmem, size = 0x4000, scoped, tag = 'input window, operand 7, single buffered']
    #allocation9 [shape = 's32[1]{0}', space=sflag, size = 0x4, scoped, tag = 'scoped memory for image_controller_net_forward.1']
    #allocation10 [shape = 'u8[8192]{0}', space=vmem, size = 0x2000, scoped, tag = 'input window, operand 9, single buffered']
    #allocation11 [shape = 'u8[512]{0}', space=vmem, size = 0x400, scoped, tag = 'input window, operand 11, single buffered']
    #allocation12 [shape = 's32[1]{0}', space=sflag, size = 0x4, scoped, tag = 'scoped memory for image_controller_net_forward.1']
    %20 = vsyncpa [#allocation4], 0
    %21 = vsyncpa [#allocation6], 0
    %22 = vsyncpa [#allocation9], 0
    %23 = vsyncpa [#allocation12], 0
    // Predicated region
    $region2: #{image_controller_net_forward.1} parent=1 // pred_check
      _
    $region3: #{image_controller_net_forward.1} parent=1 // pred_check_branch
      %25 = sbr.rel (0) target = $region5
    $region4: #{image_controller_net_forward.1} parent=1 // pred_region
      _
    $region5: #{image_controller_net_forward.1} parent=1 // pred_fallthru
      _
    // Predicated region
    $region6: #{image_controller_net_forward.1} parent=1 // pred_check
      _
    $region7: #{image_controller_net_forward.1} parent=1 // pred_check_branch
      %27 = sbr.rel (0) target = $region9
    $region8: #{image_controller_net_forward.1} parent=1 // pred_region
      %s29 = ssub.s32 115200, 115200
      %30 = vsyncadd [#allocation4], %s29
      %s31 = sshll.u32 [#allocation3], 4
      %s32 = int_to_ptr.vmem [resolvable:$true] %s31
      %37 = dma.hbm_to_vmem [thread:$0]  %s1, 115200, %s32, [#allocation4], 640, 640, 40
    $region9: #{image_controller_net_forward.1} parent=1 // pred_fallthru
      _
    // Predicated region
    $region10: #{image_controller_net_forward.1} parent=1 // pred_check
      _
    $region11: #{image_controller_net_forward.1} parent=1 // pred_check_branch
      %39 = sbr.rel (0) target = $region13
    $region12: #{image_controller_net_forward.1} parent=1 // pred_region
      _
    $region13: #{image_controller_net_forward.1} parent=1 // pred_fallthru
      _
    // Predicated region
    $region14: #{image_controller_net_forward.1} parent=1 // pred_check
      _
    $region15: #{image_controller_net_forward.1} parent=1 // pred_check_branch
      %41 = sbr.rel (0) target = $region17
    $region16: #{image_controller_net_forward.1} parent=1 // pred_region
      %s43 = ssub.s32 19200, 19200
      %44 = vsyncadd [#allocation6], %s43
      %s45 = sshll.u32 [#allocation5], 4
      %s46 = int_to_ptr.vmem [resolvable:$true] %s45
      %51 = dma.hbm_to_vmem [thread:$0]  %s3, 19200, %s46, [#allocation6], 768, 768, 48
    $region17: #{image_controller_net_forward.1} parent=1 // pred_fallthru
      _
    // Predicated region
    $region18: #{image_controller_net_forward.1} parent=1 // pred_check
      _
    $region19: #{image_controller_net_forward.1} parent=1 // pred_check_branch
      %53 = sbr.rel (0) target = $region21
    $region20: #{image_controller_net_forward.1} parent=1 // pred_region
      _
    $region21: #{image_controller_net_forward.1} parent=1 // pred_fallthru
      _
    // Predicated region
    $region22: #{image_controller_net_forward.1} parent=1 // pred_check
      _
    $region23: #{image_controller_net_forward.1} parent=1 // pred_check_branch
      %55 = sbr.rel (0) target = $region25
    $region24: #{image_controller_net_forward.1} parent=1 // pred_region
      %s57 = ssub.s32 1024, 1024
      %58 = vsyncadd [#allocation6], %s57
      %s59 = sshll.u32 [#allocation7], 4
      %s60 = int_to_ptr.vmem [resolvable:$true] %s59
      %65 = dma.hbm_to_vmem [thread:$0]  %s5, 1024, %s60, [#allocation6], 128, 128, 8
    $region25: #{image_controller_net_forward.1} parent=1 // pred_fallthru
      _
    // Predicated region
    $region26: #{image_controller_net_forward.1} parent=1 // pred_check
      _
    $region27: #{image_controller_net_forward.1} parent=1 // pred_check_branch
      %67 = sbr.rel (0) target = $region29
    $region28: #{image_controller_net_forward.1} parent=1 // pred_region
      _
    $region29: #{image_controller_net_forward.1} parent=1 // pred_fallthru
      _
    // Predicated region
    $region30: #{image_controller_net_forward.1} parent=1 // pred_check
      _
    $region31: #{image_controller_net_forward.1} parent=1 // pred_check_branch
      %69 = sbr.rel (0) target = $region33
    $region32: #{image_controller_net_forward.1} parent=1 // pred_region
      %s71 = ssub.s32 512, 512
      %72 = vsyncadd [#allocation9], %s71
      %s73 = sshll.u32 [#allocation8], 4
      %s74 = int_to_ptr.vmem [resolvable:$true] %s73
      %79 = dma.hbm_to_vmem [thread:$0]  %s7, 512, %s74, [#allocation9], 64, 64, 4
    $region33: #{image_controller_net_forward.1} parent=1 // pred_fallthru
      _
    // Predicated region
    $region34: #{image_controller_net_forward.1} parent=1 // pred_check
      _
    $region35: #{image_controller_net_forward.1} parent=1 // pred_check_branch
      %81 = sbr.rel (0) target = $region37
    $region36: #{image_controller_net_forward.1} parent=1 // pred_region
      _
    $region37: #{image_controller_net_forward.1} parent=1 // pred_fallthru
      _
    // Predicated region
    $region38: #{image_controller_net_forward.1} parent=1 // pred_check
      _
    $region39: #{image_controller_net_forward.1} parent=1 // pred_check_branch
      %83 = sbr.rel (0) target = $region41
    $region40: #{image_controller_net_forward.1} parent=1 // pred_region
      %s85 = ssub.s32 256, 256
      %86 = vsyncadd [#allocation9], %s85
      %s87 = sshll.u32 [#allocation10], 4
      %s88 = int_to_ptr.vmem [resolvable:$true] %s87
      %93 = dma.hbm_to_vmem [thread:$0]  %s9, 256, %s88, [#allocation9], 64, 64, 4
    $region41: #{image_controller_net_forward.1} parent=1 // pred_fallthru
      _
    // Predicated region
    $region42: #{image_controller_net_forward.1} parent=1 // pred_check
      _
    $region43: #{image_controller_net_forward.1} parent=1 // pred_check_branch
      %95 = sbr.rel (0) target = $region45
    $region44: #{image_controller_net_forward.1} parent=1 // pred_region
      _
    $region45: #{image_controller_net_forward.1} parent=1 // pred_fallthru
      _
    // Predicated region
    $region46: #{image_controller_net_forward.1} parent=1 // pred_check
      _
    $region47: #{image_controller_net_forward.1} parent=1 // pred_check_branch
      %97 = sbr.rel (0) target = $region49
    $region48: #{image_controller_net_forward.1} parent=1 // pred_region
      %s99 = ssub.s32 16, 16
      %100 = vsyncadd [#allocation12], %s99
      %s102 = sshll.u32 [#allocation11], 4
      %s103 = int_to_ptr.vmem [resolvable:$true] %s102
      %105 = dma.hbm_to_vmem [thread:$0]  %s11, 16, %s103, [#allocation12]
    $region49: #{image_controller_net_forward.1} parent=1 // pred_fallthru
      _
    // Predicated region
    $region50: #{image_controller_net_forward.1} parent=1 // pred_check
      _
    $region51: #{image_controller_net_forward.1} parent=1 // pred_check_branch
      %107 = sbr.rel (0) target = $region53
    $region52: #{image_controller_net_forward.1} parent=1 // pred_region
      _
    $region53: #{image_controller_net_forward.1} parent=1 // pred_fallthru
      _
    // Predicated region
    $region54: #{image_controller_net_forward.1} parent=1 // pred_check
      _
    $region55: #{image_controller_net_forward.1} parent=1 // pred_check_branch
      %109 = sbr.rel (0) target = $region57
    $region56: #{image_controller_net_forward.1} parent=1 // pred_region
      %110 = dma.done [#allocation4], 115200
    $region57: #{image_controller_net_forward.1} parent=1 // pred_fallthru
      _
    // Predicated region
    $region58: #{image_controller_net_forward.1} parent=1 // pred_check
      _
    $region59: #{image_controller_net_forward.1} parent=1 // pred_check_branch
      %112 = sbr.rel (0) target = $region61
    $region60: #{image_controller_net_forward.1} parent=1 // pred_region
      %113 = dma.done [#allocation6], 19200
    $region61: #{image_controller_net_forward.1} parent=1 // pred_fallthru
      _
    // Predicated region
    $region62: #{image_controller_net_forward.1} parent=1 // pred_check
      _
    $region63: #{image_controller_net_forward.1} parent=1 // pred_check_branch
      %115 = sbr.rel (0) target = $region65
    $region64: #{image_controller_net_forward.1} parent=1 // pred_region
      %116 = dma.done [#allocation6], 1024
    $region65: #{image_controller_net_forward.1} parent=1 // pred_fallthru
      _
    // Predicated region
    $region66: #{image_controller_net_forward.1} parent=1 // pred_check
      _
    $region67: #{image_controller_net_forward.1} parent=1 // pred_check_branch
      %118 = sbr.rel (0) target = $region69
    $region68: #{image_controller_net_forward.1} parent=1 // pred_region
      %119 = dma.done [#allocation9], 512
    $region69: #{image_controller_net_forward.1} parent=1 // pred_fallthru
      _
    // Predicated region
    $region70: #{image_controller_net_forward.1} parent=1 // pred_check
      _
    $region71: #{image_controller_net_forward.1} parent=1 // pred_check_branch
      %121 = sbr.rel (0) target = $region73
    $region72: #{image_controller_net_forward.1} parent=1 // pred_region
      %122 = dma.done [#allocation9], 256
    $region73: #{image_controller_net_forward.1} parent=1 // pred_fallthru
      _
    // Predicated region
    $region74: #{image_controller_net_forward.1} parent=1 // pred_check
      _
    $region75: #{image_controller_net_forward.1} parent=1 // pred_check_branch
      %124 = sbr.rel (0) target = $region77
    $region76: #{image_controller_net_forward.1} parent=1 // pred_region
      %125 = dma.done [#allocation12], 16
    $region77: #{image_controller_net_forward.1} parent=1 // pred_fallthru
      _
    %v127 = vld [vmem:[%s0] sm:$0xf]
    %v128 = vld [vmem:[%s0 + $0x4] sm:$0xf]
    %v129 = vld [vmem:[%s0 + $0x8] sm:$0xf]
    %v130 = vld [vmem:[%s0 + $0xc] sm:$0xf]
    %v131 = vld [vmem:[%s0 + $0x10] sm:$0xf]
    %v132 = vld [vmem:[%s0 + $0x14] sm:$0xf]
    %v133 = vld [vmem:[%s0 + $0x18] sm:$0xf]
    %v134 = vld [vmem:[%s0 + $0x1c] sm:$0xf]
    %v135 = vld [vmem:[%s0 + $0x20] sm:$0xf]
    %v136 = vld [vmem:[%s0 + $0x24] sm:$0xf]
    %v137 = vld [vmem:[%s0 + $0x28] sm:$0xf]
    %v138 = vld [vmem:[%s0 + $0x2c] sm:$0xf]
    %v139 = vld [vmem:[%s0 + $0x30] sm:$0xf]
    %v140 = vld [vmem:[%s0 + $0x34] sm:$0xf]
    %v141 = vld [vmem:[%s0 + $0x38] sm:$0xf]
    %v142 = vld [vmem:[%s0 + $0x3c] sm:$0xf]
    %v143 = vld [vmem:[%s0 + $0x40] sm:$0xf]
    %v144 = vld [vmem:[%s0 + $0x44] sm:$0xf]
    %v145 = vld [vmem:[%s0 + $0x48] sm:$0xf]
    %v146 = vld [vmem:[%s0 + $0x4c] sm:$0xf]
    %v147 = vld [vmem:[%s0 + $0x50] sm:$0xf]
    %v148 = vld [vmem:[%s0 + $0x54] sm:$0xf]
    %v149 = vld [vmem:[%s0 + $0x58] sm:$0xf]
    %v150 = vld [vmem:[%s0 + $0x5c] sm:$0xf]
    %v151 = vld [vmem:[%s0 + $0x60] sm:$0xf]
    %v152 = vld [vmem:[%s0 + $0x64] sm:$0xf]
    %v153 = vld [vmem:[%s0 + $0x68] sm:$0xf]
    %v154 = vld [vmem:[%s0 + $0x6c] sm:$0xf]
    %v155 = vld [vmem:[%s0 + $0x70] sm:$0xf]
    %v156 = vld [vmem:[%s0 + $0x74] sm:$0xf]
    %v157 = vld [vmem:[%s0 + $0x78] sm:$0xf]
    %v158 = vld [vmem:[%s0 + $0x7c] sm:$0xf]
    %v159 = vld [vmem:[%s0 + $0x80] sm:$0xf]
    %v160 = vld [vmem:[%s0 + $0x84] sm:$0xf]
    %v161 = vld [vmem:[%s0 + $0x88] sm:$0xf]
    %v162 = vld [vmem:[%s0 + $0x8c] sm:$0xf]
    %v163 = vld [vmem:[%s0 + $0x90] sm:$0xf]
    %v164 = vld [vmem:[%s0 + $0x94] sm:$0xf]
    %v165 = vld [vmem:[%s0 + $0x98] sm:$0xf]
    %v166 = vld [vmem:[%s0 + $0x9c] sm:$0xf]
    %v167 = vld [vmem:[%s0 + $0xa0] sm:$0xf]
    %v168 = vld [vmem:[%s0 + $0xa4] sm:$0xf]
    %v169 = vld [vmem:[%s0 + $0xa8] sm:$0xf]
    %v170 = vld [vmem:[%s0 + $0xac] sm:$0xf]
    %v171 = vld [vmem:[%s0 + $0xb0] sm:$0xf]
    %v172 = vld [vmem:[%s0 + $0xb4] sm:$0xf]
    %v173 = vld [vmem:[%s0 + $0xb8] sm:$0xf]
    %v174 = vld [vmem:[%s0 + $0xbc] sm:$0xf]
    %v175 = vld [vmem:[%s0 + $0xc0] sm:$0xf]
    %v176 = vld [vmem:[%s0 + $0xc4] sm:$0xf]
    %v177 = vld [vmem:[%s0 + $0xc8] sm:$0xf]
    %v178 = vld [vmem:[%s0 + $0xcc] sm:$0xf]
    %v179 = vld [vmem:[%s0 + $0xd0] sm:$0xf]
    %v180 = vld [vmem:[%s0 + $0xd4] sm:$0xf]
    %v181 = vld [vmem:[%s0 + $0xd8] sm:$0xf]
    %v182 = vld [vmem:[%s0 + $0xdc] sm:$0xf]
    %v183 = vld [vmem:[%s0 + $0xe0] sm:$0xf]
    %v184 = vld [vmem:[%s0 + $0xe4] sm:$0xf]
    %v185 = vld [vmem:[%s0 + $0xe8] sm:$0xf]
    %v186 = vld [vmem:[%s0 + $0xec] sm:$0xf]
    %v187 = vld [vmem:[%s0 + $0xf0] sm:$0xf]
    %v188 = vld [vmem:[%s0 + $0xf4] sm:$0xf]
    %v189 = vld [vmem:[%s0 + $0xf8] sm:$0xf]
    %v190 = vld [vmem:[%s0 + $0xfc] sm:$0xf]
    %v191 = vld [vmem:[%s0 + $0x100] sm:$0xf]
    %v192 = vld [vmem:[%s0 + $0x104] sm:$0xf]
    %v193 = vld [vmem:[%s0 + $0x108] sm:$0xf]
    %v194 = vld [vmem:[%s0 + $0x10c] sm:$0xf]
    %v195 = vld [vmem:[%s0 + $0x110] sm:$0xf]
    %v196 = vld [vmem:[%s0 + $0x114] sm:$0xf]
    %v197 = vld [vmem:[%s0 + $0x118] sm:$0xf]
    %v198 = vld [vmem:[%s0 + $0x11c] sm:$0xf]
    %v199 = vld [vmem:[%s0 + $0x120] sm:$0xf]
    %v200 = vld [vmem:[%s0 + $0x124] sm:$0xf]
    %v201 = vld [vmem:[%s0 + $0x128] sm:$0xf]
    %v202 = vld [vmem:[%s0 + $0x12c] sm:$0xf]
    %v203 = vld [vmem:[%s0 + $0x130] sm:$0xf]
    %v204 = vld [vmem:[%s0 + $0x134] sm:$0xf]
    %v205 = vld [vmem:[%s0 + $0x138] sm:$0xf]
    %v206 = vld [vmem:[%s0 + $0x13c] sm:$0xf]
    %v207 = vld [vmem:[%s0 + $0x140] sm:$0xf]
    %v208 = vld [vmem:[%s0 + $0x144] sm:$0xf]
    %v209 = vld [vmem:[%s0 + $0x148] sm:$0xf]
    %v210 = vld [vmem:[%s0 + $0x14c] sm:$0xf]
    %v211 = vld [vmem:[%s0 + $0x150] sm:$0xf]
    %v212 = vld [vmem:[%s0 + $0x154] sm:$0xf]
    %v213 = vld [vmem:[%s0 + $0x158] sm:$0xf]
    %v214 = vld [vmem:[%s0 + $0x15c] sm:$0xf]
    %v215 = vld [vmem:[%s0 + $0x160] sm:$0xf]
    %v216 = vld [vmem:[%s0 + $0x164] sm:$0xf]
    %v217 = vld [vmem:[%s0 + $0x168] sm:$0xf]
    %v218 = vld [vmem:[%s0 + $0x16c] sm:$0xf]
    %v219 = vld [vmem:[%s0 + $0x170] sm:$0xf]
    %v220 = vld [vmem:[%s0 + $0x174] sm:$0xf]
    %v221 = vld [vmem:[%s0 + $0x178] sm:$0xf]
    %v222 = vld [vmem:[%s0 + $0x17c] sm:$0xf]
    %v223 = vld [vmem:[%s0 + $0x180] sm:$0xf]
    %v224 = vld [vmem:[%s0 + $0x184] sm:$0xf]
    %v225 = vld [vmem:[%s0 + $0x188] sm:$0xf]
    %v226 = vld [vmem:[%s0 + $0x18c] sm:$0xf]
    %v227 = vld [vmem:[%s0 + $0x190] sm:$0xf]
    %v228 = vld [vmem:[%s0 + $0x194] sm:$0xf]
    %v229 = vld [vmem:[%s0 + $0x198] sm:$0xf]
    %v230 = vld [vmem:[%s0 + $0x19c] sm:$0xf]
    %v231 = vld [vmem:[%s0 + $0x1a0] sm:$0xf]
    %v232 = vld [vmem:[%s0 + $0x1a4] sm:$0xf]
    %v233 = vld [vmem:[%s0 + $0x1a8] sm:$0xf]
    %v234 = vld [vmem:[%s0 + $0x1ac] sm:$0xf]
    %v235 = vld [vmem:[%s0 + $0x1b0] sm:$0xf]
    %v236 = vld [vmem:[%s0 + $0x1b4] sm:$0xf]
    %v237 = vld [vmem:[%s0 + $0x1b8] sm:$0xf]
    %v238 = vld [vmem:[%s0 + $0x1bc] sm:$0xf]
    %v239 = vld [vmem:[%s0 + $0x1c0] sm:$0xf]
    %v240 = vld [vmem:[%s0 + $0x1c4] sm:$0xf]
    %v241 = vld [vmem:[%s0 + $0x1c8] sm:$0xf]
    %v242 = vld [vmem:[%s0 + $0x1cc] sm:$0xf]
    %v243 = vld [vmem:[%s0 + $0x1d0] sm:$0xf]
    %v244 = vld [vmem:[%s0 + $0x1d4] sm:$0xf]
    %v245 = vld [vmem:[%s0 + $0x1d8] sm:$0xf]
    %v246 = vld [vmem:[%s0 + $0x1dc] sm:$0xf]
    %v247 = vld [vmem:[%s0 + $0x1e0] sm:$0xf]
    %v248 = vld [vmem:[%s0 + $0x1e4] sm:$0xf]
    %v249 = vld [vmem:[%s0 + $0x1e8] sm:$0xf]
    %v250 = vld [vmem:[%s0 + $0x1ec] sm:$0xf]
    %v251 = vld [vmem:[%s0 + $0x1f0] sm:$0xf]
    %v252 = vld [vmem:[%s0 + $0x1f4] sm:$0xf]
    %v253 = vld [vmem:[%s0 + $0x1f8] sm:$0xf]
    %v254 = vld [vmem:[%s0 + $0x1fc] sm:$0xf]
    %v255 = vld [vmem:[%s0 + $0x200] sm:$0xf]
    %v256 = vld [vmem:[%s0 + $0x204] sm:$0xf]
    %v257 = vld [vmem:[%s0 + $0x208] sm:$0xf]
    %v258 = vld [vmem:[%s0 + $0x20c] sm:$0xf]
    %v259 = vld [vmem:[%s0 + $0x210] sm:$0xf]
    %v260 = vld [vmem:[%s0 + $0x214] sm:$0xf]
    %v261 = vld [vmem:[%s0 + $0x218] sm:$0xf]
    %v262 = vld [vmem:[%s0 + $0x21c] sm:$0xf]
    %v263 = vld [vmem:[%s0 + $0x220] sm:$0xf]
    %v264 = vld [vmem:[%s0 + $0x224] sm:$0xf]
    %v265 = vld [vmem:[%s0 + $0x228] sm:$0xf]
    %v266 = vld [vmem:[%s0 + $0x22c] sm:$0xf]
    %v267 = vld [vmem:[%s0 + $0x230] sm:$0xf]
    %v268 = vld [vmem:[%s0 + $0x234] sm:$0xf]
    %v269 = vld [vmem:[%s0 + $0x238] sm:$0xf]
    %v270 = vld [vmem:[%s0 + $0x23c] sm:$0xf]
    %v271 = vld [vmem:[%s0 + $0x240] sm:$0xf]
    %v272 = vld [vmem:[%s0 + $0x244] sm:$0xf]
    %v273 = vld [vmem:[%s0 + $0x248] sm:$0xf]
    %v274 = vld [vmem:[%s0 + $0x24c] sm:$0xf]
    %v275 = vld [vmem:[%s0 + $0x250] sm:$0xf]
    %v276 = vld [vmem:[%s0 + $0x254] sm:$0xf]
    %v277 = vld [vmem:[%s0 + $0x258] sm:$0xf]
    %v278 = vld [vmem:[%s0 + $0x25c] sm:$0xf]
    %v279 = vld [vmem:[%s0 + $0x260] sm:$0xf]
    %v280 = vld [vmem:[%s0 + $0x264] sm:$0xf]
    %v281 = vld [vmem:[%s0 + $0x268] sm:$0xf]
    %v282 = vld [vmem:[%s0 + $0x26c] sm:$0xf]
    %v283 = vld [vmem:[%s0 + $0x270] sm:$0xf]
    %v284 = vld [vmem:[%s0 + $0x274] sm:$0xf]
    %v285 = vld [vmem:[%s0 + $0x278] sm:$0xf]
    %v286 = vld [vmem:[%s0 + $0x27c] sm:$0xf]
    %v287 = vld [vmem:[#allocation3] sm:$0xff]
    %v288 = vld [vmem:[#allocation3 + $0x8] sm:$0xff]
    %v289 = vld [vmem:[#allocation3 + $0x10] sm:$0xff]
    %v290 = vld [vmem:[#allocation3 + $0x18] sm:$0xff]
    %v291 = vld [vmem:[#allocation3 + $0x20] sm:$0xff]
    %v292 = vld [vmem:[#allocation3 + $0x28] sm:$0xff]
    %v293 = vld [vmem:[#allocation3 + $0x30] sm:$0xff]
    %v294 = vld [vmem:[#allocation3 + $0x38] sm:$0xff]
    %v295 = vld [vmem:[#allocation3 + $0x40] sm:$0xff]
    %v296 = vld [vmem:[#allocation3 + $0x48] sm:$0xff]
    %v297 = vld [vmem:[#allocation3 + $0x50] sm:$0xff]
    %v298 = vld [vmem:[#allocation3 + $0x58] sm:$0xff]
    %v299 = vld [vmem:[#allocation3 + $0x60] sm:$0xff]
    %v300 = vld [vmem:[#allocation3 + $0x68] sm:$0xff]
    %v301 = vld [vmem:[#allocation3 + $0x70] sm:$0xff]
    %v302 = vld [vmem:[#allocation3 + $0x78] sm:$0xff]
    %v303 = vld [vmem:[#allocation3 + $0x80] sm:$0xff]
    %v304 = vld [vmem:[#allocation3 + $0x88] sm:$0xff]
    %v305 = vld [vmem:[#allocation3 + $0x90] sm:$0xff]
    %v306 = vld [vmem:[#allocation3 + $0x98] sm:$0xff]
    %v307 = vld [vmem:[#allocation3 + $0xa0] sm:$0xff]
    %v308 = vld [vmem:[#allocation3 + $0xa8] sm:$0xff]
    %v309 = vld [vmem:[#allocation3 + $0xb0] sm:$0xff]
    %v310 = vld [vmem:[#allocation3 + $0xb8] sm:$0xff]
    %v311 = vld [vmem:[#allocation3 + $0xc0] sm:$0xff]
    %v312 = vld [vmem:[#allocation3 + $0xc8] sm:$0xff]
    %v313 = vld [vmem:[#allocation3 + $0xd0] sm:$0xff]
    %v314 = vld [vmem:[#allocation3 + $0xd8] sm:$0xff]
    %v315 = vld [vmem:[#allocation3 + $0xe0] sm:$0xff]
    %v316 = vld [vmem:[#allocation3 + $0xe8] sm:$0xff]
    %v317 = vld [vmem:[#allocation3 + $0xf0] sm:$0xff]
    %v318 = vld [vmem:[#allocation3 + $0xf8] sm:$0xff]
    %v319 = vld [vmem:[#allocation3 + $0x100] sm:$0xff]
    %v320 = vld [vmem:[#allocation3 + $0x108] sm:$0xff]
    %v321 = vld [vmem:[#allocation3 + $0x110] sm:$0xff]
    %v322 = vld [vmem:[#allocation3 + $0x118] sm:$0xff]
    %v323 = vld [vmem:[#allocation3 + $0x120] sm:$0xff]
    %v324 = vld [vmem:[#allocation3 + $0x128] sm:$0xff]
    %v325 = vld [vmem:[#allocation3 + $0x130] sm:$0xff]
    %v326 = vld [vmem:[#allocation3 + $0x138] sm:$0xff]
    %v327 = vld [vmem:[#allocation3 + $0x140] sm:$0xff]
    %v328 = vld [vmem:[#allocation3 + $0x148] sm:$0xff]
    %v329 = vld [vmem:[#allocation3 + $0x150] sm:$0xff]
    %v330 = vld [vmem:[#allocation3 + $0x158] sm:$0xff]
    %v331 = vld [vmem:[#allocation3 + $0x160] sm:$0xff]
    %v332 = vld [vmem:[#allocation3 + $0x168] sm:$0xff]
    %v333 = vld [vmem:[#allocation3 + $0x170] sm:$0xff]
    %v334 = vld [vmem:[#allocation3 + $0x178] sm:$0xff]
    %v335 = vld [vmem:[#allocation3 + $0x180] sm:$0xff]
    %v336 = vld [vmem:[#allocation3 + $0x188] sm:$0xff]
    %v337 = vld [vmem:[#allocation3 + $0x190] sm:$0xff]
    %v338 = vld [vmem:[#allocation3 + $0x198] sm:$0xff]
    %v339 = vld [vmem:[#allocation3 + $0x1a0] sm:$0xff]
    %v340 = vld [vmem:[#allocation3 + $0x1a8] sm:$0xff]
    %v341 = vld [vmem:[#allocation3 + $0x1b0] sm:$0xff]
    %v342 = vld [vmem:[#allocation3 + $0x1b8] sm:$0xff]
    %v343 = vld [vmem:[#allocation3 + $0x1c0] sm:$0xff]
    %v344 = vld [vmem:[#allocation3 + $0x1c8] sm:$0xff]
    %v345 = vld [vmem:[#allocation3 + $0x1d0] sm:$0xff]
    %v346 = vld [vmem:[#allocation3 + $0x1d8] sm:$0xff]
    %v347 = vld [vmem:[#allocation3 + $0x1e0] sm:$0xff]
    %v348 = vld [vmem:[#allocation3 + $0x1e8] sm:$0xff]
    %v349 = vld [vmem:[#allocation3 + $0x1f0] sm:$0xff]
    %v350 = vld [vmem:[#allocation3 + $0x1f8] sm:$0xff]
    %v351 = vld [vmem:[#allocation3 + $0x200] sm:$0xff]
    %v352 = vld [vmem:[#allocation3 + $0x208] sm:$0xff]
    %v353 = vld [vmem:[#allocation3 + $0x210] sm:$0xff]
    %v354 = vld [vmem:[#allocation3 + $0x218] sm:$0xff]
    %v355 = vld [vmem:[#allocation3 + $0x220] sm:$0xff]
    %v356 = vld [vmem:[#allocation3 + $0x228] sm:$0xff]
    %v357 = vld [vmem:[#allocation3 + $0x230] sm:$0xff]
    %v358 = vld [vmem:[#allocation3 + $0x238] sm:$0xff]
    %v359 = vld [vmem:[#allocation3 + $0x240] sm:$0xff]
    %v360 = vld [vmem:[#allocation3 + $0x248] sm:$0xff]
    %v361 = vld [vmem:[#allocation3 + $0x250] sm:$0xff]
    %v362 = vld [vmem:[#allocation3 + $0x258] sm:$0xff]
    %v363 = vld [vmem:[#allocation3 + $0x260] sm:$0xff]
    %v364 = vld [vmem:[#allocation3 + $0x268] sm:$0xff]
    %v365 = vld [vmem:[#allocation3 + $0x270] sm:$0xff]
    %v366 = vld [vmem:[#allocation3 + $0x278] sm:$0xff]
    %v367 = vld [vmem:[#allocation3 + $0x280] sm:$0xff]
    %v368 = vld [vmem:[#allocation3 + $0x288] sm:$0xff]
    %v369 = vld [vmem:[#allocation3 + $0x290] sm:$0xff]
    %v370 = vld [vmem:[#allocation3 + $0x298] sm:$0xff]
    %v371 = vld [vmem:[#allocation3 + $0x2a0] sm:$0xff]
    %v372 = vld [vmem:[#allocation3 + $0x2a8] sm:$0xff]
    %v373 = vld [vmem:[#allocation3 + $0x2b0] sm:$0xff]
    %v374 = vld [vmem:[#allocation3 + $0x2b8] sm:$0xff]
    %v375 = vld [vmem:[#allocation3 + $0x2c0] sm:$0xff]
    %v376 = vld [vmem:[#allocation3 + $0x2c8] sm:$0xff]
    %v377 = vld [vmem:[#allocation3 + $0x2d0] sm:$0xff]
    %v378 = vld [vmem:[#allocation3 + $0x2d8] sm:$0xff]
    %v379 = vld [vmem:[#allocation3 + $0x2e0] sm:$0xff]
    %v380 = vld [vmem:[#allocation3 + $0x2e8] sm:$0xff]
    %v381 = vld [vmem:[#allocation3 + $0x2f0] sm:$0xff]
    %v382 = vld [vmem:[#allocation3 + $0x2f8] sm:$0xff]
    %v383 = vld [vmem:[#allocation3 + $0x300] sm:$0xff]
    %v384 = vld [vmem:[#allocation3 + $0x308] sm:$0xff]
    %v385 = vld [vmem:[#allocation3 + $0x310] sm:$0xff]
    %v386 = vld [vmem:[#allocation3 + $0x318] sm:$0xff]
    %v387 = vld [vmem:[#allocation3 + $0x320] sm:$0xff]
    %v388 = vld [vmem:[#allocation3 + $0x328] sm:$0xff]
    %v389 = vld [vmem:[#allocation3 + $0x330] sm:$0xff]
    %v390 = vld [vmem:[#allocation3 + $0x338] sm:$0xff]
    %v391 = vld [vmem:[#allocation3 + $0x340] sm:$0xff]
    %v392 = vld [vmem:[#allocation3 + $0x348] sm:$0xff]
    %v393 = vld [vmem:[#allocation3 + $0x350] sm:$0xff]
    %v394 = vld [vmem:[#allocation3 + $0x358] sm:$0xff]
    %v395 = vld [vmem:[#allocation3 + $0x360] sm:$0xff]
    %v396 = vld [vmem:[#allocation3 + $0x368] sm:$0xff]
    %v397 = vld [vmem:[#allocation3 + $0x370] sm:$0xff]
    %v398 = vld [vmem:[#allocation3 + $0x378] sm:$0xff]
    %v399 = vld [vmem:[#allocation3 + $0x380] sm:$0xff]
    %v400 = vld [vmem:[#allocation3 + $0x388] sm:$0xff]
    %v401 = vld [vmem:[#allocation3 + $0x390] sm:$0xff]
    %v402 = vld [vmem:[#allocation3 + $0x398] sm:$0xff]
    %v403 = vld [vmem:[#allocation3 + $0x3a0] sm:$0xff]
    %v404 = vld [vmem:[#allocation3 + $0x3a8] sm:$0xff]
    %v405 = vld [vmem:[#allocation3 + $0x3b0] sm:$0xff]
    %v406 = vld [vmem:[#allocation3 + $0x3b8] sm:$0xff]
    %v407 = vld [vmem:[#allocation3 + $0x3c0] sm:$0xff]
    %v408 = vld [vmem:[#allocation3 + $0x3c8] sm:$0xff]
    %v409 = vld [vmem:[#allocation3 + $0x3d0] sm:$0xff]
    %v410 = vld [vmem:[#allocation3 + $0x3d8] sm:$0xff]
    %v411 = vld [vmem:[#allocation3 + $0x3e0] sm:$0xff]
    %v412 = vld [vmem:[#allocation3 + $0x3e8] sm:$0xff]
    %v413 = vld [vmem:[#allocation3 + $0x3f0] sm:$0xff]
    %v414 = vld [vmem:[#allocation3 + $0x3f8] sm:$0xff]
    %v415 = vld [vmem:[#allocation3 + $0x400] sm:$0xff]
    %v416 = vld [vmem:[#allocation3 + $0x408] sm:$0xff]
    %v417 = vld [vmem:[#allocation3 + $0x410] sm:$0xff]
    %v418 = vld [vmem:[#allocation3 + $0x418] sm:$0xff]
    %v419 = vld [vmem:[#allocation3 + $0x420] sm:$0xff]
    %v420 = vld [vmem:[#allocation3 + $0x428] sm:$0xff]
    %v421 = vld [vmem:[#allocation3 + $0x430] sm:$0xff]
    %v422 = vld [vmem:[#allocation3 + $0x438] sm:$0xff]
    %v423 = vld [vmem:[#allocation3 + $0x440] sm:$0xff]
    %v424 = vld [vmem:[#allocation3 + $0x448] sm:$0xff]
    %v425 = vld [vmem:[#allocation3 + $0x450] sm:$0xff]
    %v426 = vld [vmem:[#allocation3 + $0x458] sm:$0xff]
    %v427 = vld [vmem:[#allocation3 + $0x460] sm:$0xff]
    %v428 = vld [vmem:[#allocation3 + $0x468] sm:$0xff]
    %v429 = vld [vmem:[#allocation3 + $0x470] sm:$0xff]
    %v430 = vld [vmem:[#allocation3 + $0x478] sm:$0xff]
    %v431 = vld [vmem:[#allocation3 + $0x480] sm:$0xff]
    %v432 = vld [vmem:[#allocation3 + $0x488] sm:$0xff]
    %v433 = vld [vmem:[#allocation3 + $0x490] sm:$0xff]
    %v434 = vld [vmem:[#allocation3 + $0x498] sm:$0xff]
    %v435 = vld [vmem:[#allocation3 + $0x4a0] sm:$0xff]
    %v436 = vld [vmem:[#allocation3 + $0x4a8] sm:$0xff]
    %v437 = vld [vmem:[#allocation3 + $0x4b0] sm:$0xff]
    %v438 = vld [vmem:[#allocation3 + $0x4b8] sm:$0xff]
    %v439 = vld [vmem:[#allocation3 + $0x4c0] sm:$0xff]
    %v440 = vld [vmem:[#allocation3 + $0x4c8] sm:$0xff]
    %v441 = vld [vmem:[#allocation3 + $0x4d0] sm:$0xff]
    %v442 = vld [vmem:[#allocation3 + $0x4d8] sm:$0xff]
    %v443 = vld [vmem:[#allocation3 + $0x4e0] sm:$0xff]
    %v444 = vld [vmem:[#allocation3 + $0x4e8] sm:$0xff]
    %v445 = vld [vmem:[#allocation3 + $0x4f0] sm:$0xff]
    %v446 = vld [vmem:[#allocation3 + $0x4f8] sm:$0xff]
    %v447 = vld [vmem:[#allocation3 + $0x500] sm:$0xff]
    %v448 = vld [vmem:[#allocation3 + $0x508] sm:$0xff]
    %v449 = vld [vmem:[#allocation3 + $0x510] sm:$0xff]
    %v450 = vld [vmem:[#allocation3 + $0x518] sm:$0xff]
    %v451 = vld [vmem:[#allocation3 + $0x520] sm:$0xff]
    %v452 = vld [vmem:[#allocation3 + $0x528] sm:$0xff]
    %v453 = vld [vmem:[#allocation3 + $0x530] sm:$0xff]
    %v454 = vld [vmem:[#allocation3 + $0x538] sm:$0xff]
    %v455 = vld [vmem:[#allocation3 + $0x540] sm:$0xff]
    %v456 = vld [vmem:[#allocation3 + $0x548] sm:$0xff]
    %v457 = vld [vmem:[#allocation3 + $0x550] sm:$0xff]
    %v458 = vld [vmem:[#allocation3 + $0x558] sm:$0xff]
    %v459 = vld [vmem:[#allocation3 + $0x560] sm:$0xff]
    %v460 = vld [vmem:[#allocation3 + $0x568] sm:$0xff]
    %v461 = vld [vmem:[#allocation3 + $0x570] sm:$0xff]
    %v462 = vld [vmem:[#allocation3 + $0x578] sm:$0xff]
    %v463 = vld [vmem:[#allocation3 + $0x580] sm:$0xff]
    %v464 = vld [vmem:[#allocation3 + $0x588] sm:$0xff]
    %v465 = vld [vmem:[#allocation3 + $0x590] sm:$0xff]
    %v466 = vld [vmem:[#allocation3 + $0x598] sm:$0xff]
    %v467 = vld [vmem:[#allocation3 + $0x5a0] sm:$0xff]
    %v468 = vld [vmem:[#allocation3 + $0x5a8] sm:$0xff]
    %v469 = vld [vmem:[#allocation3 + $0x5b0] sm:$0xff]
    %v470 = vld [vmem:[#allocation3 + $0x5b8] sm:$0xff]
    %v471 = vld [vmem:[#allocation3 + $0x5c0] sm:$0xff]
    %v472 = vld [vmem:[#allocation3 + $0x5c8] sm:$0xff]
    %v473 = vld [vmem:[#allocation3 + $0x5d0] sm:$0xff]
    %v474 = vld [vmem:[#allocation3 + $0x5d8] sm:$0xff]
    %v475 = vld [vmem:[#allocation3 + $0x5e0] sm:$0xff]
    %v476 = vld [vmem:[#allocation3 + $0x5e8] sm:$0xff]
    %v477 = vld [vmem:[#allocation3 + $0x5f0] sm:$0xff]
    %v478 = vld [vmem:[#allocation3 + $0x5f8] sm:$0xff]
    %v479 = vld [vmem:[#allocation3 + $0x600] sm:$0xff]
    %v480 = vld [vmem:[#allocation3 + $0x608] sm:$0xff]
    %v481 = vld [vmem:[#allocation3 + $0x610] sm:$0xff]
    %v482 = vld [vmem:[#allocation3 + $0x618] sm:$0xff]
    %v483 = vld [vmem:[#allocation3 + $0x620] sm:$0xff]
    %v484 = vld [vmem:[#allocation3 + $0x628] sm:$0xff]
    %v485 = vld [vmem:[#allocation3 + $0x630] sm:$0xff]
    %v486 = vld [vmem:[#allocation3 + $0x638] sm:$0xff]
    %v487 = vld [vmem:[#allocation3 + $0x640] sm:$0xff]
    %v488 = vld [vmem:[#allocation3 + $0x648] sm:$0xff]
    %v489 = vld [vmem:[#allocation3 + $0x650] sm:$0xff]
    %v490 = vld [vmem:[#allocation3 + $0x658] sm:$0xff]
    %v491 = vld [vmem:[#allocation3 + $0x660] sm:$0xff]
    %v492 = vld [vmem:[#allocation3 + $0x668] sm:$0xff]
    %v493 = vld [vmem:[#allocation3 + $0x670] sm:$0xff]
    %v494 = vld [vmem:[#allocation3 + $0x678] sm:$0xff]
    %v495 = vld [vmem:[#allocation3 + $0x680] sm:$0xff]
    %v496 = vld [vmem:[#allocation3 + $0x688] sm:$0xff]
    %v497 = vld [vmem:[#allocation3 + $0x690] sm:$0xff]
    %v498 = vld [vmem:[#allocation3 + $0x698] sm:$0xff]
    %v499 = vld [vmem:[#allocation3 + $0x6a0] sm:$0xff]
    %v500 = vld [vmem:[#allocation3 + $0x6a8] sm:$0xff]
    %v501 = vld [vmem:[#allocation3 + $0x6b0] sm:$0xff]
    %v502 = vld [vmem:[#allocation3 + $0x6b8] sm:$0xff]
    %v503 = vld [vmem:[#allocation3 + $0x6c0] sm:$0xff]
    %v504 = vld [vmem:[#allocation3 + $0x6c8] sm:$0xff]
    %v505 = vld [vmem:[#allocation3 + $0x6d0] sm:$0xff]
    %v506 = vld [vmem:[#allocation3 + $0x6d8] sm:$0xff]
    %v507 = vld [vmem:[#allocation3 + $0x6e0] sm:$0xff]
    %v508 = vld [vmem:[#allocation3 + $0x6e8] sm:$0xff]
    %v509 = vld [vmem:[#allocation3 + $0x6f0] sm:$0xff]
    %v510 = vld [vmem:[#allocation3 + $0x6f8] sm:$0xff]
    %v511 = vld [vmem:[#allocation3 + $0x700] sm:$0xff]
    %v512 = vld [vmem:[#allocation3 + $0x708] sm:$0xff]
    %v513 = vld [vmem:[#allocation3 + $0x710] sm:$0xff]
    %v514 = vld [vmem:[#allocation3 + $0x718] sm:$0xff]
    %v515 = vld [vmem:[#allocation3 + $0x720] sm:$0xff]
    %v516 = vld [vmem:[#allocation3 + $0x728] sm:$0xff]
    %v517 = vld [vmem:[#allocation3 + $0x730] sm:$0xff]
    %v518 = vld [vmem:[#allocation3 + $0x738] sm:$0xff]
    %v519 = vld [vmem:[#allocation3 + $0x740] sm:$0xff]
    %v520 = vld [vmem:[#allocation3 + $0x748] sm:$0xff]
    %v521 = vld [vmem:[#allocation3 + $0x750] sm:$0xff]
    %v522 = vld [vmem:[#allocation3 + $0x758] sm:$0xff]
    %v523 = vld [vmem:[#allocation3 + $0x760] sm:$0xff]
    %v524 = vld [vmem:[#allocation3 + $0x768] sm:$0xff]
    %v525 = vld [vmem:[#allocation3 + $0x770] sm:$0xff]
    %v526 = vld [vmem:[#allocation3 + $0x778] sm:$0xff]
    %v527 = vld [vmem:[#allocation3 + $0x780] sm:$0xff]
    %v528 = vld [vmem:[#allocation3 + $0x788] sm:$0xff]
    %v529 = vld [vmem:[#allocation3 + $0x790] sm:$0xff]
    %v530 = vld [vmem:[#allocation3 + $0x798] sm:$0xff]
    %v531 = vld [vmem:[#allocation3 + $0x7a0] sm:$0xff]
    %v532 = vld [vmem:[#allocation3 + $0x7a8] sm:$0xff]
    %v533 = vld [vmem:[#allocation3 + $0x7b0] sm:$0xff]
    %v534 = vld [vmem:[#allocation3 + $0x7b8] sm:$0xff]
    %v535 = vld [vmem:[#allocation3 + $0x7c0] sm:$0xff]
    %v536 = vld [vmem:[#allocation3 + $0x7c8] sm:$0xff]
    %v537 = vld [vmem:[#allocation3 + $0x7d0] sm:$0xff]
    %v538 = vld [vmem:[#allocation3 + $0x7d8] sm:$0xff]
    %v539 = vld [vmem:[#allocation3 + $0x7e0] sm:$0xff]
    %v540 = vld [vmem:[#allocation3 + $0x7e8] sm:$0xff]
    %v541 = vld [vmem:[#allocation3 + $0x7f0] sm:$0xff]
    %v542 = vld [vmem:[#allocation3 + $0x7f8] sm:$0xff]
    %v543 = vld [vmem:[#allocation3 + $0x800] sm:$0xff]
    %v544 = vld [vmem:[#allocation3 + $0x808] sm:$0xff]
    %v545 = vld [vmem:[#allocation3 + $0x810] sm:$0xff]
    %v546 = vld [vmem:[#allocation3 + $0x818] sm:$0xff]
    %v547 = vld [vmem:[#allocation3 + $0x820] sm:$0xff]
    %v548 = vld [vmem:[#allocation3 + $0x828] sm:$0xff]
    %v549 = vld [vmem:[#allocation3 + $0x830] sm:$0xff]
    %v550 = vld [vmem:[#allocation3 + $0x838] sm:$0xff]
    %v551 = vld [vmem:[#allocation3 + $0x840] sm:$0xff]
    %v552 = vld [vmem:[#allocation3 + $0x848] sm:$0xff]
    %v553 = vld [vmem:[#allocation3 + $0x850] sm:$0xff]
    %v554 = vld [vmem:[#allocation3 + $0x858] sm:$0xff]
    %v555 = vld [vmem:[#allocation3 + $0x860] sm:$0xff]
    %v556 = vld [vmem:[#allocation3 + $0x868] sm:$0xff]
    %v557 = vld [vmem:[#allocation3 + $0x870] sm:$0xff]
    %v558 = vld [vmem:[#allocation3 + $0x878] sm:$0xff]
    %v559 = vld [vmem:[#allocation3 + $0x880] sm:$0xff]
    %v560 = vld [vmem:[#allocation3 + $0x888] sm:$0xff]
    %v561 = vld [vmem:[#allocation3 + $0x890] sm:$0xff]
    %v562 = vld [vmem:[#allocation3 + $0x898] sm:$0xff]
    %v563 = vld [vmem:[#allocation3 + $0x8a0] sm:$0xff]
    %v564 = vld [vmem:[#allocation3 + $0x8a8] sm:$0xff]
    %v565 = vld [vmem:[#allocation3 + $0x8b0] sm:$0xff]
    %v566 = vld [vmem:[#allocation3 + $0x8b8] sm:$0xff]
    %v567 = vld [vmem:[#allocation3 + $0x8c0] sm:$0xff]
    %v568 = vld [vmem:[#allocation3 + $0x8c8] sm:$0xff]
    %v569 = vld [vmem:[#allocation3 + $0x8d0] sm:$0xff]
    %v570 = vld [vmem:[#allocation3 + $0x8d8] sm:$0xff]
    %v571 = vld [vmem:[#allocation3 + $0x8e0] sm:$0xff]
    %v572 = vld [vmem:[#allocation3 + $0x8e8] sm:$0xff]
    %v573 = vld [vmem:[#allocation3 + $0x8f0] sm:$0xff]
    %v574 = vld [vmem:[#allocation3 + $0x8f8] sm:$0xff]
    %v575 = vld [vmem:[#allocation3 + $0x900] sm:$0xff]
    %v576 = vld [vmem:[#allocation3 + $0x908] sm:$0xff]
    %v577 = vld [vmem:[#allocation3 + $0x910] sm:$0xff]
    %v578 = vld [vmem:[#allocation3 + $0x918] sm:$0xff]
    %v579 = vld [vmem:[#allocation3 + $0x920] sm:$0xff]
    %v580 = vld [vmem:[#allocation3 + $0x928] sm:$0xff]
    %v581 = vld [vmem:[#allocation3 + $0x930] sm:$0xff]
    %v582 = vld [vmem:[#allocation3 + $0x938] sm:$0xff]
    %v583 = vld [vmem:[#allocation3 + $0x940] sm:$0xff]
    %v584 = vld [vmem:[#allocation3 + $0x948] sm:$0xff]
    %v585 = vld [vmem:[#allocation3 + $0x950] sm:$0xff]
    %v586 = vld [vmem:[#allocation3 + $0x958] sm:$0xff]
    %v587 = vld [vmem:[#allocation3 + $0x960] sm:$0xff]
    %v588 = vld [vmem:[#allocation3 + $0x968] sm:$0xff]
    %v589 = vld [vmem:[#allocation3 + $0x970] sm:$0xff]
    %v590 = vld [vmem:[#allocation3 + $0x978] sm:$0xff]
    %v591 = vld [vmem:[#allocation3 + $0x980] sm:$0xff]
    %v592 = vld [vmem:[#allocation3 + $0x988] sm:$0xff]
    %v593 = vld [vmem:[#allocation3 + $0x990] sm:$0xff]
    %v594 = vld [vmem:[#allocation3 + $0x998] sm:$0xff]
    %v595 = vld [vmem:[#allocation3 + $0x9a0] sm:$0xff]
    %v596 = vld [vmem:[#allocation3 + $0x9a8] sm:$0xff]
    %v597 = vld [vmem:[#allocation3 + $0x9b0] sm:$0xff]
    %v598 = vld [vmem:[#allocation3 + $0x9b8] sm:$0xff]
    %v599 = vld [vmem:[#allocation3 + $0x9c0] sm:$0xff]
    %v600 = vld [vmem:[#allocation3 + $0x9c8] sm:$0xff]
    %v601 = vld [vmem:[#allocation3 + $0x9d0] sm:$0xff]
    %v602 = vld [vmem:[#allocation3 + $0x9d8] sm:$0xff]
    %v603 = vld [vmem:[#allocation3 + $0x9e0] sm:$0xff]
    %v604 = vld [vmem:[#allocation3 + $0x9e8] sm:$0xff]
    %v605 = vld [vmem:[#allocation3 + $0x9f0] sm:$0xff]
    %v606 = vld [vmem:[#allocation3 + $0x9f8] sm:$0xff]
    %v607 = vld [vmem:[#allocation3 + $0xa00] sm:$0xff]
    %v608 = vld [vmem:[#allocation3 + $0xa08] sm:$0xff]
    %v609 = vld [vmem:[#allocation3 + $0xa10] sm:$0xff]
    %v610 = vld [vmem:[#allocation3 + $0xa18] sm:$0xff]
    %v611 = vld [vmem:[#allocation3 + $0xa20] sm:$0xff]
    %v612 = vld [vmem:[#allocation3 + $0xa28] sm:$0xff]
    %v613 = vld [vmem:[#allocation3 + $0xa30] sm:$0xff]
    %v614 = vld [vmem:[#allocation3 + $0xa38] sm:$0xff]
    %v615 = vld [vmem:[#allocation3 + $0xa40] sm:$0xff]
    %v616 = vld [vmem:[#allocation3 + $0xa48] sm:$0xff]
    %v617 = vld [vmem:[#allocation3 + $0xa50] sm:$0xff]
    %v618 = vld [vmem:[#allocation3 + $0xa58] sm:$0xff]
    %v619 = vld [vmem:[#allocation3 + $0xa60] sm:$0xff]
    %v620 = vld [vmem:[#allocation3 + $0xa68] sm:$0xff]
    %v621 = vld [vmem:[#allocation3 + $0xa70] sm:$0xff]
    %v622 = vld [vmem:[#allocation3 + $0xa78] sm:$0xff]
    %v623 = vld [vmem:[#allocation3 + $0xa80] sm:$0xff]
    %v624 = vld [vmem:[#allocation3 + $0xa88] sm:$0xff]
    %v625 = vld [vmem:[#allocation3 + $0xa90] sm:$0xff]
    %v626 = vld [vmem:[#allocation3 + $0xa98] sm:$0xff]
    %v627 = vld [vmem:[#allocation3 + $0xaa0] sm:$0xff]
    %v628 = vld [vmem:[#allocation3 + $0xaa8] sm:$0xff]
    %v629 = vld [vmem:[#allocation3 + $0xab0] sm:$0xff]
    %v630 = vld [vmem:[#allocation3 + $0xab8] sm:$0xff]
    %v631 = vld [vmem:[#allocation3 + $0xac0] sm:$0xff]
    %v632 = vld [vmem:[#allocation3 + $0xac8] sm:$0xff]
    %v633 = vld [vmem:[#allocation3 + $0xad0] sm:$0xff]
    %v634 = vld [vmem:[#allocation3 + $0xad8] sm:$0xff]
    %v635 = vld [vmem:[#allocation3 + $0xae0] sm:$0xff]
    %v636 = vld [vmem:[#allocation3 + $0xae8] sm:$0xff]
    %v637 = vld [vmem:[#allocation3 + $0xaf0] sm:$0xff]
    %v638 = vld [vmem:[#allocation3 + $0xaf8] sm:$0xff]
    %v639 = vld [vmem:[#allocation3 + $0xb00] sm:$0xff]
    %v640 = vld [vmem:[#allocation3 + $0xb08] sm:$0xff]
    %v641 = vld [vmem:[#allocation3 + $0xb10] sm:$0xff]
    %v642 = vld [vmem:[#allocation3 + $0xb18] sm:$0xff]
    %v643 = vld [vmem:[#allocation3 + $0xb20] sm:$0xff]
    %v644 = vld [vmem:[#allocation3 + $0xb28] sm:$0xff]
    %v645 = vld [vmem:[#allocation3 + $0xb30] sm:$0xff]
    %v646 = vld [vmem:[#allocation3 + $0xb38] sm:$0xff]
    %v647 = vld [vmem:[#allocation3 + $0xb40] sm:$0xff]
    %v648 = vld [vmem:[#allocation3 + $0xb48] sm:$0xff]
    %v649 = vld [vmem:[#allocation3 + $0xb50] sm:$0xff]
    %v650 = vld [vmem:[#allocation3 + $0xb58] sm:$0xff]
    %v651 = vld [vmem:[#allocation3 + $0xb60] sm:$0xff]
    %v652 = vld [vmem:[#allocation3 + $0xb68] sm:$0xff]
    %v653 = vld [vmem:[#allocation3 + $0xb70] sm:$0xff]
    %v654 = vld [vmem:[#allocation3 + $0xb78] sm:$0xff]
    %v655 = vld [vmem:[#allocation3 + $0xb80] sm:$0xff]
    %v656 = vld [vmem:[#allocation3 + $0xb88] sm:$0xff]
    %v657 = vld [vmem:[#allocation3 + $0xb90] sm:$0xff]
    %v658 = vld [vmem:[#allocation3 + $0xb98] sm:$0xff]
    %v659 = vld [vmem:[#allocation3 + $0xba0] sm:$0xff]
    %v660 = vld [vmem:[#allocation3 + $0xba8] sm:$0xff]
    %v661 = vld [vmem:[#allocation3 + $0xbb0] sm:$0xff]
    %v662 = vld [vmem:[#allocation3 + $0xbb8] sm:$0xff]
    %v663 = vld [vmem:[#allocation3 + $0xbc0] sm:$0xff]
    %v664 = vld [vmem:[#allocation3 + $0xbc8] sm:$0xff]
    %v665 = vld [vmem:[#allocation3 + $0xbd0] sm:$0xff]
    %v666 = vld [vmem:[#allocation3 + $0xbd8] sm:$0xff]
    %v667 = vld [vmem:[#allocation3 + $0xbe0] sm:$0xff]
    %v668 = vld [vmem:[#allocation3 + $0xbe8] sm:$0xff]
    %v669 = vld [vmem:[#allocation3 + $0xbf0] sm:$0xff]
    %v670 = vld [vmem:[#allocation3 + $0xbf8] sm:$0xff]
    %v671 = vld [vmem:[#allocation3 + $0xc00] sm:$0xff]
    %v672 = vld [vmem:[#allocation3 + $0xc08] sm:$0xff]
    %v673 = vld [vmem:[#allocation3 + $0xc10] sm:$0xff]
    %v674 = vld [vmem:[#allocation3 + $0xc18] sm:$0xff]
    %v675 = vld [vmem:[#allocation3 + $0xc20] sm:$0xff]
    %v676 = vld [vmem:[#allocation3 + $0xc28] sm:$0xff]
    %v677 = vld [vmem:[#allocation3 + $0xc30] sm:$0xff]
    %v678 = vld [vmem:[#allocation3 + $0xc38] sm:$0xff]
    %v679 = vld [vmem:[#allocation3 + $0xc40] sm:$0xff]
    %v680 = vld [vmem:[#allocation3 + $0xc48] sm:$0xff]
    %v681 = vld [vmem:[#allocation3 + $0xc50] sm:$0xff]
    %v682 = vld [vmem:[#allocation3 + $0xc58] sm:$0xff]
    %v683 = vld [vmem:[#allocation3 + $0xc60] sm:$0xff]
    %v684 = vld [vmem:[#allocation3 + $0xc68] sm:$0xff]
    %v685 = vld [vmem:[#allocation3 + $0xc70] sm:$0xff]
    %v686 = vld [vmem:[#allocation3 + $0xc78] sm:$0xff]
    %v687 = vld [vmem:[#allocation3 + $0xc80] sm:$0xff]
    %v688 = vld [vmem:[#allocation3 + $0xc88] sm:$0xff]
    %v689 = vld [vmem:[#allocation3 + $0xc90] sm:$0xff]
    %v690 = vld [vmem:[#allocation3 + $0xc98] sm:$0xff]
    %v691 = vld [vmem:[#allocation3 + $0xca0] sm:$0xff]
    %v692 = vld [vmem:[#allocation3 + $0xca8] sm:$0xff]
    %v693 = vld [vmem:[#allocation3 + $0xcb0] sm:$0xff]
    %v694 = vld [vmem:[#allocation3 + $0xcb8] sm:$0xff]
    %v695 = vld [vmem:[#allocation3 + $0xcc0] sm:$0xff]
    %v696 = vld [vmem:[#allocation3 + $0xcc8] sm:$0xff]
    %v697 = vld [vmem:[#allocation3 + $0xcd0] sm:$0xff]
    %v698 = vld [vmem:[#allocation3 + $0xcd8] sm:$0xff]
    %v699 = vld [vmem:[#allocation3 + $0xce0] sm:$0xff]
    %v700 = vld [vmem:[#allocation3 + $0xce8] sm:$0xff]
    %v701 = vld [vmem:[#allocation3 + $0xcf0] sm:$0xff]
    %v702 = vld [vmem:[#allocation3 + $0xcf8] sm:$0xff]
    %v703 = vld [vmem:[#allocation3 + $0xd00] sm:$0xff]
    %v704 = vld [vmem:[#allocation3 + $0xd08] sm:$0xff]
    %v705 = vld [vmem:[#allocation3 + $0xd10] sm:$0xff]
    %v706 = vld [vmem:[#allocation3 + $0xd18] sm:$0xff]
    %v707 = vld [vmem:[#allocation3 + $0xd20] sm:$0xff]
    %v708 = vld [vmem:[#allocation3 + $0xd28] sm:$0xff]
    %v709 = vld [vmem:[#allocation3 + $0xd30] sm:$0xff]
    %v710 = vld [vmem:[#allocation3 + $0xd38] sm:$0xff]
    %v711 = vld [vmem:[#allocation3 + $0xd40] sm:$0xff]
    %v712 = vld [vmem:[#allocation3 + $0xd48] sm:$0xff]
    %v713 = vld [vmem:[#allocation3 + $0xd50] sm:$0xff]
    %v714 = vld [vmem:[#allocation3 + $0xd58] sm:$0xff]
    %v715 = vld [vmem:[#allocation3 + $0xd60] sm:$0xff]
    %v716 = vld [vmem:[#allocation3 + $0xd68] sm:$0xff]
    %v717 = vld [vmem:[#allocation3 + $0xd70] sm:$0xff]
    %v718 = vld [vmem:[#allocation3 + $0xd78] sm:$0xff]
    %v719 = vld [vmem:[#allocation3 + $0xd80] sm:$0xff]
    %v720 = vld [vmem:[#allocation3 + $0xd88] sm:$0xff]
    %v721 = vld [vmem:[#allocation3 + $0xd90] sm:$0xff]
    %v722 = vld [vmem:[#allocation3 + $0xd98] sm:$0xff]
    %v723 = vld [vmem:[#allocation3 + $0xda0] sm:$0xff]
    %v724 = vld [vmem:[#allocation3 + $0xda8] sm:$0xff]
    %v725 = vld [vmem:[#allocation3 + $0xdb0] sm:$0xff]
    %v726 = vld [vmem:[#allocation3 + $0xdb8] sm:$0xff]
    %v727 = vld [vmem:[#allocation3 + $0xdc0] sm:$0xff]
    %v728 = vld [vmem:[#allocation3 + $0xdc8] sm:$0xff]
    %v729 = vld [vmem:[#allocation3 + $0xdd0] sm:$0xff]
    %v730 = vld [vmem:[#allocation3 + $0xdd8] sm:$0xff]
    %v731 = vld [vmem:[#allocation3 + $0xde0] sm:$0xff]
    %v732 = vld [vmem:[#allocation3 + $0xde8] sm:$0xff]
    %v733 = vld [vmem:[#allocation3 + $0xdf0] sm:$0xff]
    %v734 = vld [vmem:[#allocation3 + $0xdf8] sm:$0xff]
    %v735 = vld [vmem:[#allocation3 + $0xe00] sm:$0xff]
    %v736 = vld [vmem:[#allocation3 + $0xe08] sm:$0xff]
    %v737 = vld [vmem:[#allocation3 + $0xe10] sm:$0xff]
    %v738 = vld [vmem:[#allocation3 + $0xe18] sm:$0xff]
    %v739 = vld [vmem:[#allocation3 + $0xe20] sm:$0xff]
    %v740 = vld [vmem:[#allocation3 + $0xe28] sm:$0xff]
    %v741 = vld [vmem:[#allocation3 + $0xe30] sm:$0xff]
    %v742 = vld [vmem:[#allocation3 + $0xe38] sm:$0xff]
    %v743 = vld [vmem:[#allocation3 + $0xe40] sm:$0xff]
    %v744 = vld [vmem:[#allocation3 + $0xe48] sm:$0xff]
    %v745 = vld [vmem:[#allocation3 + $0xe50] sm:$0xff]
    %v746 = vld [vmem:[#allocation3 + $0xe58] sm:$0xff]
    %v747 = vld [vmem:[#allocation3 + $0xe60] sm:$0xff]
    %v748 = vld [vmem:[#allocation3 + $0xe68] sm:$0xff]
    %v749 = vld [vmem:[#allocation3 + $0xe70] sm:$0xff]
    %v750 = vld [vmem:[#allocation3 + $0xe78] sm:$0xff]
    %v751 = vld [vmem:[#allocation3 + $0xe80] sm:$0xff]
    %v752 = vld [vmem:[#allocation3 + $0xe88] sm:$0xff]
    %v753 = vld [vmem:[#allocation3 + $0xe90] sm:$0xff]
    %v754 = vld [vmem:[#allocation3 + $0xe98] sm:$0xff]
    %v755 = vld [vmem:[#allocation3 + $0xea0] sm:$0xff]
    %v756 = vld [vmem:[#allocation3 + $0xea8] sm:$0xff]
    %v757 = vld [vmem:[#allocation3 + $0xeb0] sm:$0xff]
    %v758 = vld [vmem:[#allocation3 + $0xeb8] sm:$0xff]
    %v759 = vld [vmem:[#allocation3 + $0xec0] sm:$0xff]
    %v760 = vld [vmem:[#allocation3 + $0xec8] sm:$0xff]
    %v761 = vld [vmem:[#allocation3 + $0xed0] sm:$0xff]
    %v762 = vld [vmem:[#allocation3 + $0xed8] sm:$0xff]
    %v763 = vld [vmem:[#allocation3 + $0xee0] sm:$0xff]
    %v764 = vld [vmem:[#allocation3 + $0xee8] sm:$0xff]
    %v765 = vld [vmem:[#allocation3 + $0xef0] sm:$0xff]
    %v766 = vld [vmem:[#allocation3 + $0xef8] sm:$0xff]
    %v767 = vld [vmem:[#allocation3 + $0xf00] sm:$0xff]
    %v768 = vld [vmem:[#allocation3 + $0xf08] sm:$0xff]
    %v769 = vld [vmem:[#allocation3 + $0xf10] sm:$0xff]
    %v770 = vld [vmem:[#allocation3 + $0xf18] sm:$0xff]
    %v771 = vld [vmem:[#allocation3 + $0xf20] sm:$0xff]
    %v772 = vld [vmem:[#allocation3 + $0xf28] sm:$0xff]
    %v773 = vld [vmem:[#allocation3 + $0xf30] sm:$0xff]
    %v774 = vld [vmem:[#allocation3 + $0xf38] sm:$0xff]
    %v775 = vld [vmem:[#allocation3 + $0xf40] sm:$0xff]
    %v776 = vld [vmem:[#allocation3 + $0xf48] sm:$0xff]
    %v777 = vld [vmem:[#allocation3 + $0xf50] sm:$0xff]
    %v778 = vld [vmem:[#allocation3 + $0xf58] sm:$0xff]
    %v779 = vld [vmem:[#allocation3 + $0xf60] sm:$0xff]
    %v780 = vld [vmem:[#allocation3 + $0xf68] sm:$0xff]
    %v781 = vld [vmem:[#allocation3 + $0xf70] sm:$0xff]
    %v782 = vld [vmem:[#allocation3 + $0xf78] sm:$0xff]
    %v783 = vld [vmem:[#allocation3 + $0xf80] sm:$0xff]
    %v784 = vld [vmem:[#allocation3 + $0xf88] sm:$0xff]
    %v785 = vld [vmem:[#allocation3 + $0xf90] sm:$0xff]
    %v786 = vld [vmem:[#allocation3 + $0xf98] sm:$0xff]
    %v787 = vld [vmem:[#allocation3 + $0xfa0] sm:$0xff]
    %v788 = vld [vmem:[#allocation3 + $0xfa8] sm:$0xff]
    %v789 = vld [vmem:[#allocation3 + $0xfb0] sm:$0xff]
    %v790 = vld [vmem:[#allocation3 + $0xfb8] sm:$0xff]
    %v791 = vld [vmem:[#allocation3 + $0xfc0] sm:$0xff]
    %v792 = vld [vmem:[#allocation3 + $0xfc8] sm:$0xff]
    %v793 = vld [vmem:[#allocation3 + $0xfd0] sm:$0xff]
    %v794 = vld [vmem:[#allocation3 + $0xfd8] sm:$0xff]
    %v795 = vld [vmem:[#allocation3 + $0xfe0] sm:$0xff]
    %v796 = vld [vmem:[#allocation3 + $0xfe8] sm:$0xff]
    %v797 = vld [vmem:[#allocation3 + $0xff0] sm:$0xff]
    %v798 = vld [vmem:[#allocation3 + $0xff8] sm:$0xff]
    %v799 = vld [vmem:[#allocation3 + $0x1000] sm:$0xff]
    %v800 = vld [vmem:[#allocation3 + $0x1008] sm:$0xff]
    %v801 = vld [vmem:[#allocation3 + $0x1010] sm:$0xff]
    %v802 = vld [vmem:[#allocation3 + $0x1018] sm:$0xff]
    %v803 = vld [vmem:[#allocation3 + $0x1020] sm:$0xff]
    %v804 = vld [vmem:[#allocation3 + $0x1028] sm:$0xff]
    %v805 = vld [vmem:[#allocation3 + $0x1030] sm:$0xff]
    %v806 = vld [vmem:[#allocation3 + $0x1038] sm:$0xff]
    %v807 = vld [vmem:[#allocation3 + $0x1040] sm:$0xff]
    %v808 = vld [vmem:[#allocation3 + $0x1048] sm:$0xff]
    %v809 = vld [vmem:[#allocation3 + $0x1050] sm:$0xff]
    %v810 = vld [vmem:[#allocation3 + $0x1058] sm:$0xff]
    %v811 = vld [vmem:[#allocation3 + $0x1060] sm:$0xff]
    %v812 = vld [vmem:[#allocation3 + $0x1068] sm:$0xff]
    %v813 = vld [vmem:[#allocation3 + $0x1070] sm:$0xff]
    %v814 = vld [vmem:[#allocation3 + $0x1078] sm:$0xff]
    %v815 = vld [vmem:[#allocation3 + $0x1080] sm:$0xff]
    %v816 = vld [vmem:[#allocation3 + $0x1088] sm:$0xff]
    %v817 = vld [vmem:[#allocation3 + $0x1090] sm:$0xff]
    %v818 = vld [vmem:[#allocation3 + $0x1098] sm:$0xff]
    %v819 = vld [vmem:[#allocation3 + $0x10a0] sm:$0xff]
    %v820 = vld [vmem:[#allocation3 + $0x10a8] sm:$0xff]
    %v821 = vld [vmem:[#allocation3 + $0x10b0] sm:$0xff]
    %v822 = vld [vmem:[#allocation3 + $0x10b8] sm:$0xff]
    %v823 = vld [vmem:[#allocation3 + $0x10c0] sm:$0xff]
    %v824 = vld [vmem:[#allocation3 + $0x10c8] sm:$0xff]
    %v825 = vld [vmem:[#allocation3 + $0x10d0] sm:$0xff]
    %v826 = vld [vmem:[#allocation3 + $0x10d8] sm:$0xff]
    %v827 = vld [vmem:[#allocation3 + $0x10e0] sm:$0xff]
    %v828 = vld [vmem:[#allocation3 + $0x10e8] sm:$0xff]
    %v829 = vld [vmem:[#allocation3 + $0x10f0] sm:$0xff]
    %v830 = vld [vmem:[#allocation3 + $0x10f8] sm:$0xff]
    %v831 = vld [vmem:[#allocation3 + $0x1100] sm:$0xff]
    %v832 = vld [vmem:[#allocation3 + $0x1108] sm:$0xff]
    %v833 = vld [vmem:[#allocation3 + $0x1110] sm:$0xff]
    %v834 = vld [vmem:[#allocation3 + $0x1118] sm:$0xff]
    %v835 = vld [vmem:[#allocation3 + $0x1120] sm:$0xff]
    %v836 = vld [vmem:[#allocation3 + $0x1128] sm:$0xff]
    %v837 = vld [vmem:[#allocation3 + $0x1130] sm:$0xff]
    %v838 = vld [vmem:[#allocation3 + $0x1138] sm:$0xff]
    %v839 = vld [vmem:[#allocation3 + $0x1140] sm:$0xff]
    %v840 = vld [vmem:[#allocation3 + $0x1148] sm:$0xff]
    %v841 = vld [vmem:[#allocation3 + $0x1150] sm:$0xff]
    %v842 = vld [vmem:[#allocation3 + $0x1158] sm:$0xff]
    %v843 = vld [vmem:[#allocation3 + $0x1160] sm:$0xff]
    %v844 = vld [vmem:[#allocation3 + $0x1168] sm:$0xff]
    %v845 = vld [vmem:[#allocation3 + $0x1170] sm:$0xff]
    %v846 = vld [vmem:[#allocation3 + $0x1178] sm:$0xff]
    %v847 = vld [vmem:[#allocation3 + $0x1180] sm:$0xff]
    %v848 = vld [vmem:[#allocation3 + $0x1188] sm:$0xff]
    %v849 = vld [vmem:[#allocation3 + $0x1190] sm:$0xff]
    %v850 = vld [vmem:[#allocation3 + $0x1198] sm:$0xff]
    %v851 = vld [vmem:[#allocation3 + $0x11a0] sm:$0xff]
    %v852 = vld [vmem:[#allocation3 + $0x11a8] sm:$0xff]
    %v853 = vld [vmem:[#allocation3 + $0x11b0] sm:$0xff]
    %v854 = vld [vmem:[#allocation3 + $0x11b8] sm:$0xff]
    %v855 = vld [vmem:[#allocation3 + $0x11c0] sm:$0xff]
    %v856 = vld [vmem:[#allocation3 + $0x11c8] sm:$0xff]
    %v857 = vld [vmem:[#allocation3 + $0x11d0] sm:$0xff]
    %v858 = vld [vmem:[#allocation3 + $0x11d8] sm:$0xff]
    %v859 = vld [vmem:[#allocation3 + $0x11e0] sm:$0xff]
    %v860 = vld [vmem:[#allocation3 + $0x11e8] sm:$0xff]
    %v861 = vld [vmem:[#allocation3 + $0x11f0] sm:$0xff]
    %v862 = vld [vmem:[#allocation3 + $0x11f8] sm:$0xff]
    %v863 = vld [vmem:[#allocation3 + $0x1200] sm:$0xff]
    %v864 = vld [vmem:[#allocation3 + $0x1208] sm:$0xff]
    %v865 = vld [vmem:[#allocation3 + $0x1210] sm:$0xff]
    %v866 = vld [vmem:[#allocation3 + $0x1218] sm:$0xff]
    %v867 = vld [vmem:[#allocation3 + $0x1220] sm:$0xff]
    %v868 = vld [vmem:[#allocation3 + $0x1228] sm:$0xff]
    %v869 = vld [vmem:[#allocation3 + $0x1230] sm:$0xff]
    %v870 = vld [vmem:[#allocation3 + $0x1238] sm:$0xff]
    %v871 = vld [vmem:[#allocation3 + $0x1240] sm:$0xff]
    %v872 = vld [vmem:[#allocation3 + $0x1248] sm:$0xff]
    %v873 = vld [vmem:[#allocation3 + $0x1250] sm:$0xff]
    %v874 = vld [vmem:[#allocation3 + $0x1258] sm:$0xff]
    %v875 = vld [vmem:[#allocation3 + $0x1260] sm:$0xff]
    %v876 = vld [vmem:[#allocation3 + $0x1268] sm:$0xff]
    %v877 = vld [vmem:[#allocation3 + $0x1270] sm:$0xff]
    %v878 = vld [vmem:[#allocation3 + $0x1278] sm:$0xff]
    %v879 = vld [vmem:[#allocation3 + $0x1280] sm:$0xff]
    %v880 = vld [vmem:[#allocation3 + $0x1288] sm:$0xff]
    %v881 = vld [vmem:[#allocation3 + $0x1290] sm:$0xff]
    %v882 = vld [vmem:[#allocation3 + $0x1298] sm:$0xff]
    %v883 = vld [vmem:[#allocation3 + $0x12a0] sm:$0xff]
    %v884 = vld [vmem:[#allocation3 + $0x12a8] sm:$0xff]
    %v885 = vld [vmem:[#allocation3 + $0x12b0] sm:$0xff]
    %v886 = vld [vmem:[#allocation3 + $0x12b8] sm:$0xff]
    %v887 = vld [vmem:[#allocation3 + $0x12c0] sm:$0xff]
    %v888 = vld [vmem:[#allocation3 + $0x12c8] sm:$0xff]
    %v889 = vld [vmem:[#allocation3 + $0x12d0] sm:$0xff]
    %v890 = vld [vmem:[#allocation3 + $0x12d8] sm:$0xff]
    %v891 = vld [vmem:[#allocation3 + $0x12e0] sm:$0xff]
    %v892 = vld [vmem:[#allocation3 + $0x12e8] sm:$0xff]
    %v893 = vld [vmem:[#allocation3 + $0x12f0] sm:$0xff]
    %v894 = vld [vmem:[#allocation3 + $0x12f8] sm:$0xff]
    %v895 = vld [vmem:[#allocation3 + $0x1300] sm:$0xff]
    %v896 = vld [vmem:[#allocation3 + $0x1308] sm:$0xff]
    %v897 = vld [vmem:[#allocation3 + $0x1310] sm:$0xff]
    %v898 = vld [vmem:[#allocation3 + $0x1318] sm:$0xff]
    %v899 = vld [vmem:[#allocation3 + $0x1320] sm:$0xff]
    %v900 = vld [vmem:[#allocation3 + $0x1328] sm:$0xff]
    %v901 = vld [vmem:[#allocation3 + $0x1330] sm:$0xff]
    %v902 = vld [vmem:[#allocation3 + $0x1338] sm:$0xff]
    %v903 = vld [vmem:[#allocation3 + $0x1340] sm:$0xff]
    %v904 = vld [vmem:[#allocation3 + $0x1348] sm:$0xff]
    %v905 = vld [vmem:[#allocation3 + $0x1350] sm:$0xff]
    %v906 = vld [vmem:[#allocation3 + $0x1358] sm:$0xff]
    %v907 = vld [vmem:[#allocation3 + $0x1360] sm:$0xff]
    %v908 = vld [vmem:[#allocation3 + $0x1368] sm:$0xff]
    %v909 = vld [vmem:[#allocation3 + $0x1370] sm:$0xff]
    %v910 = vld [vmem:[#allocation3 + $0x1378] sm:$0xff]
    %v911 = vld [vmem:[#allocation3 + $0x1380] sm:$0xff]
    %v912 = vld [vmem:[#allocation3 + $0x1388] sm:$0xff]
    %v913 = vld [vmem:[#allocation3 + $0x1390] sm:$0xff]
    %v914 = vld [vmem:[#allocation3 + $0x1398] sm:$0xff]
    %v915 = vld [vmem:[#allocation3 + $0x13a0] sm:$0xff]
    %v916 = vld [vmem:[#allocation3 + $0x13a8] sm:$0xff]
    %v917 = vld [vmem:[#allocation3 + $0x13b0] sm:$0xff]
    %v918 = vld [vmem:[#allocation3 + $0x13b8] sm:$0xff]
    %v919 = vld [vmem:[#allocation3 + $0x13c0] sm:$0xff]
    %v920 = vld [vmem:[#allocation3 + $0x13c8] sm:$0xff]
    %v921 = vld [vmem:[#allocation3 + $0x13d0] sm:$0xff]
    %v922 = vld [vmem:[#allocation3 + $0x13d8] sm:$0xff]
    %v923 = vld [vmem:[#allocation3 + $0x13e0] sm:$0xff]
    %v924 = vld [vmem:[#allocation3 + $0x13e8] sm:$0xff]
    %v925 = vld [vmem:[#allocation3 + $0x13f0] sm:$0xff]
    %v926 = vld [vmem:[#allocation3 + $0x13f8] sm:$0xff]
    %v927 = vld [vmem:[#allocation3 + $0x1400] sm:$0xff]
    %v928 = vld [vmem:[#allocation3 + $0x1408] sm:$0xff]
    %v929 = vld [vmem:[#allocation3 + $0x1410] sm:$0xff]
    %v930 = vld [vmem:[#allocation3 + $0x1418] sm:$0xff]
    %v931 = vld [vmem:[#allocation3 + $0x1420] sm:$0xff]
    %v932 = vld [vmem:[#allocation3 + $0x1428] sm:$0xff]
    %v933 = vld [vmem:[#allocation3 + $0x1430] sm:$0xff]
    %v934 = vld [vmem:[#allocation3 + $0x1438] sm:$0xff]
    %v935 = vld [vmem:[#allocation3 + $0x1440] sm:$0xff]
    %v936 = vld [vmem:[#allocation3 + $0x1448] sm:$0xff]
    %v937 = vld [vmem:[#allocation3 + $0x1450] sm:$0xff]
    %v938 = vld [vmem:[#allocation3 + $0x1458] sm:$0xff]
    %v939 = vld [vmem:[#allocation3 + $0x1460] sm:$0xff]
    %v940 = vld [vmem:[#allocation3 + $0x1468] sm:$0xff]
    %v941 = vld [vmem:[#allocation3 + $0x1470] sm:$0xff]
    %v942 = vld [vmem:[#allocation3 + $0x1478] sm:$0xff]
    %v943 = vld [vmem:[#allocation3 + $0x1480] sm:$0xff]
    %v944 = vld [vmem:[#allocation3 + $0x1488] sm:$0xff]
    %v945 = vld [vmem:[#allocation3 + $0x1490] sm:$0xff]
    %v946 = vld [vmem:[#allocation3 + $0x1498] sm:$0xff]
    %v947 = vld [vmem:[#allocation3 + $0x14a0] sm:$0xff]
    %v948 = vld [vmem:[#allocation3 + $0x14a8] sm:$0xff]
    %v949 = vld [vmem:[#allocation3 + $0x14b0] sm:$0xff]
    %v950 = vld [vmem:[#allocation3 + $0x14b8] sm:$0xff]
    %v951 = vld [vmem:[#allocation3 + $0x14c0] sm:$0xff]
    %v952 = vld [vmem:[#allocation3 + $0x14c8] sm:$0xff]
    %v953 = vld [vmem:[#allocation3 + $0x14d0] sm:$0xff]
    %v954 = vld [vmem:[#allocation3 + $0x14d8] sm:$0xff]
    %v955 = vld [vmem:[#allocation3 + $0x14e0] sm:$0xff]
    %v956 = vld [vmem:[#allocation3 + $0x14e8] sm:$0xff]
    %v957 = vld [vmem:[#allocation3 + $0x14f0] sm:$0xff]
    %v958 = vld [vmem:[#allocation3 + $0x14f8] sm:$0xff]
    %v959 = vld [vmem:[#allocation3 + $0x1500] sm:$0xff]
    %v960 = vld [vmem:[#allocation3 + $0x1508] sm:$0xff]
    %v961 = vld [vmem:[#allocation3 + $0x1510] sm:$0xff]
    %v962 = vld [vmem:[#allocation3 + $0x1518] sm:$0xff]
    %v963 = vld [vmem:[#allocation3 + $0x1520] sm:$0xff]
    %v964 = vld [vmem:[#allocation3 + $0x1528] sm:$0xff]
    %v965 = vld [vmem:[#allocation3 + $0x1530] sm:$0xff]
    %v966 = vld [vmem:[#allocation3 + $0x1538] sm:$0xff]
    %v967 = vld [vmem:[#allocation3 + $0x1540] sm:$0xff]
    %v968 = vld [vmem:[#allocation3 + $0x1548] sm:$0xff]
    %v969 = vld [vmem:[#allocation3 + $0x1550] sm:$0xff]
    %v970 = vld [vmem:[#allocation3 + $0x1558] sm:$0xff]
    %v971 = vld [vmem:[#allocation3 + $0x1560] sm:$0xff]
    %v972 = vld [vmem:[#allocation3 + $0x1568] sm:$0xff]
    %v973 = vld [vmem:[#allocation3 + $0x1570] sm:$0xff]
    %v974 = vld [vmem:[#allocation3 + $0x1578] sm:$0xff]
    %v975 = vld [vmem:[#allocation3 + $0x1580] sm:$0xff]
    %v976 = vld [vmem:[#allocation3 + $0x1588] sm:$0xff]
    %v977 = vld [vmem:[#allocation3 + $0x1590] sm:$0xff]
    %v978 = vld [vmem:[#allocation3 + $0x1598] sm:$0xff]
    %v979 = vld [vmem:[#allocation3 + $0x15a0] sm:$0xff]
    %v980 = vld [vmem:[#allocation3 + $0x15a8] sm:$0xff]
    %v981 = vld [vmem:[#allocation3 + $0x15b0] sm:$0xff]
    %v982 = vld [vmem:[#allocation3 + $0x15b8] sm:$0xff]
    %v983 = vld [vmem:[#allocation3 + $0x15c0] sm:$0xff]
    %v984 = vld [vmem:[#allocation3 + $0x15c8] sm:$0xff]
    %v985 = vld [vmem:[#allocation3 + $0x15d0] sm:$0xff]
    %v986 = vld [vmem:[#allocation3 + $0x15d8] sm:$0xff]
    %v987 = vld [vmem:[#allocation3 + $0x15e0] sm:$0xff]
    %v988 = vld [vmem:[#allocation3 + $0x15e8] sm:$0xff]
    %v989 = vld [vmem:[#allocation3 + $0x15f0] sm:$0xff]
    %v990 = vld [vmem:[#allocation3 + $0x15f8] sm:$0xff]
    %v991 = vld [vmem:[#allocation3 + $0x1600] sm:$0xff]
    %v992 = vld [vmem:[#allocation3 + $0x1608] sm:$0xff]
    %v993 = vld [vmem:[#allocation3 + $0x1610] sm:$0xff]
    %v994 = vld [vmem:[#allocation3 + $0x1618] sm:$0xff]
    %v995 = vld [vmem:[#allocation3 + $0x1620] sm:$0xff]
    %v996 = vld [vmem:[#allocation3 + $0x1628] sm:$0xff]
    %v997 = vld [vmem:[#allocation3 + $0x1630] sm:$0xff]
    %v998 = vld [vmem:[#allocation3 + $0x1638] sm:$0xff]
    %v999 = vld [vmem:[#allocation3 + $0x1640] sm:$0xff]
    %v1000 = vld [vmem:[#allocation3 + $0x1648] sm:$0xff]
    %v1001 = vld [vmem:[#allocation3 + $0x1650] sm:$0xff]
    %v1002 = vld [vmem:[#allocation3 + $0x1658] sm:$0xff]
    %v1003 = vld [vmem:[#allocation3 + $0x1660] sm:$0xff]
    %v1004 = vld [vmem:[#allocation3 + $0x1668] sm:$0xff]
    %v1005 = vld [vmem:[#allocation3 + $0x1670] sm:$0xff]
    %v1006 = vld [vmem:[#allocation3 + $0x1678] sm:$0xff]
    %v1007 = vld [vmem:[#allocation3 + $0x1680] sm:$0xff]
    %v1008 = vld [vmem:[#allocation3 + $0x1688] sm:$0xff]
    %v1009 = vld [vmem:[#allocation3 + $0x1690] sm:$0xff]
    %v1010 = vld [vmem:[#allocation3 + $0x1698] sm:$0xff]
    %v1011 = vld [vmem:[#allocation3 + $0x16a0] sm:$0xff]
    %v1012 = vld [vmem:[#allocation3 + $0x16a8] sm:$0xff]
    %v1013 = vld [vmem:[#allocation3 + $0x16b0] sm:$0xff]
    %v1014 = vld [vmem:[#allocation3 + $0x16b8] sm:$0xff]
    %v1015 = vld [vmem:[#allocation3 + $0x16c0] sm:$0xff]
    %v1016 = vld [vmem:[#allocation3 + $0x16c8] sm:$0xff]
    %v1017 = vld [vmem:[#allocation3 + $0x16d0] sm:$0xff]
    %v1018 = vld [vmem:[#allocation3 + $0x16d8] sm:$0xff]
    %v1019 = vld [vmem:[#allocation3 + $0x16e0] sm:$0xff]
    %v1020 = vld [vmem:[#allocation3 + $0x16e8] sm:$0xff]
    %v1021 = vld [vmem:[#allocation3 + $0x16f0] sm:$0xff]
    %v1022 = vld [vmem:[#allocation3 + $0x16f8] sm:$0xff]
    %v1023 = vld [vmem:[#allocation3 + $0x1700] sm:$0xff]
    %v1024 = vld [vmem:[#allocation3 + $0x1708] sm:$0xff]
    %v1025 = vld [vmem:[#allocation3 + $0x1710] sm:$0xff]
    %v1026 = vld [vmem:[#allocation3 + $0x1718] sm:$0xff]
    %v1027 = vld [vmem:[#allocation3 + $0x1720] sm:$0xff]
    %v1028 = vld [vmem:[#allocation3 + $0x1728] sm:$0xff]
    %v1029 = vld [vmem:[#allocation3 + $0x1730] sm:$0xff]
    %v1030 = vld [vmem:[#allocation3 + $0x1738] sm:$0xff]
    %v1031 = vld [vmem:[#allocation3 + $0x1740] sm:$0xff]
    %v1032 = vld [vmem:[#allocation3 + $0x1748] sm:$0xff]
    %v1033 = vld [vmem:[#allocation3 + $0x1750] sm:$0xff]
    %v1034 = vld [vmem:[#allocation3 + $0x1758] sm:$0xff]
    %v1035 = vld [vmem:[#allocation3 + $0x1760] sm:$0xff]
    %v1036 = vld [vmem:[#allocation3 + $0x1768] sm:$0xff]
    %v1037 = vld [vmem:[#allocation3 + $0x1770] sm:$0xff]
    %v1038 = vld [vmem:[#allocation3 + $0x1778] sm:$0xff]
    %v1039 = vld [vmem:[#allocation3 + $0x1780] sm:$0xff]
    %v1040 = vld [vmem:[#allocation3 + $0x1788] sm:$0xff]
    %v1041 = vld [vmem:[#allocation3 + $0x1790] sm:$0xff]
    %v1042 = vld [vmem:[#allocation3 + $0x1798] sm:$0xff]
    %v1043 = vld [vmem:[#allocation3 + $0x17a0] sm:$0xff]
    %v1044 = vld [vmem:[#allocation3 + $0x17a8] sm:$0xff]
    %v1045 = vld [vmem:[#allocation3 + $0x17b0] sm:$0xff]
    %v1046 = vld [vmem:[#allocation3 + $0x17b8] sm:$0xff]
    %v1047 = vld [vmem:[#allocation3 + $0x17c0] sm:$0xff]
    %v1048 = vld [vmem:[#allocation3 + $0x17c8] sm:$0xff]
    %v1049 = vld [vmem:[#allocation3 + $0x17d0] sm:$0xff]
    %v1050 = vld [vmem:[#allocation3 + $0x17d8] sm:$0xff]
    %v1051 = vld [vmem:[#allocation3 + $0x17e0] sm:$0xff]
    %v1052 = vld [vmem:[#allocation3 + $0x17e8] sm:$0xff]
    %v1053 = vld [vmem:[#allocation3 + $0x17f0] sm:$0xff]
    %v1054 = vld [vmem:[#allocation3 + $0x17f8] sm:$0xff]
    %v1055 = vld [vmem:[#allocation3 + $0x1800] sm:$0xff]
    %v1056 = vld [vmem:[#allocation3 + $0x1808] sm:$0xff]
    %v1057 = vld [vmem:[#allocation3 + $0x1810] sm:$0xff]
    %v1058 = vld [vmem:[#allocation3 + $0x1818] sm:$0xff]
    %v1059 = vld [vmem:[#allocation3 + $0x1820] sm:$0xff]
    %v1060 = vld [vmem:[#allocation3 + $0x1828] sm:$0xff]
    %v1061 = vld [vmem:[#allocation3 + $0x1830] sm:$0xff]
    %v1062 = vld [vmem:[#allocation3 + $0x1838] sm:$0xff]
    %v1063 = vld [vmem:[#allocation3 + $0x1840] sm:$0xff]
    %v1064 = vld [vmem:[#allocation3 + $0x1848] sm:$0xff]
    %v1065 = vld [vmem:[#allocation3 + $0x1850] sm:$0xff]
    %v1066 = vld [vmem:[#allocation3 + $0x1858] sm:$0xff]
    %v1067 = vld [vmem:[#allocation3 + $0x1860] sm:$0xff]
    %v1068 = vld [vmem:[#allocation3 + $0x1868] sm:$0xff]
    %v1069 = vld [vmem:[#allocation3 + $0x1870] sm:$0xff]
    %v1070 = vld [vmem:[#allocation3 + $0x1878] sm:$0xff]
    %v1071 = vld [vmem:[#allocation3 + $0x1880] sm:$0xff]
    %v1072 = vld [vmem:[#allocation3 + $0x1888] sm:$0xff]
    %v1073 = vld [vmem:[#allocation3 + $0x1890] sm:$0xff]
    %v1074 = vld [vmem:[#allocation3 + $0x1898] sm:$0xff]
    %v1075 = vld [vmem:[#allocation3 + $0x18a0] sm:$0xff]
    %v1076 = vld [vmem:[#allocation3 + $0x18a8] sm:$0xff]
    %v1077 = vld [vmem:[#allocation3 + $0x18b0] sm:$0xff]
    %v1078 = vld [vmem:[#allocation3 + $0x18b8] sm:$0xff]
    %v1079 = vld [vmem:[#allocation3 + $0x18c0] sm:$0xff]
    %v1080 = vld [vmem:[#allocation3 + $0x18c8] sm:$0xff]
    %v1081 = vld [vmem:[#allocation3 + $0x18d0] sm:$0xff]
    %v1082 = vld [vmem:[#allocation3 + $0x18d8] sm:$0xff]
    %v1083 = vld [vmem:[#allocation3 + $0x18e0] sm:$0xff]
    %v1084 = vld [vmem:[#allocation3 + $0x18e8] sm:$0xff]
    %v1085 = vld [vmem:[#allocation3 + $0x18f0] sm:$0xff]
    %v1086 = vld [vmem:[#allocation3 + $0x18f8] sm:$0xff]
    %v1087 = vld [vmem:[#allocation3 + $0x1900] sm:$0xff]
    %v1088 = vld [vmem:[#allocation3 + $0x1908] sm:$0xff]
    %v1089 = vld [vmem:[#allocation3 + $0x1910] sm:$0xff]
    %v1090 = vld [vmem:[#allocation3 + $0x1918] sm:$0xff]
    %v1091 = vld [vmem:[#allocation3 + $0x1920] sm:$0xff]
    %v1092 = vld [vmem:[#allocation3 + $0x1928] sm:$0xff]
    %v1093 = vld [vmem:[#allocation3 + $0x1930] sm:$0xff]
    %v1094 = vld [vmem:[#allocation3 + $0x1938] sm:$0xff]
    %v1095 = vld [vmem:[#allocation3 + $0x1940] sm:$0xff]
    %v1096 = vld [vmem:[#allocation3 + $0x1948] sm:$0xff]
    %v1097 = vld [vmem:[#allocation3 + $0x1950] sm:$0xff]
    %v1098 = vld [vmem:[#allocation3 + $0x1958] sm:$0xff]
    %v1099 = vld [vmem:[#allocation3 + $0x1960] sm:$0xff]
    %v1100 = vld [vmem:[#allocation3 + $0x1968] sm:$0xff]
    %v1101 = vld [vmem:[#allocation3 + $0x1970] sm:$0xff]
    %v1102 = vld [vmem:[#allocation3 + $0x1978] sm:$0xff]
    %v1103 = vld [vmem:[#allocation3 + $0x1980] sm:$0xff]
    %v1104 = vld [vmem:[#allocation3 + $0x1988] sm:$0xff]
    %v1105 = vld [vmem:[#allocation3 + $0x1990] sm:$0xff]
    %v1106 = vld [vmem:[#allocation3 + $0x1998] sm:$0xff]
    %v1107 = vld [vmem:[#allocation3 + $0x19a0] sm:$0xff]
    %v1108 = vld [vmem:[#allocation3 + $0x19a8] sm:$0xff]
    %v1109 = vld [vmem:[#allocation3 + $0x19b0] sm:$0xff]
    %v1110 = vld [vmem:[#allocation3 + $0x19b8] sm:$0xff]
    %v1111 = vld [vmem:[#allocation3 + $0x19c0] sm:$0xff]
    %v1112 = vld [vmem:[#allocation3 + $0x19c8] sm:$0xff]
    %v1113 = vld [vmem:[#allocation3 + $0x19d0] sm:$0xff]
    %v1114 = vld [vmem:[#allocation3 + $0x19d8] sm:$0xff]
    %v1115 = vld [vmem:[#allocation3 + $0x19e0] sm:$0xff]
    %v1116 = vld [vmem:[#allocation3 + $0x19e8] sm:$0xff]
    %v1117 = vld [vmem:[#allocation3 + $0x19f0] sm:$0xff]
    %v1118 = vld [vmem:[#allocation3 + $0x19f8] sm:$0xff]
    %v1119 = vld [vmem:[#allocation3 + $0x1a00] sm:$0xff]
    %v1120 = vld [vmem:[#allocation3 + $0x1a08] sm:$0xff]
    %v1121 = vld [vmem:[#allocation3 + $0x1a10] sm:$0xff]
    %v1122 = vld [vmem:[#allocation3 + $0x1a18] sm:$0xff]
    %v1123 = vld [vmem:[#allocation3 + $0x1a20] sm:$0xff]
    %v1124 = vld [vmem:[#allocation3 + $0x1a28] sm:$0xff]
    %v1125 = vld [vmem:[#allocation3 + $0x1a30] sm:$0xff]
    %v1126 = vld [vmem:[#allocation3 + $0x1a38] sm:$0xff]
    %v1127 = vld [vmem:[#allocation3 + $0x1a40] sm:$0xff]
    %v1128 = vld [vmem:[#allocation3 + $0x1a48] sm:$0xff]
    %v1129 = vld [vmem:[#allocation3 + $0x1a50] sm:$0xff]
    %v1130 = vld [vmem:[#allocation3 + $0x1a58] sm:$0xff]
    %v1131 = vld [vmem:[#allocation3 + $0x1a60] sm:$0xff]
    %v1132 = vld [vmem:[#allocation3 + $0x1a68] sm:$0xff]
    %v1133 = vld [vmem:[#allocation3 + $0x1a70] sm:$0xff]
    %v1134 = vld [vmem:[#allocation3 + $0x1a78] sm:$0xff]
    %v1135 = vld [vmem:[#allocation3 + $0x1a80] sm:$0xff]
    %v1136 = vld [vmem:[#allocation3 + $0x1a88] sm:$0xff]
    %v1137 = vld [vmem:[#allocation3 + $0x1a90] sm:$0xff]
    %v1138 = vld [vmem:[#allocation3 + $0x1a98] sm:$0xff]
    %v1139 = vld [vmem:[#allocation3 + $0x1aa0] sm:$0xff]
    %v1140 = vld [vmem:[#allocation3 + $0x1aa8] sm:$0xff]
    %v1141 = vld [vmem:[#allocation3 + $0x1ab0] sm:$0xff]
    %v1142 = vld [vmem:[#allocation3 + $0x1ab8] sm:$0xff]
    %v1143 = vld [vmem:[#allocation3 + $0x1ac0] sm:$0xff]
    %v1144 = vld [vmem:[#allocation3 + $0x1ac8] sm:$0xff]
    %v1145 = vld [vmem:[#allocation3 + $0x1ad0] sm:$0xff]
    %v1146 = vld [vmem:[#allocation3 + $0x1ad8] sm:$0xff]
    %v1147 = vld [vmem:[#allocation3 + $0x1ae0] sm:$0xff]
    %v1148 = vld [vmem:[#allocation3 + $0x1ae8] sm:$0xff]
    %v1149 = vld [vmem:[#allocation3 + $0x1af0] sm:$0xff]
    %v1150 = vld [vmem:[#allocation3 + $0x1af8] sm:$0xff]
    %v1151 = vld [vmem:[#allocation3 + $0x1b00] sm:$0xff]
    %v1152 = vld [vmem:[#allocation3 + $0x1b08] sm:$0xff]
    %v1153 = vld [vmem:[#allocation3 + $0x1b10] sm:$0xff]
    %v1154 = vld [vmem:[#allocation3 + $0x1b18] sm:$0xff]
    %v1155 = vld [vmem:[#allocation3 + $0x1b20] sm:$0xff]
    %v1156 = vld [vmem:[#allocation3 + $0x1b28] sm:$0xff]
    %v1157 = vld [vmem:[#allocation3 + $0x1b30] sm:$0xff]
    %v1158 = vld [vmem:[#allocation3 + $0x1b38] sm:$0xff]
    %v1159 = vld [vmem:[#allocation3 + $0x1b40] sm:$0xff]
    %v1160 = vld [vmem:[#allocation3 + $0x1b48] sm:$0xff]
    %v1161 = vld [vmem:[#allocation3 + $0x1b50] sm:$0xff]
    %v1162 = vld [vmem:[#allocation3 + $0x1b58] sm:$0xff]
    %v1163 = vld [vmem:[#allocation3 + $0x1b60] sm:$0xff]
    %v1164 = vld [vmem:[#allocation3 + $0x1b68] sm:$0xff]
    %v1165 = vld [vmem:[#allocation3 + $0x1b70] sm:$0xff]
    %v1166 = vld [vmem:[#allocation3 + $0x1b78] sm:$0xff]
    %v1167 = vld [vmem:[#allocation3 + $0x1b80] sm:$0xff]
    %v1168 = vld [vmem:[#allocation3 + $0x1b88] sm:$0xff]
    %v1169 = vld [vmem:[#allocation3 + $0x1b90] sm:$0xff]
    %v1170 = vld [vmem:[#allocation3 + $0x1b98] sm:$0xff]
    %v1171 = vld [vmem:[#allocation3 + $0x1ba0] sm:$0xff]
    %v1172 = vld [vmem:[#allocation3 + $0x1ba8] sm:$0xff]
    %v1173 = vld [vmem:[#allocation3 + $0x1bb0] sm:$0xff]
    %v1174 = vld [vmem:[#allocation3 + $0x1bb8] sm:$0xff]
    %v1175 = vld [vmem:[#allocation3 + $0x1bc0] sm:$0xff]
    %v1176 = vld [vmem:[#allocation3 + $0x1bc8] sm:$0xff]
    %v1177 = vld [vmem:[#allocation3 + $0x1bd0] sm:$0xff]
    %v1178 = vld [vmem:[#allocation3 + $0x1bd8] sm:$0xff]
    %v1179 = vld [vmem:[#allocation3 + $0x1be0] sm:$0xff]
    %v1180 = vld [vmem:[#allocation3 + $0x1be8] sm:$0xff]
    %v1181 = vld [vmem:[#allocation3 + $0x1bf0] sm:$0xff]
    %v1182 = vld [vmem:[#allocation3 + $0x1bf8] sm:$0xff]
    %v1183 = vld [vmem:[#allocation3 + $0x1c00] sm:$0xff]
    %v1184 = vld [vmem:[#allocation3 + $0x1c08] sm:$0xff]
    %v1185 = vld [vmem:[#allocation3 + $0x1c10] sm:$0xff]
    %v1186 = vld [vmem:[#allocation3 + $0x1c18] sm:$0xff]
    %v1187 = vld [vmem:[%s2] sm:$0xff]
    %v1188 = vld [vmem:[%s2 + $0x8] sm:$0xff]
    %v1189 = vld [vmem:[%s2 + $0x10] sm:$0xff]
    %v1190 = vld [vmem:[%s2 + $0x18] sm:$0xff]
    %v1191 = vld [vmem:[%s2 + $0x20] sm:$0xff]
    %v1192 = vld [vmem:[%s2 + $0x28] sm:$0xff]
    %v1193 = vld [vmem:[%s2 + $0x30] sm:$0xff]
    %v1194 = vld [vmem:[%s2 + $0x38] sm:$0xff]
    %v1195 = vld [vmem:[%s2 + $0x40] sm:$0xff]
    %v1196 = vld [vmem:[%s2 + $0x48] sm:$0xff]
    %v1197 = vld [vmem:[%s2 + $0x50] sm:$0xff]
    %v1198 = vld [vmem:[%s2 + $0x58] sm:$0xff]
    %v1199 = vld [vmem:[%s2 + $0x60] sm:$0xff]
    %v1200 = vld [vmem:[%s2 + $0x68] sm:$0xff]
    %v1201 = vld [vmem:[%s2 + $0x70] sm:$0xff]
    %v1202 = vld [vmem:[%s2 + $0x78] sm:$0xff]
    %v1203 = vld [vmem:[%s2 + $0x80] sm:$0xff]
    %v1204 = vld [vmem:[%s2 + $0x88] sm:$0xff]
    %v1205 = vld [vmem:[%s2 + $0x90] sm:$0xff]
    %v1206 = vld [vmem:[%s2 + $0x98] sm:$0xff]
    %v1207 = vld [vmem:[%s2 + $0xa0] sm:$0xff]
    %v1208 = vld [vmem:[%s2 + $0xa8] sm:$0xff]
    %v1209 = vld [vmem:[%s2 + $0xb0] sm:$0xff]
    %v1210 = vld [vmem:[%s2 + $0xb8] sm:$0xff]
    %v1211 = vld [vmem:[%s2 + $0xc0] sm:$0xff]
    %v1212 = vld [vmem:[%s2 + $0xc8] sm:$0xff]
    %v1213 = vld [vmem:[%s2 + $0xd0] sm:$0xff]
    %v1214 = vld [vmem:[%s2 + $0xd8] sm:$0xff]
    %v1215 = vld [vmem:[%s2 + $0xe0] sm:$0xff]
    %v1216 = vld [vmem:[%s2 + $0xe8] sm:$0xff]
    %v1217 = vld [vmem:[%s2 + $0xf0] sm:$0xff]
    %v1218 = vld [vmem:[%s2 + $0xf8] sm:$0xff]
    %v1219 = vld [vmem:[%s2 + $0x100] sm:$0xff]
    %v1220 = vld [vmem:[%s2 + $0x108] sm:$0xff]
    %v1221 = vld [vmem:[%s2 + $0x110] sm:$0xff]
    %v1222 = vld [vmem:[%s2 + $0x118] sm:$0xff]
    %v1223 = vld [vmem:[%s2 + $0x120] sm:$0xff]
    %v1224 = vld [vmem:[%s2 + $0x128] sm:$0xff]
    %v1225 = vld [vmem:[%s2 + $0x130] sm:$0xff]
    %v1226 = vld [vmem:[%s2 + $0x138] sm:$0xff]
    %v1227 = vld [vmem:[%s2 + $0x140] sm:$0xff]
    %v1228 = vld [vmem:[%s2 + $0x148] sm:$0xff]
    %v1229 = vld [vmem:[%s2 + $0x150] sm:$0xff]
    %v1230 = vld [vmem:[%s2 + $0x158] sm:$0xff]
    %v1231 = vld [vmem:[%s2 + $0x160] sm:$0xff]
    %v1232 = vld [vmem:[%s2 + $0x168] sm:$0xff]
    %v1233 = vld [vmem:[%s2 + $0x170] sm:$0xff]
    %v1234 = vld [vmem:[%s2 + $0x178] sm:$0xff]
    %v1235 = vld [vmem:[%s2 + $0x180] sm:$0xff]
    %v1236 = vld [vmem:[%s2 + $0x188] sm:$0xff]
    %v1237 = vld [vmem:[%s2 + $0x190] sm:$0xff]
    %v1238 = vld [vmem:[%s2 + $0x198] sm:$0xff]
    %v1239 = vld [vmem:[%s2 + $0x1a0] sm:$0xff]
    %v1240 = vld [vmem:[%s2 + $0x1a8] sm:$0xff]
    %v1241 = vld [vmem:[%s2 + $0x1b0] sm:$0xff]
    %v1242 = vld [vmem:[%s2 + $0x1b8] sm:$0xff]
    %v1243 = vld [vmem:[%s2 + $0x1c0] sm:$0xff]
    %v1244 = vld [vmem:[%s2 + $0x1c8] sm:$0xff]
    %v1245 = vld [vmem:[%s2 + $0x1d0] sm:$0xff]
    %v1246 = vld [vmem:[%s2 + $0x1d8] sm:$0xff]
    %v1247 = vld [vmem:[%s2 + $0x1e0] sm:$0xff]
    %v1248 = vld [vmem:[%s2 + $0x1e8] sm:$0xff]
    %v1249 = vld [vmem:[%s2 + $0x1f0] sm:$0xff]
    %v1250 = vld [vmem:[%s2 + $0x1f8] sm:$0xff]
    %v1251 = vld [vmem:[%s2 + $0x200] sm:$0xff]
    %v1252 = vld [vmem:[%s2 + $0x208] sm:$0xff]
    %v1253 = vld [vmem:[%s2 + $0x210] sm:$0xff]
    %v1254 = vld [vmem:[%s2 + $0x218] sm:$0xff]
    %v1255 = vld [vmem:[%s2 + $0x220] sm:$0xff]
    %v1256 = vld [vmem:[%s2 + $0x228] sm:$0xff]
    %v1257 = vld [vmem:[%s2 + $0x230] sm:$0xff]
    %v1258 = vld [vmem:[%s2 + $0x238] sm:$0xff]
    %v1259 = vld [vmem:[%s2 + $0x240] sm:$0xff]
    %v1260 = vld [vmem:[%s2 + $0x248] sm:$0xff]
    %v1261 = vld [vmem:[%s2 + $0x250] sm:$0xff]
    %v1262 = vld [vmem:[%s2 + $0x258] sm:$0xff]
    %v1263 = vld [vmem:[%s2 + $0x260] sm:$0xff]
    %v1264 = vld [vmem:[%s2 + $0x268] sm:$0xff]
    %v1265 = vld [vmem:[%s2 + $0x270] sm:$0xff]
    %v1266 = vld [vmem:[%s2 + $0x278] sm:$0xff]
    %v1267 = vld [vmem:[%s2 + $0x280] sm:$0xff]
    %v1268 = vld [vmem:[%s2 + $0x288] sm:$0xff]
    %v1269 = vld [vmem:[%s2 + $0x290] sm:$0xff]
    %v1270 = vld [vmem:[%s2 + $0x298] sm:$0xff]
    %v1271 = vld [vmem:[%s2 + $0x2a0] sm:$0xff]
    %v1272 = vld [vmem:[%s2 + $0x2a8] sm:$0xff]
    %v1273 = vld [vmem:[%s2 + $0x2b0] sm:$0xff]
    %v1274 = vld [vmem:[%s2 + $0x2b8] sm:$0xff]
    %v1275 = vld [vmem:[%s2 + $0x2c0] sm:$0xff]
    %v1276 = vld [vmem:[%s2 + $0x2c8] sm:$0xff]
    %v1277 = vld [vmem:[%s2 + $0x2d0] sm:$0xff]
    %v1278 = vld [vmem:[%s2 + $0x2d8] sm:$0xff]
    %v1279 = vld [vmem:[%s2 + $0x2e0] sm:$0xff]
    %v1280 = vld [vmem:[%s2 + $0x2e8] sm:$0xff]
    %v1281 = vld [vmem:[%s2 + $0x2f0] sm:$0xff]
    %v1282 = vld [vmem:[%s2 + $0x2f8] sm:$0xff]
    %v1283 = vld [vmem:[%s2 + $0x300] sm:$0xff]
    %v1284 = vld [vmem:[%s2 + $0x308] sm:$0xff]
    %v1285 = vld [vmem:[%s2 + $0x310] sm:$0xff]
    %v1286 = vld [vmem:[%s2 + $0x318] sm:$0xff]
    %v1287 = vld [vmem:[%s2 + $0x320] sm:$0xff]
    %v1288 = vld [vmem:[%s2 + $0x328] sm:$0xff]
    %v1289 = vld [vmem:[%s2 + $0x330] sm:$0xff]
    %v1290 = vld [vmem:[%s2 + $0x338] sm:$0xff]
    %v1291 = vld [vmem:[%s2 + $0x340] sm:$0xff]
    %v1292 = vld [vmem:[%s2 + $0x348] sm:$0xff]
    %v1293 = vld [vmem:[%s2 + $0x350] sm:$0xff]
    %v1294 = vld [vmem:[%s2 + $0x358] sm:$0xff]
    %v1295 = vld [vmem:[%s2 + $0x360] sm:$0xff]
    %v1296 = vld [vmem:[%s2 + $0x368] sm:$0xff]
    %v1297 = vld [vmem:[%s2 + $0x370] sm:$0xff]
    %v1298 = vld [vmem:[%s2 + $0x378] sm:$0xff]
    %v1299 = vld [vmem:[%s2 + $0x380] sm:$0xff]
    %v1300 = vld [vmem:[%s2 + $0x388] sm:$0xff]
    %v1301 = vld [vmem:[%s2 + $0x390] sm:$0xff]
    %v1302 = vld [vmem:[%s2 + $0x398] sm:$0xff]
    %v1303 = vld [vmem:[%s2 + $0x3a0] sm:$0xff]
    %v1304 = vld [vmem:[%s2 + $0x3a8] sm:$0xff]
    %v1305 = vld [vmem:[%s2 + $0x3b0] sm:$0xff]
    %v1306 = vld [vmem:[%s2 + $0x3b8] sm:$0xff]
    %v1307 = vld [vmem:[%s2 + $0x3c0] sm:$0xff]
    %v1308 = vld [vmem:[%s2 + $0x3c8] sm:$0xff]
    %v1309 = vld [vmem:[%s2 + $0x3d0] sm:$0xff]
    %v1310 = vld [vmem:[%s2 + $0x3d8] sm:$0xff]
    %v1311 = vld [vmem:[%s2 + $0x3e0] sm:$0xff]
    %v1312 = vld [vmem:[%s2 + $0x3e8] sm:$0xff]
    %v1313 = vld [vmem:[%s2 + $0x3f0] sm:$0xff]
    %v1314 = vld [vmem:[%s2 + $0x3f8] sm:$0xff]
    %v1315 = vld [vmem:[%s2 + $0x400] sm:$0xff]
    %v1316 = vld [vmem:[%s2 + $0x408] sm:$0xff]
    %v1317 = vld [vmem:[%s2 + $0x410] sm:$0xff]
    %v1318 = vld [vmem:[%s2 + $0x418] sm:$0xff]
    %v1319 = vld [vmem:[%s2 + $0x420] sm:$0xff]
    %v1320 = vld [vmem:[%s2 + $0x428] sm:$0xff]
    %v1321 = vld [vmem:[%s2 + $0x430] sm:$0xff]
    %v1322 = vld [vmem:[%s2 + $0x438] sm:$0xff]
    %v1323 = vld [vmem:[%s2 + $0x440] sm:$0xff]
    %v1324 = vld [vmem:[%s2 + $0x448] sm:$0xff]
    %v1325 = vld [vmem:[%s2 + $0x450] sm:$0xff]
    %v1326 = vld [vmem:[%s2 + $0x458] sm:$0xff]
    %v1327 = vld [vmem:[%s2 + $0x460] sm:$0xff]
    %v1328 = vld [vmem:[%s2 + $0x468] sm:$0xff]
    %v1329 = vld [vmem:[%s2 + $0x470] sm:$0xff]
    %v1330 = vld [vmem:[%s2 + $0x478] sm:$0xff]
    %v1331 = vld [vmem:[%s2 + $0x480] sm:$0xff]
    %v1332 = vld [vmem:[%s2 + $0x488] sm:$0xff]
    %v1333 = vld [vmem:[%s2 + $0x490] sm:$0xff]
    %v1334 = vld [vmem:[%s2 + $0x498] sm:$0xff]
    %v1335 = vld [vmem:[%s2 + $0x4a0] sm:$0xff]
    %v1336 = vld [vmem:[%s2 + $0x4a8] sm:$0xff]
    %v1337 = vld [vmem:[%s2 + $0x4b0] sm:$0xff]
    %v1338 = vld [vmem:[%s2 + $0x4b8] sm:$0xff]
    %v1339 = vld [vmem:[%s2 + $0x4c0] sm:$0xff]
    %v1340 = vld [vmem:[%s2 + $0x4c8] sm:$0xff]
    %v1341 = vld [vmem:[%s2 + $0x4d0] sm:$0xff]
    %v1342 = vld [vmem:[%s2 + $0x4d8] sm:$0xff]
    %v1343 = vld [vmem:[%s2 + $0x4e0] sm:$0xff]
    %v1344 = vld [vmem:[%s2 + $0x4e8] sm:$0xff]
    %v1345 = vld [vmem:[%s2 + $0x4f0] sm:$0xff]
    %v1346 = vld [vmem:[%s2 + $0x4f8] sm:$0xff]
    %v1347 = vld [vmem:[%s2 + $0x500] sm:$0xff]
    %v1348 = vld [vmem:[%s2 + $0x508] sm:$0xff]
    %v1349 = vld [vmem:[%s2 + $0x510] sm:$0xff]
    %v1350 = vld [vmem:[%s2 + $0x518] sm:$0xff]
    %v1351 = vld [vmem:[%s2 + $0x520] sm:$0xff]
    %v1352 = vld [vmem:[%s2 + $0x528] sm:$0xff]
    %v1353 = vld [vmem:[%s2 + $0x530] sm:$0xff]
    %v1354 = vld [vmem:[%s2 + $0x538] sm:$0xff]
    %v1355 = vld [vmem:[%s2 + $0x540] sm:$0xff]
    %v1356 = vld [vmem:[%s2 + $0x548] sm:$0xff]
    %v1357 = vld [vmem:[%s2 + $0x550] sm:$0xff]
    %v1358 = vld [vmem:[%s2 + $0x558] sm:$0xff]
    %v1359 = vld [vmem:[%s2 + $0x560] sm:$0xff]
    %v1360 = vld [vmem:[%s2 + $0x568] sm:$0xff]
    %v1361 = vld [vmem:[%s2 + $0x570] sm:$0xff]
    %v1362 = vld [vmem:[%s2 + $0x578] sm:$0xff]
    %v1363 = vld [vmem:[%s2 + $0x580] sm:$0xff]
    %v1364 = vld [vmem:[%s2 + $0x588] sm:$0xff]
    %v1365 = vld [vmem:[%s2 + $0x590] sm:$0xff]
    %v1366 = vld [vmem:[%s2 + $0x598] sm:$0xff]
    %1368 = vset.pattern.permute.xlu0 0
    %1369 = vperm.xlu0 %1368, %v1187
    %v1370 = vpop.permute.xlu0 %1369
    %1373 = vset.pattern.permute.xlu0 0
    %1374 = vperm.xlu0 %1373, %v1188
    %v1375 = vpop.permute.xlu0 %1374
    %1378 = vset.pattern.permute.xlu0 0
    %1379 = vperm.xlu0 %1378, %v1189
    %v1380 = vpop.permute.xlu0 %1379
    %1383 = vset.pattern.permute.xlu0 0
    %1384 = vperm.xlu0 %1383, %v1190
    %v1385 = vpop.permute.xlu0 %1384
    %1388 = vset.pattern.permute.xlu0 0
    %1389 = vperm.xlu0 %1388, %v1191
    %v1390 = vpop.permute.xlu0 %1389
    %1393 = vset.pattern.permute.xlu0 0
    %1394 = vperm.xlu0 %1393, %v1192
    %v1395 = vpop.permute.xlu0 %1394
    %1398 = vset.pattern.permute.xlu0 0
    %1399 = vperm.xlu0 %1398, %v1193
    %v1400 = vpop.permute.xlu0 %1399
    %1403 = vset.pattern.permute.xlu0 0
    %1404 = vperm.xlu0 %1403, %v1194
    %v1405 = vpop.permute.xlu0 %1404
    %1408 = vset.pattern.permute.xlu0 0
    %1409 = vperm.xlu0 %1408, %v1195
    %v1410 = vpop.permute.xlu0 %1409
    %1413 = vset.pattern.permute.xlu0 0
    %1414 = vperm.xlu0 %1413, %v1196
    %v1415 = vpop.permute.xlu0 %1414
    %1418 = vset.pattern.permute.xlu0 0
    %1419 = vperm.xlu0 %1418, %v1197
    %v1420 = vpop.permute.xlu0 %1419
    %1423 = vset.pattern.permute.xlu0 0
    %1424 = vperm.xlu0 %1423, %v1198
    %v1425 = vpop.permute.xlu0 %1424
    %1428 = vset.pattern.permute.xlu0 0
    %1429 = vperm.xlu0 %1428, %v1199
    %v1430 = vpop.permute.xlu0 %1429
    %1433 = vset.pattern.permute.xlu0 0
    %1434 = vperm.xlu0 %1433, %v1200
    %v1435 = vpop.permute.xlu0 %1434
    %1438 = vset.pattern.permute.xlu0 0
    %1439 = vperm.xlu0 %1438, %v1201
    %v1440 = vpop.permute.xlu0 %1439
    %1443 = vset.pattern.permute.xlu0 0
    %1444 = vperm.xlu0 %1443, %v1202
    %v1445 = vpop.permute.xlu0 %1444
    %1448 = vset.pattern.permute.xlu0 0
    %1449 = vperm.xlu0 %1448, %v1203
    %v1450 = vpop.permute.xlu0 %1449
    %1453 = vset.pattern.permute.xlu0 0
    %1454 = vperm.xlu0 %1453, %v1204
    %v1455 = vpop.permute.xlu0 %1454
    %1458 = vset.pattern.permute.xlu0 0
    %1459 = vperm.xlu0 %1458, %v1205
    %v1460 = vpop.permute.xlu0 %1459
    %1463 = vset.pattern.permute.xlu0 0
    %1464 = vperm.xlu0 %1463, %v1206
    %v1465 = vpop.permute.xlu0 %1464
    %1468 = vset.pattern.permute.xlu0 0
    %1469 = vperm.xlu0 %1468, %v1207
    %v1470 = vpop.permute.xlu0 %1469
    %1473 = vset.pattern.permute.xlu0 0
    %1474 = vperm.xlu0 %1473, %v1208
    %v1475 = vpop.permute.xlu0 %1474
    %1478 = vset.pattern.permute.xlu0 0
    %1479 = vperm.xlu0 %1478, %v1209
    %v1480 = vpop.permute.xlu0 %1479
    %1483 = vset.pattern.permute.xlu0 0
    %1484 = vperm.xlu0 %1483, %v1210
    %v1485 = vpop.permute.xlu0 %1484
    %1488 = vset.pattern.permute.xlu0 0
    %1489 = vperm.xlu0 %1488, %v1211
    %v1490 = vpop.permute.xlu0 %1489
    %1493 = vset.pattern.permute.xlu0 0
    %1494 = vperm.xlu0 %1493, %v1212
    %v1495 = vpop.permute.xlu0 %1494
    %1498 = vset.pattern.permute.xlu0 0
    %1499 = vperm.xlu0 %1498, %v1213
    %v1500 = vpop.permute.xlu0 %1499
    %1503 = vset.pattern.permute.xlu0 0
    %1504 = vperm.xlu0 %1503, %v1214
    %v1505 = vpop.permute.xlu0 %1504
    %1508 = vset.pattern.permute.xlu0 0
    %1509 = vperm.xlu0 %1508, %v1215
    %v1510 = vpop.permute.xlu0 %1509
    %1513 = vset.pattern.permute.xlu0 0
    %1514 = vperm.xlu0 %1513, %v1216
    %v1515 = vpop.permute.xlu0 %1514
    %1518 = vset.pattern.permute.xlu0 0
    %1519 = vperm.xlu0 %1518, %v1217
    %v1520 = vpop.permute.xlu0 %1519
    %1523 = vset.pattern.permute.xlu0 0
    %1524 = vperm.xlu0 %1523, %v1218
    %v1525 = vpop.permute.xlu0 %1524
    %1528 = vset.pattern.permute.xlu0 0
    %1529 = vperm.xlu0 %1528, %v1219
    %v1530 = vpop.permute.xlu0 %1529
    %1533 = vset.pattern.permute.xlu0 0
    %1534 = vperm.xlu0 %1533, %v1220
    %v1535 = vpop.permute.xlu0 %1534
    %1538 = vset.pattern.permute.xlu0 0
    %1539 = vperm.xlu0 %1538, %v1221
    %v1540 = vpop.permute.xlu0 %1539
    %1543 = vset.pattern.permute.xlu0 0
    %1544 = vperm.xlu0 %1543, %v1222
    %v1545 = vpop.permute.xlu0 %1544
    %1548 = vset.pattern.permute.xlu0 0
    %1549 = vperm.xlu0 %1548, %v1223
    %v1550 = vpop.permute.xlu0 %1549
    %1553 = vset.pattern.permute.xlu0 0
    %1554 = vperm.xlu0 %1553, %v1224
    %v1555 = vpop.permute.xlu0 %1554
    %1558 = vset.pattern.permute.xlu0 0
    %1559 = vperm.xlu0 %1558, %v1225
    %v1560 = vpop.permute.xlu0 %1559
    %1563 = vset.pattern.permute.xlu0 0
    %1564 = vperm.xlu0 %1563, %v1226
    %v1565 = vpop.permute.xlu0 %1564
    %1568 = vset.pattern.permute.xlu0 0
    %1569 = vperm.xlu0 %1568, %v1227
    %v1570 = vpop.permute.xlu0 %1569
    %1573 = vset.pattern.permute.xlu0 0
    %1574 = vperm.xlu0 %1573, %v1228
    %v1575 = vpop.permute.xlu0 %1574
    %1578 = vset.pattern.permute.xlu0 0
    %1579 = vperm.xlu0 %1578, %v1229
    %v1580 = vpop.permute.xlu0 %1579
    %1583 = vset.pattern.permute.xlu0 0
    %1584 = vperm.xlu0 %1583, %v1230
    %v1585 = vpop.permute.xlu0 %1584
    %1588 = vset.pattern.permute.xlu0 0
    %1589 = vperm.xlu0 %1588, %v1231
    %v1590 = vpop.permute.xlu0 %1589
    %1593 = vset.pattern.permute.xlu0 0
    %1594 = vperm.xlu0 %1593, %v1232
    %v1595 = vpop.permute.xlu0 %1594
    %1598 = vset.pattern.permute.xlu0 0
    %1599 = vperm.xlu0 %1598, %v1233
    %v1600 = vpop.permute.xlu0 %1599
    %1603 = vset.pattern.permute.xlu0 0
    %1604 = vperm.xlu0 %1603, %v1234
    %v1605 = vpop.permute.xlu0 %1604
    %1608 = vset.pattern.permute.xlu0 0
    %1609 = vperm.xlu0 %1608, %v1235
    %v1610 = vpop.permute.xlu0 %1609
    %1613 = vset.pattern.permute.xlu0 0
    %1614 = vperm.xlu0 %1613, %v1236
    %v1615 = vpop.permute.xlu0 %1614
    %1618 = vset.pattern.permute.xlu0 0
    %1619 = vperm.xlu0 %1618, %v1237
    %v1620 = vpop.permute.xlu0 %1619
    %1623 = vset.pattern.permute.xlu0 0
    %1624 = vperm.xlu0 %1623, %v1238
    %v1625 = vpop.permute.xlu0 %1624
    %1628 = vset.pattern.permute.xlu0 0
    %1629 = vperm.xlu0 %1628, %v1239
    %v1630 = vpop.permute.xlu0 %1629
    %1633 = vset.pattern.permute.xlu0 0
    %1634 = vperm.xlu0 %1633, %v1240
    %v1635 = vpop.permute.xlu0 %1634
    %1638 = vset.pattern.permute.xlu0 0
    %1639 = vperm.xlu0 %1638, %v1241
    %v1640 = vpop.permute.xlu0 %1639
    %1643 = vset.pattern.permute.xlu0 0
    %1644 = vperm.xlu0 %1643, %v1242
    %v1645 = vpop.permute.xlu0 %1644
    %1648 = vset.pattern.permute.xlu0 0
    %1649 = vperm.xlu0 %1648, %v1243
    %v1650 = vpop.permute.xlu0 %1649
    %1653 = vset.pattern.permute.xlu0 0
    %1654 = vperm.xlu0 %1653, %v1244
    %v1655 = vpop.permute.xlu0 %1654
    %1658 = vset.pattern.permute.xlu0 0
    %1659 = vperm.xlu0 %1658, %v1245
    %v1660 = vpop.permute.xlu0 %1659
    %1663 = vset.pattern.permute.xlu0 0
    %1664 = vperm.xlu0 %1663, %v1246
    %v1665 = vpop.permute.xlu0 %1664
    %1668 = vset.pattern.permute.xlu0 0
    %1669 = vperm.xlu0 %1668, %v1247
    %v1670 = vpop.permute.xlu0 %1669
    %1673 = vset.pattern.permute.xlu0 0
    %1674 = vperm.xlu0 %1673, %v1248
    %v1675 = vpop.permute.xlu0 %1674
    %1678 = vset.pattern.permute.xlu0 0
    %1679 = vperm.xlu0 %1678, %v1249
    %v1680 = vpop.permute.xlu0 %1679
    %1683 = vset.pattern.permute.xlu0 0
    %1684 = vperm.xlu0 %1683, %v1250
    %v1685 = vpop.permute.xlu0 %1684
    %1688 = vset.pattern.permute.xlu0 0
    %1689 = vperm.xlu0 %1688, %v1251
    %v1690 = vpop.permute.xlu0 %1689
    %1693 = vset.pattern.permute.xlu0 0
    %1694 = vperm.xlu0 %1693, %v1252
    %v1695 = vpop.permute.xlu0 %1694
    %1698 = vset.pattern.permute.xlu0 0
    %1699 = vperm.xlu0 %1698, %v1253
    %v1700 = vpop.permute.xlu0 %1699
    %1703 = vset.pattern.permute.xlu0 0
    %1704 = vperm.xlu0 %1703, %v1254
    %v1705 = vpop.permute.xlu0 %1704
    %1708 = vset.pattern.permute.xlu0 0
    %1709 = vperm.xlu0 %1708, %v1255
    %v1710 = vpop.permute.xlu0 %1709
    %1713 = vset.pattern.permute.xlu0 0
    %1714 = vperm.xlu0 %1713, %v1256
    %v1715 = vpop.permute.xlu0 %1714
    %1718 = vset.pattern.permute.xlu0 0
    %1719 = vperm.xlu0 %1718, %v1257
    %v1720 = vpop.permute.xlu0 %1719
    %1723 = vset.pattern.permute.xlu0 0
    %1724 = vperm.xlu0 %1723, %v1258
    %v1725 = vpop.permute.xlu0 %1724
    %1728 = vset.pattern.permute.xlu0 0
    %1729 = vperm.xlu0 %1728, %v1259
    %v1730 = vpop.permute.xlu0 %1729
    %1733 = vset.pattern.permute.xlu0 0
    %1734 = vperm.xlu0 %1733, %v1260
    %v1735 = vpop.permute.xlu0 %1734
    %1738 = vset.pattern.permute.xlu0 0
    %1739 = vperm.xlu0 %1738, %v1261
    %v1740 = vpop.permute.xlu0 %1739
    %1743 = vset.pattern.permute.xlu0 0
    %1744 = vperm.xlu0 %1743, %v1262
    %v1745 = vpop.permute.xlu0 %1744
    %1748 = vset.pattern.permute.xlu0 0
    %1749 = vperm.xlu0 %1748, %v1263
    %v1750 = vpop.permute.xlu0 %1749
    %1753 = vset.pattern.permute.xlu0 0
    %1754 = vperm.xlu0 %1753, %v1264
    %v1755 = vpop.permute.xlu0 %1754
    %1758 = vset.pattern.permute.xlu0 0
    %1759 = vperm.xlu0 %1758, %v1265
    %v1760 = vpop.permute.xlu0 %1759
    %1763 = vset.pattern.permute.xlu0 0
    %1764 = vperm.xlu0 %1763, %v1266
    %v1765 = vpop.permute.xlu0 %1764
    %1768 = vset.pattern.permute.xlu0 0
    %1769 = vperm.xlu0 %1768, %v1267
    %v1770 = vpop.permute.xlu0 %1769
    %1773 = vset.pattern.permute.xlu0 0
    %1774 = vperm.xlu0 %1773, %v1268
    %v1775 = vpop.permute.xlu0 %1774
    %1778 = vset.pattern.permute.xlu0 0
    %1779 = vperm.xlu0 %1778, %v1269
    %v1780 = vpop.permute.xlu0 %1779
    %1783 = vset.pattern.permute.xlu0 0
    %1784 = vperm.xlu0 %1783, %v1270
    %v1785 = vpop.permute.xlu0 %1784
    %1788 = vset.pattern.permute.xlu0 0
    %1789 = vperm.xlu0 %1788, %v1271
    %v1790 = vpop.permute.xlu0 %1789
    %1793 = vset.pattern.permute.xlu0 0
    %1794 = vperm.xlu0 %1793, %v1272
    %v1795 = vpop.permute.xlu0 %1794
    %1798 = vset.pattern.permute.xlu0 0
    %1799 = vperm.xlu0 %1798, %v1273
    %v1800 = vpop.permute.xlu0 %1799
    %1803 = vset.pattern.permute.xlu0 0
    %1804 = vperm.xlu0 %1803, %v1274
    %v1805 = vpop.permute.xlu0 %1804
    %1808 = vset.pattern.permute.xlu0 0
    %1809 = vperm.xlu0 %1808, %v1275
    %v1810 = vpop.permute.xlu0 %1809
    %1813 = vset.pattern.permute.xlu0 0
    %1814 = vperm.xlu0 %1813, %v1276
    %v1815 = vpop.permute.xlu0 %1814
    %1818 = vset.pattern.permute.xlu0 0
    %1819 = vperm.xlu0 %1818, %v1277
    %v1820 = vpop.permute.xlu0 %1819
    %1823 = vset.pattern.permute.xlu0 0
    %1824 = vperm.xlu0 %1823, %v1278
    %v1825 = vpop.permute.xlu0 %1824
    %1828 = vset.pattern.permute.xlu0 0
    %1829 = vperm.xlu0 %1828, %v1279
    %v1830 = vpop.permute.xlu0 %1829
    %1833 = vset.pattern.permute.xlu0 0
    %1834 = vperm.xlu0 %1833, %v1280
    %v1835 = vpop.permute.xlu0 %1834
    %1838 = vset.pattern.permute.xlu0 0
    %1839 = vperm.xlu0 %1838, %v1281
    %v1840 = vpop.permute.xlu0 %1839
    %1843 = vset.pattern.permute.xlu0 0
    %1844 = vperm.xlu0 %1843, %v1282
    %v1845 = vpop.permute.xlu0 %1844
    %1848 = vset.pattern.permute.xlu0 0
    %1849 = vperm.xlu0 %1848, %v1283
    %v1850 = vpop.permute.xlu0 %1849
    %1853 = vset.pattern.permute.xlu0 0
    %1854 = vperm.xlu0 %1853, %v1284
    %v1855 = vpop.permute.xlu0 %1854
    %1858 = vset.pattern.permute.xlu0 0
    %1859 = vperm.xlu0 %1858, %v1285
    %v1860 = vpop.permute.xlu0 %1859
    %1863 = vset.pattern.permute.xlu0 0
    %1864 = vperm.xlu0 %1863, %v1286
    %v1865 = vpop.permute.xlu0 %1864
    %1868 = vset.pattern.permute.xlu0 0
    %1869 = vperm.xlu0 %1868, %v1287
    %v1870 = vpop.permute.xlu0 %1869
    %1873 = vset.pattern.permute.xlu0 0
    %1874 = vperm.xlu0 %1873, %v1288
    %v1875 = vpop.permute.xlu0 %1874
    %1878 = vset.pattern.permute.xlu0 0
    %1879 = vperm.xlu0 %1878, %v1289
    %v1880 = vpop.permute.xlu0 %1879
    %1883 = vset.pattern.permute.xlu0 0
    %1884 = vperm.xlu0 %1883, %v1290
    %v1885 = vpop.permute.xlu0 %1884
    %1888 = vset.pattern.permute.xlu0 0
    %1889 = vperm.xlu0 %1888, %v1291
    %v1890 = vpop.permute.xlu0 %1889
    %1893 = vset.pattern.permute.xlu0 0
    %1894 = vperm.xlu0 %1893, %v1292
    %v1895 = vpop.permute.xlu0 %1894
    %1898 = vset.pattern.permute.xlu0 0
    %1899 = vperm.xlu0 %1898, %v1293
    %v1900 = vpop.permute.xlu0 %1899
    %1903 = vset.pattern.permute.xlu0 0
    %1904 = vperm.xlu0 %1903, %v1294
    %v1905 = vpop.permute.xlu0 %1904
    %1908 = vset.pattern.permute.xlu0 0
    %1909 = vperm.xlu0 %1908, %v1295
    %v1910 = vpop.permute.xlu0 %1909
    %1913 = vset.pattern.permute.xlu0 0
    %1914 = vperm.xlu0 %1913, %v1296
    %v1915 = vpop.permute.xlu0 %1914
    %1918 = vset.pattern.permute.xlu0 0
    %1919 = vperm.xlu0 %1918, %v1297
    %v1920 = vpop.permute.xlu0 %1919
    %1923 = vset.pattern.permute.xlu0 0
    %1924 = vperm.xlu0 %1923, %v1298
    %v1925 = vpop.permute.xlu0 %1924
    %1928 = vset.pattern.permute.xlu0 0
    %1929 = vperm.xlu0 %1928, %v1299
    %v1930 = vpop.permute.xlu0 %1929
    %1933 = vset.pattern.permute.xlu0 0
    %1934 = vperm.xlu0 %1933, %v1300
    %v1935 = vpop.permute.xlu0 %1934
    %1938 = vset.pattern.permute.xlu0 0
    %1939 = vperm.xlu0 %1938, %v1301
    %v1940 = vpop.permute.xlu0 %1939
    %1943 = vset.pattern.permute.xlu0 0
    %1944 = vperm.xlu0 %1943, %v1302
    %v1945 = vpop.permute.xlu0 %1944
    %1948 = vset.pattern.permute.xlu0 0
    %1949 = vperm.xlu0 %1948, %v1303
    %v1950 = vpop.permute.xlu0 %1949
    %1953 = vset.pattern.permute.xlu0 0
    %1954 = vperm.xlu0 %1953, %v1304
    %v1955 = vpop.permute.xlu0 %1954
    %1958 = vset.pattern.permute.xlu0 0
    %1959 = vperm.xlu0 %1958, %v1305
    %v1960 = vpop.permute.xlu0 %1959
    %1963 = vset.pattern.permute.xlu0 0
    %1964 = vperm.xlu0 %1963, %v1306
    %v1965 = vpop.permute.xlu0 %1964
    %1968 = vset.pattern.permute.xlu0 0
    %1969 = vperm.xlu0 %1968, %v1307
    %v1970 = vpop.permute.xlu0 %1969
    %1973 = vset.pattern.permute.xlu0 0
    %1974 = vperm.xlu0 %1973, %v1308
    %v1975 = vpop.permute.xlu0 %1974
    %1978 = vset.pattern.permute.xlu0 0
    %1979 = vperm.xlu0 %1978, %v1309
    %v1980 = vpop.permute.xlu0 %1979
    %1983 = vset.pattern.permute.xlu0 0
    %1984 = vperm.xlu0 %1983, %v1310
    %v1985 = vpop.permute.xlu0 %1984
    %1988 = vset.pattern.permute.xlu0 0
    %1989 = vperm.xlu0 %1988, %v1311
    %v1990 = vpop.permute.xlu0 %1989
    %1993 = vset.pattern.permute.xlu0 0
    %1994 = vperm.xlu0 %1993, %v1312
    %v1995 = vpop.permute.xlu0 %1994
    %1998 = vset.pattern.permute.xlu0 0
    %1999 = vperm.xlu0 %1998, %v1313
    %v2000 = vpop.permute.xlu0 %1999
    %2003 = vset.pattern.permute.xlu0 0
    %2004 = vperm.xlu0 %2003, %v1314
    %v2005 = vpop.permute.xlu0 %2004
    %2008 = vset.pattern.permute.xlu0 0
    %2009 = vperm.xlu0 %2008, %v1315
    %v2010 = vpop.permute.xlu0 %2009
    %2013 = vset.pattern.permute.xlu0 0
    %2014 = vperm.xlu0 %2013, %v1316
    %v2015 = vpop.permute.xlu0 %2014
    %2018 = vset.pattern.permute.xlu0 0
    %2019 = vperm.xlu0 %2018, %v1317
    %v2020 = vpop.permute.xlu0 %2019
    %2023 = vset.pattern.permute.xlu0 0
    %2024 = vperm.xlu0 %2023, %v1318
    %v2025 = vpop.permute.xlu0 %2024
    %2028 = vset.pattern.permute.xlu0 0
    %2029 = vperm.xlu0 %2028, %v1319
    %v2030 = vpop.permute.xlu0 %2029
    %2033 = vset.pattern.permute.xlu0 0
    %2034 = vperm.xlu0 %2033, %v1320
    %v2035 = vpop.permute.xlu0 %2034
    %2038 = vset.pattern.permute.xlu0 0
    %2039 = vperm.xlu0 %2038, %v1321
    %v2040 = vpop.permute.xlu0 %2039
    %2043 = vset.pattern.permute.xlu0 0
    %2044 = vperm.xlu0 %2043, %v1322
    %v2045 = vpop.permute.xlu0 %2044
    %2048 = vset.pattern.permute.xlu0 0
    %2049 = vperm.xlu0 %2048, %v1323
    %v2050 = vpop.permute.xlu0 %2049
    %2053 = vset.pattern.permute.xlu0 0
    %2054 = vperm.xlu0 %2053, %v1324
    %v2055 = vpop.permute.xlu0 %2054
    %2058 = vset.pattern.permute.xlu0 0
    %2059 = vperm.xlu0 %2058, %v1325
    %v2060 = vpop.permute.xlu0 %2059
    %2063 = vset.pattern.permute.xlu0 0
    %2064 = vperm.xlu0 %2063, %v1326
    %v2065 = vpop.permute.xlu0 %2064
    %2068 = vset.pattern.permute.xlu0 0
    %2069 = vperm.xlu0 %2068, %v1327
    %v2070 = vpop.permute.xlu0 %2069
    %2073 = vset.pattern.permute.xlu0 0
    %2074 = vperm.xlu0 %2073, %v1328
    %v2075 = vpop.permute.xlu0 %2074
    %2078 = vset.pattern.permute.xlu0 0
    %2079 = vperm.xlu0 %2078, %v1329
    %v2080 = vpop.permute.xlu0 %2079
    %2083 = vset.pattern.permute.xlu0 0
    %2084 = vperm.xlu0 %2083, %v1330
    %v2085 = vpop.permute.xlu0 %2084
    %2088 = vset.pattern.permute.xlu0 0
    %2089 = vperm.xlu0 %2088, %v1331
    %v2090 = vpop.permute.xlu0 %2089
    %2093 = vset.pattern.permute.xlu0 0
    %2094 = vperm.xlu0 %2093, %v1332
    %v2095 = vpop.permute.xlu0 %2094
    %2098 = vset.pattern.permute.xlu0 0
    %2099 = vperm.xlu0 %2098, %v1333
    %v2100 = vpop.permute.xlu0 %2099
    %2103 = vset.pattern.permute.xlu0 0
    %2104 = vperm.xlu0 %2103, %v1334
    %v2105 = vpop.permute.xlu0 %2104
    %2108 = vset.pattern.permute.xlu0 0
    %2109 = vperm.xlu0 %2108, %v1335
    %v2110 = vpop.permute.xlu0 %2109
    %2113 = vset.pattern.permute.xlu0 0
    %2114 = vperm.xlu0 %2113, %v1336
    %v2115 = vpop.permute.xlu0 %2114
    %2118 = vset.pattern.permute.xlu0 0
    %2119 = vperm.xlu0 %2118, %v1337
    %v2120 = vpop.permute.xlu0 %2119
    %2123 = vset.pattern.permute.xlu0 0
    %2124 = vperm.xlu0 %2123, %v1338
    %v2125 = vpop.permute.xlu0 %2124
    %2128 = vset.pattern.permute.xlu0 0
    %2129 = vperm.xlu0 %2128, %v1339
    %v2130 = vpop.permute.xlu0 %2129
    %2133 = vset.pattern.permute.xlu0 0
    %2134 = vperm.xlu0 %2133, %v1340
    %v2135 = vpop.permute.xlu0 %2134
    %2138 = vset.pattern.permute.xlu0 0
    %2139 = vperm.xlu0 %2138, %v1341
    %v2140 = vpop.permute.xlu0 %2139
    %2143 = vset.pattern.permute.xlu0 0
    %2144 = vperm.xlu0 %2143, %v1342
    %v2145 = vpop.permute.xlu0 %2144
    %2148 = vset.pattern.permute.xlu0 0
    %2149 = vperm.xlu0 %2148, %v1343
    %v2150 = vpop.permute.xlu0 %2149
    %2153 = vset.pattern.permute.xlu0 0
    %2154 = vperm.xlu0 %2153, %v1344
    %v2155 = vpop.permute.xlu0 %2154
    %2158 = vset.pattern.permute.xlu0 0
    %2159 = vperm.xlu0 %2158, %v1345
    %v2160 = vpop.permute.xlu0 %2159
    %2163 = vset.pattern.permute.xlu0 0
    %2164 = vperm.xlu0 %2163, %v1346
    %v2165 = vpop.permute.xlu0 %2164
    %2168 = vset.pattern.permute.xlu0 0
    %2169 = vperm.xlu0 %2168, %v1347
    %v2170 = vpop.permute.xlu0 %2169
    %2173 = vset.pattern.permute.xlu0 0
    %2174 = vperm.xlu0 %2173, %v1348
    %v2175 = vpop.permute.xlu0 %2174
    %2178 = vset.pattern.permute.xlu0 0
    %2179 = vperm.xlu0 %2178, %v1349
    %v2180 = vpop.permute.xlu0 %2179
    %2183 = vset.pattern.permute.xlu0 0
    %2184 = vperm.xlu0 %2183, %v1350
    %v2185 = vpop.permute.xlu0 %2184
    %2188 = vset.pattern.permute.xlu0 0
    %2189 = vperm.xlu0 %2188, %v1351
    %v2190 = vpop.permute.xlu0 %2189
    %2193 = vset.pattern.permute.xlu0 0
    %2194 = vperm.xlu0 %2193, %v1352
    %v2195 = vpop.permute.xlu0 %2194
    %2198 = vset.pattern.permute.xlu0 0
    %2199 = vperm.xlu0 %2198, %v1353
    %v2200 = vpop.permute.xlu0 %2199
    %2203 = vset.pattern.permute.xlu0 0
    %2204 = vperm.xlu0 %2203, %v1354
    %v2205 = vpop.permute.xlu0 %2204
    %2208 = vset.pattern.permute.xlu0 0
    %2209 = vperm.xlu0 %2208, %v1355
    %v2210 = vpop.permute.xlu0 %2209
    %2213 = vset.pattern.permute.xlu0 0
    %2214 = vperm.xlu0 %2213, %v1356
    %v2215 = vpop.permute.xlu0 %2214
    %2218 = vset.pattern.permute.xlu0 0
    %2219 = vperm.xlu0 %2218, %v1357
    %v2220 = vpop.permute.xlu0 %2219
    %2223 = vset.pattern.permute.xlu0 0
    %2224 = vperm.xlu0 %2223, %v1358
    %v2225 = vpop.permute.xlu0 %2224
    %2228 = vset.pattern.permute.xlu0 0
    %2229 = vperm.xlu0 %2228, %v1359
    %v2230 = vpop.permute.xlu0 %2229
    %2233 = vset.pattern.permute.xlu0 0
    %2234 = vperm.xlu0 %2233, %v1360
    %v2235 = vpop.permute.xlu0 %2234
    %2238 = vset.pattern.permute.xlu0 0
    %2239 = vperm.xlu0 %2238, %v1361
    %v2240 = vpop.permute.xlu0 %2239
    %2243 = vset.pattern.permute.xlu0 0
    %2244 = vperm.xlu0 %2243, %v1362
    %v2245 = vpop.permute.xlu0 %2244
    %2248 = vset.pattern.permute.xlu0 0
    %2249 = vperm.xlu0 %2248, %v1363
    %v2250 = vpop.permute.xlu0 %2249
    %2253 = vset.pattern.permute.xlu0 0
    %2254 = vperm.xlu0 %2253, %v1364
    %v2255 = vpop.permute.xlu0 %2254
    %2258 = vset.pattern.permute.xlu0 0
    %2259 = vperm.xlu0 %2258, %v1365
    %v2260 = vpop.permute.xlu0 %2259
    %2263 = vset.pattern.permute.xlu0 0
    %2264 = vperm.xlu0 %2263, %v1366
    %v2265 = vpop.permute.xlu0 %2264
    %v3167 = vunpack.c.l.b16 %v287
    %v3168 = vunpack.c.h.b16 %v287
    %v3169 = vunpack.c.l.b16 %v288
    %v3170 = vunpack.c.h.b16 %v288
    %v3171 = vunpack.c.l.b16 %v289
    %v3172 = vunpack.c.h.b16 %v289
    %v3173 = vunpack.c.l.b16 %v290
    %v3174 = vunpack.c.h.b16 %v290
    %v3175 = vunpack.c.l.b16 %v291
    %v3176 = vunpack.c.h.b16 %v291
    %v3177 = vunpack.c.l.b16 %v292
    %v3178 = vunpack.c.h.b16 %v292
    %v3179 = vunpack.c.l.b16 %v293
    %v3180 = vunpack.c.h.b16 %v293
    %v3181 = vunpack.c.l.b16 %v294
    %v3182 = vunpack.c.h.b16 %v294
    %v3183 = vunpack.c.l.b16 %v295
    %v3184 = vunpack.c.h.b16 %v295
    %v3185 = vunpack.c.l.b16 %v296
    %v3186 = vunpack.c.h.b16 %v296
    %v3187 = vunpack.c.l.b16 %v297
    %v3188 = vunpack.c.h.b16 %v297
    %v3189 = vunpack.c.l.b16 %v298
    %v3190 = vunpack.c.h.b16 %v298
    %v3191 = vunpack.c.l.b16 %v299
    %v3192 = vunpack.c.h.b16 %v299
    %v3193 = vunpack.c.l.b16 %v300
    %v3194 = vunpack.c.h.b16 %v300
    %v3195 = vunpack.c.l.b16 %v301
    %v3196 = vunpack.c.h.b16 %v301
    %v3197 = vunpack.c.l.b16 %v302
    %v3198 = vunpack.c.h.b16 %v302
    %v3199 = vunpack.c.l.b16 %v303
    %v3200 = vunpack.c.h.b16 %v303
    %v3201 = vunpack.c.l.b16 %v304
    %v3202 = vunpack.c.h.b16 %v304
    %v3203 = vunpack.c.l.b16 %v305
    %v3204 = vunpack.c.h.b16 %v305
    %v3205 = vunpack.c.l.b16 %v306
    %v3206 = vunpack.c.h.b16 %v306
    %v3207 = vunpack.c.l.b16 %v307
    %v3208 = vunpack.c.h.b16 %v307
    %v3209 = vunpack.c.l.b16 %v308
    %v3210 = vunpack.c.h.b16 %v308
    %v3211 = vunpack.c.l.b16 %v309
    %v3212 = vunpack.c.h.b16 %v309
    %v3213 = vunpack.c.l.b16 %v310
    %v3214 = vunpack.c.h.b16 %v310
    %v3215 = vunpack.c.l.b16 %v311
    %v3216 = vunpack.c.h.b16 %v311
    %v3217 = vunpack.c.l.b16 %v312
    %v3218 = vunpack.c.h.b16 %v312
    %v3219 = vunpack.c.l.b16 %v313
    %v3220 = vunpack.c.h.b16 %v313
    %v3221 = vunpack.c.l.b16 %v314
    %v3222 = vunpack.c.h.b16 %v314
    %v3223 = vunpack.c.l.b16 %v315
    %v3224 = vunpack.c.h.b16 %v315
    %v3225 = vunpack.c.l.b16 %v316
    %v3226 = vunpack.c.h.b16 %v316
    %v3227 = vunpack.c.l.b16 %v317
    %v3228 = vunpack.c.h.b16 %v317
    %v3229 = vunpack.c.l.b16 %v318
    %v3230 = vunpack.c.h.b16 %v318
    %v3231 = vunpack.c.l.b16 %v319
    %v3232 = vunpack.c.h.b16 %v319
    %v3233 = vunpack.c.l.b16 %v320
    %v3234 = vunpack.c.h.b16 %v320
    %v3235 = vunpack.c.l.b16 %v321
    %v3236 = vunpack.c.h.b16 %v321
    %v3237 = vunpack.c.l.b16 %v322
    %v3238 = vunpack.c.h.b16 %v322
    %v3239 = vunpack.c.l.b16 %v323
    %v3240 = vunpack.c.h.b16 %v323
    %v3241 = vunpack.c.l.b16 %v324
    %v3242 = vunpack.c.h.b16 %v324
    %v3243 = vunpack.c.l.b16 %v325
    %v3244 = vunpack.c.h.b16 %v325
    %v3245 = vunpack.c.l.b16 %v326
    %v3246 = vunpack.c.h.b16 %v326
    %v3247 = vunpack.c.l.b16 %v327
    %v3248 = vunpack.c.h.b16 %v327
    %v3249 = vunpack.c.l.b16 %v328
    %v3250 = vunpack.c.h.b16 %v328
    %v3251 = vunpack.c.l.b16 %v329
    %v3252 = vunpack.c.h.b16 %v329
    %v3253 = vunpack.c.l.b16 %v330
    %v3254 = vunpack.c.h.b16 %v330
    %v3255 = vunpack.c.l.b16 %v331
    %v3256 = vunpack.c.h.b16 %v331
    %v3257 = vunpack.c.l.b16 %v332
    %v3258 = vunpack.c.h.b16 %v332
    %v3259 = vunpack.c.l.b16 %v333
    %v3260 = vunpack.c.h.b16 %v333
    %v3261 = vunpack.c.l.b16 %v334
    %v3262 = vunpack.c.h.b16 %v334
    %v3263 = vunpack.c.l.b16 %v335
    %v3264 = vunpack.c.h.b16 %v335
    %v3265 = vunpack.c.l.b16 %v336
    %v3266 = vunpack.c.h.b16 %v336
    %v3267 = vunpack.c.l.b16 %v337
    %v3268 = vunpack.c.h.b16 %v337
    %v3269 = vunpack.c.l.b16 %v338
    %v3270 = vunpack.c.h.b16 %v338
    %v3271 = vunpack.c.l.b16 %v339
    %v3272 = vunpack.c.h.b16 %v339
    %v3273 = vunpack.c.l.b16 %v340
    %v3274 = vunpack.c.h.b16 %v340
    %v3275 = vunpack.c.l.b16 %v341
    %v3276 = vunpack.c.h.b16 %v341
    %v3277 = vunpack.c.l.b16 %v342
    %v3278 = vunpack.c.h.b16 %v342
    %v3279 = vunpack.c.l.b16 %v343
    %v3280 = vunpack.c.h.b16 %v343
    %v3281 = vunpack.c.l.b16 %v344
    %v3282 = vunpack.c.h.b16 %v344
    %v3283 = vunpack.c.l.b16 %v345
    %v3284 = vunpack.c.h.b16 %v345
    %v3285 = vunpack.c.l.b16 %v346
    %v3286 = vunpack.c.h.b16 %v346
    %v3287 = vunpack.c.l.b16 %v347
    %v3288 = vunpack.c.h.b16 %v347
    %v3289 = vunpack.c.l.b16 %v348
    %v3290 = vunpack.c.h.b16 %v348
    %v3291 = vunpack.c.l.b16 %v349
    %v3292 = vunpack.c.h.b16 %v349
    %v3293 = vunpack.c.l.b16 %v350
    %v3294 = vunpack.c.h.b16 %v350
    %v3295 = vunpack.c.l.b16 %v351
    %v3296 = vunpack.c.h.b16 %v351
    %v3297 = vunpack.c.l.b16 %v352
    %v3298 = vunpack.c.h.b16 %v352
    %v3299 = vunpack.c.l.b16 %v353
    %v3300 = vunpack.c.h.b16 %v353
    %v3301 = vunpack.c.l.b16 %v354
    %v3302 = vunpack.c.h.b16 %v354
    %v3303 = vunpack.c.l.b16 %v355
    %v3304 = vunpack.c.h.b16 %v355
    %v3305 = vunpack.c.l.b16 %v356
    %v3306 = vunpack.c.h.b16 %v356
    %v3307 = vunpack.c.l.b16 %v357
    %v3308 = vunpack.c.h.b16 %v357
    %v3309 = vunpack.c.l.b16 %v358
    %v3310 = vunpack.c.h.b16 %v358
    %v3311 = vunpack.c.l.b16 %v359
    %v3312 = vunpack.c.h.b16 %v359
    %v3313 = vunpack.c.l.b16 %v360
    %v3314 = vunpack.c.h.b16 %v360
    %v3315 = vunpack.c.l.b16 %v361
    %v3316 = vunpack.c.h.b16 %v361
    %v3317 = vunpack.c.l.b16 %v362
    %v3318 = vunpack.c.h.b16 %v362
    %v3319 = vunpack.c.l.b16 %v363
    %v3320 = vunpack.c.h.b16 %v363
    %v3321 = vunpack.c.l.b16 %v364
    %v3322 = vunpack.c.h.b16 %v364
    %v3323 = vunpack.c.l.b16 %v365
    %v3324 = vunpack.c.h.b16 %v365
    %v3325 = vunpack.c.l.b16 %v366
    %v3326 = vunpack.c.h.b16 %v366
    %v3327 = vunpack.c.l.b16 %v367
    %v3328 = vunpack.c.h.b16 %v367
    %v3329 = vunpack.c.l.b16 %v368
    %v3330 = vunpack.c.h.b16 %v368
    %v3331 = vunpack.c.l.b16 %v369
    %v3332 = vunpack.c.h.b16 %v369
    %v3333 = vunpack.c.l.b16 %v370
    %v3334 = vunpack.c.h.b16 %v370
    %v3335 = vunpack.c.l.b16 %v371
    %v3336 = vunpack.c.h.b16 %v371
    %v3337 = vunpack.c.l.b16 %v372
    %v3338 = vunpack.c.h.b16 %v372
    %v3339 = vunpack.c.l.b16 %v373
    %v3340 = vunpack.c.h.b16 %v373
    %v3341 = vunpack.c.l.b16 %v374
    %v3342 = vunpack.c.h.b16 %v374
    %v3343 = vunpack.c.l.b16 %v375
    %v3344 = vunpack.c.h.b16 %v375
    %v3345 = vunpack.c.l.b16 %v376
    %v3346 = vunpack.c.h.b16 %v376
    %v3347 = vunpack.c.l.b16 %v377
    %v3348 = vunpack.c.h.b16 %v377
    %v3349 = vunpack.c.l.b16 %v378
    %v3350 = vunpack.c.h.b16 %v378
    %v3351 = vunpack.c.l.b16 %v379
    %v3352 = vunpack.c.h.b16 %v379
    %v3353 = vunpack.c.l.b16 %v380
    %v3354 = vunpack.c.h.b16 %v380
    %v3355 = vunpack.c.l.b16 %v381
    %v3356 = vunpack.c.h.b16 %v381
    %v3357 = vunpack.c.l.b16 %v382
    %v3358 = vunpack.c.h.b16 %v382
    %v3359 = vunpack.c.l.b16 %v383
    %v3360 = vunpack.c.h.b16 %v383
    %v3361 = vunpack.c.l.b16 %v384
    %v3362 = vunpack.c.h.b16 %v384
    %v3363 = vunpack.c.l.b16 %v385
    %v3364 = vunpack.c.h.b16 %v385
    %v3365 = vunpack.c.l.b16 %v386
    %v3366 = vunpack.c.h.b16 %v386
    %v3367 = vunpack.c.l.b16 %v387
    %v3368 = vunpack.c.h.b16 %v387
    %v3369 = vunpack.c.l.b16 %v388
    %v3370 = vunpack.c.h.b16 %v388
    %v3371 = vunpack.c.l.b16 %v389
    %v3372 = vunpack.c.h.b16 %v389
    %v3373 = vunpack.c.l.b16 %v390
    %v3374 = vunpack.c.h.b16 %v390
    %v3375 = vunpack.c.l.b16 %v391
    %v3376 = vunpack.c.h.b16 %v391
    %v3377 = vunpack.c.l.b16 %v392
    %v3378 = vunpack.c.h.b16 %v392
    %v3379 = vunpack.c.l.b16 %v393
    %v3380 = vunpack.c.h.b16 %v393
    %v3381 = vunpack.c.l.b16 %v394
    %v3382 = vunpack.c.h.b16 %v394
    %v3383 = vunpack.c.l.b16 %v395
    %v3384 = vunpack.c.h.b16 %v395
    %v3385 = vunpack.c.l.b16 %v396
    %v3386 = vunpack.c.h.b16 %v396
    %v3387 = vunpack.c.l.b16 %v397
    %v3388 = vunpack.c.h.b16 %v397
    %v3389 = vunpack.c.l.b16 %v398
    %v3390 = vunpack.c.h.b16 %v398
    %v3391 = vunpack.c.l.b16 %v399
    %v3392 = vunpack.c.h.b16 %v399
    %v3393 = vunpack.c.l.b16 %v400
    %v3394 = vunpack.c.h.b16 %v400
    %v3395 = vunpack.c.l.b16 %v401
    %v3396 = vunpack.c.h.b16 %v401
    %v3397 = vunpack.c.l.b16 %v402
    %v3398 = vunpack.c.h.b16 %v402
    %v3399 = vunpack.c.l.b16 %v403
    %v3400 = vunpack.c.h.b16 %v403
    %v3401 = vunpack.c.l.b16 %v404
    %v3402 = vunpack.c.h.b16 %v404
    %v3403 = vunpack.c.l.b16 %v405
    %v3404 = vunpack.c.h.b16 %v405
    %v3405 = vunpack.c.l.b16 %v406
    %v3406 = vunpack.c.h.b16 %v406
    %v3407 = vunpack.c.l.b16 %v407
    %v3408 = vunpack.c.h.b16 %v407
    %v3409 = vunpack.c.l.b16 %v408
    %v3410 = vunpack.c.h.b16 %v408
    %v3411 = vunpack.c.l.b16 %v409
    %v3412 = vunpack.c.h.b16 %v409
    %v3413 = vunpack.c.l.b16 %v410
    %v3414 = vunpack.c.h.b16 %v410
    %v3415 = vunpack.c.l.b16 %v411
    %v3416 = vunpack.c.h.b16 %v411
    %v3417 = vunpack.c.l.b16 %v412
    %v3418 = vunpack.c.h.b16 %v412
    %v3419 = vunpack.c.l.b16 %v413
    %v3420 = vunpack.c.h.b16 %v413
    %v3421 = vunpack.c.l.b16 %v414
    %v3422 = vunpack.c.h.b16 %v414
    %v3423 = vunpack.c.l.b16 %v415
    %v3424 = vunpack.c.h.b16 %v415
    %v3425 = vunpack.c.l.b16 %v416
    %v3426 = vunpack.c.h.b16 %v416
    %v3427 = vunpack.c.l.b16 %v417
    %v3428 = vunpack.c.h.b16 %v417
    %v3429 = vunpack.c.l.b16 %v418
    %v3430 = vunpack.c.h.b16 %v418
    %v3431 = vunpack.c.l.b16 %v419
    %v3432 = vunpack.c.h.b16 %v419
    %v3433 = vunpack.c.l.b16 %v420
    %v3434 = vunpack.c.h.b16 %v420
    %v3435 = vunpack.c.l.b16 %v421
    %v3436 = vunpack.c.h.b16 %v421
    %v3437 = vunpack.c.l.b16 %v422
    %v3438 = vunpack.c.h.b16 %v422
    %v3439 = vunpack.c.l.b16 %v423
    %v3440 = vunpack.c.h.b16 %v423
    %v3441 = vunpack.c.l.b16 %v424
    %v3442 = vunpack.c.h.b16 %v424
    %v3443 = vunpack.c.l.b16 %v425
    %v3444 = vunpack.c.h.b16 %v425
    %v3445 = vunpack.c.l.b16 %v426
    %v3446 = vunpack.c.h.b16 %v426
    %v3447 = vunpack.c.l.b16 %v427
    %v3448 = vunpack.c.h.b16 %v427
    %v3449 = vunpack.c.l.b16 %v428
    %v3450 = vunpack.c.h.b16 %v428
    %v3451 = vunpack.c.l.b16 %v429
    %v3452 = vunpack.c.h.b16 %v429
    %v3453 = vunpack.c.l.b16 %v430
    %v3454 = vunpack.c.h.b16 %v430
    %v3455 = vunpack.c.l.b16 %v431
    %v3456 = vunpack.c.h.b16 %v431
    %v3457 = vunpack.c.l.b16 %v432
    %v3458 = vunpack.c.h.b16 %v432
    %v3459 = vunpack.c.l.b16 %v433
    %v3460 = vunpack.c.h.b16 %v433
    %v3461 = vunpack.c.l.b16 %v434
    %v3462 = vunpack.c.h.b16 %v434
    %v3463 = vunpack.c.l.b16 %v435
    %v3464 = vunpack.c.h.b16 %v435
    %v3465 = vunpack.c.l.b16 %v436
    %v3466 = vunpack.c.h.b16 %v436
    %v3467 = vunpack.c.l.b16 %v437
    %v3468 = vunpack.c.h.b16 %v437
    %v3469 = vunpack.c.l.b16 %v438
    %v3470 = vunpack.c.h.b16 %v438
    %v3471 = vunpack.c.l.b16 %v439
    %v3472 = vunpack.c.h.b16 %v439
    %v3473 = vunpack.c.l.b16 %v440
    %v3474 = vunpack.c.h.b16 %v440
    %v3475 = vunpack.c.l.b16 %v441
    %v3476 = vunpack.c.h.b16 %v441
    %v3477 = vunpack.c.l.b16 %v442
    %v3478 = vunpack.c.h.b16 %v442
    %v3479 = vunpack.c.l.b16 %v443
    %v3480 = vunpack.c.h.b16 %v443
    %v3481 = vunpack.c.l.b16 %v444
    %v3482 = vunpack.c.h.b16 %v444
    %v3483 = vunpack.c.l.b16 %v445
    %v3484 = vunpack.c.h.b16 %v445
    %v3485 = vunpack.c.l.b16 %v446
    %v3486 = vunpack.c.h.b16 %v446
    %v3487 = vunpack.c.l.b16 %v447
    %v3488 = vunpack.c.h.b16 %v447
    %v3489 = vunpack.c.l.b16 %v448
    %v3490 = vunpack.c.h.b16 %v448
    %v3491 = vunpack.c.l.b16 %v449
    %v3492 = vunpack.c.h.b16 %v449
    %v3493 = vunpack.c.l.b16 %v450
    %v3494 = vunpack.c.h.b16 %v450
    %v3495 = vunpack.c.l.b16 %v451
    %v3496 = vunpack.c.h.b16 %v451
    %v3497 = vunpack.c.l.b16 %v452
    %v3498 = vunpack.c.h.b16 %v452
    %v3499 = vunpack.c.l.b16 %v453
    %v3500 = vunpack.c.h.b16 %v453
    %v3501 = vunpack.c.l.b16 %v454
    %v3502 = vunpack.c.h.b16 %v454
    %v3503 = vunpack.c.l.b16 %v455
    %v3504 = vunpack.c.h.b16 %v455
    %v3505 = vunpack.c.l.b16 %v456
    %v3506 = vunpack.c.h.b16 %v456
    %v3507 = vunpack.c.l.b16 %v457
    %v3508 = vunpack.c.h.b16 %v457
    %v3509 = vunpack.c.l.b16 %v458
    %v3510 = vunpack.c.h.b16 %v458
    %v3511 = vunpack.c.l.b16 %v459
    %v3512 = vunpack.c.h.b16 %v459
    %v3513 = vunpack.c.l.b16 %v460
    %v3514 = vunpack.c.h.b16 %v460
    %v3515 = vunpack.c.l.b16 %v461
    %v3516 = vunpack.c.h.b16 %v461
    %v3517 = vunpack.c.l.b16 %v462
    %v3518 = vunpack.c.h.b16 %v462
    %v3519 = vunpack.c.l.b16 %v463
    %v3520 = vunpack.c.h.b16 %v463
    %v3521 = vunpack.c.l.b16 %v464
    %v3522 = vunpack.c.h.b16 %v464
    %v3523 = vunpack.c.l.b16 %v465
    %v3524 = vunpack.c.h.b16 %v465
    %v3525 = vunpack.c.l.b16 %v466
    %v3526 = vunpack.c.h.b16 %v466
    %v3527 = vunpack.c.l.b16 %v467
    %v3528 = vunpack.c.h.b16 %v467
    %v3529 = vunpack.c.l.b16 %v468
    %v3530 = vunpack.c.h.b16 %v468
    %v3531 = vunpack.c.l.b16 %v469
    %v3532 = vunpack.c.h.b16 %v469
    %v3533 = vunpack.c.l.b16 %v470
    %v3534 = vunpack.c.h.b16 %v470
    %v3535 = vunpack.c.l.b16 %v471
    %v3536 = vunpack.c.h.b16 %v471
    %v3537 = vunpack.c.l.b16 %v472
    %v3538 = vunpack.c.h.b16 %v472
    %v3539 = vunpack.c.l.b16 %v473
    %v3540 = vunpack.c.h.b16 %v473
    %v3541 = vunpack.c.l.b16 %v474
    %v3542 = vunpack.c.h.b16 %v474
    %v3543 = vunpack.c.l.b16 %v475
    %v3544 = vunpack.c.h.b16 %v475
    %v3545 = vunpack.c.l.b16 %v476
    %v3546 = vunpack.c.h.b16 %v476
    %v3547 = vunpack.c.l.b16 %v477
    %v3548 = vunpack.c.h.b16 %v477
    %v3549 = vunpack.c.l.b16 %v478
    %v3550 = vunpack.c.h.b16 %v478
    %v3551 = vunpack.c.l.b16 %v479
    %v3552 = vunpack.c.h.b16 %v479
    %v3553 = vunpack.c.l.b16 %v480
    %v3554 = vunpack.c.h.b16 %v480
    %v3555 = vunpack.c.l.b16 %v481
    %v3556 = vunpack.c.h.b16 %v481
    %v3557 = vunpack.c.l.b16 %v482
    %v3558 = vunpack.c.h.b16 %v482
    %v3559 = vunpack.c.l.b16 %v483
    %v3560 = vunpack.c.h.b16 %v483
    %v3561 = vunpack.c.l.b16 %v484
    %v3562 = vunpack.c.h.b16 %v484
    %v3563 = vunpack.c.l.b16 %v485
    %v3564 = vunpack.c.h.b16 %v485
    %v3565 = vunpack.c.l.b16 %v486
    %v3566 = vunpack.c.h.b16 %v486
    %v3567 = vunpack.c.l.b16 %v487
    %v3568 = vunpack.c.h.b16 %v487
    %v3569 = vunpack.c.l.b16 %v488
    %v3570 = vunpack.c.h.b16 %v488
    %v3571 = vunpack.c.l.b16 %v489
    %v3572 = vunpack.c.h.b16 %v489
    %v3573 = vunpack.c.l.b16 %v490
    %v3574 = vunpack.c.h.b16 %v490
    %v3575 = vunpack.c.l.b16 %v491
    %v3576 = vunpack.c.h.b16 %v491
    %v3577 = vunpack.c.l.b16 %v492
    %v3578 = vunpack.c.h.b16 %v492
    %v3579 = vunpack.c.l.b16 %v493
    %v3580 = vunpack.c.h.b16 %v493
    %v3581 = vunpack.c.l.b16 %v494
    %v3582 = vunpack.c.h.b16 %v494
    %v3583 = vunpack.c.l.b16 %v495
    %v3584 = vunpack.c.h.b16 %v495
    %v3585 = vunpack.c.l.b16 %v496
    %v3586 = vunpack.c.h.b16 %v496
    %v3587 = vunpack.c.l.b16 %v497
    %v3588 = vunpack.c.h.b16 %v497
    %v3589 = vunpack.c.l.b16 %v498
    %v3590 = vunpack.c.h.b16 %v498
    %v3591 = vunpack.c.l.b16 %v499
    %v3592 = vunpack.c.h.b16 %v499
    %v3593 = vunpack.c.l.b16 %v500
    %v3594 = vunpack.c.h.b16 %v500
    %v3595 = vunpack.c.l.b16 %v501
    %v3596 = vunpack.c.h.b16 %v501
    %v3597 = vunpack.c.l.b16 %v502
    %v3598 = vunpack.c.h.b16 %v502
    %v3599 = vunpack.c.l.b16 %v503
    %v3600 = vunpack.c.h.b16 %v503
    %v3601 = vunpack.c.l.b16 %v504
    %v3602 = vunpack.c.h.b16 %v504
    %v3603 = vunpack.c.l.b16 %v505
    %v3604 = vunpack.c.h.b16 %v505
    %v3605 = vunpack.c.l.b16 %v506
    %v3606 = vunpack.c.h.b16 %v506
    %v3607 = vunpack.c.l.b16 %v507
    %v3608 = vunpack.c.h.b16 %v507
    %v3609 = vunpack.c.l.b16 %v508
    %v3610 = vunpack.c.h.b16 %v508
    %v3611 = vunpack.c.l.b16 %v509
    %v3612 = vunpack.c.h.b16 %v509
    %v3613 = vunpack.c.l.b16 %v510
    %v3614 = vunpack.c.h.b16 %v510
    %v3615 = vunpack.c.l.b16 %v511
    %v3616 = vunpack.c.h.b16 %v511
    %v3617 = vunpack.c.l.b16 %v512
    %v3618 = vunpack.c.h.b16 %v512
    %v3619 = vunpack.c.l.b16 %v513
    %v3620 = vunpack.c.h.b16 %v513
    %v3621 = vunpack.c.l.b16 %v514
    %v3622 = vunpack.c.h.b16 %v514
    %v3623 = vunpack.c.l.b16 %v515
    %v3624 = vunpack.c.h.b16 %v515
    %v3625 = vunpack.c.l.b16 %v516
    %v3626 = vunpack.c.h.b16 %v516
    %v3627 = vunpack.c.l.b16 %v517
    %v3628 = vunpack.c.h.b16 %v517
    %v3629 = vunpack.c.l.b16 %v518
    %v3630 = vunpack.c.h.b16 %v518
    %v3631 = vunpack.c.l.b16 %v519
    %v3632 = vunpack.c.h.b16 %v519
    %v3633 = vunpack.c.l.b16 %v520
    %v3634 = vunpack.c.h.b16 %v520
    %v3635 = vunpack.c.l.b16 %v521
    %v3636 = vunpack.c.h.b16 %v521
    %v3637 = vunpack.c.l.b16 %v522
    %v3638 = vunpack.c.h.b16 %v522
    %v3639 = vunpack.c.l.b16 %v523
    %v3640 = vunpack.c.h.b16 %v523
    %v3641 = vunpack.c.l.b16 %v524
    %v3642 = vunpack.c.h.b16 %v524
    %v3643 = vunpack.c.l.b16 %v525
    %v3644 = vunpack.c.h.b16 %v525
    %v3645 = vunpack.c.l.b16 %v526
    %v3646 = vunpack.c.h.b16 %v526
    %v3647 = vunpack.c.l.b16 %v527
    %v3648 = vunpack.c.h.b16 %v527
    %v3649 = vunpack.c.l.b16 %v528
    %v3650 = vunpack.c.h.b16 %v528
    %v3651 = vunpack.c.l.b16 %v529
    %v3652 = vunpack.c.h.b16 %v529
    %v3653 = vunpack.c.l.b16 %v530
    %v3654 = vunpack.c.h.b16 %v530
    %v3655 = vunpack.c.l.b16 %v531
    %v3656 = vunpack.c.h.b16 %v531
    %v3657 = vunpack.c.l.b16 %v532
    %v3658 = vunpack.c.h.b16 %v532
    %v3659 = vunpack.c.l.b16 %v533
    %v3660 = vunpack.c.h.b16 %v533
    %v3661 = vunpack.c.l.b16 %v534
    %v3662 = vunpack.c.h.b16 %v534
    %v3663 = vunpack.c.l.b16 %v535
    %v3664 = vunpack.c.h.b16 %v535
    %v3665 = vunpack.c.l.b16 %v536
    %v3666 = vunpack.c.h.b16 %v536
    %v3667 = vunpack.c.l.b16 %v537
    %v3668 = vunpack.c.h.b16 %v537
    %v3669 = vunpack.c.l.b16 %v538
    %v3670 = vunpack.c.h.b16 %v538
    %v3671 = vunpack.c.l.b16 %v539
    %v3672 = vunpack.c.h.b16 %v539
    %v3673 = vunpack.c.l.b16 %v540
    %v3674 = vunpack.c.h.b16 %v540
    %v3675 = vunpack.c.l.b16 %v541
    %v3676 = vunpack.c.h.b16 %v541
    %v3677 = vunpack.c.l.b16 %v542
    %v3678 = vunpack.c.h.b16 %v542
    %v3679 = vunpack.c.l.b16 %v543
    %v3680 = vunpack.c.h.b16 %v543
    %v3681 = vunpack.c.l.b16 %v544
    %v3682 = vunpack.c.h.b16 %v544
    %v3683 = vunpack.c.l.b16 %v545
    %v3684 = vunpack.c.h.b16 %v545
    %v3685 = vunpack.c.l.b16 %v546
    %v3686 = vunpack.c.h.b16 %v546
    %v3687 = vunpack.c.l.b16 %v547
    %v3688 = vunpack.c.h.b16 %v547
    %v3689 = vunpack.c.l.b16 %v548
    %v3690 = vunpack.c.h.b16 %v548
    %v3691 = vunpack.c.l.b16 %v549
    %v3692 = vunpack.c.h.b16 %v549
    %v3693 = vunpack.c.l.b16 %v550
    %v3694 = vunpack.c.h.b16 %v550
    %v3695 = vunpack.c.l.b16 %v551
    %v3696 = vunpack.c.h.b16 %v551
    %v3697 = vunpack.c.l.b16 %v552
    %v3698 = vunpack.c.h.b16 %v552
    %v3699 = vunpack.c.l.b16 %v553
    %v3700 = vunpack.c.h.b16 %v553
    %v3701 = vunpack.c.l.b16 %v554
    %v3702 = vunpack.c.h.b16 %v554
    %v3703 = vunpack.c.l.b16 %v555
    %v3704 = vunpack.c.h.b16 %v555
    %v3705 = vunpack.c.l.b16 %v556
    %v3706 = vunpack.c.h.b16 %v556
    %v3707 = vunpack.c.l.b16 %v557
    %v3708 = vunpack.c.h.b16 %v557
    %v3709 = vunpack.c.l.b16 %v558
    %v3710 = vunpack.c.h.b16 %v558
    %v3711 = vunpack.c.l.b16 %v559
    %v3712 = vunpack.c.h.b16 %v559
    %v3713 = vunpack.c.l.b16 %v560
    %v3714 = vunpack.c.h.b16 %v560
    %v3715 = vunpack.c.l.b16 %v561
    %v3716 = vunpack.c.h.b16 %v561
    %v3717 = vunpack.c.l.b16 %v562
    %v3718 = vunpack.c.h.b16 %v562
    %v3719 = vunpack.c.l.b16 %v563
    %v3720 = vunpack.c.h.b16 %v563
    %v3721 = vunpack.c.l.b16 %v564
    %v3722 = vunpack.c.h.b16 %v564
    %v3723 = vunpack.c.l.b16 %v565
    %v3724 = vunpack.c.h.b16 %v565
    %v3725 = vunpack.c.l.b16 %v566
    %v3726 = vunpack.c.h.b16 %v566
    %v3727 = vunpack.c.l.b16 %v567
    %v3728 = vunpack.c.h.b16 %v567
    %v3729 = vunpack.c.l.b16 %v568
    %v3730 = vunpack.c.h.b16 %v568
    %v3731 = vunpack.c.l.b16 %v569
    %v3732 = vunpack.c.h.b16 %v569
    %v3733 = vunpack.c.l.b16 %v570
    %v3734 = vunpack.c.h.b16 %v570
    %v3735 = vunpack.c.l.b16 %v571
    %v3736 = vunpack.c.h.b16 %v571
    %v3737 = vunpack.c.l.b16 %v572
    %v3738 = vunpack.c.h.b16 %v572
    %v3739 = vunpack.c.l.b16 %v573
    %v3740 = vunpack.c.h.b16 %v573
    %v3741 = vunpack.c.l.b16 %v574
    %v3742 = vunpack.c.h.b16 %v574
    %v3743 = vunpack.c.l.b16 %v575
    %v3744 = vunpack.c.h.b16 %v575
    %v3745 = vunpack.c.l.b16 %v576
    %v3746 = vunpack.c.h.b16 %v576
    %v3747 = vunpack.c.l.b16 %v577
    %v3748 = vunpack.c.h.b16 %v577
    %v3749 = vunpack.c.l.b16 %v578
    %v3750 = vunpack.c.h.b16 %v578
    %v3751 = vunpack.c.l.b16 %v579
    %v3752 = vunpack.c.h.b16 %v579
    %v3753 = vunpack.c.l.b16 %v580
    %v3754 = vunpack.c.h.b16 %v580
    %v3755 = vunpack.c.l.b16 %v581
    %v3756 = vunpack.c.h.b16 %v581
    %v3757 = vunpack.c.l.b16 %v582
    %v3758 = vunpack.c.h.b16 %v582
    %v3759 = vunpack.c.l.b16 %v583
    %v3760 = vunpack.c.h.b16 %v583
    %v3761 = vunpack.c.l.b16 %v584
    %v3762 = vunpack.c.h.b16 %v584
    %v3763 = vunpack.c.l.b16 %v585
    %v3764 = vunpack.c.h.b16 %v585
    %v3765 = vunpack.c.l.b16 %v586
    %v3766 = vunpack.c.h.b16 %v586
    %v3767 = vunpack.c.l.b16 %v587
    %v3768 = vunpack.c.h.b16 %v587
    %v3769 = vunpack.c.l.b16 %v588
    %v3770 = vunpack.c.h.b16 %v588
    %v3771 = vunpack.c.l.b16 %v589
    %v3772 = vunpack.c.h.b16 %v589
    %v3773 = vunpack.c.l.b16 %v590
    %v3774 = vunpack.c.h.b16 %v590
    %v3775 = vunpack.c.l.b16 %v591
    %v3776 = vunpack.c.h.b16 %v591
    %v3777 = vunpack.c.l.b16 %v592
    %v3778 = vunpack.c.h.b16 %v592
    %v3779 = vunpack.c.l.b16 %v593
    %v3780 = vunpack.c.h.b16 %v593
    %v3781 = vunpack.c.l.b16 %v594
    %v3782 = vunpack.c.h.b16 %v594
    %v3783 = vunpack.c.l.b16 %v595
    %v3784 = vunpack.c.h.b16 %v595
    %v3785 = vunpack.c.l.b16 %v596
    %v3786 = vunpack.c.h.b16 %v596
    %v3787 = vunpack.c.l.b16 %v597
    %v3788 = vunpack.c.h.b16 %v597
    %v3789 = vunpack.c.l.b16 %v598
    %v3790 = vunpack.c.h.b16 %v598
    %v3791 = vunpack.c.l.b16 %v599
    %v3792 = vunpack.c.h.b16 %v599
    %v3793 = vunpack.c.l.b16 %v600
    %v3794 = vunpack.c.h.b16 %v600
    %v3795 = vunpack.c.l.b16 %v601
    %v3796 = vunpack.c.h.b16 %v601
    %v3797 = vunpack.c.l.b16 %v602
    %v3798 = vunpack.c.h.b16 %v602
    %v3799 = vunpack.c.l.b16 %v603
    %v3800 = vunpack.c.h.b16 %v603
    %v3801 = vunpack.c.l.b16 %v604
    %v3802 = vunpack.c.h.b16 %v604
    %v3803 = vunpack.c.l.b16 %v605
    %v3804 = vunpack.c.h.b16 %v605
    %v3805 = vunpack.c.l.b16 %v606
    %v3806 = vunpack.c.h.b16 %v606
    %v3807 = vunpack.c.l.b16 %v607
    %v3808 = vunpack.c.h.b16 %v607
    %v3809 = vunpack.c.l.b16 %v608
    %v3810 = vunpack.c.h.b16 %v608
    %v3811 = vunpack.c.l.b16 %v609
    %v3812 = vunpack.c.h.b16 %v609
    %v3813 = vunpack.c.l.b16 %v610
    %v3814 = vunpack.c.h.b16 %v610
    %v3815 = vunpack.c.l.b16 %v611
    %v3816 = vunpack.c.h.b16 %v611
    %v3817 = vunpack.c.l.b16 %v612
    %v3818 = vunpack.c.h.b16 %v612
    %v3819 = vunpack.c.l.b16 %v613
    %v3820 = vunpack.c.h.b16 %v613
    %v3821 = vunpack.c.l.b16 %v614
    %v3822 = vunpack.c.h.b16 %v614
    %v3823 = vunpack.c.l.b16 %v615
    %v3824 = vunpack.c.h.b16 %v615
    %v3825 = vunpack.c.l.b16 %v616
    %v3826 = vunpack.c.h.b16 %v616
    %v3827 = vunpack.c.l.b16 %v617
    %v3828 = vunpack.c.h.b16 %v617
    %v3829 = vunpack.c.l.b16 %v618
    %v3830 = vunpack.c.h.b16 %v618
    %v3831 = vunpack.c.l.b16 %v619
    %v3832 = vunpack.c.h.b16 %v619
    %v3833 = vunpack.c.l.b16 %v620
    %v3834 = vunpack.c.h.b16 %v620
    %v3835 = vunpack.c.l.b16 %v621
    %v3836 = vunpack.c.h.b16 %v621
    %v3837 = vunpack.c.l.b16 %v622
    %v3838 = vunpack.c.h.b16 %v622
    %v3839 = vunpack.c.l.b16 %v623
    %v3840 = vunpack.c.h.b16 %v623
    %v3841 = vunpack.c.l.b16 %v624
    %v3842 = vunpack.c.h.b16 %v624
    %v3843 = vunpack.c.l.b16 %v625
    %v3844 = vunpack.c.h.b16 %v625
    %v3845 = vunpack.c.l.b16 %v626
    %v3846 = vunpack.c.h.b16 %v626
    %v3847 = vunpack.c.l.b16 %v627
    %v3848 = vunpack.c.h.b16 %v627
    %v3849 = vunpack.c.l.b16 %v628
    %v3850 = vunpack.c.h.b16 %v628
    %v3851 = vunpack.c.l.b16 %v629
    %v3852 = vunpack.c.h.b16 %v629
    %v3853 = vunpack.c.l.b16 %v630
    %v3854 = vunpack.c.h.b16 %v630
    %v3855 = vunpack.c.l.b16 %v631
    %v3856 = vunpack.c.h.b16 %v631
    %v3857 = vunpack.c.l.b16 %v632
    %v3858 = vunpack.c.h.b16 %v632
    %v3859 = vunpack.c.l.b16 %v633
    %v3860 = vunpack.c.h.b16 %v633
    %v3861 = vunpack.c.l.b16 %v634
    %v3862 = vunpack.c.h.b16 %v634
    %v3863 = vunpack.c.l.b16 %v635
    %v3864 = vunpack.c.h.b16 %v635
    %v3865 = vunpack.c.l.b16 %v636
    %v3866 = vunpack.c.h.b16 %v636
    %v3867 = vunpack.c.l.b16 %v637
    %v3868 = vunpack.c.h.b16 %v637
    %v3869 = vunpack.c.l.b16 %v638
    %v3870 = vunpack.c.h.b16 %v638
    %v3871 = vunpack.c.l.b16 %v639
    %v3872 = vunpack.c.h.b16 %v639
    %v3873 = vunpack.c.l.b16 %v640
    %v3874 = vunpack.c.h.b16 %v640
    %v3875 = vunpack.c.l.b16 %v641
    %v3876 = vunpack.c.h.b16 %v641
    %v3877 = vunpack.c.l.b16 %v642
    %v3878 = vunpack.c.h.b16 %v642
    %v3879 = vunpack.c.l.b16 %v643
    %v3880 = vunpack.c.h.b16 %v643
    %v3881 = vunpack.c.l.b16 %v644
    %v3882 = vunpack.c.h.b16 %v644
    %v3883 = vunpack.c.l.b16 %v645
    %v3884 = vunpack.c.h.b16 %v645
    %v3885 = vunpack.c.l.b16 %v646
    %v3886 = vunpack.c.h.b16 %v646
    %v3887 = vunpack.c.l.b16 %v647
    %v3888 = vunpack.c.h.b16 %v647
    %v3889 = vunpack.c.l.b16 %v648
    %v3890 = vunpack.c.h.b16 %v648
    %v3891 = vunpack.c.l.b16 %v649
    %v3892 = vunpack.c.h.b16 %v649
    %v3893 = vunpack.c.l.b16 %v650
    %v3894 = vunpack.c.h.b16 %v650
    %v3895 = vunpack.c.l.b16 %v651
    %v3896 = vunpack.c.h.b16 %v651
    %v3897 = vunpack.c.l.b16 %v652
    %v3898 = vunpack.c.h.b16 %v652
    %v3899 = vunpack.c.l.b16 %v653
    %v3900 = vunpack.c.h.b16 %v653
    %v3901 = vunpack.c.l.b16 %v654
    %v3902 = vunpack.c.h.b16 %v654
    %v3903 = vunpack.c.l.b16 %v655
    %v3904 = vunpack.c.h.b16 %v655
    %v3905 = vunpack.c.l.b16 %v656
    %v3906 = vunpack.c.h.b16 %v656
    %v3907 = vunpack.c.l.b16 %v657
    %v3908 = vunpack.c.h.b16 %v657
    %v3909 = vunpack.c.l.b16 %v658
    %v3910 = vunpack.c.h.b16 %v658
    %v3911 = vunpack.c.l.b16 %v659
    %v3912 = vunpack.c.h.b16 %v659
    %v3913 = vunpack.c.l.b16 %v660
    %v3914 = vunpack.c.h.b16 %v660
    %v3915 = vunpack.c.l.b16 %v661
    %v3916 = vunpack.c.h.b16 %v661
    %v3917 = vunpack.c.l.b16 %v662
    %v3918 = vunpack.c.h.b16 %v662
    %v3919 = vunpack.c.l.b16 %v663
    %v3920 = vunpack.c.h.b16 %v663
    %v3921 = vunpack.c.l.b16 %v664
    %v3922 = vunpack.c.h.b16 %v664
    %v3923 = vunpack.c.l.b16 %v665
    %v3924 = vunpack.c.h.b16 %v665
    %v3925 = vunpack.c.l.b16 %v666
    %v3926 = vunpack.c.h.b16 %v666
    %v3927 = vunpack.c.l.b16 %v667
    %v3928 = vunpack.c.h.b16 %v667
    %v3929 = vunpack.c.l.b16 %v668
    %v3930 = vunpack.c.h.b16 %v668
    %v3931 = vunpack.c.l.b16 %v669
    %v3932 = vunpack.c.h.b16 %v669
    %v3933 = vunpack.c.l.b16 %v670
    %v3934 = vunpack.c.h.b16 %v670
    %v3935 = vunpack.c.l.b16 %v671
    %v3936 = vunpack.c.h.b16 %v671
    %v3937 = vunpack.c.l.b16 %v672
    %v3938 = vunpack.c.h.b16 %v672
    %v3939 = vunpack.c.l.b16 %v673
    %v3940 = vunpack.c.h.b16 %v673
    %v3941 = vunpack.c.l.b16 %v674
    %v3942 = vunpack.c.h.b16 %v674
    %v3943 = vunpack.c.l.b16 %v675
    %v3944 = vunpack.c.h.b16 %v675
    %v3945 = vunpack.c.l.b16 %v676
    %v3946 = vunpack.c.h.b16 %v676
    %v3947 = vunpack.c.l.b16 %v677
    %v3948 = vunpack.c.h.b16 %v677
    %v3949 = vunpack.c.l.b16 %v678
    %v3950 = vunpack.c.h.b16 %v678
    %v3951 = vunpack.c.l.b16 %v679
    %v3952 = vunpack.c.h.b16 %v679
    %v3953 = vunpack.c.l.b16 %v680
    %v3954 = vunpack.c.h.b16 %v680
    %v3955 = vunpack.c.l.b16 %v681
    %v3956 = vunpack.c.h.b16 %v681
    %v3957 = vunpack.c.l.b16 %v682
    %v3958 = vunpack.c.h.b16 %v682
    %v3959 = vunpack.c.l.b16 %v683
    %v3960 = vunpack.c.h.b16 %v683
    %v3961 = vunpack.c.l.b16 %v684
    %v3962 = vunpack.c.h.b16 %v684
    %v3963 = vunpack.c.l.b16 %v685
    %v3964 = vunpack.c.h.b16 %v685
    %v3965 = vunpack.c.l.b16 %v686
    %v3966 = vunpack.c.h.b16 %v686
    %v3967 = vunpack.c.l.b16 %v687
    %v3968 = vunpack.c.h.b16 %v687
    %v3969 = vunpack.c.l.b16 %v688
    %v3970 = vunpack.c.h.b16 %v688
    %v3971 = vunpack.c.l.b16 %v689
    %v3972 = vunpack.c.h.b16 %v689
    %v3973 = vunpack.c.l.b16 %v690
    %v3974 = vunpack.c.h.b16 %v690
    %v3975 = vunpack.c.l.b16 %v691
    %v3976 = vunpack.c.h.b16 %v691
    %v3977 = vunpack.c.l.b16 %v692
    %v3978 = vunpack.c.h.b16 %v692
    %v3979 = vunpack.c.l.b16 %v693
    %v3980 = vunpack.c.h.b16 %v693
    %v3981 = vunpack.c.l.b16 %v694
    %v3982 = vunpack.c.h.b16 %v694
    %v3983 = vunpack.c.l.b16 %v695
    %v3984 = vunpack.c.h.b16 %v695
    %v3985 = vunpack.c.l.b16 %v696
    %v3986 = vunpack.c.h.b16 %v696
    %v3987 = vunpack.c.l.b16 %v697
    %v3988 = vunpack.c.h.b16 %v697
    %v3989 = vunpack.c.l.b16 %v698
    %v3990 = vunpack.c.h.b16 %v698
    %v3991 = vunpack.c.l.b16 %v699
    %v3992 = vunpack.c.h.b16 %v699
    %v3993 = vunpack.c.l.b16 %v700
    %v3994 = vunpack.c.h.b16 %v700
    %v3995 = vunpack.c.l.b16 %v701
    %v3996 = vunpack.c.h.b16 %v701
    %v3997 = vunpack.c.l.b16 %v702
    %v3998 = vunpack.c.h.b16 %v702
    %v3999 = vunpack.c.l.b16 %v703
    %v4000 = vunpack.c.h.b16 %v703
    %v4001 = vunpack.c.l.b16 %v704
    %v4002 = vunpack.c.h.b16 %v704
    %v4003 = vunpack.c.l.b16 %v705
    %v4004 = vunpack.c.h.b16 %v705
    %v4005 = vunpack.c.l.b16 %v706
    %v4006 = vunpack.c.h.b16 %v706
    %v4007 = vunpack.c.l.b16 %v707
    %v4008 = vunpack.c.h.b16 %v707
    %v4009 = vunpack.c.l.b16 %v708
    %v4010 = vunpack.c.h.b16 %v708
    %v4011 = vunpack.c.l.b16 %v709
    %v4012 = vunpack.c.h.b16 %v709
    %v4013 = vunpack.c.l.b16 %v710
    %v4014 = vunpack.c.h.b16 %v710
    %v4015 = vunpack.c.l.b16 %v711
    %v4016 = vunpack.c.h.b16 %v711
    %v4017 = vunpack.c.l.b16 %v712
    %v4018 = vunpack.c.h.b16 %v712
    %v4019 = vunpack.c.l.b16 %v713
    %v4020 = vunpack.c.h.b16 %v713
    %v4021 = vunpack.c.l.b16 %v714
    %v4022 = vunpack.c.h.b16 %v714
    %v4023 = vunpack.c.l.b16 %v715
    %v4024 = vunpack.c.h.b16 %v715
    %v4025 = vunpack.c.l.b16 %v716
    %v4026 = vunpack.c.h.b16 %v716
    %v4027 = vunpack.c.l.b16 %v717
    %v4028 = vunpack.c.h.b16 %v717
    %v4029 = vunpack.c.l.b16 %v718
    %v4030 = vunpack.c.h.b16 %v718
    %v4031 = vunpack.c.l.b16 %v719
    %v4032 = vunpack.c.h.b16 %v719
    %v4033 = vunpack.c.l.b16 %v720
    %v4034 = vunpack.c.h.b16 %v720
    %v4035 = vunpack.c.l.b16 %v721
    %v4036 = vunpack.c.h.b16 %v721
    %v4037 = vunpack.c.l.b16 %v722
    %v4038 = vunpack.c.h.b16 %v722
    %v4039 = vunpack.c.l.b16 %v723
    %v4040 = vunpack.c.h.b16 %v723
    %v4041 = vunpack.c.l.b16 %v724
    %v4042 = vunpack.c.h.b16 %v724
    %v4043 = vunpack.c.l.b16 %v725
    %v4044 = vunpack.c.h.b16 %v725
    %v4045 = vunpack.c.l.b16 %v726
    %v4046 = vunpack.c.h.b16 %v726
    %v4047 = vunpack.c.l.b16 %v727
    %v4048 = vunpack.c.h.b16 %v727
    %v4049 = vunpack.c.l.b16 %v728
    %v4050 = vunpack.c.h.b16 %v728
    %v4051 = vunpack.c.l.b16 %v729
    %v4052 = vunpack.c.h.b16 %v729
    %v4053 = vunpack.c.l.b16 %v730
    %v4054 = vunpack.c.h.b16 %v730
    %v4055 = vunpack.c.l.b16 %v731
    %v4056 = vunpack.c.h.b16 %v731
    %v4057 = vunpack.c.l.b16 %v732
    %v4058 = vunpack.c.h.b16 %v732
    %v4059 = vunpack.c.l.b16 %v733
    %v4060 = vunpack.c.h.b16 %v733
    %v4061 = vunpack.c.l.b16 %v734
    %v4062 = vunpack.c.h.b16 %v734
    %v4063 = vunpack.c.l.b16 %v735
    %v4064 = vunpack.c.h.b16 %v735
    %v4065 = vunpack.c.l.b16 %v736
    %v4066 = vunpack.c.h.b16 %v736
    %v4067 = vunpack.c.l.b16 %v737
    %v4068 = vunpack.c.h.b16 %v737
    %v4069 = vunpack.c.l.b16 %v738
    %v4070 = vunpack.c.h.b16 %v738
    %v4071 = vunpack.c.l.b16 %v739
    %v4072 = vunpack.c.h.b16 %v739
    %v4073 = vunpack.c.l.b16 %v740
    %v4074 = vunpack.c.h.b16 %v740
    %v4075 = vunpack.c.l.b16 %v741
    %v4076 = vunpack.c.h.b16 %v741
    %v4077 = vunpack.c.l.b16 %v742
    %v4078 = vunpack.c.h.b16 %v742
    %v4079 = vunpack.c.l.b16 %v743
    %v4080 = vunpack.c.h.b16 %v743
    %v4081 = vunpack.c.l.b16 %v744
    %v4082 = vunpack.c.h.b16 %v744
    %v4083 = vunpack.c.l.b16 %v745
    %v4084 = vunpack.c.h.b16 %v745
    %v4085 = vunpack.c.l.b16 %v746
    %v4086 = vunpack.c.h.b16 %v746
    %v4087 = vunpack.c.l.b16 %v747
    %v4088 = vunpack.c.h.b16 %v747
    %v4089 = vunpack.c.l.b16 %v748
    %v4090 = vunpack.c.h.b16 %v748
    %v4091 = vunpack.c.l.b16 %v749
    %v4092 = vunpack.c.h.b16 %v749
    %v4093 = vunpack.c.l.b16 %v750
    %v4094 = vunpack.c.h.b16 %v750
    %v4095 = vunpack.c.l.b16 %v751
    %v4096 = vunpack.c.h.b16 %v751
    %v4097 = vunpack.c.l.b16 %v752
    %v4098 = vunpack.c.h.b16 %v752
    %v4099 = vunpack.c.l.b16 %v753
    %v4100 = vunpack.c.h.b16 %v753
    %v4101 = vunpack.c.l.b16 %v754
    %v4102 = vunpack.c.h.b16 %v754
    %v4103 = vunpack.c.l.b16 %v755
    %v4104 = vunpack.c.h.b16 %v755
    %v4105 = vunpack.c.l.b16 %v756
    %v4106 = vunpack.c.h.b16 %v756
    %v4107 = vunpack.c.l.b16 %v757
    %v4108 = vunpack.c.h.b16 %v757
    %v4109 = vunpack.c.l.b16 %v758
    %v4110 = vunpack.c.h.b16 %v758
    %v4111 = vunpack.c.l.b16 %v759
    %v4112 = vunpack.c.h.b16 %v759
    %v4113 = vunpack.c.l.b16 %v760
    %v4114 = vunpack.c.h.b16 %v760
    %v4115 = vunpack.c.l.b16 %v761
    %v4116 = vunpack.c.h.b16 %v761
    %v4117 = vunpack.c.l.b16 %v762
    %v4118 = vunpack.c.h.b16 %v762
    %v4119 = vunpack.c.l.b16 %v763
    %v4120 = vunpack.c.h.b16 %v763
    %v4121 = vunpack.c.l.b16 %v764
    %v4122 = vunpack.c.h.b16 %v764
    %v4123 = vunpack.c.l.b16 %v765
    %v4124 = vunpack.c.h.b16 %v765
    %v4125 = vunpack.c.l.b16 %v766
    %v4126 = vunpack.c.h.b16 %v766
    %v4127 = vunpack.c.l.b16 %v767
    %v4128 = vunpack.c.h.b16 %v767
    %v4129 = vunpack.c.l.b16 %v768
    %v4130 = vunpack.c.h.b16 %v768
    %v4131 = vunpack.c.l.b16 %v769
    %v4132 = vunpack.c.h.b16 %v769
    %v4133 = vunpack.c.l.b16 %v770
    %v4134 = vunpack.c.h.b16 %v770
    %v4135 = vunpack.c.l.b16 %v771
    %v4136 = vunpack.c.h.b16 %v771
    %v4137 = vunpack.c.l.b16 %v772
    %v4138 = vunpack.c.h.b16 %v772
    %v4139 = vunpack.c.l.b16 %v773
    %v4140 = vunpack.c.h.b16 %v773
    %v4141 = vunpack.c.l.b16 %v774
    %v4142 = vunpack.c.h.b16 %v774
    %v4143 = vunpack.c.l.b16 %v775
    %v4144 = vunpack.c.h.b16 %v775
    %v4145 = vunpack.c.l.b16 %v776
    %v4146 = vunpack.c.h.b16 %v776
    %v4147 = vunpack.c.l.b16 %v777
    %v4148 = vunpack.c.h.b16 %v777
    %v4149 = vunpack.c.l.b16 %v778
    %v4150 = vunpack.c.h.b16 %v778
    %v4151 = vunpack.c.l.b16 %v779
    %v4152 = vunpack.c.h.b16 %v779
    %v4153 = vunpack.c.l.b16 %v780
    %v4154 = vunpack.c.h.b16 %v780
    %v4155 = vunpack.c.l.b16 %v781
    %v4156 = vunpack.c.h.b16 %v781
    %v4157 = vunpack.c.l.b16 %v782
    %v4158 = vunpack.c.h.b16 %v782
    %v4159 = vunpack.c.l.b16 %v783
    %v4160 = vunpack.c.h.b16 %v783
    %v4161 = vunpack.c.l.b16 %v784
    %v4162 = vunpack.c.h.b16 %v784
    %v4163 = vunpack.c.l.b16 %v785
    %v4164 = vunpack.c.h.b16 %v785
    %v4165 = vunpack.c.l.b16 %v786
    %v4166 = vunpack.c.h.b16 %v786
    %v4167 = vunpack.c.l.b16 %v787
    %v4168 = vunpack.c.h.b16 %v787
    %v4169 = vunpack.c.l.b16 %v788
    %v4170 = vunpack.c.h.b16 %v788
    %v4171 = vunpack.c.l.b16 %v789
    %v4172 = vunpack.c.h.b16 %v789
    %v4173 = vunpack.c.l.b16 %v790
    %v4174 = vunpack.c.h.b16 %v790
    %v4175 = vunpack.c.l.b16 %v791
    %v4176 = vunpack.c.h.b16 %v791
    %v4177 = vunpack.c.l.b16 %v792
    %v4178 = vunpack.c.h.b16 %v792
    %v4179 = vunpack.c.l.b16 %v793
    %v4180 = vunpack.c.h.b16 %v793
    %v4181 = vunpack.c.l.b16 %v794
    %v4182 = vunpack.c.h.b16 %v794
    %v4183 = vunpack.c.l.b16 %v795
    %v4184 = vunpack.c.h.b16 %v795
    %v4185 = vunpack.c.l.b16 %v796
    %v4186 = vunpack.c.h.b16 %v796
    %v4187 = vunpack.c.l.b16 %v797
    %v4188 = vunpack.c.h.b16 %v797
    %v4189 = vunpack.c.l.b16 %v798
    %v4190 = vunpack.c.h.b16 %v798
    %v4191 = vunpack.c.l.b16 %v799
    %v4192 = vunpack.c.h.b16 %v799
    %v4193 = vunpack.c.l.b16 %v800
    %v4194 = vunpack.c.h.b16 %v800
    %v4195 = vunpack.c.l.b16 %v801
    %v4196 = vunpack.c.h.b16 %v801
    %v4197 = vunpack.c.l.b16 %v802
    %v4198 = vunpack.c.h.b16 %v802
    %v4199 = vunpack.c.l.b16 %v803
    %v4200 = vunpack.c.h.b16 %v803
    %v4201 = vunpack.c.l.b16 %v804
    %v4202 = vunpack.c.h.b16 %v804
    %v4203 = vunpack.c.l.b16 %v805
    %v4204 = vunpack.c.h.b16 %v805
    %v4205 = vunpack.c.l.b16 %v806
    %v4206 = vunpack.c.h.b16 %v806
    %v4207 = vunpack.c.l.b16 %v807
    %v4208 = vunpack.c.h.b16 %v807
    %v4209 = vunpack.c.l.b16 %v808
    %v4210 = vunpack.c.h.b16 %v808
    %v4211 = vunpack.c.l.b16 %v809
    %v4212 = vunpack.c.h.b16 %v809
    %v4213 = vunpack.c.l.b16 %v810
    %v4214 = vunpack.c.h.b16 %v810
    %v4215 = vunpack.c.l.b16 %v811
    %v4216 = vunpack.c.h.b16 %v811
    %v4217 = vunpack.c.l.b16 %v812
    %v4218 = vunpack.c.h.b16 %v812
    %v4219 = vunpack.c.l.b16 %v813
    %v4220 = vunpack.c.h.b16 %v813
    %v4221 = vunpack.c.l.b16 %v814
    %v4222 = vunpack.c.h.b16 %v814
    %v4223 = vunpack.c.l.b16 %v815
    %v4224 = vunpack.c.h.b16 %v815
    %v4225 = vunpack.c.l.b16 %v816
    %v4226 = vunpack.c.h.b16 %v816
    %v4227 = vunpack.c.l.b16 %v817
    %v4228 = vunpack.c.h.b16 %v817
    %v4229 = vunpack.c.l.b16 %v818
    %v4230 = vunpack.c.h.b16 %v818
    %v4231 = vunpack.c.l.b16 %v819
    %v4232 = vunpack.c.h.b16 %v819
    %v4233 = vunpack.c.l.b16 %v820
    %v4234 = vunpack.c.h.b16 %v820
    %v4235 = vunpack.c.l.b16 %v821
    %v4236 = vunpack.c.h.b16 %v821
    %v4237 = vunpack.c.l.b16 %v822
    %v4238 = vunpack.c.h.b16 %v822
    %v4239 = vunpack.c.l.b16 %v823
    %v4240 = vunpack.c.h.b16 %v823
    %v4241 = vunpack.c.l.b16 %v824
    %v4242 = vunpack.c.h.b16 %v824
    %v4243 = vunpack.c.l.b16 %v825
    %v4244 = vunpack.c.h.b16 %v825
    %v4245 = vunpack.c.l.b16 %v826
    %v4246 = vunpack.c.h.b16 %v826
    %v4247 = vunpack.c.l.b16 %v827
    %v4248 = vunpack.c.h.b16 %v827
    %v4249 = vunpack.c.l.b16 %v828
    %v4250 = vunpack.c.h.b16 %v828
    %v4251 = vunpack.c.l.b16 %v829
    %v4252 = vunpack.c.h.b16 %v829
    %v4253 = vunpack.c.l.b16 %v830
    %v4254 = vunpack.c.h.b16 %v830
    %v4255 = vunpack.c.l.b16 %v831
    %v4256 = vunpack.c.h.b16 %v831
    %v4257 = vunpack.c.l.b16 %v832
    %v4258 = vunpack.c.h.b16 %v832
    %v4259 = vunpack.c.l.b16 %v833
    %v4260 = vunpack.c.h.b16 %v833
    %v4261 = vunpack.c.l.b16 %v834
    %v4262 = vunpack.c.h.b16 %v834
    %v4263 = vunpack.c.l.b16 %v835
    %v4264 = vunpack.c.h.b16 %v835
    %v4265 = vunpack.c.l.b16 %v836
    %v4266 = vunpack.c.h.b16 %v836
    %v4267 = vunpack.c.l.b16 %v837
    %v4268 = vunpack.c.h.b16 %v837
    %v4269 = vunpack.c.l.b16 %v838
    %v4270 = vunpack.c.h.b16 %v838
    %v4271 = vunpack.c.l.b16 %v839
    %v4272 = vunpack.c.h.b16 %v839
    %v4273 = vunpack.c.l.b16 %v840
    %v4274 = vunpack.c.h.b16 %v840
    %v4275 = vunpack.c.l.b16 %v841
    %v4276 = vunpack.c.h.b16 %v841
    %v4277 = vunpack.c.l.b16 %v842
    %v4278 = vunpack.c.h.b16 %v842
    %v4279 = vunpack.c.l.b16 %v843
    %v4280 = vunpack.c.h.b16 %v843
    %v4281 = vunpack.c.l.b16 %v844
    %v4282 = vunpack.c.h.b16 %v844
    %v4283 = vunpack.c.l.b16 %v845
    %v4284 = vunpack.c.h.b16 %v845
    %v4285 = vunpack.c.l.b16 %v846
    %v4286 = vunpack.c.h.b16 %v846
    %v4287 = vunpack.c.l.b16 %v847
    %v4288 = vunpack.c.h.b16 %v847
    %v4289 = vunpack.c.l.b16 %v848
    %v4290 = vunpack.c.h.b16 %v848
    %v4291 = vunpack.c.l.b16 %v849
    %v4292 = vunpack.c.h.b16 %v849
    %v4293 = vunpack.c.l.b16 %v850
    %v4294 = vunpack.c.h.b16 %v850
    %v4295 = vunpack.c.l.b16 %v851
    %v4296 = vunpack.c.h.b16 %v851
    %v4297 = vunpack.c.l.b16 %v852
    %v4298 = vunpack.c.h.b16 %v852
    %v4299 = vunpack.c.l.b16 %v853
    %v4300 = vunpack.c.h.b16 %v853
    %v4301 = vunpack.c.l.b16 %v854
    %v4302 = vunpack.c.h.b16 %v854
    %v4303 = vunpack.c.l.b16 %v855
    %v4304 = vunpack.c.h.b16 %v855
    %v4305 = vunpack.c.l.b16 %v856
    %v4306 = vunpack.c.h.b16 %v856
    %v4307 = vunpack.c.l.b16 %v857
    %v4308 = vunpack.c.h.b16 %v857
    %v4309 = vunpack.c.l.b16 %v858
    %v4310 = vunpack.c.h.b16 %v858
    %v4311 = vunpack.c.l.b16 %v859
    %v4312 = vunpack.c.h.b16 %v859
    %v4313 = vunpack.c.l.b16 %v860
    %v4314 = vunpack.c.h.b16 %v860
    %v4315 = vunpack.c.l.b16 %v861
    %v4316 = vunpack.c.h.b16 %v861
    %v4317 = vunpack.c.l.b16 %v862
    %v4318 = vunpack.c.h.b16 %v862
    %v4319 = vunpack.c.l.b16 %v863
    %v4320 = vunpack.c.h.b16 %v863
    %v4321 = vunpack.c.l.b16 %v864
    %v4322 = vunpack.c.h.b16 %v864
    %v4323 = vunpack.c.l.b16 %v865
    %v4324 = vunpack.c.h.b16 %v865
    %v4325 = vunpack.c.l.b16 %v866
    %v4326 = vunpack.c.h.b16 %v866
    %v4327 = vunpack.c.l.b16 %v867
    %v4328 = vunpack.c.h.b16 %v867
    %v4329 = vunpack.c.l.b16 %v868
    %v4330 = vunpack.c.h.b16 %v868
    %v4331 = vunpack.c.l.b16 %v869
    %v4332 = vunpack.c.h.b16 %v869
    %v4333 = vunpack.c.l.b16 %v870
    %v4334 = vunpack.c.h.b16 %v870
    %v4335 = vunpack.c.l.b16 %v871
    %v4336 = vunpack.c.h.b16 %v871
    %v4337 = vunpack.c.l.b16 %v872
    %v4338 = vunpack.c.h.b16 %v872
    %v4339 = vunpack.c.l.b16 %v873
    %v4340 = vunpack.c.h.b16 %v873
    %v4341 = vunpack.c.l.b16 %v874
    %v4342 = vunpack.c.h.b16 %v874
    %v4343 = vunpack.c.l.b16 %v875
    %v4344 = vunpack.c.h.b16 %v875
    %v4345 = vunpack.c.l.b16 %v876
    %v4346 = vunpack.c.h.b16 %v876
    %v4347 = vunpack.c.l.b16 %v877
    %v4348 = vunpack.c.h.b16 %v877
    %v4349 = vunpack.c.l.b16 %v878
    %v4350 = vunpack.c.h.b16 %v878
    %v4351 = vunpack.c.l.b16 %v879
    %v4352 = vunpack.c.h.b16 %v879
    %v4353 = vunpack.c.l.b16 %v880
    %v4354 = vunpack.c.h.b16 %v880
    %v4355 = vunpack.c.l.b16 %v881
    %v4356 = vunpack.c.h.b16 %v881
    %v4357 = vunpack.c.l.b16 %v882
    %v4358 = vunpack.c.h.b16 %v882
    %v4359 = vunpack.c.l.b16 %v883
    %v4360 = vunpack.c.h.b16 %v883
    %v4361 = vunpack.c.l.b16 %v884
    %v4362 = vunpack.c.h.b16 %v884
    %v4363 = vunpack.c.l.b16 %v885
    %v4364 = vunpack.c.h.b16 %v885
    %v4365 = vunpack.c.l.b16 %v886
    %v4366 = vunpack.c.h.b16 %v886
    %v4367 = vunpack.c.l.b16 %v887
    %v4368 = vunpack.c.h.b16 %v887
    %v4369 = vunpack.c.l.b16 %v888
    %v4370 = vunpack.c.h.b16 %v888
    %v4371 = vunpack.c.l.b16 %v889
    %v4372 = vunpack.c.h.b16 %v889
    %v4373 = vunpack.c.l.b16 %v890
    %v4374 = vunpack.c.h.b16 %v890
    %v4375 = vunpack.c.l.b16 %v891
    %v4376 = vunpack.c.h.b16 %v891
    %v4377 = vunpack.c.l.b16 %v892
    %v4378 = vunpack.c.h.b16 %v892
    %v4379 = vunpack.c.l.b16 %v893
    %v4380 = vunpack.c.h.b16 %v893
    %v4381 = vunpack.c.l.b16 %v894
    %v4382 = vunpack.c.h.b16 %v894
    %v4383 = vunpack.c.l.b16 %v895
    %v4384 = vunpack.c.h.b16 %v895
    %v4385 = vunpack.c.l.b16 %v896
    %v4386 = vunpack.c.h.b16 %v896
    %v4387 = vunpack.c.l.b16 %v897
    %v4388 = vunpack.c.h.b16 %v897
    %v4389 = vunpack.c.l.b16 %v898
    %v4390 = vunpack.c.h.b16 %v898
    %v4391 = vunpack.c.l.b16 %v899
    %v4392 = vunpack.c.h.b16 %v899
    %v4393 = vunpack.c.l.b16 %v900
    %v4394 = vunpack.c.h.b16 %v900
    %v4395 = vunpack.c.l.b16 %v901
    %v4396 = vunpack.c.h.b16 %v901
    %v4397 = vunpack.c.l.b16 %v902
    %v4398 = vunpack.c.h.b16 %v902
    %v4399 = vunpack.c.l.b16 %v903
    %v4400 = vunpack.c.h.b16 %v903
    %v4401 = vunpack.c.l.b16 %v904
    %v4402 = vunpack.c.h.b16 %v904
    %v4403 = vunpack.c.l.b16 %v905
    %v4404 = vunpack.c.h.b16 %v905
    %v4405 = vunpack.c.l.b16 %v906
    %v4406 = vunpack.c.h.b16 %v906
    %v4407 = vunpack.c.l.b16 %v907
    %v4408 = vunpack.c.h.b16 %v907
    %v4409 = vunpack.c.l.b16 %v908
    %v4410 = vunpack.c.h.b16 %v908
    %v4411 = vunpack.c.l.b16 %v909
    %v4412 = vunpack.c.h.b16 %v909
    %v4413 = vunpack.c.l.b16 %v910
    %v4414 = vunpack.c.h.b16 %v910
    %v4415 = vunpack.c.l.b16 %v911
    %v4416 = vunpack.c.h.b16 %v911
    %v4417 = vunpack.c.l.b16 %v912
    %v4418 = vunpack.c.h.b16 %v912
    %v4419 = vunpack.c.l.b16 %v913
    %v4420 = vunpack.c.h.b16 %v913
    %v4421 = vunpack.c.l.b16 %v914
    %v4422 = vunpack.c.h.b16 %v914
    %v4423 = vunpack.c.l.b16 %v915
    %v4424 = vunpack.c.h.b16 %v915
    %v4425 = vunpack.c.l.b16 %v916
    %v4426 = vunpack.c.h.b16 %v916
    %v4427 = vunpack.c.l.b16 %v917
    %v4428 = vunpack.c.h.b16 %v917
    %v4429 = vunpack.c.l.b16 %v918
    %v4430 = vunpack.c.h.b16 %v918
    %v4431 = vunpack.c.l.b16 %v919
    %v4432 = vunpack.c.h.b16 %v919
    %v4433 = vunpack.c.l.b16 %v920
    %v4434 = vunpack.c.h.b16 %v920
    %v4435 = vunpack.c.l.b16 %v921
    %v4436 = vunpack.c.h.b16 %v921
    %v4437 = vunpack.c.l.b16 %v922
    %v4438 = vunpack.c.h.b16 %v922
    %v4439 = vunpack.c.l.b16 %v923
    %v4440 = vunpack.c.h.b16 %v923
    %v4441 = vunpack.c.l.b16 %v924
    %v4442 = vunpack.c.h.b16 %v924
    %v4443 = vunpack.c.l.b16 %v925
    %v4444 = vunpack.c.h.b16 %v925
    %v4445 = vunpack.c.l.b16 %v926
    %v4446 = vunpack.c.h.b16 %v926
    %v4447 = vunpack.c.l.b16 %v927
    %v4448 = vunpack.c.h.b16 %v927
    %v4449 = vunpack.c.l.b16 %v928
    %v4450 = vunpack.c.h.b16 %v928
    %v4451 = vunpack.c.l.b16 %v929
    %v4452 = vunpack.c.h.b16 %v929
    %v4453 = vunpack.c.l.b16 %v930
    %v4454 = vunpack.c.h.b16 %v930
    %v4455 = vunpack.c.l.b16 %v931
    %v4456 = vunpack.c.h.b16 %v931
    %v4457 = vunpack.c.l.b16 %v932
    %v4458 = vunpack.c.h.b16 %v932
    %v4459 = vunpack.c.l.b16 %v933
    %v4460 = vunpack.c.h.b16 %v933
    %v4461 = vunpack.c.l.b16 %v934
    %v4462 = vunpack.c.h.b16 %v934
    %v4463 = vunpack.c.l.b16 %v935
    %v4464 = vunpack.c.h.b16 %v935
    %v4465 = vunpack.c.l.b16 %v936
    %v4466 = vunpack.c.h.b16 %v936
    %v4467 = vunpack.c.l.b16 %v937
    %v4468 = vunpack.c.h.b16 %v937
    %v4469 = vunpack.c.l.b16 %v938
    %v4470 = vunpack.c.h.b16 %v938
    %v4471 = vunpack.c.l.b16 %v939
    %v4472 = vunpack.c.h.b16 %v939
    %v4473 = vunpack.c.l.b16 %v940
    %v4474 = vunpack.c.h.b16 %v940
    %v4475 = vunpack.c.l.b16 %v941
    %v4476 = vunpack.c.h.b16 %v941
    %v4477 = vunpack.c.l.b16 %v942
    %v4478 = vunpack.c.h.b16 %v942
    %v4479 = vunpack.c.l.b16 %v943
    %v4480 = vunpack.c.h.b16 %v943
    %v4481 = vunpack.c.l.b16 %v944
    %v4482 = vunpack.c.h.b16 %v944
    %v4483 = vunpack.c.l.b16 %v945
    %v4484 = vunpack.c.h.b16 %v945
    %v4485 = vunpack.c.l.b16 %v946
    %v4486 = vunpack.c.h.b16 %v946
    %v4487 = vunpack.c.l.b16 %v947
    %v4488 = vunpack.c.h.b16 %v947
    %v4489 = vunpack.c.l.b16 %v948
    %v4490 = vunpack.c.h.b16 %v948
    %v4491 = vunpack.c.l.b16 %v949
    %v4492 = vunpack.c.h.b16 %v949
    %v4493 = vunpack.c.l.b16 %v950
    %v4494 = vunpack.c.h.b16 %v950
    %v4495 = vunpack.c.l.b16 %v951
    %v4496 = vunpack.c.h.b16 %v951
    %v4497 = vunpack.c.l.b16 %v952
    %v4498 = vunpack.c.h.b16 %v952
    %v4499 = vunpack.c.l.b16 %v953
    %v4500 = vunpack.c.h.b16 %v953
    %v4501 = vunpack.c.l.b16 %v954
    %v4502 = vunpack.c.h.b16 %v954
    %v4503 = vunpack.c.l.b16 %v955
    %v4504 = vunpack.c.h.b16 %v955
    %v4505 = vunpack.c.l.b16 %v956
    %v4506 = vunpack.c.h.b16 %v956
    %v4507 = vunpack.c.l.b16 %v957
    %v4508 = vunpack.c.h.b16 %v957
    %v4509 = vunpack.c.l.b16 %v958
    %v4510 = vunpack.c.h.b16 %v958
    %v4511 = vunpack.c.l.b16 %v959
    %v4512 = vunpack.c.h.b16 %v959
    %v4513 = vunpack.c.l.b16 %v960
    %v4514 = vunpack.c.h.b16 %v960
    %v4515 = vunpack.c.l.b16 %v961
    %v4516 = vunpack.c.h.b16 %v961
    %v4517 = vunpack.c.l.b16 %v962
    %v4518 = vunpack.c.h.b16 %v962
    %v4519 = vunpack.c.l.b16 %v963
    %v4520 = vunpack.c.h.b16 %v963
    %v4521 = vunpack.c.l.b16 %v964
    %v4522 = vunpack.c.h.b16 %v964
    %v4523 = vunpack.c.l.b16 %v965
    %v4524 = vunpack.c.h.b16 %v965
    %v4525 = vunpack.c.l.b16 %v966
    %v4526 = vunpack.c.h.b16 %v966
    %v4527 = vunpack.c.l.b16 %v967
    %v4528 = vunpack.c.h.b16 %v967
    %v4529 = vunpack.c.l.b16 %v968
    %v4530 = vunpack.c.h.b16 %v968
    %v4531 = vunpack.c.l.b16 %v969
    %v4532 = vunpack.c.h.b16 %v969
    %v4533 = vunpack.c.l.b16 %v970
    %v4534 = vunpack.c.h.b16 %v970
    %v4535 = vunpack.c.l.b16 %v971
    %v4536 = vunpack.c.h.b16 %v971
    %v4537 = vunpack.c.l.b16 %v972
    %v4538 = vunpack.c.h.b16 %v972
    %v4539 = vunpack.c.l.b16 %v973
    %v4540 = vunpack.c.h.b16 %v973
    %v4541 = vunpack.c.l.b16 %v974
    %v4542 = vunpack.c.h.b16 %v974
    %v4543 = vunpack.c.l.b16 %v975
    %v4544 = vunpack.c.h.b16 %v975
    %v4545 = vunpack.c.l.b16 %v976
    %v4546 = vunpack.c.h.b16 %v976
    %v4547 = vunpack.c.l.b16 %v977
    %v4548 = vunpack.c.h.b16 %v977
    %v4549 = vunpack.c.l.b16 %v978
    %v4550 = vunpack.c.h.b16 %v978
    %v4551 = vunpack.c.l.b16 %v979
    %v4552 = vunpack.c.h.b16 %v979
    %v4553 = vunpack.c.l.b16 %v980
    %v4554 = vunpack.c.h.b16 %v980
    %v4555 = vunpack.c.l.b16 %v981
    %v4556 = vunpack.c.h.b16 %v981
    %v4557 = vunpack.c.l.b16 %v982
    %v4558 = vunpack.c.h.b16 %v982
    %v4559 = vunpack.c.l.b16 %v983
    %v4560 = vunpack.c.h.b16 %v983
    %v4561 = vunpack.c.l.b16 %v984
    %v4562 = vunpack.c.h.b16 %v984
    %v4563 = vunpack.c.l.b16 %v985
    %v4564 = vunpack.c.h.b16 %v985
    %v4565 = vunpack.c.l.b16 %v986
    %v4566 = vunpack.c.h.b16 %v986
    %v4567 = vunpack.c.l.b16 %v987
    %v4568 = vunpack.c.h.b16 %v987
    %v4569 = vunpack.c.l.b16 %v988
    %v4570 = vunpack.c.h.b16 %v988
    %v4571 = vunpack.c.l.b16 %v989
    %v4572 = vunpack.c.h.b16 %v989
    %v4573 = vunpack.c.l.b16 %v990
    %v4574 = vunpack.c.h.b16 %v990
    %v4575 = vunpack.c.l.b16 %v991
    %v4576 = vunpack.c.h.b16 %v991
    %v4577 = vunpack.c.l.b16 %v992
    %v4578 = vunpack.c.h.b16 %v992
    %v4579 = vunpack.c.l.b16 %v993
    %v4580 = vunpack.c.h.b16 %v993
    %v4581 = vunpack.c.l.b16 %v994
    %v4582 = vunpack.c.h.b16 %v994
    %v4583 = vunpack.c.l.b16 %v995
    %v4584 = vunpack.c.h.b16 %v995
    %v4585 = vunpack.c.l.b16 %v996
    %v4586 = vunpack.c.h.b16 %v996
    %v4587 = vunpack.c.l.b16 %v997
    %v4588 = vunpack.c.h.b16 %v997
    %v4589 = vunpack.c.l.b16 %v998
    %v4590 = vunpack.c.h.b16 %v998
    %v4591 = vunpack.c.l.b16 %v999
    %v4592 = vunpack.c.h.b16 %v999
    %v4593 = vunpack.c.l.b16 %v1000
    %v4594 = vunpack.c.h.b16 %v1000
    %v4595 = vunpack.c.l.b16 %v1001
    %v4596 = vunpack.c.h.b16 %v1001
    %v4597 = vunpack.c.l.b16 %v1002
    %v4598 = vunpack.c.h.b16 %v1002
    %v4599 = vunpack.c.l.b16 %v1003
    %v4600 = vunpack.c.h.b16 %v1003
    %v4601 = vunpack.c.l.b16 %v1004
    %v4602 = vunpack.c.h.b16 %v1004
    %v4603 = vunpack.c.l.b16 %v1005
    %v4604 = vunpack.c.h.b16 %v1005
    %v4605 = vunpack.c.l.b16 %v1006
    %v4606 = vunpack.c.h.b16 %v1006
    %v4607 = vunpack.c.l.b16 %v1007
    %v4608 = vunpack.c.h.b16 %v1007
    %v4609 = vunpack.c.l.b16 %v1008
    %v4610 = vunpack.c.h.b16 %v1008
    %v4611 = vunpack.c.l.b16 %v1009
    %v4612 = vunpack.c.h.b16 %v1009
    %v4613 = vunpack.c.l.b16 %v1010
    %v4614 = vunpack.c.h.b16 %v1010
    %v4615 = vunpack.c.l.b16 %v1011
    %v4616 = vunpack.c.h.b16 %v1011
    %v4617 = vunpack.c.l.b16 %v1012
    %v4618 = vunpack.c.h.b16 %v1012
    %v4619 = vunpack.c.l.b16 %v1013
    %v4620 = vunpack.c.h.b16 %v1013
    %v4621 = vunpack.c.l.b16 %v1014
    %v4622 = vunpack.c.h.b16 %v1014
    %v4623 = vunpack.c.l.b16 %v1015
    %v4624 = vunpack.c.h.b16 %v1015
    %v4625 = vunpack.c.l.b16 %v1016
    %v4626 = vunpack.c.h.b16 %v1016
    %v4627 = vunpack.c.l.b16 %v1017
    %v4628 = vunpack.c.h.b16 %v1017
    %v4629 = vunpack.c.l.b16 %v1018
    %v4630 = vunpack.c.h.b16 %v1018
    %v4631 = vunpack.c.l.b16 %v1019
    %v4632 = vunpack.c.h.b16 %v1019
    %v4633 = vunpack.c.l.b16 %v1020
    %v4634 = vunpack.c.h.b16 %v1020
    %v4635 = vunpack.c.l.b16 %v1021
    %v4636 = vunpack.c.h.b16 %v1021
    %v4637 = vunpack.c.l.b16 %v1022
    %v4638 = vunpack.c.h.b16 %v1022
    %v4639 = vunpack.c.l.b16 %v1023
    %v4640 = vunpack.c.h.b16 %v1023
    %v4641 = vunpack.c.l.b16 %v1024
    %v4642 = vunpack.c.h.b16 %v1024
    %v4643 = vunpack.c.l.b16 %v1025
    %v4644 = vunpack.c.h.b16 %v1025
    %v4645 = vunpack.c.l.b16 %v1026
    %v4646 = vunpack.c.h.b16 %v1026
    %v4647 = vunpack.c.l.b16 %v1027
    %v4648 = vunpack.c.h.b16 %v1027
    %v4649 = vunpack.c.l.b16 %v1028
    %v4650 = vunpack.c.h.b16 %v1028
    %v4651 = vunpack.c.l.b16 %v1029
    %v4652 = vunpack.c.h.b16 %v1029
    %v4653 = vunpack.c.l.b16 %v1030
    %v4654 = vunpack.c.h.b16 %v1030
    %v4655 = vunpack.c.l.b16 %v1031
    %v4656 = vunpack.c.h.b16 %v1031
    %v4657 = vunpack.c.l.b16 %v1032
    %v4658 = vunpack.c.h.b16 %v1032
    %v4659 = vunpack.c.l.b16 %v1033
    %v4660 = vunpack.c.h.b16 %v1033
    %v4661 = vunpack.c.l.b16 %v1034
    %v4662 = vunpack.c.h.b16 %v1034
    %v4663 = vunpack.c.l.b16 %v1035
    %v4664 = vunpack.c.h.b16 %v1035
    %v4665 = vunpack.c.l.b16 %v1036
    %v4666 = vunpack.c.h.b16 %v1036
    %v4667 = vunpack.c.l.b16 %v1037
    %v4668 = vunpack.c.h.b16 %v1037
    %v4669 = vunpack.c.l.b16 %v1038
    %v4670 = vunpack.c.h.b16 %v1038
    %v4671 = vunpack.c.l.b16 %v1039
    %v4672 = vunpack.c.h.b16 %v1039
    %v4673 = vunpack.c.l.b16 %v1040
    %v4674 = vunpack.c.h.b16 %v1040
    %v4675 = vunpack.c.l.b16 %v1041
    %v4676 = vunpack.c.h.b16 %v1041
    %v4677 = vunpack.c.l.b16 %v1042
    %v4678 = vunpack.c.h.b16 %v1042
    %v4679 = vunpack.c.l.b16 %v1043
    %v4680 = vunpack.c.h.b16 %v1043
    %v4681 = vunpack.c.l.b16 %v1044
    %v4682 = vunpack.c.h.b16 %v1044
    %v4683 = vunpack.c.l.b16 %v1045
    %v4684 = vunpack.c.h.b16 %v1045
    %v4685 = vunpack.c.l.b16 %v1046
    %v4686 = vunpack.c.h.b16 %v1046
    %v4687 = vunpack.c.l.b16 %v1047
    %v4688 = vunpack.c.h.b16 %v1047
    %v4689 = vunpack.c.l.b16 %v1048
    %v4690 = vunpack.c.h.b16 %v1048
    %v4691 = vunpack.c.l.b16 %v1049
    %v4692 = vunpack.c.h.b16 %v1049
    %v4693 = vunpack.c.l.b16 %v1050
    %v4694 = vunpack.c.h.b16 %v1050
    %v4695 = vunpack.c.l.b16 %v1051
    %v4696 = vunpack.c.h.b16 %v1051
    %v4697 = vunpack.c.l.b16 %v1052
    %v4698 = vunpack.c.h.b16 %v1052
    %v4699 = vunpack.c.l.b16 %v1053
    %v4700 = vunpack.c.h.b16 %v1053
    %v4701 = vunpack.c.l.b16 %v1054
    %v4702 = vunpack.c.h.b16 %v1054
    %v4703 = vunpack.c.l.b16 %v1055
    %v4704 = vunpack.c.h.b16 %v1055
    %v4705 = vunpack.c.l.b16 %v1056
    %v4706 = vunpack.c.h.b16 %v1056
    %v4707 = vunpack.c.l.b16 %v1057
    %v4708 = vunpack.c.h.b16 %v1057
    %v4709 = vunpack.c.l.b16 %v1058
    %v4710 = vunpack.c.h.b16 %v1058
    %v4711 = vunpack.c.l.b16 %v1059
    %v4712 = vunpack.c.h.b16 %v1059
    %v4713 = vunpack.c.l.b16 %v1060
    %v4714 = vunpack.c.h.b16 %v1060
    %v4715 = vunpack.c.l.b16 %v1061
    %v4716 = vunpack.c.h.b16 %v1061
    %v4717 = vunpack.c.l.b16 %v1062
    %v4718 = vunpack.c.h.b16 %v1062
    %v4719 = vunpack.c.l.b16 %v1063
    %v4720 = vunpack.c.h.b16 %v1063
    %v4721 = vunpack.c.l.b16 %v1064
    %v4722 = vunpack.c.h.b16 %v1064
    %v4723 = vunpack.c.l.b16 %v1065
    %v4724 = vunpack.c.h.b16 %v1065
    %v4725 = vunpack.c.l.b16 %v1066
    %v4726 = vunpack.c.h.b16 %v1066
    %v4727 = vunpack.c.l.b16 %v1067
    %v4728 = vunpack.c.h.b16 %v1067
    %v4729 = vunpack.c.l.b16 %v1068
    %v4730 = vunpack.c.h.b16 %v1068
    %v4731 = vunpack.c.l.b16 %v1069
    %v4732 = vunpack.c.h.b16 %v1069
    %v4733 = vunpack.c.l.b16 %v1070
    %v4734 = vunpack.c.h.b16 %v1070
    %v4735 = vunpack.c.l.b16 %v1071
    %v4736 = vunpack.c.h.b16 %v1071
    %v4737 = vunpack.c.l.b16 %v1072
    %v4738 = vunpack.c.h.b16 %v1072
    %v4739 = vunpack.c.l.b16 %v1073
    %v4740 = vunpack.c.h.b16 %v1073
    %v4741 = vunpack.c.l.b16 %v1074
    %v4742 = vunpack.c.h.b16 %v1074
    %v4743 = vunpack.c.l.b16 %v1075
    %v4744 = vunpack.c.h.b16 %v1075
    %v4745 = vunpack.c.l.b16 %v1076
    %v4746 = vunpack.c.h.b16 %v1076
    %v4747 = vunpack.c.l.b16 %v1077
    %v4748 = vunpack.c.h.b16 %v1077
    %v4749 = vunpack.c.l.b16 %v1078
    %v4750 = vunpack.c.h.b16 %v1078
    %v4751 = vunpack.c.l.b16 %v1079
    %v4752 = vunpack.c.h.b16 %v1079
    %v4753 = vunpack.c.l.b16 %v1080
    %v4754 = vunpack.c.h.b16 %v1080
    %v4755 = vunpack.c.l.b16 %v1081
    %v4756 = vunpack.c.h.b16 %v1081
    %v4757 = vunpack.c.l.b16 %v1082
    %v4758 = vunpack.c.h.b16 %v1082
    %v4759 = vunpack.c.l.b16 %v1083
    %v4760 = vunpack.c.h.b16 %v1083
    %v4761 = vunpack.c.l.b16 %v1084
    %v4762 = vunpack.c.h.b16 %v1084
    %v4763 = vunpack.c.l.b16 %v1085
    %v4764 = vunpack.c.h.b16 %v1085
    %v4765 = vunpack.c.l.b16 %v1086
    %v4766 = vunpack.c.h.b16 %v1086
    %v4767 = vunpack.c.l.b16 %v1087
    %v4768 = vunpack.c.h.b16 %v1087
    %v4769 = vunpack.c.l.b16 %v1088
    %v4770 = vunpack.c.h.b16 %v1088
    %v4771 = vunpack.c.l.b16 %v1089
    %v4772 = vunpack.c.h.b16 %v1089
    %v4773 = vunpack.c.l.b16 %v1090
    %v4774 = vunpack.c.h.b16 %v1090
    %v4775 = vunpack.c.l.b16 %v1091
    %v4776 = vunpack.c.h.b16 %v1091
    %v4777 = vunpack.c.l.b16 %v1092
    %v4778 = vunpack.c.h.b16 %v1092
    %v4779 = vunpack.c.l.b16 %v1093
    %v4780 = vunpack.c.h.b16 %v1093
    %v4781 = vunpack.c.l.b16 %v1094
    %v4782 = vunpack.c.h.b16 %v1094
    %v4783 = vunpack.c.l.b16 %v1095
    %v4784 = vunpack.c.h.b16 %v1095
    %v4785 = vunpack.c.l.b16 %v1096
    %v4786 = vunpack.c.h.b16 %v1096
    %v4787 = vunpack.c.l.b16 %v1097
    %v4788 = vunpack.c.h.b16 %v1097
    %v4789 = vunpack.c.l.b16 %v1098
    %v4790 = vunpack.c.h.b16 %v1098
    %v4791 = vunpack.c.l.b16 %v1099
    %v4792 = vunpack.c.h.b16 %v1099
    %v4793 = vunpack.c.l.b16 %v1100
    %v4794 = vunpack.c.h.b16 %v1100
    %v4795 = vunpack.c.l.b16 %v1101
    %v4796 = vunpack.c.h.b16 %v1101
    %v4797 = vunpack.c.l.b16 %v1102
    %v4798 = vunpack.c.h.b16 %v1102
    %v4799 = vunpack.c.l.b16 %v1103
    %v4800 = vunpack.c.h.b16 %v1103
    %v4801 = vunpack.c.l.b16 %v1104
    %v4802 = vunpack.c.h.b16 %v1104
    %v4803 = vunpack.c.l.b16 %v1105
    %v4804 = vunpack.c.h.b16 %v1105
    %v4805 = vunpack.c.l.b16 %v1106
    %v4806 = vunpack.c.h.b16 %v1106
    %v4807 = vunpack.c.l.b16 %v1107
    %v4808 = vunpack.c.h.b16 %v1107
    %v4809 = vunpack.c.l.b16 %v1108
    %v4810 = vunpack.c.h.b16 %v1108
    %v4811 = vunpack.c.l.b16 %v1109
    %v4812 = vunpack.c.h.b16 %v1109
    %v4813 = vunpack.c.l.b16 %v1110
    %v4814 = vunpack.c.h.b16 %v1110
    %v4815 = vunpack.c.l.b16 %v1111
    %v4816 = vunpack.c.h.b16 %v1111
    %v4817 = vunpack.c.l.b16 %v1112
    %v4818 = vunpack.c.h.b16 %v1112
    %v4819 = vunpack.c.l.b16 %v1113
    %v4820 = vunpack.c.h.b16 %v1113
    %v4821 = vunpack.c.l.b16 %v1114
    %v4822 = vunpack.c.h.b16 %v1114
    %v4823 = vunpack.c.l.b16 %v1115
    %v4824 = vunpack.c.h.b16 %v1115
    %v4825 = vunpack.c.l.b16 %v1116
    %v4826 = vunpack.c.h.b16 %v1116
    %v4827 = vunpack.c.l.b16 %v1117
    %v4828 = vunpack.c.h.b16 %v1117
    %v4829 = vunpack.c.l.b16 %v1118
    %v4830 = vunpack.c.h.b16 %v1118
    %v4831 = vunpack.c.l.b16 %v1119
    %v4832 = vunpack.c.h.b16 %v1119
    %v4833 = vunpack.c.l.b16 %v1120
    %v4834 = vunpack.c.h.b16 %v1120
    %v4835 = vunpack.c.l.b16 %v1121
    %v4836 = vunpack.c.h.b16 %v1121
    %v4837 = vunpack.c.l.b16 %v1122
    %v4838 = vunpack.c.h.b16 %v1122
    %v4839 = vunpack.c.l.b16 %v1123
    %v4840 = vunpack.c.h.b16 %v1123
    %v4841 = vunpack.c.l.b16 %v1124
    %v4842 = vunpack.c.h.b16 %v1124
    %v4843 = vunpack.c.l.b16 %v1125
    %v4844 = vunpack.c.h.b16 %v1125
    %v4845 = vunpack.c.l.b16 %v1126
    %v4846 = vunpack.c.h.b16 %v1126
    %v4847 = vunpack.c.l.b16 %v1127
    %v4848 = vunpack.c.h.b16 %v1127
    %v4849 = vunpack.c.l.b16 %v1128
    %v4850 = vunpack.c.h.b16 %v1128
    %v4851 = vunpack.c.l.b16 %v1129
    %v4852 = vunpack.c.h.b16 %v1129
    %v4853 = vunpack.c.l.b16 %v1130
    %v4854 = vunpack.c.h.b16 %v1130
    %v4855 = vunpack.c.l.b16 %v1131
    %v4856 = vunpack.c.h.b16 %v1131
    %v4857 = vunpack.c.l.b16 %v1132
    %v4858 = vunpack.c.h.b16 %v1132
    %v4859 = vunpack.c.l.b16 %v1133
    %v4860 = vunpack.c.h.b16 %v1133
    %v4861 = vunpack.c.l.b16 %v1134
    %v4862 = vunpack.c.h.b16 %v1134
    %v4863 = vunpack.c.l.b16 %v1135
    %v4864 = vunpack.c.h.b16 %v1135
    %v4865 = vunpack.c.l.b16 %v1136
    %v4866 = vunpack.c.h.b16 %v1136
    %v4867 = vunpack.c.l.b16 %v1137
    %v4868 = vunpack.c.h.b16 %v1137
    %v4869 = vunpack.c.l.b16 %v1138
    %v4870 = vunpack.c.h.b16 %v1138
    %v4871 = vunpack.c.l.b16 %v1139
    %v4872 = vunpack.c.h.b16 %v1139
    %v4873 = vunpack.c.l.b16 %v1140
    %v4874 = vunpack.c.h.b16 %v1140
    %v4875 = vunpack.c.l.b16 %v1141
    %v4876 = vunpack.c.h.b16 %v1141
    %v4877 = vunpack.c.l.b16 %v1142
    %v4878 = vunpack.c.h.b16 %v1142
    %v4879 = vunpack.c.l.b16 %v1143
    %v4880 = vunpack.c.h.b16 %v1143
    %v4881 = vunpack.c.l.b16 %v1144
    %v4882 = vunpack.c.h.b16 %v1144
    %v4883 = vunpack.c.l.b16 %v1145
    %v4884 = vunpack.c.h.b16 %v1145
    %v4885 = vunpack.c.l.b16 %v1146
    %v4886 = vunpack.c.h.b16 %v1146
    %v4887 = vunpack.c.l.b16 %v1147
    %v4888 = vunpack.c.h.b16 %v1147
    %v4889 = vunpack.c.l.b16 %v1148
    %v4890 = vunpack.c.h.b16 %v1148
    %v4891 = vunpack.c.l.b16 %v1149
    %v4892 = vunpack.c.h.b16 %v1149
    %v4893 = vunpack.c.l.b16 %v1150
    %v4894 = vunpack.c.h.b16 %v1150
    %v4895 = vunpack.c.l.b16 %v1151
    %v4896 = vunpack.c.h.b16 %v1151
    %v4897 = vunpack.c.l.b16 %v1152
    %v4898 = vunpack.c.h.b16 %v1152
    %v4899 = vunpack.c.l.b16 %v1153
    %v4900 = vunpack.c.h.b16 %v1153
    %v4901 = vunpack.c.l.b16 %v1154
    %v4902 = vunpack.c.h.b16 %v1154
    %v4903 = vunpack.c.l.b16 %v1155
    %v4904 = vunpack.c.h.b16 %v1155
    %v4905 = vunpack.c.l.b16 %v1156
    %v4906 = vunpack.c.h.b16 %v1156
    %v4907 = vunpack.c.l.b16 %v1157
    %v4908 = vunpack.c.h.b16 %v1157
    %v4909 = vunpack.c.l.b16 %v1158
    %v4910 = vunpack.c.h.b16 %v1158
    %v4911 = vunpack.c.l.b16 %v1159
    %v4912 = vunpack.c.h.b16 %v1159
    %v4913 = vunpack.c.l.b16 %v1160
    %v4914 = vunpack.c.h.b16 %v1160
    %v4915 = vunpack.c.l.b16 %v1161
    %v4916 = vunpack.c.h.b16 %v1161
    %v4917 = vunpack.c.l.b16 %v1162
    %v4918 = vunpack.c.h.b16 %v1162
    %v4919 = vunpack.c.l.b16 %v1163
    %v4920 = vunpack.c.h.b16 %v1163
    %v4921 = vunpack.c.l.b16 %v1164
    %v4922 = vunpack.c.h.b16 %v1164
    %v4923 = vunpack.c.l.b16 %v1165
    %v4924 = vunpack.c.h.b16 %v1165
    %v4925 = vunpack.c.l.b16 %v1166
    %v4926 = vunpack.c.h.b16 %v1166
    %v4927 = vunpack.c.l.b16 %v1167
    %v4928 = vunpack.c.h.b16 %v1167
    %v4929 = vunpack.c.l.b16 %v1168
    %v4930 = vunpack.c.h.b16 %v1168
    %v4931 = vunpack.c.l.b16 %v1169
    %v4932 = vunpack.c.h.b16 %v1169
    %v4933 = vunpack.c.l.b16 %v1170
    %v4934 = vunpack.c.h.b16 %v1170
    %v4935 = vunpack.c.l.b16 %v1171
    %v4936 = vunpack.c.h.b16 %v1171
    %v4937 = vunpack.c.l.b16 %v1172
    %v4938 = vunpack.c.h.b16 %v1172
    %v4939 = vunpack.c.l.b16 %v1173
    %v4940 = vunpack.c.h.b16 %v1173
    %v4941 = vunpack.c.l.b16 %v1174
    %v4942 = vunpack.c.h.b16 %v1174
    %v4943 = vunpack.c.l.b16 %v1175
    %v4944 = vunpack.c.h.b16 %v1175
    %v4945 = vunpack.c.l.b16 %v1176
    %v4946 = vunpack.c.h.b16 %v1176
    %v4947 = vunpack.c.l.b16 %v1177
    %v4948 = vunpack.c.h.b16 %v1177
    %v4949 = vunpack.c.l.b16 %v1178
    %v4950 = vunpack.c.h.b16 %v1178
    %v4951 = vunpack.c.l.b16 %v1179
    %v4952 = vunpack.c.h.b16 %v1179
    %v4953 = vunpack.c.l.b16 %v1180
    %v4954 = vunpack.c.h.b16 %v1180
    %v4955 = vunpack.c.l.b16 %v1181
    %v4956 = vunpack.c.h.b16 %v1181
    %v4957 = vunpack.c.l.b16 %v1182
    %v4958 = vunpack.c.h.b16 %v1182
    %v4959 = vunpack.c.l.b16 %v1183
    %v4960 = vunpack.c.h.b16 %v1183
    %v4961 = vunpack.c.l.b16 %v1184
    %v4962 = vunpack.c.h.b16 %v1184
    %v4963 = vunpack.c.l.b16 %v1185
    %v4964 = vunpack.c.h.b16 %v1185
    %v4965 = vunpack.c.l.b16 %v1186
    %v4966 = vunpack.c.h.b16 %v1186
    %v4967 = vpack.c.b16 %v3177, %v3167
    %v4968 = vpack.c.b16 %v3178, %v3168
    %v4969 = vpack.c.b16 %v3179, %v3169
    %v4970 = vpack.c.b16 %v3180, %v3170
    %v4971 = vpack.c.b16 %v3181, %v3171
    %v4972 = vpack.c.b16 %v3182, %v3172
    %v4973 = vpack.c.b16 %v3183, %v3173
    %v4974 = vpack.c.b16 %v3184, %v3174
    %v4975 = vpack.c.b16 %v3185, %v3175
    %v4976 = vpack.c.b16 %v3186, %v3176
    %v4977 = vpack.c.b16 %v3197, %v3187
    %v4978 = vpack.c.b16 %v3198, %v3188
    %v4979 = vpack.c.b16 %v3199, %v3189
    %v4980 = vpack.c.b16 %v3200, %v3190
    %v4981 = vpack.c.b16 %v3201, %v3191
    %v4982 = vpack.c.b16 %v3202, %v3192
    %v4983 = vpack.c.b16 %v3203, %v3193
    %v4984 = vpack.c.b16 %v3204, %v3194
    %v4985 = vpack.c.b16 %v3205, %v3195
    %v4986 = vpack.c.b16 %v3206, %v3196
    %v4987 = vpack.c.b16 %v3217, %v3207
    %v4988 = vpack.c.b16 %v3218, %v3208
    %v4989 = vpack.c.b16 %v3219, %v3209
    %v4990 = vpack.c.b16 %v3220, %v3210
    %v4991 = vpack.c.b16 %v3221, %v3211
    %v4992 = vpack.c.b16 %v3222, %v3212
    %v4993 = vpack.c.b16 %v3223, %v3213
    %v4994 = vpack.c.b16 %v3224, %v3214
    %v4995 = vpack.c.b16 %v3225, %v3215
    %v4996 = vpack.c.b16 %v3226, %v3216
    %v4997 = vpack.c.b16 %v3237, %v3227
    %v4998 = vpack.c.b16 %v3238, %v3228
    %v4999 = vpack.c.b16 %v3239, %v3229
    %v5000 = vpack.c.b16 %v3240, %v3230
    %v5001 = vpack.c.b16 %v3241, %v3231
    %v5002 = vpack.c.b16 %v3242, %v3232
    %v5003 = vpack.c.b16 %v3243, %v3233
    %v5004 = vpack.c.b16 %v3244, %v3234
    %v5005 = vpack.c.b16 %v3245, %v3235
    %v5006 = vpack.c.b16 %v3246, %v3236
    %v5007 = vpack.c.b16 %v3257, %v3247
    %v5008 = vpack.c.b16 %v3258, %v3248
    %v5009 = vpack.c.b16 %v3259, %v3249
    %v5010 = vpack.c.b16 %v3260, %v3250
    %v5011 = vpack.c.b16 %v3261, %v3251
    %v5012 = vpack.c.b16 %v3262, %v3252
    %v5013 = vpack.c.b16 %v3263, %v3253
    %v5014 = vpack.c.b16 %v3264, %v3254
    %v5015 = vpack.c.b16 %v3265, %v3255
    %v5016 = vpack.c.b16 %v3266, %v3256
    %v5017 = vpack.c.b16 %v3277, %v3267
    %v5018 = vpack.c.b16 %v3278, %v3268
    %v5019 = vpack.c.b16 %v3279, %v3269
    %v5020 = vpack.c.b16 %v3280, %v3270
    %v5021 = vpack.c.b16 %v3281, %v3271
    %v5022 = vpack.c.b16 %v3282, %v3272
    %v5023 = vpack.c.b16 %v3283, %v3273
    %v5024 = vpack.c.b16 %v3284, %v3274
    %v5025 = vpack.c.b16 %v3285, %v3275
    %v5026 = vpack.c.b16 %v3286, %v3276
    %v5027 = vpack.c.b16 %v3297, %v3287
    %v5028 = vpack.c.b16 %v3298, %v3288
    %v5029 = vpack.c.b16 %v3299, %v3289
    %v5030 = vpack.c.b16 %v3300, %v3290
    %v5031 = vpack.c.b16 %v3301, %v3291
    %v5032 = vpack.c.b16 %v3302, %v3292
    %v5033 = vpack.c.b16 %v3303, %v3293
    %v5034 = vpack.c.b16 %v3304, %v3294
    %v5035 = vpack.c.b16 %v3305, %v3295
    %v5036 = vpack.c.b16 %v3306, %v3296
    %v5037 = vpack.c.b16 %v3317, %v3307
    %v5038 = vpack.c.b16 %v3318, %v3308
    %v5039 = vpack.c.b16 %v3319, %v3309
    %v5040 = vpack.c.b16 %v3320, %v3310
    %v5041 = vpack.c.b16 %v3321, %v3311
    %v5042 = vpack.c.b16 %v3322, %v3312
    %v5043 = vpack.c.b16 %v3323, %v3313
    %v5044 = vpack.c.b16 %v3324, %v3314
    %v5045 = vpack.c.b16 %v3325, %v3315
    %v5046 = vpack.c.b16 %v3326, %v3316
    %v5047 = vpack.c.b16 %v3337, %v3327
    %v5048 = vpack.c.b16 %v3338, %v3328
    %v5049 = vpack.c.b16 %v3339, %v3329
    %v5050 = vpack.c.b16 %v3340, %v3330
    %v5051 = vpack.c.b16 %v3341, %v3331
    %v5052 = vpack.c.b16 %v3342, %v3332
    %v5053 = vpack.c.b16 %v3343, %v3333
    %v5054 = vpack.c.b16 %v3344, %v3334
    %v5055 = vpack.c.b16 %v3345, %v3335
    %v5056 = vpack.c.b16 %v3346, %v3336
    %v5057 = vpack.c.b16 %v3357, %v3347
    %v5058 = vpack.c.b16 %v3358, %v3348
    %v5059 = vpack.c.b16 %v3359, %v3349
    %v5060 = vpack.c.b16 %v3360, %v3350
    %v5061 = vpack.c.b16 %v3361, %v3351
    %v5062 = vpack.c.b16 %v3362, %v3352
    %v5063 = vpack.c.b16 %v3363, %v3353
    %v5064 = vpack.c.b16 %v3364, %v3354
    %v5065 = vpack.c.b16 %v3365, %v3355
    %v5066 = vpack.c.b16 %v3366, %v3356
    %v5067 = vpack.c.b16 %v3377, %v3367
    %v5068 = vpack.c.b16 %v3378, %v3368
    %v5069 = vpack.c.b16 %v3379, %v3369
    %v5070 = vpack.c.b16 %v3380, %v3370
    %v5071 = vpack.c.b16 %v3381, %v3371
    %v5072 = vpack.c.b16 %v3382, %v3372
    %v5073 = vpack.c.b16 %v3383, %v3373
    %v5074 = vpack.c.b16 %v3384, %v3374
    %v5075 = vpack.c.b16 %v3385, %v3375
    %v5076 = vpack.c.b16 %v3386, %v3376
    %v5077 = vpack.c.b16 %v3397, %v3387
    %v5078 = vpack.c.b16 %v3398, %v3388
    %v5079 = vpack.c.b16 %v3399, %v3389
    %v5080 = vpack.c.b16 %v3400, %v3390
    %v5081 = vpack.c.b16 %v3401, %v3391
    %v5082 = vpack.c.b16 %v3402, %v3392
    %v5083 = vpack.c.b16 %v3403, %v3393
    %v5084 = vpack.c.b16 %v3404, %v3394
    %v5085 = vpack.c.b16 %v3405, %v3395
    %v5086 = vpack.c.b16 %v3406, %v3396
    %v5087 = vpack.c.b16 %v3417, %v3407
    %v5088 = vpack.c.b16 %v3418, %v3408
    %v5089 = vpack.c.b16 %v3419, %v3409
    %v5090 = vpack.c.b16 %v3420, %v3410
    %v5091 = vpack.c.b16 %v3421, %v3411
    %v5092 = vpack.c.b16 %v3422, %v3412
    %v5093 = vpack.c.b16 %v3423, %v3413
    %v5094 = vpack.c.b16 %v3424, %v3414
    %v5095 = vpack.c.b16 %v3425, %v3415
    %v5096 = vpack.c.b16 %v3426, %v3416
    %v5097 = vpack.c.b16 %v3437, %v3427
    %v5098 = vpack.c.b16 %v3438, %v3428
    %v5099 = vpack.c.b16 %v3439, %v3429
    %v5100 = vpack.c.b16 %v3440, %v3430
    %v5101 = vpack.c.b16 %v3441, %v3431
    %v5102 = vpack.c.b16 %v3442, %v3432
    %v5103 = vpack.c.b16 %v3443, %v3433
    %v5104 = vpack.c.b16 %v3444, %v3434
    %v5105 = vpack.c.b16 %v3445, %v3435
    %v5106 = vpack.c.b16 %v3446, %v3436
    %v5107 = vpack.c.b16 %v3457, %v3447
    %v5108 = vpack.c.b16 %v3458, %v3448
    %v5109 = vpack.c.b16 %v3459, %v3449
    %v5110 = vpack.c.b16 %v3460, %v3450
    %v5111 = vpack.c.b16 %v3461, %v3451
    %v5112 = vpack.c.b16 %v3462, %v3452
    %v5113 = vpack.c.b16 %v3463, %v3453
    %v5114 = vpack.c.b16 %v3464, %v3454
    %v5115 = vpack.c.b16 %v3465, %v3455
    %v5116 = vpack.c.b16 %v3466, %v3456
    %v5117 = vpack.c.b16 %v3477, %v3467
    %v5118 = vpack.c.b16 %v3478, %v3468
    %v5119 = vpack.c.b16 %v3479, %v3469
    %v5120 = vpack.c.b16 %v3480, %v3470
    %v5121 = vpack.c.b16 %v3481, %v3471
    %v5122 = vpack.c.b16 %v3482, %v3472
    %v5123 = vpack.c.b16 %v3483, %v3473
    %v5124 = vpack.c.b16 %v3484, %v3474
    %v5125 = vpack.c.b16 %v3485, %v3475
    %v5126 = vpack.c.b16 %v3486, %v3476
    %v5127 = vpack.c.b16 %v3497, %v3487
    %v5128 = vpack.c.b16 %v3498, %v3488
    %v5129 = vpack.c.b16 %v3499, %v3489
    %v5130 = vpack.c.b16 %v3500, %v3490
    %v5131 = vpack.c.b16 %v3501, %v3491
    %v5132 = vpack.c.b16 %v3502, %v3492
    %v5133 = vpack.c.b16 %v3503, %v3493
    %v5134 = vpack.c.b16 %v3504, %v3494
    %v5135 = vpack.c.b16 %v3505, %v3495
    %v5136 = vpack.c.b16 %v3506, %v3496
    %v5137 = vpack.c.b16 %v3517, %v3507
    %v5138 = vpack.c.b16 %v3518, %v3508
    %v5139 = vpack.c.b16 %v3519, %v3509
    %v5140 = vpack.c.b16 %v3520, %v3510
    %v5141 = vpack.c.b16 %v3521, %v3511
    %v5142 = vpack.c.b16 %v3522, %v3512
    %v5143 = vpack.c.b16 %v3523, %v3513
    %v5144 = vpack.c.b16 %v3524, %v3514
    %v5145 = vpack.c.b16 %v3525, %v3515
    %v5146 = vpack.c.b16 %v3526, %v3516
    %v5147 = vpack.c.b16 %v3537, %v3527
    %v5148 = vpack.c.b16 %v3538, %v3528
    %v5149 = vpack.c.b16 %v3539, %v3529
    %v5150 = vpack.c.b16 %v3540, %v3530
    %v5151 = vpack.c.b16 %v3541, %v3531
    %v5152 = vpack.c.b16 %v3542, %v3532
    %v5153 = vpack.c.b16 %v3543, %v3533
    %v5154 = vpack.c.b16 %v3544, %v3534
    %v5155 = vpack.c.b16 %v3545, %v3535
    %v5156 = vpack.c.b16 %v3546, %v3536
    %v5157 = vpack.c.b16 %v3557, %v3547
    %v5158 = vpack.c.b16 %v3558, %v3548
    %v5159 = vpack.c.b16 %v3559, %v3549
    %v5160 = vpack.c.b16 %v3560, %v3550
    %v5161 = vpack.c.b16 %v3561, %v3551
    %v5162 = vpack.c.b16 %v3562, %v3552
    %v5163 = vpack.c.b16 %v3563, %v3553
    %v5164 = vpack.c.b16 %v3564, %v3554
    %v5165 = vpack.c.b16 %v3565, %v3555
    %v5166 = vpack.c.b16 %v3566, %v3556
    %v5167 = vpack.c.b16 %v3577, %v3567
    %v5168 = vpack.c.b16 %v3578, %v3568
    %v5169 = vpack.c.b16 %v3579, %v3569
    %v5170 = vpack.c.b16 %v3580, %v3570
    %v5171 = vpack.c.b16 %v3581, %v3571
    %v5172 = vpack.c.b16 %v3582, %v3572
    %v5173 = vpack.c.b16 %v3583, %v3573
    %v5174 = vpack.c.b16 %v3584, %v3574
    %v5175 = vpack.c.b16 %v3585, %v3575
    %v5176 = vpack.c.b16 %v3586, %v3576
    %v5177 = vpack.c.b16 %v3597, %v3587
    %v5178 = vpack.c.b16 %v3598, %v3588
    %v5179 = vpack.c.b16 %v3599, %v3589
    %v5180 = vpack.c.b16 %v3600, %v3590
    %v5181 = vpack.c.b16 %v3601, %v3591
    %v5182 = vpack.c.b16 %v3602, %v3592
    %v5183 = vpack.c.b16 %v3603, %v3593
    %v5184 = vpack.c.b16 %v3604, %v3594
    %v5185 = vpack.c.b16 %v3605, %v3595
    %v5186 = vpack.c.b16 %v3606, %v3596
    %v5187 = vpack.c.b16 %v3617, %v3607
    %v5188 = vpack.c.b16 %v3618, %v3608
    %v5189 = vpack.c.b16 %v3619, %v3609
    %v5190 = vpack.c.b16 %v3620, %v3610
    %v5191 = vpack.c.b16 %v3621, %v3611
    %v5192 = vpack.c.b16 %v3622, %v3612
    %v5193 = vpack.c.b16 %v3623, %v3613
    %v5194 = vpack.c.b16 %v3624, %v3614
    %v5195 = vpack.c.b16 %v3625, %v3615
    %v5196 = vpack.c.b16 %v3626, %v3616
    %v5197 = vpack.c.b16 %v3637, %v3627
    %v5198 = vpack.c.b16 %v3638, %v3628
    %v5199 = vpack.c.b16 %v3639, %v3629
    %v5200 = vpack.c.b16 %v3640, %v3630
    %v5201 = vpack.c.b16 %v3641, %v3631
    %v5202 = vpack.c.b16 %v3642, %v3632
    %v5203 = vpack.c.b16 %v3643, %v3633
    %v5204 = vpack.c.b16 %v3644, %v3634
    %v5205 = vpack.c.b16 %v3645, %v3635
    %v5206 = vpack.c.b16 %v3646, %v3636
    %v5207 = vpack.c.b16 %v3657, %v3647
    %v5208 = vpack.c.b16 %v3658, %v3648
    %v5209 = vpack.c.b16 %v3659, %v3649
    %v5210 = vpack.c.b16 %v3660, %v3650
    %v5211 = vpack.c.b16 %v3661, %v3651
    %v5212 = vpack.c.b16 %v3662, %v3652
    %v5213 = vpack.c.b16 %v3663, %v3653
    %v5214 = vpack.c.b16 %v3664, %v3654
    %v5215 = vpack.c.b16 %v3665, %v3655
    %v5216 = vpack.c.b16 %v3666, %v3656
    %v5217 = vpack.c.b16 %v3677, %v3667
    %v5218 = vpack.c.b16 %v3678, %v3668
    %v5219 = vpack.c.b16 %v3679, %v3669
    %v5220 = vpack.c.b16 %v3680, %v3670
    %v5221 = vpack.c.b16 %v3681, %v3671
    %v5222 = vpack.c.b16 %v3682, %v3672
    %v5223 = vpack.c.b16 %v3683, %v3673
    %v5224 = vpack.c.b16 %v3684, %v3674
    %v5225 = vpack.c.b16 %v3685, %v3675
    %v5226 = vpack.c.b16 %v3686, %v3676
    %v5227 = vpack.c.b16 %v3697, %v3687
    %v5228 = vpack.c.b16 %v3698, %v3688
    %v5229 = vpack.c.b16 %v3699, %v3689
    %v5230 = vpack.c.b16 %v3700, %v3690
    %v5231 = vpack.c.b16 %v3701, %v3691
    %v5232 = vpack.c.b16 %v3702, %v3692
    %v5233 = vpack.c.b16 %v3703, %v3693
    %v5234 = vpack.c.b16 %v3704, %v3694
    %v5235 = vpack.c.b16 %v3705, %v3695
    %v5236 = vpack.c.b16 %v3706, %v3696
    %v5237 = vpack.c.b16 %v3717, %v3707
    %v5238 = vpack.c.b16 %v3718, %v3708
    %v5239 = vpack.c.b16 %v3719, %v3709
    %v5240 = vpack.c.b16 %v3720, %v3710
    %v5241 = vpack.c.b16 %v3721, %v3711
    %v5242 = vpack.c.b16 %v3722, %v3712
    %v5243 = vpack.c.b16 %v3723, %v3713
    %v5244 = vpack.c.b16 %v3724, %v3714
    %v5245 = vpack.c.b16 %v3725, %v3715
    %v5246 = vpack.c.b16 %v3726, %v3716
    %v5247 = vpack.c.b16 %v3737, %v3727
    %v5248 = vpack.c.b16 %v3738, %v3728
    %v5249 = vpack.c.b16 %v3739, %v3729
    %v5250 = vpack.c.b16 %v3740, %v3730
    %v5251 = vpack.c.b16 %v3741, %v3731
    %v5252 = vpack.c.b16 %v3742, %v3732
    %v5253 = vpack.c.b16 %v3743, %v3733
    %v5254 = vpack.c.b16 %v3744, %v3734
    %v5255 = vpack.c.b16 %v3745, %v3735
    %v5256 = vpack.c.b16 %v3746, %v3736
    %v5257 = vpack.c.b16 %v3757, %v3747
    %v5258 = vpack.c.b16 %v3758, %v3748
    %v5259 = vpack.c.b16 %v3759, %v3749
    %v5260 = vpack.c.b16 %v3760, %v3750
    %v5261 = vpack.c.b16 %v3761, %v3751
    %v5262 = vpack.c.b16 %v3762, %v3752
    %v5263 = vpack.c.b16 %v3763, %v3753
    %v5264 = vpack.c.b16 %v3764, %v3754
    %v5265 = vpack.c.b16 %v3765, %v3755
    %v5266 = vpack.c.b16 %v3766, %v3756
    %v5267 = vpack.c.b16 %v3777, %v3767
    %v5268 = vpack.c.b16 %v3778, %v3768
    %v5269 = vpack.c.b16 %v3779, %v3769
    %v5270 = vpack.c.b16 %v3780, %v3770
    %v5271 = vpack.c.b16 %v3781, %v3771
    %v5272 = vpack.c.b16 %v3782, %v3772
    %v5273 = vpack.c.b16 %v3783, %v3773
    %v5274 = vpack.c.b16 %v3784, %v3774
    %v5275 = vpack.c.b16 %v3785, %v3775
    %v5276 = vpack.c.b16 %v3786, %v3776
    %v5277 = vpack.c.b16 %v3797, %v3787
    %v5278 = vpack.c.b16 %v3798, %v3788
    %v5279 = vpack.c.b16 %v3799, %v3789
    %v5280 = vpack.c.b16 %v3800, %v3790
    %v5281 = vpack.c.b16 %v3801, %v3791
    %v5282 = vpack.c.b16 %v3802, %v3792
    %v5283 = vpack.c.b16 %v3803, %v3793
    %v5284 = vpack.c.b16 %v3804, %v3794
    %v5285 = vpack.c.b16 %v3805, %v3795
    %v5286 = vpack.c.b16 %v3806, %v3796
    %v5287 = vpack.c.b16 %v3817, %v3807
    %v5288 = vpack.c.b16 %v3818, %v3808
    %v5289 = vpack.c.b16 %v3819, %v3809
    %v5290 = vpack.c.b16 %v3820, %v3810
    %v5291 = vpack.c.b16 %v3821, %v3811
    %v5292 = vpack.c.b16 %v3822, %v3812
    %v5293 = vpack.c.b16 %v3823, %v3813
    %v5294 = vpack.c.b16 %v3824, %v3814
    %v5295 = vpack.c.b16 %v3825, %v3815
    %v5296 = vpack.c.b16 %v3826, %v3816
    %v5297 = vpack.c.b16 %v3837, %v3827
    %v5298 = vpack.c.b16 %v3838, %v3828
    %v5299 = vpack.c.b16 %v3839, %v3829
    %v5300 = vpack.c.b16 %v3840, %v3830
    %v5301 = vpack.c.b16 %v3841, %v3831
    %v5302 = vpack.c.b16 %v3842, %v3832
    %v5303 = vpack.c.b16 %v3843, %v3833
    %v5304 = vpack.c.b16 %v3844, %v3834
    %v5305 = vpack.c.b16 %v3845, %v3835
    %v5306 = vpack.c.b16 %v3846, %v3836
    %v5307 = vpack.c.b16 %v3857, %v3847
    %v5308 = vpack.c.b16 %v3858, %v3848
    %v5309 = vpack.c.b16 %v3859, %v3849
    %v5310 = vpack.c.b16 %v3860, %v3850
    %v5311 = vpack.c.b16 %v3861, %v3851
    %v5312 = vpack.c.b16 %v3862, %v3852
    %v5313 = vpack.c.b16 %v3863, %v3853
    %v5314 = vpack.c.b16 %v3864, %v3854
    %v5315 = vpack.c.b16 %v3865, %v3855
    %v5316 = vpack.c.b16 %v3866, %v3856
    %v5317 = vpack.c.b16 %v3877, %v3867
    %v5318 = vpack.c.b16 %v3878, %v3868
    %v5319 = vpack.c.b16 %v3879, %v3869
    %v5320 = vpack.c.b16 %v3880, %v3870
    %v5321 = vpack.c.b16 %v3881, %v3871
    %v5322 = vpack.c.b16 %v3882, %v3872
    %v5323 = vpack.c.b16 %v3883, %v3873
    %v5324 = vpack.c.b16 %v3884, %v3874
    %v5325 = vpack.c.b16 %v3885, %v3875
    %v5326 = vpack.c.b16 %v3886, %v3876
    %v5327 = vpack.c.b16 %v3897, %v3887
    %v5328 = vpack.c.b16 %v3898, %v3888
    %v5329 = vpack.c.b16 %v3899, %v3889
    %v5330 = vpack.c.b16 %v3900, %v3890
    %v5331 = vpack.c.b16 %v3901, %v3891
    %v5332 = vpack.c.b16 %v3902, %v3892
    %v5333 = vpack.c.b16 %v3903, %v3893
    %v5334 = vpack.c.b16 %v3904, %v3894
    %v5335 = vpack.c.b16 %v3905, %v3895
    %v5336 = vpack.c.b16 %v3906, %v3896
    %v5337 = vpack.c.b16 %v3917, %v3907
    %v5338 = vpack.c.b16 %v3918, %v3908
    %v5339 = vpack.c.b16 %v3919, %v3909
    %v5340 = vpack.c.b16 %v3920, %v3910
    %v5341 = vpack.c.b16 %v3921, %v3911
    %v5342 = vpack.c.b16 %v3922, %v3912
    %v5343 = vpack.c.b16 %v3923, %v3913
    %v5344 = vpack.c.b16 %v3924, %v3914
    %v5345 = vpack.c.b16 %v3925, %v3915
    %v5346 = vpack.c.b16 %v3926, %v3916
    %v5347 = vpack.c.b16 %v3937, %v3927
    %v5348 = vpack.c.b16 %v3938, %v3928
    %v5349 = vpack.c.b16 %v3939, %v3929
    %v5350 = vpack.c.b16 %v3940, %v3930
    %v5351 = vpack.c.b16 %v3941, %v3931
    %v5352 = vpack.c.b16 %v3942, %v3932
    %v5353 = vpack.c.b16 %v3943, %v3933
    %v5354 = vpack.c.b16 %v3944, %v3934
    %v5355 = vpack.c.b16 %v3945, %v3935
    %v5356 = vpack.c.b16 %v3946, %v3936
    %v5357 = vpack.c.b16 %v3957, %v3947
    %v5358 = vpack.c.b16 %v3958, %v3948
    %v5359 = vpack.c.b16 %v3959, %v3949
    %v5360 = vpack.c.b16 %v3960, %v3950
    %v5361 = vpack.c.b16 %v3961, %v3951
    %v5362 = vpack.c.b16 %v3962, %v3952
    %v5363 = vpack.c.b16 %v3963, %v3953
    %v5364 = vpack.c.b16 %v3964, %v3954
    %v5365 = vpack.c.b16 %v3965, %v3955
    %v5366 = vpack.c.b16 %v3966, %v3956
    %v5367 = vpack.c.b16 %v3977, %v3967
    %v5368 = vpack.c.b16 %v3978, %v3968
    %v5369 = vpack.c.b16 %v3979, %v3969
    %v5370 = vpack.c.b16 %v3980, %v3970
    %v5371 = vpack.c.b16 %v3981, %v3971
    %v5372 = vpack.c.b16 %v3982, %v3972
    %v5373 = vpack.c.b16 %v3983, %v3973
    %v5374 = vpack.c.b16 %v3984, %v3974
    %v5375 = vpack.c.b16 %v3985, %v3975
    %v5376 = vpack.c.b16 %v3986, %v3976
    %v5377 = vpack.c.b16 %v3997, %v3987
    %v5378 = vpack.c.b16 %v3998, %v3988
    %v5379 = vpack.c.b16 %v3999, %v3989
    %v5380 = vpack.c.b16 %v4000, %v3990
    %v5381 = vpack.c.b16 %v4001, %v3991
    %v5382 = vpack.c.b16 %v4002, %v3992
    %v5383 = vpack.c.b16 %v4003, %v3993
    %v5384 = vpack.c.b16 %v4004, %v3994
    %v5385 = vpack.c.b16 %v4005, %v3995
    %v5386 = vpack.c.b16 %v4006, %v3996
    %v5387 = vpack.c.b16 %v4017, %v4007
    %v5388 = vpack.c.b16 %v4018, %v4008
    %v5389 = vpack.c.b16 %v4019, %v4009
    %v5390 = vpack.c.b16 %v4020, %v4010
    %v5391 = vpack.c.b16 %v4021, %v4011
    %v5392 = vpack.c.b16 %v4022, %v4012
    %v5393 = vpack.c.b16 %v4023, %v4013
    %v5394 = vpack.c.b16 %v4024, %v4014
    %v5395 = vpack.c.b16 %v4025, %v4015
    %v5396 = vpack.c.b16 %v4026, %v4016
    %v5397 = vpack.c.b16 %v4037, %v4027
    %v5398 = vpack.c.b16 %v4038, %v4028
    %v5399 = vpack.c.b16 %v4039, %v4029
    %v5400 = vpack.c.b16 %v4040, %v4030
    %v5401 = vpack.c.b16 %v4041, %v4031
    %v5402 = vpack.c.b16 %v4042, %v4032
    %v5403 = vpack.c.b16 %v4043, %v4033
    %v5404 = vpack.c.b16 %v4044, %v4034
    %v5405 = vpack.c.b16 %v4045, %v4035
    %v5406 = vpack.c.b16 %v4046, %v4036
    %v5407 = vpack.c.b16 %v4057, %v4047
    %v5408 = vpack.c.b16 %v4058, %v4048
    %v5409 = vpack.c.b16 %v4059, %v4049
    %v5410 = vpack.c.b16 %v4060, %v4050
    %v5411 = vpack.c.b16 %v4061, %v4051
    %v5412 = vpack.c.b16 %v4062, %v4052
    %v5413 = vpack.c.b16 %v4063, %v4053
    %v5414 = vpack.c.b16 %v4064, %v4054
    %v5415 = vpack.c.b16 %v4065, %v4055
    %v5416 = vpack.c.b16 %v4066, %v4056
    %v5417 = vpack.c.b16 %v4077, %v4067
    %v5418 = vpack.c.b16 %v4078, %v4068
    %v5419 = vpack.c.b16 %v4079, %v4069
    %v5420 = vpack.c.b16 %v4080, %v4070
    %v5421 = vpack.c.b16 %v4081, %v4071
    %v5422 = vpack.c.b16 %v4082, %v4072
    %v5423 = vpack.c.b16 %v4083, %v4073
    %v5424 = vpack.c.b16 %v4084, %v4074
    %v5425 = vpack.c.b16 %v4085, %v4075
    %v5426 = vpack.c.b16 %v4086, %v4076
    %v5427 = vpack.c.b16 %v4097, %v4087
    %v5428 = vpack.c.b16 %v4098, %v4088
    %v5429 = vpack.c.b16 %v4099, %v4089
    %v5430 = vpack.c.b16 %v4100, %v4090
    %v5431 = vpack.c.b16 %v4101, %v4091
    %v5432 = vpack.c.b16 %v4102, %v4092
    %v5433 = vpack.c.b16 %v4103, %v4093
    %v5434 = vpack.c.b16 %v4104, %v4094
    %v5435 = vpack.c.b16 %v4105, %v4095
    %v5436 = vpack.c.b16 %v4106, %v4096
    %v5437 = vpack.c.b16 %v4117, %v4107
    %v5438 = vpack.c.b16 %v4118, %v4108
    %v5439 = vpack.c.b16 %v4119, %v4109
    %v5440 = vpack.c.b16 %v4120, %v4110
    %v5441 = vpack.c.b16 %v4121, %v4111
    %v5442 = vpack.c.b16 %v4122, %v4112
    %v5443 = vpack.c.b16 %v4123, %v4113
    %v5444 = vpack.c.b16 %v4124, %v4114
    %v5445 = vpack.c.b16 %v4125, %v4115
    %v5446 = vpack.c.b16 %v4126, %v4116
    %v5447 = vpack.c.b16 %v4137, %v4127
    %v5448 = vpack.c.b16 %v4138, %v4128
    %v5449 = vpack.c.b16 %v4139, %v4129
    %v5450 = vpack.c.b16 %v4140, %v4130
    %v5451 = vpack.c.b16 %v4141, %v4131
    %v5452 = vpack.c.b16 %v4142, %v4132
    %v5453 = vpack.c.b16 %v4143, %v4133
    %v5454 = vpack.c.b16 %v4144, %v4134
    %v5455 = vpack.c.b16 %v4145, %v4135
    %v5456 = vpack.c.b16 %v4146, %v4136
    %v5457 = vpack.c.b16 %v4157, %v4147
    %v5458 = vpack.c.b16 %v4158, %v4148
    %v5459 = vpack.c.b16 %v4159, %v4149
    %v5460 = vpack.c.b16 %v4160, %v4150
    %v5461 = vpack.c.b16 %v4161, %v4151
    %v5462 = vpack.c.b16 %v4162, %v4152
    %v5463 = vpack.c.b16 %v4163, %v4153
    %v5464 = vpack.c.b16 %v4164, %v4154
    %v5465 = vpack.c.b16 %v4165, %v4155
    %v5466 = vpack.c.b16 %v4166, %v4156
    %v5467 = vpack.c.b16 %v4177, %v4167
    %v5468 = vpack.c.b16 %v4178, %v4168
    %v5469 = vpack.c.b16 %v4179, %v4169
    %v5470 = vpack.c.b16 %v4180, %v4170
    %v5471 = vpack.c.b16 %v4181, %v4171
    %v5472 = vpack.c.b16 %v4182, %v4172
    %v5473 = vpack.c.b16 %v4183, %v4173
    %v5474 = vpack.c.b16 %v4184, %v4174
    %v5475 = vpack.c.b16 %v4185, %v4175
    %v5476 = vpack.c.b16 %v4186, %v4176
    %v5477 = vpack.c.b16 %v4197, %v4187
    %v5478 = vpack.c.b16 %v4198, %v4188
    %v5479 = vpack.c.b16 %v4199, %v4189
    %v5480 = vpack.c.b16 %v4200, %v4190
    %v5481 = vpack.c.b16 %v4201, %v4191
    %v5482 = vpack.c.b16 %v4202, %v4192
    %v5483 = vpack.c.b16 %v4203, %v4193
    %v5484 = vpack.c.b16 %v4204, %v4194
    %v5485 = vpack.c.b16 %v4205, %v4195
    %v5486 = vpack.c.b16 %v4206, %v4196
    %v5487 = vpack.c.b16 %v4217, %v4207
    %v5488 = vpack.c.b16 %v4218, %v4208
    %v5489 = vpack.c.b16 %v4219, %v4209
    %v5490 = vpack.c.b16 %v4220, %v4210
    %v5491 = vpack.c.b16 %v4221, %v4211
    %v5492 = vpack.c.b16 %v4222, %v4212
    %v5493 = vpack.c.b16 %v4223, %v4213
    %v5494 = vpack.c.b16 %v4224, %v4214
    %v5495 = vpack.c.b16 %v4225, %v4215
    %v5496 = vpack.c.b16 %v4226, %v4216
    %v5497 = vpack.c.b16 %v4237, %v4227
    %v5498 = vpack.c.b16 %v4238, %v4228
    %v5499 = vpack.c.b16 %v4239, %v4229
    %v5500 = vpack.c.b16 %v4240, %v4230
    %v5501 = vpack.c.b16 %v4241, %v4231
    %v5502 = vpack.c.b16 %v4242, %v4232
    %v5503 = vpack.c.b16 %v4243, %v4233
    %v5504 = vpack.c.b16 %v4244, %v4234
    %v5505 = vpack.c.b16 %v4245, %v4235
    %v5506 = vpack.c.b16 %v4246, %v4236
    %v5507 = vpack.c.b16 %v4257, %v4247
    %v5508 = vpack.c.b16 %v4258, %v4248
    %v5509 = vpack.c.b16 %v4259, %v4249
    %v5510 = vpack.c.b16 %v4260, %v4250
    %v5511 = vpack.c.b16 %v4261, %v4251
    %v5512 = vpack.c.b16 %v4262, %v4252
    %v5513 = vpack.c.b16 %v4263, %v4253
    %v5514 = vpack.c.b16 %v4264, %v4254
    %v5515 = vpack.c.b16 %v4265, %v4255
    %v5516 = vpack.c.b16 %v4266, %v4256
    %v5517 = vpack.c.b16 %v4277, %v4267
    %v5518 = vpack.c.b16 %v4278, %v4268
    %v5519 = vpack.c.b16 %v4279, %v4269
    %v5520 = vpack.c.b16 %v4280, %v4270
    %v5521 = vpack.c.b16 %v4281, %v4271
    %v5522 = vpack.c.b16 %v4282, %v4272
    %v5523 = vpack.c.b16 %v4283, %v4273
    %v5524 = vpack.c.b16 %v4284, %v4274
    %v5525 = vpack.c.b16 %v4285, %v4275
    %v5526 = vpack.c.b16 %v4286, %v4276
    %v5527 = vpack.c.b16 %v4297, %v4287
    %v5528 = vpack.c.b16 %v4298, %v4288
    %v5529 = vpack.c.b16 %v4299, %v4289
    %v5530 = vpack.c.b16 %v4300, %v4290
    %v5531 = vpack.c.b16 %v4301, %v4291
    %v5532 = vpack.c.b16 %v4302, %v4292
    %v5533 = vpack.c.b16 %v4303, %v4293
    %v5534 = vpack.c.b16 %v4304, %v4294
    %v5535 = vpack.c.b16 %v4305, %v4295
    %v5536 = vpack.c.b16 %v4306, %v4296
    %v5537 = vpack.c.b16 %v4317, %v4307
    %v5538 = vpack.c.b16 %v4318, %v4308
    %v5539 = vpack.c.b16 %v4319, %v4309
    %v5540 = vpack.c.b16 %v4320, %v4310
    %v5541 = vpack.c.b16 %v4321, %v4311
    %v5542 = vpack.c.b16 %v4322, %v4312
    %v5543 = vpack.c.b16 %v4323, %v4313
    %v5544 = vpack.c.b16 %v4324, %v4314
    %v5545 = vpack.c.b16 %v4325, %v4315
    %v5546 = vpack.c.b16 %v4326, %v4316
    %v5547 = vpack.c.b16 %v4337, %v4327
    %v5548 = vpack.c.b16 %v4338, %v4328
    %v5549 = vpack.c.b16 %v4339, %v4329
    %v5550 = vpack.c.b16 %v4340, %v4330
    %v5551 = vpack.c.b16 %v4341, %v4331
    %v5552 = vpack.c.b16 %v4342, %v4332
    %v5553 = vpack.c.b16 %v4343, %v4333
    %v5554 = vpack.c.b16 %v4344, %v4334
    %v5555 = vpack.c.b16 %v4345, %v4335
    %v5556 = vpack.c.b16 %v4346, %v4336
    %v5557 = vpack.c.b16 %v4357, %v4347
    %v5558 = vpack.c.b16 %v4358, %v4348
    %v5559 = vpack.c.b16 %v4359, %v4349
    %v5560 = vpack.c.b16 %v4360, %v4350
    %v5561 = vpack.c.b16 %v4361, %v4351
    %v5562 = vpack.c.b16 %v4362, %v4352
    %v5563 = vpack.c.b16 %v4363, %v4353
    %v5564 = vpack.c.b16 %v4364, %v4354
    %v5565 = vpack.c.b16 %v4365, %v4355
    %v5566 = vpack.c.b16 %v4366, %v4356
    %v5567 = vpack.c.b16 %v4377, %v4367
    %v5568 = vpack.c.b16 %v4378, %v4368
    %v5569 = vpack.c.b16 %v4379, %v4369
    %v5570 = vpack.c.b16 %v4380, %v4370
    %v5571 = vpack.c.b16 %v4381, %v4371
    %v5572 = vpack.c.b16 %v4382, %v4372
    %v5573 = vpack.c.b16 %v4383, %v4373
    %v5574 = vpack.c.b16 %v4384, %v4374
    %v5575 = vpack.c.b16 %v4385, %v4375
    %v5576 = vpack.c.b16 %v4386, %v4376
    %v5577 = vpack.c.b16 %v4397, %v4387
    %v5578 = vpack.c.b16 %v4398, %v4388
    %v5579 = vpack.c.b16 %v4399, %v4389
    %v5580 = vpack.c.b16 %v4400, %v4390
    %v5581 = vpack.c.b16 %v4401, %v4391
    %v5582 = vpack.c.b16 %v4402, %v4392
    %v5583 = vpack.c.b16 %v4403, %v4393
    %v5584 = vpack.c.b16 %v4404, %v4394
    %v5585 = vpack.c.b16 %v4405, %v4395
    %v5586 = vpack.c.b16 %v4406, %v4396
    %v5587 = vpack.c.b16 %v4417, %v4407
    %v5588 = vpack.c.b16 %v4418, %v4408
    %v5589 = vpack.c.b16 %v4419, %v4409
    %v5590 = vpack.c.b16 %v4420, %v4410
    %v5591 = vpack.c.b16 %v4421, %v4411
    %v5592 = vpack.c.b16 %v4422, %v4412
    %v5593 = vpack.c.b16 %v4423, %v4413
    %v5594 = vpack.c.b16 %v4424, %v4414
    %v5595 = vpack.c.b16 %v4425, %v4415
    %v5596 = vpack.c.b16 %v4426, %v4416
    %v5597 = vpack.c.b16 %v4437, %v4427
    %v5598 = vpack.c.b16 %v4438, %v4428
    %v5599 = vpack.c.b16 %v4439, %v4429
    %v5600 = vpack.c.b16 %v4440, %v4430
    %v5601 = vpack.c.b16 %v4441, %v4431
    %v5602 = vpack.c.b16 %v4442, %v4432
    %v5603 = vpack.c.b16 %v4443, %v4433
    %v5604 = vpack.c.b16 %v4444, %v4434
    %v5605 = vpack.c.b16 %v4445, %v4435
    %v5606 = vpack.c.b16 %v4446, %v4436
    %v5607 = vpack.c.b16 %v4457, %v4447
    %v5608 = vpack.c.b16 %v4458, %v4448
    %v5609 = vpack.c.b16 %v4459, %v4449
    %v5610 = vpack.c.b16 %v4460, %v4450
    %v5611 = vpack.c.b16 %v4461, %v4451
    %v5612 = vpack.c.b16 %v4462, %v4452
    %v5613 = vpack.c.b16 %v4463, %v4453
    %v5614 = vpack.c.b16 %v4464, %v4454
    %v5615 = vpack.c.b16 %v4465, %v4455
    %v5616 = vpack.c.b16 %v4466, %v4456
    %v5617 = vpack.c.b16 %v4477, %v4467
    %v5618 = vpack.c.b16 %v4478, %v4468
    %v5619 = vpack.c.b16 %v4479, %v4469
    %v5620 = vpack.c.b16 %v4480, %v4470
    %v5621 = vpack.c.b16 %v4481, %v4471
    %v5622 = vpack.c.b16 %v4482, %v4472
    %v5623 = vpack.c.b16 %v4483, %v4473
    %v5624 = vpack.c.b16 %v4484, %v4474
    %v5625 = vpack.c.b16 %v4485, %v4475
    %v5626 = vpack.c.b16 %v4486, %v4476
    %v5627 = vpack.c.b16 %v4497, %v4487
    %v5628 = vpack.c.b16 %v4498, %v4488
    %v5629 = vpack.c.b16 %v4499, %v4489
    %v5630 = vpack.c.b16 %v4500, %v4490
    %v5631 = vpack.c.b16 %v4501, %v4491
    %v5632 = vpack.c.b16 %v4502, %v4492
    %v5633 = vpack.c.b16 %v4503, %v4493
    %v5634 = vpack.c.b16 %v4504, %v4494
    %v5635 = vpack.c.b16 %v4505, %v4495
    %v5636 = vpack.c.b16 %v4506, %v4496
    %v5637 = vpack.c.b16 %v4517, %v4507
    %v5638 = vpack.c.b16 %v4518, %v4508
    %v5639 = vpack.c.b16 %v4519, %v4509
    %v5640 = vpack.c.b16 %v4520, %v4510
    %v5641 = vpack.c.b16 %v4521, %v4511
    %v5642 = vpack.c.b16 %v4522, %v4512
    %v5643 = vpack.c.b16 %v4523, %v4513
    %v5644 = vpack.c.b16 %v4524, %v4514
    %v5645 = vpack.c.b16 %v4525, %v4515
    %v5646 = vpack.c.b16 %v4526, %v4516
    %v5647 = vpack.c.b16 %v4537, %v4527
    %v5648 = vpack.c.b16 %v4538, %v4528
    %v5649 = vpack.c.b16 %v4539, %v4529
    %v5650 = vpack.c.b16 %v4540, %v4530
    %v5651 = vpack.c.b16 %v4541, %v4531
    %v5652 = vpack.c.b16 %v4542, %v4532
    %v5653 = vpack.c.b16 %v4543, %v4533
    %v5654 = vpack.c.b16 %v4544, %v4534
    %v5655 = vpack.c.b16 %v4545, %v4535
    %v5656 = vpack.c.b16 %v4546, %v4536
    %v5657 = vpack.c.b16 %v4557, %v4547
    %v5658 = vpack.c.b16 %v4558, %v4548
    %v5659 = vpack.c.b16 %v4559, %v4549
    %v5660 = vpack.c.b16 %v4560, %v4550
    %v5661 = vpack.c.b16 %v4561, %v4551
    %v5662 = vpack.c.b16 %v4562, %v4552
    %v5663 = vpack.c.b16 %v4563, %v4553
    %v5664 = vpack.c.b16 %v4564, %v4554
    %v5665 = vpack.c.b16 %v4565, %v4555
    %v5666 = vpack.c.b16 %v4566, %v4556
    %v5667 = vpack.c.b16 %v4577, %v4567
    %v5668 = vpack.c.b16 %v4578, %v4568
    %v5669 = vpack.c.b16 %v4579, %v4569
    %v5670 = vpack.c.b16 %v4580, %v4570
    %v5671 = vpack.c.b16 %v4581, %v4571
    %v5672 = vpack.c.b16 %v4582, %v4572
    %v5673 = vpack.c.b16 %v4583, %v4573
    %v5674 = vpack.c.b16 %v4584, %v4574
    %v5675 = vpack.c.b16 %v4585, %v4575
    %v5676 = vpack.c.b16 %v4586, %v4576
    %v5677 = vpack.c.b16 %v4597, %v4587
    %v5678 = vpack.c.b16 %v4598, %v4588
    %v5679 = vpack.c.b16 %v4599, %v4589
    %v5680 = vpack.c.b16 %v4600, %v4590
    %v5681 = vpack.c.b16 %v4601, %v4591
    %v5682 = vpack.c.b16 %v4602, %v4592
    %v5683 = vpack.c.b16 %v4603, %v4593
    %v5684 = vpack.c.b16 %v4604, %v4594
    %v5685 = vpack.c.b16 %v4605, %v4595
    %v5686 = vpack.c.b16 %v4606, %v4596
    %v5687 = vpack.c.b16 %v4617, %v4607
    %v5688 = vpack.c.b16 %v4618, %v4608
    %v5689 = vpack.c.b16 %v4619, %v4609
    %v5690 = vpack.c.b16 %v4620, %v4610
    %v5691 = vpack.c.b16 %v4621, %v4611
    %v5692 = vpack.c.b16 %v4622, %v4612
    %v5693 = vpack.c.b16 %v4623, %v4613
    %v5694 = vpack.c.b16 %v4624, %v4614
    %v5695 = vpack.c.b16 %v4625, %v4615
    %v5696 = vpack.c.b16 %v4626, %v4616
    %v5697 = vpack.c.b16 %v4637, %v4627
    %v5698 = vpack.c.b16 %v4638, %v4628
    %v5699 = vpack.c.b16 %v4639, %v4629
    %v5700 = vpack.c.b16 %v4640, %v4630
    %v5701 = vpack.c.b16 %v4641, %v4631
    %v5702 = vpack.c.b16 %v4642, %v4632
    %v5703 = vpack.c.b16 %v4643, %v4633
    %v5704 = vpack.c.b16 %v4644, %v4634
    %v5705 = vpack.c.b16 %v4645, %v4635
    %v5706 = vpack.c.b16 %v4646, %v4636
    %v5707 = vpack.c.b16 %v4657, %v4647
    %v5708 = vpack.c.b16 %v4658, %v4648
    %v5709 = vpack.c.b16 %v4659, %v4649
    %v5710 = vpack.c.b16 %v4660, %v4650
    %v5711 = vpack.c.b16 %v4661, %v4651
    %v5712 = vpack.c.b16 %v4662, %v4652
    %v5713 = vpack.c.b16 %v4663, %v4653
    %v5714 = vpack.c.b16 %v4664, %v4654
    %v5715 = vpack.c.b16 %v4665, %v4655
    %v5716 = vpack.c.b16 %v4666, %v4656
    %v5717 = vpack.c.b16 %v4677, %v4667
    %v5718 = vpack.c.b16 %v4678, %v4668
    %v5719 = vpack.c.b16 %v4679, %v4669
    %v5720 = vpack.c.b16 %v4680, %v4670
    %v5721 = vpack.c.b16 %v4681, %v4671
    %v5722 = vpack.c.b16 %v4682, %v4672
    %v5723 = vpack.c.b16 %v4683, %v4673
    %v5724 = vpack.c.b16 %v4684, %v4674
    %v5725 = vpack.c.b16 %v4685, %v4675
    %v5726 = vpack.c.b16 %v4686, %v4676
    %v5727 = vpack.c.b16 %v4697, %v4687
    %v5728 = vpack.c.b16 %v4698, %v4688
    %v5729 = vpack.c.b16 %v4699, %v4689
    %v5730 = vpack.c.b16 %v4700, %v4690
    %v5731 = vpack.c.b16 %v4701, %v4691
    %v5732 = vpack.c.b16 %v4702, %v4692
    %v5733 = vpack.c.b16 %v4703, %v4693
    %v5734 = vpack.c.b16 %v4704, %v4694
    %v5735 = vpack.c.b16 %v4705, %v4695
    %v5736 = vpack.c.b16 %v4706, %v4696
    %v5737 = vpack.c.b16 %v4717, %v4707
    %v5738 = vpack.c.b16 %v4718, %v4708
    %v5739 = vpack.c.b16 %v4719, %v4709
    %v5740 = vpack.c.b16 %v4720, %v4710
    %v5741 = vpack.c.b16 %v4721, %v4711
    %v5742 = vpack.c.b16 %v4722, %v4712
    %v5743 = vpack.c.b16 %v4723, %v4713
    %v5744 = vpack.c.b16 %v4724, %v4714
    %v5745 = vpack.c.b16 %v4725, %v4715
    %v5746 = vpack.c.b16 %v4726, %v4716
    %v5747 = vpack.c.b16 %v4737, %v4727
    %v5748 = vpack.c.b16 %v4738, %v4728
    %v5749 = vpack.c.b16 %v4739, %v4729
    %v5750 = vpack.c.b16 %v4740, %v4730
    %v5751 = vpack.c.b16 %v4741, %v4731
    %v5752 = vpack.c.b16 %v4742, %v4732
    %v5753 = vpack.c.b16 %v4743, %v4733
    %v5754 = vpack.c.b16 %v4744, %v4734
    %v5755 = vpack.c.b16 %v4745, %v4735
    %v5756 = vpack.c.b16 %v4746, %v4736
    %v5757 = vpack.c.b16 %v4757, %v4747
    %v5758 = vpack.c.b16 %v4758, %v4748
    %v5759 = vpack.c.b16 %v4759, %v4749
    %v5760 = vpack.c.b16 %v4760, %v4750
    %v5761 = vpack.c.b16 %v4761, %v4751
    %v5762 = vpack.c.b16 %v4762, %v4752
    %v5763 = vpack.c.b16 %v4763, %v4753
    %v5764 = vpack.c.b16 %v4764, %v4754
    %v5765 = vpack.c.b16 %v4765, %v4755
    %v5766 = vpack.c.b16 %v4766, %v4756
    %v5767 = vpack.c.b16 %v4777, %v4767
    %v5768 = vpack.c.b16 %v4778, %v4768
    %v5769 = vpack.c.b16 %v4779, %v4769
    %v5770 = vpack.c.b16 %v4780, %v4770
    %v5771 = vpack.c.b16 %v4781, %v4771
    %v5772 = vpack.c.b16 %v4782, %v4772
    %v5773 = vpack.c.b16 %v4783, %v4773
    %v5774 = vpack.c.b16 %v4784, %v4774
    %v5775 = vpack.c.b16 %v4785, %v4775
    %v5776 = vpack.c.b16 %v4786, %v4776
    %v5777 = vpack.c.b16 %v4797, %v4787
    %v5778 = vpack.c.b16 %v4798, %v4788
    %v5779 = vpack.c.b16 %v4799, %v4789
    %v5780 = vpack.c.b16 %v4800, %v4790
    %v5781 = vpack.c.b16 %v4801, %v4791
    %v5782 = vpack.c.b16 %v4802, %v4792
    %v5783 = vpack.c.b16 %v4803, %v4793
    %v5784 = vpack.c.b16 %v4804, %v4794
    %v5785 = vpack.c.b16 %v4805, %v4795
    %v5786 = vpack.c.b16 %v4806, %v4796
    %v5787 = vpack.c.b16 %v4817, %v4807
    %v5788 = vpack.c.b16 %v4818, %v4808
    %v5789 = vpack.c.b16 %v4819, %v4809
    %v5790 = vpack.c.b16 %v4820, %v4810
    %v5791 = vpack.c.b16 %v4821, %v4811
    %v5792 = vpack.c.b16 %v4822, %v4812
    %v5793 = vpack.c.b16 %v4823, %v4813
    %v5794 = vpack.c.b16 %v4824, %v4814
    %v5795 = vpack.c.b16 %v4825, %v4815
    %v5796 = vpack.c.b16 %v4826, %v4816
    %v5797 = vpack.c.b16 %v4837, %v4827
    %v5798 = vpack.c.b16 %v4838, %v4828
    %v5799 = vpack.c.b16 %v4839, %v4829
    %v5800 = vpack.c.b16 %v4840, %v4830
    %v5801 = vpack.c.b16 %v4841, %v4831
    %v5802 = vpack.c.b16 %v4842, %v4832
    %v5803 = vpack.c.b16 %v4843, %v4833
    %v5804 = vpack.c.b16 %v4844, %v4834
    %v5805 = vpack.c.b16 %v4845, %v4835
    %v5806 = vpack.c.b16 %v4846, %v4836
    %v5807 = vpack.c.b16 %v4857, %v4847
    %v5808 = vpack.c.b16 %v4858, %v4848
    %v5809 = vpack.c.b16 %v4859, %v4849
    %v5810 = vpack.c.b16 %v4860, %v4850
    %v5811 = vpack.c.b16 %v4861, %v4851
    %v5812 = vpack.c.b16 %v4862, %v4852
    %v5813 = vpack.c.b16 %v4863, %v4853
    %v5814 = vpack.c.b16 %v4864, %v4854
    %v5815 = vpack.c.b16 %v4865, %v4855
    %v5816 = vpack.c.b16 %v4866, %v4856
    %v5817 = vpack.c.b16 %v4877, %v4867
    %v5818 = vpack.c.b16 %v4878, %v4868
    %v5819 = vpack.c.b16 %v4879, %v4869
    %v5820 = vpack.c.b16 %v4880, %v4870
    %v5821 = vpack.c.b16 %v4881, %v4871
    %v5822 = vpack.c.b16 %v4882, %v4872
    %v5823 = vpack.c.b16 %v4883, %v4873
    %v5824 = vpack.c.b16 %v4884, %v4874
    %v5825 = vpack.c.b16 %v4885, %v4875
    %v5826 = vpack.c.b16 %v4886, %v4876
    %v5827 = vpack.c.b16 %v4897, %v4887
    %v5828 = vpack.c.b16 %v4898, %v4888
    %v5829 = vpack.c.b16 %v4899, %v4889
    %v5830 = vpack.c.b16 %v4900, %v4890
    %v5831 = vpack.c.b16 %v4901, %v4891
    %v5832 = vpack.c.b16 %v4902, %v4892
    %v5833 = vpack.c.b16 %v4903, %v4893
    %v5834 = vpack.c.b16 %v4904, %v4894
    %v5835 = vpack.c.b16 %v4905, %v4895
    %v5836 = vpack.c.b16 %v4906, %v4896
    %v5837 = vpack.c.b16 %v4917, %v4907
    %v5838 = vpack.c.b16 %v4918, %v4908
    %v5839 = vpack.c.b16 %v4919, %v4909
    %v5840 = vpack.c.b16 %v4920, %v4910
    %v5841 = vpack.c.b16 %v4921, %v4911
    %v5842 = vpack.c.b16 %v4922, %v4912
    %v5843 = vpack.c.b16 %v4923, %v4913
    %v5844 = vpack.c.b16 %v4924, %v4914
    %v5845 = vpack.c.b16 %v4925, %v4915
    %v5846 = vpack.c.b16 %v4926, %v4916
    %v5847 = vpack.c.b16 %v4937, %v4927
    %v5848 = vpack.c.b16 %v4938, %v4928
    %v5849 = vpack.c.b16 %v4939, %v4929
    %v5850 = vpack.c.b16 %v4940, %v4930
    %v5851 = vpack.c.b16 %v4941, %v4931
    %v5852 = vpack.c.b16 %v4942, %v4932
    %v5853 = vpack.c.b16 %v4943, %v4933
    %v5854 = vpack.c.b16 %v4944, %v4934
    %v5855 = vpack.c.b16 %v4945, %v4935
    %v5856 = vpack.c.b16 %v4946, %v4936
    %v5857 = vpack.c.b16 %v4957, %v4947
    %v5858 = vpack.c.b16 %v4958, %v4948
    %v5859 = vpack.c.b16 %v4959, %v4949
    %v5860 = vpack.c.b16 %v4960, %v4950
    %v5861 = vpack.c.b16 %v4961, %v4951
    %v5862 = vpack.c.b16 %v4962, %v4952
    %v5863 = vpack.c.b16 %v4963, %v4953
    %v5864 = vpack.c.b16 %v4964, %v4954
    %v5865 = vpack.c.b16 %v4965, %v4955
    %v5866 = vpack.c.b16 %v4966, %v4956
    %v6927 = vunpack.c.l.b16 %v127
    %v6928 = vunpack.c.l.b16 %v128
    %v6929 = vunpack.c.l.b16 %v129
    %v6930 = vunpack.c.l.b16 %v130
    %v6931 = vunpack.c.l.b16 %v131
    %v6932 = vunpack.c.l.b16 %v132
    %v6933 = vunpack.c.l.b16 %v133
    %v6934 = vunpack.c.l.b16 %v134
    %v6935 = vunpack.c.l.b16 %v135
    %v6936 = vunpack.c.l.b16 %v136
    %v6937 = vunpack.c.l.b16 %v137
    %v6938 = vunpack.c.l.b16 %v138
    %v6939 = vunpack.c.l.b16 %v139
    %v6940 = vunpack.c.l.b16 %v140
    %v6941 = vunpack.c.l.b16 %v141
    %v6942 = vunpack.c.l.b16 %v142
    %v6943 = vunpack.c.l.b16 %v143
    %v6944 = vunpack.c.l.b16 %v144
    %v6945 = vunpack.c.l.b16 %v145
    %v6946 = vunpack.c.l.b16 %v146
    %v6947 = vunpack.c.l.b16 %v147
    %v6948 = vunpack.c.l.b16 %v148
    %v6949 = vunpack.c.l.b16 %v149
    %v6950 = vunpack.c.l.b16 %v150
    %v6951 = vunpack.c.l.b16 %v151
    %v6952 = vunpack.c.l.b16 %v152
    %v6953 = vunpack.c.l.b16 %v153
    %v6954 = vunpack.c.l.b16 %v154
    %v6955 = vunpack.c.l.b16 %v155
    %v6956 = vunpack.c.l.b16 %v156
    %v6957 = vunpack.c.l.b16 %v157
    %v6958 = vunpack.c.l.b16 %v158
    %v6959 = vunpack.c.l.b16 %v159
    %v6960 = vunpack.c.l.b16 %v160
    %v6961 = vunpack.c.l.b16 %v161
    %v6962 = vunpack.c.l.b16 %v162
    %v6963 = vunpack.c.l.b16 %v163
    %v6964 = vunpack.c.l.b16 %v164
    %v6965 = vunpack.c.l.b16 %v165
    %v6966 = vunpack.c.l.b16 %v166
    %v6967 = vunpack.c.l.b16 %v167
    %v6968 = vunpack.c.l.b16 %v168
    %v6969 = vunpack.c.l.b16 %v169
    %v6970 = vunpack.c.l.b16 %v170
    %v6971 = vunpack.c.l.b16 %v171
    %v6972 = vunpack.c.l.b16 %v172
    %v6973 = vunpack.c.l.b16 %v173
    %v6974 = vunpack.c.l.b16 %v174
    %v6975 = vunpack.c.l.b16 %v175
    %v6976 = vunpack.c.l.b16 %v176
    %v6977 = vunpack.c.l.b16 %v177
    %v6978 = vunpack.c.l.b16 %v178
    %v6979 = vunpack.c.l.b16 %v179
    %v6980 = vunpack.c.l.b16 %v180
    %v6981 = vunpack.c.l.b16 %v181
    %v6982 = vunpack.c.l.b16 %v182
    %v6983 = vunpack.c.l.b16 %v183
    %v6984 = vunpack.c.l.b16 %v184
    %v6985 = vunpack.c.l.b16 %v185
    %v6986 = vunpack.c.l.b16 %v186
    %v6987 = vunpack.c.l.b16 %v187
    %v6988 = vunpack.c.l.b16 %v188
    %v6989 = vunpack.c.l.b16 %v189
    %v6990 = vunpack.c.l.b16 %v190
    %v6991 = vunpack.c.l.b16 %v191
    %v6992 = vunpack.c.l.b16 %v192
    %v6993 = vunpack.c.l.b16 %v193
    %v6994 = vunpack.c.l.b16 %v194
    %v6995 = vunpack.c.l.b16 %v195
    %v6996 = vunpack.c.l.b16 %v196
    %v6997 = vunpack.c.l.b16 %v197
    %v6998 = vunpack.c.l.b16 %v198
    %v6999 = vunpack.c.l.b16 %v199
    %v7000 = vunpack.c.l.b16 %v200
    %v7001 = vunpack.c.l.b16 %v201
    %v7002 = vunpack.c.l.b16 %v202
    %v7003 = vunpack.c.l.b16 %v203
    %v7004 = vunpack.c.l.b16 %v204
    %v7005 = vunpack.c.l.b16 %v205
    %v7006 = vunpack.c.l.b16 %v206
    %v7007 = vunpack.c.l.b16 %v207
    %v7008 = vunpack.c.l.b16 %v208
    %v7009 = vunpack.c.l.b16 %v209
    %v7010 = vunpack.c.l.b16 %v210
    %v7011 = vunpack.c.l.b16 %v211
    %v7012 = vunpack.c.l.b16 %v212
    %v7013 = vunpack.c.l.b16 %v213
    %v7014 = vunpack.c.l.b16 %v214
    %v7015 = vunpack.c.l.b16 %v215
    %v7016 = vunpack.c.l.b16 %v216
    %v7017 = vunpack.c.l.b16 %v217
    %v7018 = vunpack.c.l.b16 %v218
    %v7019 = vunpack.c.l.b16 %v219
    %v7020 = vunpack.c.l.b16 %v220
    %v7021 = vunpack.c.l.b16 %v221
    %v7022 = vunpack.c.l.b16 %v222
    %v7023 = vunpack.c.l.b16 %v223
    %v7024 = vunpack.c.l.b16 %v224
    %v7025 = vunpack.c.l.b16 %v225
    %v7026 = vunpack.c.l.b16 %v226
    %v7027 = vunpack.c.l.b16 %v227
    %v7028 = vunpack.c.l.b16 %v228
    %v7029 = vunpack.c.l.b16 %v229
    %v7030 = vunpack.c.l.b16 %v230
    %v7031 = vunpack.c.l.b16 %v231
    %v7032 = vunpack.c.l.b16 %v232
    %v7033 = vunpack.c.l.b16 %v233
    %v7034 = vunpack.c.l.b16 %v234
    %v7035 = vunpack.c.l.b16 %v235
    %v7036 = vunpack.c.l.b16 %v236
    %v7037 = vunpack.c.l.b16 %v237
    %v7038 = vunpack.c.l.b16 %v238
    %v7039 = vunpack.c.l.b16 %v239
    %v7040 = vunpack.c.l.b16 %v240
    %v7041 = vunpack.c.l.b16 %v241
    %v7042 = vunpack.c.l.b16 %v242
    %v7043 = vunpack.c.l.b16 %v243
    %v7044 = vunpack.c.l.b16 %v244
    %v7045 = vunpack.c.l.b16 %v245
    %v7046 = vunpack.c.l.b16 %v246
    %v7047 = vunpack.c.l.b16 %v247
    %v7048 = vunpack.c.l.b16 %v248
    %v7049 = vunpack.c.l.b16 %v249
    %v7050 = vunpack.c.l.b16 %v250
    %v7051 = vunpack.c.l.b16 %v251
    %v7052 = vunpack.c.l.b16 %v252
    %v7053 = vunpack.c.l.b16 %v253
    %v7054 = vunpack.c.l.b16 %v254
    %v7055 = vunpack.c.l.b16 %v255
    %v7056 = vunpack.c.l.b16 %v256
    %v7057 = vunpack.c.l.b16 %v257
    %v7058 = vunpack.c.l.b16 %v258
    %v7059 = vunpack.c.l.b16 %v259
    %v7060 = vunpack.c.l.b16 %v260
    %v7061 = vunpack.c.l.b16 %v261
    %v7062 = vunpack.c.l.b16 %v262
    %v7063 = vunpack.c.l.b16 %v263
    %v7064 = vunpack.c.l.b16 %v264
    %v7065 = vunpack.c.l.b16 %v265
    %v7066 = vunpack.c.l.b16 %v266
    %v7067 = vunpack.c.l.b16 %v267
    %v7068 = vunpack.c.l.b16 %v268
    %v7069 = vunpack.c.l.b16 %v269
    %v7070 = vunpack.c.l.b16 %v270
    %v7071 = vunpack.c.l.b16 %v271
    %v7072 = vunpack.c.l.b16 %v272
    %v7073 = vunpack.c.l.b16 %v273
    %v7074 = vunpack.c.l.b16 %v274
    %v7075 = vunpack.c.l.b16 %v275
    %v7076 = vunpack.c.l.b16 %v276
    %v7077 = vunpack.c.l.b16 %v277
    %v7078 = vunpack.c.l.b16 %v278
    %v7079 = vunpack.c.l.b16 %v279
    %v7080 = vunpack.c.l.b16 %v280
    %v7081 = vunpack.c.l.b16 %v281
    %v7082 = vunpack.c.l.b16 %v282
    %v7083 = vunpack.c.l.b16 %v283
    %v7084 = vunpack.c.l.b16 %v284
    %v7085 = vunpack.c.l.b16 %v285
    %v7086 = vunpack.c.l.b16 %v286
    %v7087 = vpack.c.b16 %v6928, %v6927
    %v7088 = vpack.c.b16 %v6930, %v6929
    %v7089 = vpack.c.b16 %v6932, %v6931
    %v7090 = vpack.c.b16 %v6934, %v6933
    %v7091 = vpack.c.b16 %v6936, %v6935
    %v7092 = vpack.c.b16 %v6938, %v6937
    %v7093 = vpack.c.b16 %v6940, %v6939
    %v7094 = vpack.c.b16 %v6942, %v6941
    %v7095 = vpack.c.b16 %v6944, %v6943
    %v7096 = vpack.c.b16 %v6946, %v6945
    %v7097 = vpack.c.b16 %v6948, %v6947
    %v7098 = vpack.c.b16 %v6950, %v6949
    %v7099 = vpack.c.b16 %v6952, %v6951
    %v7100 = vpack.c.b16 %v6954, %v6953
    %v7101 = vpack.c.b16 %v6956, %v6955
    %v7102 = vpack.c.b16 %v6958, %v6957
    %v7103 = vpack.c.b16 %v6960, %v6959
    %v7104 = vpack.c.b16 %v6962, %v6961
    %v7105 = vpack.c.b16 %v6964, %v6963
    %v7106 = vpack.c.b16 %v6966, %v6965
    %v7107 = vpack.c.b16 %v6968, %v6967
    %v7108 = vpack.c.b16 %v6970, %v6969
    %v7109 = vpack.c.b16 %v6972, %v6971
    %v7110 = vpack.c.b16 %v6974, %v6973
    %v7111 = vpack.c.b16 %v6976, %v6975
    %v7112 = vpack.c.b16 %v6978, %v6977
    %v7113 = vpack.c.b16 %v6980, %v6979
    %v7114 = vpack.c.b16 %v6982, %v6981
    %v7115 = vpack.c.b16 %v6984, %v6983
    %v7116 = vpack.c.b16 %v6986, %v6985
    %v7117 = vpack.c.b16 %v6988, %v6987
    %v7118 = vpack.c.b16 %v6990, %v6989
    %v7119 = vpack.c.b16 %v6992, %v6991
    %v7120 = vpack.c.b16 %v6994, %v6993
    %v7121 = vpack.c.b16 %v6996, %v6995
    %v7122 = vpack.c.b16 %v6998, %v6997
    %v7123 = vpack.c.b16 %v7000, %v6999
    %v7124 = vpack.c.b16 %v7002, %v7001
    %v7125 = vpack.c.b16 %v7004, %v7003
    %v7126 = vpack.c.b16 %v7006, %v7005
    %v7127 = vpack.c.b16 %v7008, %v7007
    %v7128 = vpack.c.b16 %v7010, %v7009
    %v7129 = vpack.c.b16 %v7012, %v7011
    %v7130 = vpack.c.b16 %v7014, %v7013
    %v7131 = vpack.c.b16 %v7016, %v7015
    %v7132 = vpack.c.b16 %v7018, %v7017
    %v7133 = vpack.c.b16 %v7020, %v7019
    %v7134 = vpack.c.b16 %v7022, %v7021
    %v7135 = vpack.c.b16 %v7024, %v7023
    %v7136 = vpack.c.b16 %v7026, %v7025
    %v7137 = vpack.c.b16 %v7028, %v7027
    %v7138 = vpack.c.b16 %v7030, %v7029
    %v7139 = vpack.c.b16 %v7032, %v7031
    %v7140 = vpack.c.b16 %v7034, %v7033
    %v7141 = vpack.c.b16 %v7036, %v7035
    %v7142 = vpack.c.b16 %v7038, %v7037
    %v7143 = vpack.c.b16 %v7040, %v7039
    %v7144 = vpack.c.b16 %v7042, %v7041
    %v7145 = vpack.c.b16 %v7044, %v7043
    %v7146 = vpack.c.b16 %v7046, %v7045
    %v7147 = vpack.c.b16 %v7048, %v7047
    %v7148 = vpack.c.b16 %v7050, %v7049
    %v7149 = vpack.c.b16 %v7052, %v7051
    %v7150 = vpack.c.b16 %v7054, %v7053
    %v7151 = vpack.c.b16 %v7056, %v7055
    %v7152 = vpack.c.b16 %v7058, %v7057
    %v7153 = vpack.c.b16 %v7060, %v7059
    %v7154 = vpack.c.b16 %v7062, %v7061
    %v7155 = vpack.c.b16 %v7064, %v7063
    %v7156 = vpack.c.b16 %v7066, %v7065
    %v7157 = vpack.c.b16 %v7068, %v7067
    %v7158 = vpack.c.b16 %v7070, %v7069
    %v7159 = vpack.c.b16 %v7072, %v7071
    %v7160 = vpack.c.b16 %v7074, %v7073
    %v7161 = vpack.c.b16 %v7076, %v7075
    %v7162 = vpack.c.b16 %v7078, %v7077
    %v7163 = vpack.c.b16 %v7080, %v7079
    %v7164 = vpack.c.b16 %v7082, %v7081
    %v7165 = vpack.c.b16 %v7084, %v7083
    %v7166 = vpack.c.b16 %v7086, %v7085
    %7247 = vmatprep.subr.bf16.mxu0 0
    %7248 = vmatpush1.bf16.msra.mxu0 %v7094
    %7249 = vmatprep.subr.bf16.mxu0 0
    %7250 = vmatpush1.bf16.msra.mxu0 %v7093
    %7251 = vmatprep.subr.bf16.mxu0 0
    %7252 = vmatpush1.bf16.msra.mxu0 %v7092
    %7253 = vmatprep.subr.bf16.mxu0 0
    %7254 = vmatpush1.bf16.msra.mxu0 %v7091
    %7255 = vmatprep.subr.bf16.mxu0 0
    %7256 = vmatpush1.bf16.msra.mxu0 %v7090
    %7257 = vmatprep.subr.bf16.mxu0 0
    %7258 = vmatpush1.bf16.msra.mxu0 %v7089
    %7259 = vmatprep.subr.bf16.mxu0 0
    %7260 = vmatpush1.bf16.msra.mxu0 %v7088
    %7261 = vmatprep.subr.bf16.mxu0 0
    %7262 = vmatpush1.bf16.msra.mxu0 %v7087
    %7263 = vmatprep.subr.bf16.mxu0 0
    %7264 = vmatpush2.bf16.msra.mxu0 %v7102
    %7265 = vmatprep.subr.bf16.mxu0 0
    %7266 = vmatpush2.bf16.msra.mxu0 %v7101
    %7267 = vmatprep.subr.bf16.mxu0 0
    %7268 = vmatpush2.bf16.msra.mxu0 %v7100
    %7269 = vmatprep.subr.bf16.mxu0 0
    %7270 = vmatpush2.bf16.msra.mxu0 %v7099
    %7271 = vmatprep.subr.bf16.mxu0 0
    %7272 = vmatpush2.bf16.msra.mxu0 %v7098
    %7273 = vmatprep.subr.bf16.mxu0 0
    %7274 = vmatpush2.bf16.msra.mxu0 %v7097
    %7275 = vmatprep.subr.bf16.mxu0 0
    %7276 = vmatpush2.bf16.msra.mxu0 %v7096
    %7277 = vmatprep.subr.bf16.mxu0 0
    %7278 = vmatpush2.bf16.msra.mxu0 %v7095
    %7279 = vmatprep.mubr.bf16.mxu0 %v4968
    %7280 = vmatmul.mubr.bf16.gmra.mxu0 %v4967
    %v7281 = vpop.f32.mrf.mxu0
    %v7282 = vadd.f32 %v1370, %v7281
    %v7283 = vpop.f32.mrf.mxu0
    %v7284 = vpop.f32.mrf.mxu0
    %v7285 = vadd.f32 %v1375, %v7284
    %v7286 = vpop.f32.mrf.mxu0
    %7287 = vmatprep.mubr.bf16.mxu0 %v4978
    %7288 = vmatmul.mubr.bf16.gmra.mxu0 %v4977
    %v7289 = vpop.f32.mrf.mxu0
    %v7290 = vadd.f32 %v1380, %v7289
    %v7291 = vpop.f32.mrf.mxu0
    %v7292 = vpop.f32.mrf.mxu0
    %v7293 = vadd.f32 %v1385, %v7292
    %v7294 = vpop.f32.mrf.mxu0
    %7295 = vmatprep.mubr.bf16.mxu0 %v4988
    %7296 = vmatmul.mubr.bf16.gmra.mxu0 %v4987
    %v7297 = vpop.f32.mrf.mxu0
    %v7298 = vadd.f32 %v1390, %v7297
    %v7299 = vpop.f32.mrf.mxu0
    %v7300 = vpop.f32.mrf.mxu0
    %v7301 = vadd.f32 %v1395, %v7300
    %v7302 = vpop.f32.mrf.mxu0
    %7303 = vmatprep.mubr.bf16.mxu0 %v4998
    %7304 = vmatmul.mubr.bf16.gmra.mxu0 %v4997
    %v7305 = vpop.f32.mrf.mxu0
    %v7306 = vadd.f32 %v1400, %v7305
    %v7307 = vpop.f32.mrf.mxu0
    %v7308 = vpop.f32.mrf.mxu0
    %v7309 = vadd.f32 %v1405, %v7308
    %v7310 = vpop.f32.mrf.mxu0
    %7311 = vmatprep.mubr.bf16.mxu0 %v5008
    %7312 = vmatmul.mubr.bf16.gmra.mxu0 %v5007
    %v7313 = vpop.f32.mrf.mxu0
    %v7314 = vadd.f32 %v1410, %v7313
    %v7315 = vpop.f32.mrf.mxu0
    %v7316 = vpop.f32.mrf.mxu0
    %v7317 = vadd.f32 %v1415, %v7316
    %v7318 = vpop.f32.mrf.mxu0
    %7319 = vmatprep.mubr.bf16.mxu0 %v5018
    %7320 = vmatmul.mubr.bf16.gmra.mxu0 %v5017
    %v7321 = vpop.f32.mrf.mxu0
    %v7322 = vadd.f32 %v1420, %v7321
    %v7323 = vpop.f32.mrf.mxu0
    %v7324 = vpop.f32.mrf.mxu0
    %v7325 = vadd.f32 %v1425, %v7324
    %v7326 = vpop.f32.mrf.mxu0
    %7327 = vmatprep.mubr.bf16.mxu0 %v5028
    %7328 = vmatmul.mubr.bf16.gmra.mxu0 %v5027
    %v7329 = vpop.f32.mrf.mxu0
    %v7330 = vadd.f32 %v1430, %v7329
    %v7331 = vpop.f32.mrf.mxu0
    %v7332 = vpop.f32.mrf.mxu0
    %v7333 = vadd.f32 %v1435, %v7332
    %v7334 = vpop.f32.mrf.mxu0
    %7335 = vmatprep.mubr.bf16.mxu0 %v5038
    %7336 = vmatmul.mubr.bf16.gmra.mxu0 %v5037
    %v7337 = vpop.f32.mrf.mxu0
    %v7338 = vadd.f32 %v1440, %v7337
    %v7339 = vpop.f32.mrf.mxu0
    %v7340 = vpop.f32.mrf.mxu0
    %v7341 = vadd.f32 %v1445, %v7340
    %v7342 = vpop.f32.mrf.mxu0
    %7343 = vmatprep.mubr.bf16.mxu0 %v5048
    %7344 = vmatmul.mubr.bf16.gmra.mxu0 %v5047
    %v7345 = vpop.f32.mrf.mxu0
    %v7346 = vadd.f32 %v1450, %v7345
    %v7347 = vpop.f32.mrf.mxu0
    %v7348 = vpop.f32.mrf.mxu0
    %v7349 = vadd.f32 %v1455, %v7348
    %v7350 = vpop.f32.mrf.mxu0
    %7351 = vmatprep.mubr.bf16.mxu0 %v5058
    %7352 = vmatmul.mubr.bf16.gmra.mxu0 %v5057
    %v7353 = vpop.f32.mrf.mxu0
    %v7354 = vadd.f32 %v1460, %v7353
    %v7355 = vpop.f32.mrf.mxu0
    %v7356 = vpop.f32.mrf.mxu0
    %v7357 = vadd.f32 %v1465, %v7356
    %v7358 = vpop.f32.mrf.mxu0
    %7359 = vmatprep.mubr.bf16.mxu0 %v5068
    %7360 = vmatmul.mubr.bf16.gmra.mxu0 %v5067
    %v7361 = vpop.f32.mrf.mxu0
    %v7362 = vadd.f32 %v1470, %v7361
    %v7363 = vpop.f32.mrf.mxu0
    %v7364 = vpop.f32.mrf.mxu0
    %v7365 = vadd.f32 %v1475, %v7364
    %v7366 = vpop.f32.mrf.mxu0
    %7367 = vmatprep.mubr.bf16.mxu0 %v5078
    %7368 = vmatmul.mubr.bf16.gmra.mxu0 %v5077
    %v7369 = vpop.f32.mrf.mxu0
    %v7370 = vadd.f32 %v1480, %v7369
    %v7371 = vpop.f32.mrf.mxu0
    %v7372 = vpop.f32.mrf.mxu0
    %v7373 = vadd.f32 %v1485, %v7372
    %v7374 = vpop.f32.mrf.mxu0
    %7375 = vmatprep.mubr.bf16.mxu0 %v5088
    %7376 = vmatmul.mubr.bf16.gmra.mxu0 %v5087
    %v7377 = vpop.f32.mrf.mxu0
    %v7378 = vadd.f32 %v1490, %v7377
    %v7379 = vpop.f32.mrf.mxu0
    %v7380 = vpop.f32.mrf.mxu0
    %v7381 = vadd.f32 %v1495, %v7380
    %v7382 = vpop.f32.mrf.mxu0
    %7383 = vmatprep.mubr.bf16.mxu0 %v5098
    %7384 = vmatmul.mubr.bf16.gmra.mxu0 %v5097
    %v7385 = vpop.f32.mrf.mxu0
    %v7386 = vadd.f32 %v1500, %v7385
    %v7387 = vpop.f32.mrf.mxu0
    %v7388 = vpop.f32.mrf.mxu0
    %v7389 = vadd.f32 %v1505, %v7388
    %v7390 = vpop.f32.mrf.mxu0
    %7391 = vmatprep.mubr.bf16.mxu0 %v5108
    %7392 = vmatmul.mubr.bf16.gmra.mxu0 %v5107
    %v7393 = vpop.f32.mrf.mxu0
    %v7394 = vadd.f32 %v1510, %v7393
    %v7395 = vpop.f32.mrf.mxu0
    %v7396 = vpop.f32.mrf.mxu0
    %v7397 = vadd.f32 %v1515, %v7396
    %v7398 = vpop.f32.mrf.mxu0
    %7399 = vmatprep.mubr.bf16.mxu0 %v5118
    %7400 = vmatmul.mubr.bf16.gmra.mxu0 %v5117
    %v7401 = vpop.f32.mrf.mxu0
    %v7402 = vadd.f32 %v1520, %v7401
    %v7403 = vpop.f32.mrf.mxu0
    %v7404 = vpop.f32.mrf.mxu0
    %v7405 = vadd.f32 %v1525, %v7404
    %v7406 = vpop.f32.mrf.mxu0
    %7407 = vmatprep.mubr.bf16.mxu0 %v5128
    %7408 = vmatmul.mubr.bf16.gmra.mxu0 %v5127
    %v7409 = vpop.f32.mrf.mxu0
    %v7410 = vadd.f32 %v1530, %v7409
    %v7411 = vpop.f32.mrf.mxu0
    %v7412 = vpop.f32.mrf.mxu0
    %v7413 = vadd.f32 %v1535, %v7412
    %v7414 = vpop.f32.mrf.mxu0
    %7415 = vmatprep.mubr.bf16.mxu0 %v5138
    %7416 = vmatmul.mubr.bf16.gmra.mxu0 %v5137
    %v7417 = vpop.f32.mrf.mxu0
    %v7418 = vadd.f32 %v1540, %v7417
    %v7419 = vpop.f32.mrf.mxu0
    %v7420 = vpop.f32.mrf.mxu0
    %v7421 = vadd.f32 %v1545, %v7420
    %v7422 = vpop.f32.mrf.mxu0
    %7423 = vmatprep.mubr.bf16.mxu0 %v5148
    %7424 = vmatmul.mubr.bf16.gmra.mxu0 %v5147
    %v7425 = vpop.f32.mrf.mxu0
    %v7426 = vadd.f32 %v1550, %v7425
    %v7427 = vpop.f32.mrf.mxu0
    %v7428 = vpop.f32.mrf.mxu0
    %v7429 = vadd.f32 %v1555, %v7428
    %v7430 = vpop.f32.mrf.mxu0
    %7431 = vmatprep.mubr.bf16.mxu0 %v5158
    %7432 = vmatmul.mubr.bf16.gmra.mxu0 %v5157
    %v7433 = vpop.f32.mrf.mxu0
    %v7434 = vadd.f32 %v1560, %v7433
    %v7435 = vpop.f32.mrf.mxu0
    %v7436 = vpop.f32.mrf.mxu0
    %v7437 = vadd.f32 %v1565, %v7436
    %v7438 = vpop.f32.mrf.mxu0
    %7439 = vmatprep.mubr.bf16.mxu0 %v5168
    %7440 = vmatmul.mubr.bf16.gmra.mxu0 %v5167
    %v7441 = vpop.f32.mrf.mxu0
    %v7442 = vadd.f32 %v1570, %v7441
    %v7443 = vpop.f32.mrf.mxu0
    %v7444 = vpop.f32.mrf.mxu0
    %v7445 = vadd.f32 %v1575, %v7444
    %v7446 = vpop.f32.mrf.mxu0
    %7447 = vmatprep.mubr.bf16.mxu0 %v5178
    %7448 = vmatmul.mubr.bf16.gmra.mxu0 %v5177
    %v7449 = vpop.f32.mrf.mxu0
    %v7450 = vadd.f32 %v1580, %v7449
    %v7451 = vpop.f32.mrf.mxu0
    %v7452 = vpop.f32.mrf.mxu0
    %v7453 = vadd.f32 %v1585, %v7452
    %v7454 = vpop.f32.mrf.mxu0
    %7455 = vmatprep.mubr.bf16.mxu0 %v5188
    %7456 = vmatmul.mubr.bf16.gmra.mxu0 %v5187
    %v7457 = vpop.f32.mrf.mxu0
    %v7458 = vadd.f32 %v1590, %v7457
    %v7459 = vpop.f32.mrf.mxu0
    %v7460 = vpop.f32.mrf.mxu0
    %v7461 = vadd.f32 %v1595, %v7460
    %v7462 = vpop.f32.mrf.mxu0
    %7463 = vmatprep.mubr.bf16.mxu0 %v5198
    %7464 = vmatmul.mubr.bf16.gmra.mxu0 %v5197
    %v7465 = vpop.f32.mrf.mxu0
    %v7466 = vadd.f32 %v1600, %v7465
    %v7467 = vpop.f32.mrf.mxu0
    %v7468 = vpop.f32.mrf.mxu0
    %v7469 = vadd.f32 %v1605, %v7468
    %v7470 = vpop.f32.mrf.mxu0
    %7471 = vmatprep.mubr.bf16.mxu0 %v5208
    %7472 = vmatmul.mubr.bf16.gmra.mxu0 %v5207
    %v7473 = vpop.f32.mrf.mxu0
    %v7474 = vadd.f32 %v1610, %v7473
    %v7475 = vpop.f32.mrf.mxu0
    %v7476 = vpop.f32.mrf.mxu0
    %v7477 = vadd.f32 %v1615, %v7476
    %v7478 = vpop.f32.mrf.mxu0
    %7479 = vmatprep.mubr.bf16.mxu0 %v5218
    %7480 = vmatmul.mubr.bf16.gmra.mxu0 %v5217
    %v7481 = vpop.f32.mrf.mxu0
    %v7482 = vadd.f32 %v1620, %v7481
    %v7483 = vpop.f32.mrf.mxu0
    %v7484 = vpop.f32.mrf.mxu0
    %v7485 = vadd.f32 %v1625, %v7484
    %v7486 = vpop.f32.mrf.mxu0
    %7487 = vmatprep.mubr.bf16.mxu0 %v5228
    %7488 = vmatmul.mubr.bf16.gmra.mxu0 %v5227
    %v7489 = vpop.f32.mrf.mxu0
    %v7490 = vadd.f32 %v1630, %v7489
    %v7491 = vpop.f32.mrf.mxu0
    %v7492 = vpop.f32.mrf.mxu0
    %v7493 = vadd.f32 %v1635, %v7492
    %v7494 = vpop.f32.mrf.mxu0
    %7495 = vmatprep.mubr.bf16.mxu0 %v5238
    %7496 = vmatmul.mubr.bf16.gmra.mxu0 %v5237
    %v7497 = vpop.f32.mrf.mxu0
    %v7498 = vadd.f32 %v1640, %v7497
    %v7499 = vpop.f32.mrf.mxu0
    %v7500 = vpop.f32.mrf.mxu0
    %v7501 = vadd.f32 %v1645, %v7500
    %v7502 = vpop.f32.mrf.mxu0
    %7503 = vmatprep.mubr.bf16.mxu0 %v5248
    %7504 = vmatmul.mubr.bf16.gmra.mxu0 %v5247
    %v7505 = vpop.f32.mrf.mxu0
    %v7506 = vadd.f32 %v1650, %v7505
    %v7507 = vpop.f32.mrf.mxu0
    %v7508 = vpop.f32.mrf.mxu0
    %v7509 = vadd.f32 %v1655, %v7508
    %v7510 = vpop.f32.mrf.mxu0
    %7511 = vmatprep.mubr.bf16.mxu0 %v5258
    %7512 = vmatmul.mubr.bf16.gmra.mxu0 %v5257
    %v7513 = vpop.f32.mrf.mxu0
    %v7514 = vadd.f32 %v1660, %v7513
    %v7515 = vpop.f32.mrf.mxu0
    %v7516 = vpop.f32.mrf.mxu0
    %v7517 = vadd.f32 %v1665, %v7516
    %v7518 = vpop.f32.mrf.mxu0
    %7519 = vmatprep.mubr.bf16.mxu0 %v5268
    %7520 = vmatmul.mubr.bf16.gmra.mxu0 %v5267
    %v7521 = vpop.f32.mrf.mxu0
    %v7522 = vadd.f32 %v1670, %v7521
    %v7523 = vpop.f32.mrf.mxu0
    %v7524 = vpop.f32.mrf.mxu0
    %v7525 = vadd.f32 %v1675, %v7524
    %v7526 = vpop.f32.mrf.mxu0
    %7527 = vmatprep.mubr.bf16.mxu0 %v5278
    %7528 = vmatmul.mubr.bf16.gmra.mxu0 %v5277
    %v7529 = vpop.f32.mrf.mxu0
    %v7530 = vadd.f32 %v1680, %v7529
    %v7531 = vpop.f32.mrf.mxu0
    %v7532 = vpop.f32.mrf.mxu0
    %v7533 = vadd.f32 %v1685, %v7532
    %v7534 = vpop.f32.mrf.mxu0
    %7535 = vmatprep.mubr.bf16.mxu0 %v5288
    %7536 = vmatmul.mubr.bf16.gmra.mxu0 %v5287
    %v7537 = vpop.f32.mrf.mxu0
    %v7538 = vadd.f32 %v1690, %v7537
    %v7539 = vpop.f32.mrf.mxu0
    %v7540 = vpop.f32.mrf.mxu0
    %v7541 = vadd.f32 %v1695, %v7540
    %v7542 = vpop.f32.mrf.mxu0
    %7543 = vmatprep.mubr.bf16.mxu0 %v5298
    %7544 = vmatmul.mubr.bf16.gmra.mxu0 %v5297
    %v7545 = vpop.f32.mrf.mxu0
    %v7546 = vadd.f32 %v1700, %v7545
    %v7547 = vpop.f32.mrf.mxu0
    %v7548 = vpop.f32.mrf.mxu0
    %v7549 = vadd.f32 %v1705, %v7548
    %v7550 = vpop.f32.mrf.mxu0
    %7551 = vmatprep.mubr.bf16.mxu0 %v5308
    %7552 = vmatmul.mubr.bf16.gmra.mxu0 %v5307
    %v7553 = vpop.f32.mrf.mxu0
    %v7554 = vadd.f32 %v1710, %v7553
    %v7555 = vpop.f32.mrf.mxu0
    %v7556 = vpop.f32.mrf.mxu0
    %v7557 = vadd.f32 %v1715, %v7556
    %v7558 = vpop.f32.mrf.mxu0
    %7559 = vmatprep.mubr.bf16.mxu0 %v5318
    %7560 = vmatmul.mubr.bf16.gmra.mxu0 %v5317
    %v7561 = vpop.f32.mrf.mxu0
    %v7562 = vadd.f32 %v1720, %v7561
    %v7563 = vpop.f32.mrf.mxu0
    %v7564 = vpop.f32.mrf.mxu0
    %v7565 = vadd.f32 %v1725, %v7564
    %v7566 = vpop.f32.mrf.mxu0
    %7567 = vmatprep.mubr.bf16.mxu0 %v5328
    %7568 = vmatmul.mubr.bf16.gmra.mxu0 %v5327
    %v7569 = vpop.f32.mrf.mxu0
    %v7570 = vadd.f32 %v1730, %v7569
    %v7571 = vpop.f32.mrf.mxu0
    %v7572 = vpop.f32.mrf.mxu0
    %v7573 = vadd.f32 %v1735, %v7572
    %v7574 = vpop.f32.mrf.mxu0
    %7575 = vmatprep.mubr.bf16.mxu0 %v5338
    %7576 = vmatmul.mubr.bf16.gmra.mxu0 %v5337
    %v7577 = vpop.f32.mrf.mxu0
    %v7578 = vadd.f32 %v1740, %v7577
    %v7579 = vpop.f32.mrf.mxu0
    %v7580 = vpop.f32.mrf.mxu0
    %v7581 = vadd.f32 %v1745, %v7580
    %v7582 = vpop.f32.mrf.mxu0
    %7583 = vmatprep.mubr.bf16.mxu0 %v5348
    %7584 = vmatmul.mubr.bf16.gmra.mxu0 %v5347
    %v7585 = vpop.f32.mrf.mxu0
    %v7586 = vadd.f32 %v1750, %v7585
    %v7587 = vpop.f32.mrf.mxu0
    %v7588 = vpop.f32.mrf.mxu0
    %v7589 = vadd.f32 %v1755, %v7588
    %v7590 = vpop.f32.mrf.mxu0
    %7591 = vmatprep.mubr.bf16.mxu0 %v5358
    %7592 = vmatmul.mubr.bf16.gmra.mxu0 %v5357
    %v7593 = vpop.f32.mrf.mxu0
    %v7594 = vadd.f32 %v1760, %v7593
    %v7595 = vpop.f32.mrf.mxu0
    %v7596 = vpop.f32.mrf.mxu0
    %v7597 = vadd.f32 %v1765, %v7596
    %v7598 = vpop.f32.mrf.mxu0
    %7599 = vmatprep.mubr.bf16.mxu0 %v5368
    %7600 = vmatmul.mubr.bf16.gmra.mxu0 %v5367
    %v7601 = vpop.f32.mrf.mxu0
    %v7602 = vadd.f32 %v1770, %v7601
    %v7603 = vpop.f32.mrf.mxu0
    %v7604 = vpop.f32.mrf.mxu0
    %v7605 = vadd.f32 %v1775, %v7604
    %v7606 = vpop.f32.mrf.mxu0
    %7607 = vmatprep.mubr.bf16.mxu0 %v5378
    %7608 = vmatmul.mubr.bf16.gmra.mxu0 %v5377
    %v7609 = vpop.f32.mrf.mxu0
    %v7610 = vadd.f32 %v1780, %v7609
    %v7611 = vpop.f32.mrf.mxu0
    %v7612 = vpop.f32.mrf.mxu0
    %v7613 = vadd.f32 %v1785, %v7612
    %v7614 = vpop.f32.mrf.mxu0
    %7615 = vmatprep.mubr.bf16.mxu0 %v5388
    %7616 = vmatmul.mubr.bf16.gmra.mxu0 %v5387
    %v7617 = vpop.f32.mrf.mxu0
    %v7618 = vadd.f32 %v1790, %v7617
    %v7619 = vpop.f32.mrf.mxu0
    %v7620 = vpop.f32.mrf.mxu0
    %v7621 = vadd.f32 %v1795, %v7620
    %v7622 = vpop.f32.mrf.mxu0
    %7623 = vmatprep.mubr.bf16.mxu0 %v5398
    %7624 = vmatmul.mubr.bf16.gmra.mxu0 %v5397
    %v7625 = vpop.f32.mrf.mxu0
    %v7626 = vadd.f32 %v1800, %v7625
    %v7627 = vpop.f32.mrf.mxu0
    %v7628 = vpop.f32.mrf.mxu0
    %v7629 = vadd.f32 %v1805, %v7628
    %v7630 = vpop.f32.mrf.mxu0
    %7631 = vmatprep.mubr.bf16.mxu0 %v5408
    %7632 = vmatmul.mubr.bf16.gmra.mxu0 %v5407
    %v7633 = vpop.f32.mrf.mxu0
    %v7634 = vadd.f32 %v1810, %v7633
    %v7635 = vpop.f32.mrf.mxu0
    %v7636 = vpop.f32.mrf.mxu0
    %v7637 = vadd.f32 %v1815, %v7636
    %v7638 = vpop.f32.mrf.mxu0
    %7639 = vmatprep.mubr.bf16.mxu0 %v5418
    %7640 = vmatmul.mubr.bf16.gmra.mxu0 %v5417
    %v7641 = vpop.f32.mrf.mxu0
    %v7642 = vadd.f32 %v1820, %v7641
    %v7643 = vpop.f32.mrf.mxu0
    %v7644 = vpop.f32.mrf.mxu0
    %v7645 = vadd.f32 %v1825, %v7644
    %v7646 = vpop.f32.mrf.mxu0
    %7647 = vmatprep.mubr.bf16.mxu0 %v5428
    %7648 = vmatmul.mubr.bf16.gmra.mxu0 %v5427
    %v7649 = vpop.f32.mrf.mxu0
    %v7650 = vadd.f32 %v1830, %v7649
    %v7651 = vpop.f32.mrf.mxu0
    %v7652 = vpop.f32.mrf.mxu0
    %v7653 = vadd.f32 %v1835, %v7652
    %v7654 = vpop.f32.mrf.mxu0
    %7655 = vmatprep.mubr.bf16.mxu0 %v5438
    %7656 = vmatmul.mubr.bf16.gmra.mxu0 %v5437
    %v7657 = vpop.f32.mrf.mxu0
    %v7658 = vadd.f32 %v1840, %v7657
    %v7659 = vpop.f32.mrf.mxu0
    %v7660 = vpop.f32.mrf.mxu0
    %v7661 = vadd.f32 %v1845, %v7660
    %v7662 = vpop.f32.mrf.mxu0
    %7663 = vmatprep.mubr.bf16.mxu0 %v5448
    %7664 = vmatmul.mubr.bf16.gmra.mxu0 %v5447
    %v7665 = vpop.f32.mrf.mxu0
    %v7666 = vadd.f32 %v1850, %v7665
    %v7667 = vpop.f32.mrf.mxu0
    %v7668 = vpop.f32.mrf.mxu0
    %v7669 = vadd.f32 %v1855, %v7668
    %v7670 = vpop.f32.mrf.mxu0
    %7671 = vmatprep.mubr.bf16.mxu0 %v5458
    %7672 = vmatmul.mubr.bf16.gmra.mxu0 %v5457
    %v7673 = vpop.f32.mrf.mxu0
    %v7674 = vadd.f32 %v1860, %v7673
    %v7675 = vpop.f32.mrf.mxu0
    %v7676 = vpop.f32.mrf.mxu0
    %v7677 = vadd.f32 %v1865, %v7676
    %v7678 = vpop.f32.mrf.mxu0
    %7679 = vmatprep.mubr.bf16.mxu0 %v5468
    %7680 = vmatmul.mubr.bf16.gmra.mxu0 %v5467
    %v7681 = vpop.f32.mrf.mxu0
    %v7682 = vadd.f32 %v1870, %v7681
    %v7683 = vpop.f32.mrf.mxu0
    %v7684 = vpop.f32.mrf.mxu0
    %v7685 = vadd.f32 %v1875, %v7684
    %v7686 = vpop.f32.mrf.mxu0
    %7687 = vmatprep.mubr.bf16.mxu0 %v5478
    %7688 = vmatmul.mubr.bf16.gmra.mxu0 %v5477
    %v7689 = vpop.f32.mrf.mxu0
    %v7690 = vadd.f32 %v1880, %v7689
    %v7691 = vpop.f32.mrf.mxu0
    %v7692 = vpop.f32.mrf.mxu0
    %v7693 = vadd.f32 %v1885, %v7692
    %v7694 = vpop.f32.mrf.mxu0
    %7695 = vmatprep.mubr.bf16.mxu0 %v5488
    %7696 = vmatmul.mubr.bf16.gmra.mxu0 %v5487
    %v7697 = vpop.f32.mrf.mxu0
    %v7698 = vadd.f32 %v1890, %v7697
    %v7699 = vpop.f32.mrf.mxu0
    %v7700 = vpop.f32.mrf.mxu0
    %v7701 = vadd.f32 %v1895, %v7700
    %v7702 = vpop.f32.mrf.mxu0
    %7703 = vmatprep.mubr.bf16.mxu0 %v5498
    %7704 = vmatmul.mubr.bf16.gmra.mxu0 %v5497
    %v7705 = vpop.f32.mrf.mxu0
    %v7706 = vadd.f32 %v1900, %v7705
    %v7707 = vpop.f32.mrf.mxu0
    %v7708 = vpop.f32.mrf.mxu0
    %v7709 = vadd.f32 %v1905, %v7708
    %v7710 = vpop.f32.mrf.mxu0
    %7711 = vmatprep.mubr.bf16.mxu0 %v5508
    %7712 = vmatmul.mubr.bf16.gmra.mxu0 %v5507
    %v7713 = vpop.f32.mrf.mxu0
    %v7714 = vadd.f32 %v1910, %v7713
    %v7715 = vpop.f32.mrf.mxu0
    %v7716 = vpop.f32.mrf.mxu0
    %v7717 = vadd.f32 %v1915, %v7716
    %v7718 = vpop.f32.mrf.mxu0
    %7719 = vmatprep.mubr.bf16.mxu0 %v5518
    %7720 = vmatmul.mubr.bf16.gmra.mxu0 %v5517
    %v7721 = vpop.f32.mrf.mxu0
    %v7722 = vadd.f32 %v1920, %v7721
    %v7723 = vpop.f32.mrf.mxu0
    %v7724 = vpop.f32.mrf.mxu0
    %v7725 = vadd.f32 %v1925, %v7724
    %v7726 = vpop.f32.mrf.mxu0
    %7727 = vmatprep.mubr.bf16.mxu0 %v5528
    %7728 = vmatmul.mubr.bf16.gmra.mxu0 %v5527
    %v7729 = vpop.f32.mrf.mxu0
    %v7730 = vadd.f32 %v1930, %v7729
    %v7731 = vpop.f32.mrf.mxu0
    %v7732 = vpop.f32.mrf.mxu0
    %v7733 = vadd.f32 %v1935, %v7732
    %v7734 = vpop.f32.mrf.mxu0
    %7735 = vmatprep.mubr.bf16.mxu0 %v5538
    %7736 = vmatmul.mubr.bf16.gmra.mxu0 %v5537
    %v7737 = vpop.f32.mrf.mxu0
    %v7738 = vadd.f32 %v1940, %v7737
    %v7739 = vpop.f32.mrf.mxu0
    %v7740 = vpop.f32.mrf.mxu0
    %v7741 = vadd.f32 %v1945, %v7740
    %v7742 = vpop.f32.mrf.mxu0
    %7743 = vmatprep.mubr.bf16.mxu0 %v5548
    %7744 = vmatmul.mubr.bf16.gmra.mxu0 %v5547
    %v7745 = vpop.f32.mrf.mxu0
    %v7746 = vadd.f32 %v1950, %v7745
    %v7747 = vpop.f32.mrf.mxu0
    %v7748 = vpop.f32.mrf.mxu0
    %v7749 = vadd.f32 %v1955, %v7748
    %v7750 = vpop.f32.mrf.mxu0
    %7751 = vmatprep.mubr.bf16.mxu0 %v5558
    %7752 = vmatmul.mubr.bf16.gmra.mxu0 %v5557
    %v7753 = vpop.f32.mrf.mxu0
    %v7754 = vadd.f32 %v1960, %v7753
    %v7755 = vpop.f32.mrf.mxu0
    %v7756 = vpop.f32.mrf.mxu0
    %v7757 = vadd.f32 %v1965, %v7756
    %v7758 = vpop.f32.mrf.mxu0
    %7759 = vmatprep.mubr.bf16.mxu0 %v5568
    %7760 = vmatmul.mubr.bf16.gmra.mxu0 %v5567
    %v7761 = vpop.f32.mrf.mxu0
    %v7762 = vadd.f32 %v1970, %v7761
    %v7763 = vpop.f32.mrf.mxu0
    %v7764 = vpop.f32.mrf.mxu0
    %v7765 = vadd.f32 %v1975, %v7764
    %v7766 = vpop.f32.mrf.mxu0
    %7767 = vmatprep.mubr.bf16.mxu0 %v5578
    %7768 = vmatmul.mubr.bf16.gmra.mxu0 %v5577
    %v7769 = vpop.f32.mrf.mxu0
    %v7770 = vadd.f32 %v1980, %v7769
    %v7771 = vpop.f32.mrf.mxu0
    %v7772 = vpop.f32.mrf.mxu0
    %v7773 = vadd.f32 %v1985, %v7772
    %v7774 = vpop.f32.mrf.mxu0
    %7775 = vmatprep.mubr.bf16.mxu0 %v5588
    %7776 = vmatmul.mubr.bf16.gmra.mxu0 %v5587
    %v7777 = vpop.f32.mrf.mxu0
    %v7778 = vadd.f32 %v1990, %v7777
    %v7779 = vpop.f32.mrf.mxu0
    %v7780 = vpop.f32.mrf.mxu0
    %v7781 = vadd.f32 %v1995, %v7780
    %v7782 = vpop.f32.mrf.mxu0
    %7783 = vmatprep.mubr.bf16.mxu0 %v5598
    %7784 = vmatmul.mubr.bf16.gmra.mxu0 %v5597
    %v7785 = vpop.f32.mrf.mxu0
    %v7786 = vadd.f32 %v2000, %v7785
    %v7787 = vpop.f32.mrf.mxu0
    %v7788 = vpop.f32.mrf.mxu0
    %v7789 = vadd.f32 %v2005, %v7788
    %v7790 = vpop.f32.mrf.mxu0
    %7791 = vmatprep.mubr.bf16.mxu0 %v5608
    %7792 = vmatmul.mubr.bf16.gmra.mxu0 %v5607
    %v7793 = vpop.f32.mrf.mxu0
    %v7794 = vadd.f32 %v2010, %v7793
    %v7795 = vpop.f32.mrf.mxu0
    %v7796 = vpop.f32.mrf.mxu0
    %v7797 = vadd.f32 %v2015, %v7796
    %v7798 = vpop.f32.mrf.mxu0
    %7799 = vmatprep.mubr.bf16.mxu0 %v5618
    %7800 = vmatmul.mubr.bf16.gmra.mxu0 %v5617
    %v7801 = vpop.f32.mrf.mxu0
    %v7802 = vadd.f32 %v2020, %v7801
    %v7803 = vpop.f32.mrf.mxu0
    %v7804 = vpop.f32.mrf.mxu0
    %v7805 = vadd.f32 %v2025, %v7804
    %v7806 = vpop.f32.mrf.mxu0
    %7807 = vmatprep.mubr.bf16.mxu0 %v5628
    %7808 = vmatmul.mubr.bf16.gmra.mxu0 %v5627
    %v7809 = vpop.f32.mrf.mxu0
    %v7810 = vadd.f32 %v2030, %v7809
    %v7811 = vpop.f32.mrf.mxu0
    %v7812 = vpop.f32.mrf.mxu0
    %v7813 = vadd.f32 %v2035, %v7812
    %v7814 = vpop.f32.mrf.mxu0
    %7815 = vmatprep.mubr.bf16.mxu0 %v5638
    %7816 = vmatmul.mubr.bf16.gmra.mxu0 %v5637
    %v7817 = vpop.f32.mrf.mxu0
    %v7818 = vadd.f32 %v2040, %v7817
    %v7819 = vpop.f32.mrf.mxu0
    %v7820 = vpop.f32.mrf.mxu0
    %v7821 = vadd.f32 %v2045, %v7820
    %v7822 = vpop.f32.mrf.mxu0
    %7823 = vmatprep.mubr.bf16.mxu0 %v5648
    %7824 = vmatmul.mubr.bf16.gmra.mxu0 %v5647
    %v7825 = vpop.f32.mrf.mxu0
    %v7826 = vadd.f32 %v2050, %v7825
    %v7827 = vpop.f32.mrf.mxu0
    %v7828 = vpop.f32.mrf.mxu0
    %v7829 = vadd.f32 %v2055, %v7828
    %v7830 = vpop.f32.mrf.mxu0
    %7831 = vmatprep.mubr.bf16.mxu0 %v5658
    %7832 = vmatmul.mubr.bf16.gmra.mxu0 %v5657
    %v7833 = vpop.f32.mrf.mxu0
    %v7834 = vadd.f32 %v2060, %v7833
    %v7835 = vpop.f32.mrf.mxu0
    %v7836 = vpop.f32.mrf.mxu0
    %v7837 = vadd.f32 %v2065, %v7836
    %v7838 = vpop.f32.mrf.mxu0
    %7839 = vmatprep.mubr.bf16.mxu0 %v5668
    %7840 = vmatmul.mubr.bf16.gmra.mxu0 %v5667
    %v7841 = vpop.f32.mrf.mxu0
    %v7842 = vadd.f32 %v2070, %v7841
    %v7843 = vpop.f32.mrf.mxu0
    %v7844 = vpop.f32.mrf.mxu0
    %v7845 = vadd.f32 %v2075, %v7844
    %v7846 = vpop.f32.mrf.mxu0
    %7847 = vmatprep.mubr.bf16.mxu0 %v5678
    %7848 = vmatmul.mubr.bf16.gmra.mxu0 %v5677
    %v7849 = vpop.f32.mrf.mxu0
    %v7850 = vadd.f32 %v2080, %v7849
    %v7851 = vpop.f32.mrf.mxu0
    %v7852 = vpop.f32.mrf.mxu0
    %v7853 = vadd.f32 %v2085, %v7852
    %v7854 = vpop.f32.mrf.mxu0
    %7855 = vmatprep.mubr.bf16.mxu0 %v5688
    %7856 = vmatmul.mubr.bf16.gmra.mxu0 %v5687
    %v7857 = vpop.f32.mrf.mxu0
    %v7858 = vadd.f32 %v2090, %v7857
    %v7859 = vpop.f32.mrf.mxu0
    %v7860 = vpop.f32.mrf.mxu0
    %v7861 = vadd.f32 %v2095, %v7860
    %v7862 = vpop.f32.mrf.mxu0
    %7863 = vmatprep.mubr.bf16.mxu0 %v5698
    %7864 = vmatmul.mubr.bf16.gmra.mxu0 %v5697
    %v7865 = vpop.f32.mrf.mxu0
    %v7866 = vadd.f32 %v2100, %v7865
    %v7867 = vpop.f32.mrf.mxu0
    %v7868 = vpop.f32.mrf.mxu0
    %v7869 = vadd.f32 %v2105, %v7868
    %v7870 = vpop.f32.mrf.mxu0
    %7871 = vmatprep.mubr.bf16.mxu0 %v5708
    %7872 = vmatmul.mubr.bf16.gmra.mxu0 %v5707
    %v7873 = vpop.f32.mrf.mxu0
    %v7874 = vadd.f32 %v2110, %v7873
    %v7875 = vpop.f32.mrf.mxu0
    %v7876 = vpop.f32.mrf.mxu0
    %v7877 = vadd.f32 %v2115, %v7876
    %v7878 = vpop.f32.mrf.mxu0
    %7879 = vmatprep.mubr.bf16.mxu0 %v5718
    %7880 = vmatmul.mubr.bf16.gmra.mxu0 %v5717
    %v7881 = vpop.f32.mrf.mxu0
    %v7882 = vadd.f32 %v2120, %v7881
    %v7883 = vpop.f32.mrf.mxu0
    %v7884 = vpop.f32.mrf.mxu0
    %v7885 = vadd.f32 %v2125, %v7884
    %v7886 = vpop.f32.mrf.mxu0
    %7887 = vmatprep.mubr.bf16.mxu0 %v5728
    %7888 = vmatmul.mubr.bf16.gmra.mxu0 %v5727
    %v7889 = vpop.f32.mrf.mxu0
    %v7890 = vadd.f32 %v2130, %v7889
    %v7891 = vpop.f32.mrf.mxu0
    %v7892 = vpop.f32.mrf.mxu0
    %v7893 = vadd.f32 %v2135, %v7892
    %v7894 = vpop.f32.mrf.mxu0
    %7895 = vmatprep.mubr.bf16.mxu0 %v5738
    %7896 = vmatmul.mubr.bf16.gmra.mxu0 %v5737
    %v7897 = vpop.f32.mrf.mxu0
    %v7898 = vadd.f32 %v2140, %v7897
    %v7899 = vpop.f32.mrf.mxu0
    %v7900 = vpop.f32.mrf.mxu0
    %v7901 = vadd.f32 %v2145, %v7900
    %v7902 = vpop.f32.mrf.mxu0
    %7903 = vmatprep.mubr.bf16.mxu0 %v5748
    %7904 = vmatmul.mubr.bf16.gmra.mxu0 %v5747
    %v7905 = vpop.f32.mrf.mxu0
    %v7906 = vadd.f32 %v2150, %v7905
    %v7907 = vpop.f32.mrf.mxu0
    %v7908 = vpop.f32.mrf.mxu0
    %v7909 = vadd.f32 %v2155, %v7908
    %v7910 = vpop.f32.mrf.mxu0
    %7911 = vmatprep.mubr.bf16.mxu0 %v5758
    %7912 = vmatmul.mubr.bf16.gmra.mxu0 %v5757
    %v7913 = vpop.f32.mrf.mxu0
    %v7914 = vadd.f32 %v2160, %v7913
    %v7915 = vpop.f32.mrf.mxu0
    %v7916 = vpop.f32.mrf.mxu0
    %v7917 = vadd.f32 %v2165, %v7916
    %v7918 = vpop.f32.mrf.mxu0
    %7919 = vmatprep.mubr.bf16.mxu0 %v5768
    %7920 = vmatmul.mubr.bf16.gmra.mxu0 %v5767
    %v7921 = vpop.f32.mrf.mxu0
    %v7922 = vadd.f32 %v2170, %v7921
    %v7923 = vpop.f32.mrf.mxu0
    %v7924 = vpop.f32.mrf.mxu0
    %v7925 = vadd.f32 %v2175, %v7924
    %v7926 = vpop.f32.mrf.mxu0
    %7927 = vmatprep.mubr.bf16.mxu0 %v5778
    %7928 = vmatmul.mubr.bf16.gmra.mxu0 %v5777
    %v7929 = vpop.f32.mrf.mxu0
    %v7930 = vadd.f32 %v2180, %v7929
    %v7931 = vpop.f32.mrf.mxu0
    %v7932 = vpop.f32.mrf.mxu0
    %v7933 = vadd.f32 %v2185, %v7932
    %v7934 = vpop.f32.mrf.mxu0
    %7935 = vmatprep.mubr.bf16.mxu0 %v5788
    %7936 = vmatmul.mubr.bf16.gmra.mxu0 %v5787
    %v7937 = vpop.f32.mrf.mxu0
    %v7938 = vadd.f32 %v2190, %v7937
    %v7939 = vpop.f32.mrf.mxu0
    %v7940 = vpop.f32.mrf.mxu0
    %v7941 = vadd.f32 %v2195, %v7940
    %v7942 = vpop.f32.mrf.mxu0
    %7943 = vmatprep.mubr.bf16.mxu0 %v5798
    %7944 = vmatmul.mubr.bf16.gmra.mxu0 %v5797
    %v7945 = vpop.f32.mrf.mxu0
    %v7946 = vadd.f32 %v2200, %v7945
    %v7947 = vpop.f32.mrf.mxu0
    %v7948 = vpop.f32.mrf.mxu0
    %v7949 = vadd.f32 %v2205, %v7948
    %v7950 = vpop.f32.mrf.mxu0
    %7951 = vmatprep.mubr.bf16.mxu0 %v5808
    %7952 = vmatmul.mubr.bf16.gmra.mxu0 %v5807
    %v7953 = vpop.f32.mrf.mxu0
    %v7954 = vadd.f32 %v2210, %v7953
    %v7955 = vpop.f32.mrf.mxu0
    %v7956 = vpop.f32.mrf.mxu0
    %v7957 = vadd.f32 %v2215, %v7956
    %v7958 = vpop.f32.mrf.mxu0
    %7959 = vmatprep.mubr.bf16.mxu0 %v5818
    %7960 = vmatmul.mubr.bf16.gmra.mxu0 %v5817
    %v7961 = vpop.f32.mrf.mxu0
    %v7962 = vadd.f32 %v2220, %v7961
    %v7963 = vpop.f32.mrf.mxu0
    %v7964 = vpop.f32.mrf.mxu0
    %v7965 = vadd.f32 %v2225, %v7964
    %v7966 = vpop.f32.mrf.mxu0
    %7967 = vmatprep.mubr.bf16.mxu0 %v5828
    %7968 = vmatmul.mubr.bf16.gmra.mxu0 %v5827
    %v7969 = vpop.f32.mrf.mxu0
    %v7970 = vadd.f32 %v2230, %v7969
    %v7971 = vpop.f32.mrf.mxu0
    %v7972 = vpop.f32.mrf.mxu0
    %v7973 = vadd.f32 %v2235, %v7972
    %v7974 = vpop.f32.mrf.mxu0
    %7975 = vmatprep.mubr.bf16.mxu0 %v5838
    %7976 = vmatmul.mubr.bf16.gmra.mxu0 %v5837
    %v7977 = vpop.f32.mrf.mxu0
    %v7978 = vadd.f32 %v2240, %v7977
    %v7979 = vpop.f32.mrf.mxu0
    %v7980 = vpop.f32.mrf.mxu0
    %v7981 = vadd.f32 %v2245, %v7980
    %v7982 = vpop.f32.mrf.mxu0
    %7983 = vmatprep.mubr.bf16.mxu0 %v5848
    %7984 = vmatmul.mubr.bf16.gmra.mxu0 %v5847
    %v7985 = vpop.f32.mrf.mxu0
    %v7986 = vadd.f32 %v2250, %v7985
    %v7987 = vpop.f32.mrf.mxu0
    %v7988 = vpop.f32.mrf.mxu0
    %v7989 = vadd.f32 %v2255, %v7988
    %v7990 = vpop.f32.mrf.mxu0
    %7991 = vmatprep.mubr.bf16.mxu0 %v5858
    %7992 = vmatmul.mubr.bf16.gmra.mxu0 %v5857
    %v7993 = vpop.f32.mrf.mxu0
    %v7994 = vadd.f32 %v2260, %v7993
    %v7995 = vpop.f32.mrf.mxu0
    %v7996 = vpop.f32.mrf.mxu0
    %v7997 = vadd.f32 %v2265, %v7996
    %v7998 = vpop.f32.mrf.mxu0
    %7999 = vdwg.mxu0
    %8000 = vmatprep.subr.bf16.mxu0 0
    %8001 = vmatpush1.bf16.msra.mxu0 %v7110
    %8002 = vmatprep.subr.bf16.mxu0 0
    %8003 = vmatpush1.bf16.msra.mxu0 %v7109
    %8004 = vmatprep.subr.bf16.mxu0 0
    %8005 = vmatpush1.bf16.msra.mxu0 %v7108
    %8006 = vmatprep.subr.bf16.mxu0 0
    %8007 = vmatpush1.bf16.msra.mxu0 %v7107
    %8008 = vmatprep.subr.bf16.mxu0 0
    %8009 = vmatpush1.bf16.msra.mxu0 %v7106
    %8010 = vmatprep.subr.bf16.mxu0 0
    %8011 = vmatpush1.bf16.msra.mxu0 %v7105
    %8012 = vmatprep.subr.bf16.mxu0 0
    %8013 = vmatpush1.bf16.msra.mxu0 %v7104
    %8014 = vmatprep.subr.bf16.mxu0 0
    %8015 = vmatpush1.bf16.msra.mxu0 %v7103
    %8016 = vmatprep.subr.bf16.mxu0 0
    %8017 = vmatpush2.bf16.msra.mxu0 %v7118
    %8018 = vmatprep.subr.bf16.mxu0 0
    %8019 = vmatpush2.bf16.msra.mxu0 %v7117
    %8020 = vmatprep.subr.bf16.mxu0 0
    %8021 = vmatpush2.bf16.msra.mxu0 %v7116
    %8022 = vmatprep.subr.bf16.mxu0 0
    %8023 = vmatpush2.bf16.msra.mxu0 %v7115
    %8024 = vmatprep.subr.bf16.mxu0 0
    %8025 = vmatpush2.bf16.msra.mxu0 %v7114
    %8026 = vmatprep.subr.bf16.mxu0 0
    %8027 = vmatpush2.bf16.msra.mxu0 %v7113
    %8028 = vmatprep.subr.bf16.mxu0 0
    %8029 = vmatpush2.bf16.msra.mxu0 %v7112
    %8030 = vmatprep.subr.bf16.mxu0 0
    %8031 = vmatpush2.bf16.msra.mxu0 %v7111
    %8032 = vmatprep.mubr.bf16.mxu0 %v4970
    %8033 = vmatmul.mubr.bf16.gmra.mxu0 %v4969
    %v8034 = vpop.f32.mrf.mxu0
    %v8035 = vadd.f32 %v7282, %v8034
    %v8036 = vpop.f32.mrf.mxu0
    %v8037 = vpop.f32.mrf.mxu0
    %v8038 = vadd.f32 %v7285, %v8037
    %v8039 = vpop.f32.mrf.mxu0
    %8040 = vmatprep.mubr.bf16.mxu0 %v4980
    %8041 = vmatmul.mubr.bf16.gmra.mxu0 %v4979
    %v8042 = vpop.f32.mrf.mxu0
    %v8043 = vadd.f32 %v7290, %v8042
    %v8044 = vpop.f32.mrf.mxu0
    %v8045 = vpop.f32.mrf.mxu0
    %v8046 = vadd.f32 %v7293, %v8045
    %v8047 = vpop.f32.mrf.mxu0
    %8048 = vmatprep.mubr.bf16.mxu0 %v4990
    %8049 = vmatmul.mubr.bf16.gmra.mxu0 %v4989
    %v8050 = vpop.f32.mrf.mxu0
    %v8051 = vadd.f32 %v7298, %v8050
    %v8052 = vpop.f32.mrf.mxu0
    %v8053 = vpop.f32.mrf.mxu0
    %v8054 = vadd.f32 %v7301, %v8053
    %v8055 = vpop.f32.mrf.mxu0
    %8056 = vmatprep.mubr.bf16.mxu0 %v5000
    %8057 = vmatmul.mubr.bf16.gmra.mxu0 %v4999
    %v8058 = vpop.f32.mrf.mxu0
    %v8059 = vadd.f32 %v7306, %v8058
    %v8060 = vpop.f32.mrf.mxu0
    %v8061 = vpop.f32.mrf.mxu0
    %v8062 = vadd.f32 %v7309, %v8061
    %v8063 = vpop.f32.mrf.mxu0
    %8064 = vmatprep.mubr.bf16.mxu0 %v5010
    %8065 = vmatmul.mubr.bf16.gmra.mxu0 %v5009
    %v8066 = vpop.f32.mrf.mxu0
    %v8067 = vadd.f32 %v7314, %v8066
    %v8068 = vpop.f32.mrf.mxu0
    %v8069 = vpop.f32.mrf.mxu0
    %v8070 = vadd.f32 %v7317, %v8069
    %v8071 = vpop.f32.mrf.mxu0
    %8072 = vmatprep.mubr.bf16.mxu0 %v5020
    %8073 = vmatmul.mubr.bf16.gmra.mxu0 %v5019
    %v8074 = vpop.f32.mrf.mxu0
    %v8075 = vadd.f32 %v7322, %v8074
    %v8076 = vpop.f32.mrf.mxu0
    %v8077 = vpop.f32.mrf.mxu0
    %v8078 = vadd.f32 %v7325, %v8077
    %v8079 = vpop.f32.mrf.mxu0
    %8080 = vmatprep.mubr.bf16.mxu0 %v5030
    %8081 = vmatmul.mubr.bf16.gmra.mxu0 %v5029
    %v8082 = vpop.f32.mrf.mxu0
    %v8083 = vadd.f32 %v7330, %v8082
    %v8084 = vpop.f32.mrf.mxu0
    %v8085 = vpop.f32.mrf.mxu0
    %v8086 = vadd.f32 %v7333, %v8085
    %v8087 = vpop.f32.mrf.mxu0
    %8088 = vmatprep.mubr.bf16.mxu0 %v5040
    %8089 = vmatmul.mubr.bf16.gmra.mxu0 %v5039
    %v8090 = vpop.f32.mrf.mxu0
    %v8091 = vadd.f32 %v7338, %v8090
    %v8092 = vpop.f32.mrf.mxu0
    %v8093 = vpop.f32.mrf.mxu0
    %v8094 = vadd.f32 %v7341, %v8093
    %v8095 = vpop.f32.mrf.mxu0
    %8096 = vmatprep.mubr.bf16.mxu0 %v5050
    %8097 = vmatmul.mubr.bf16.gmra.mxu0 %v5049
    %v8098 = vpop.f32.mrf.mxu0
    %v8099 = vadd.f32 %v7346, %v8098
    %v8100 = vpop.f32.mrf.mxu0
    %v8101 = vpop.f32.mrf.mxu0
    %v8102 = vadd.f32 %v7349, %v8101
    %v8103 = vpop.f32.mrf.mxu0
    %8104 = vmatprep.mubr.bf16.mxu0 %v5060
    %8105 = vmatmul.mubr.bf16.gmra.mxu0 %v5059
    %v8106 = vpop.f32.mrf.mxu0
    %v8107 = vadd.f32 %v7354, %v8106
    %v8108 = vpop.f32.mrf.mxu0
    %v8109 = vpop.f32.mrf.mxu0
    %v8110 = vadd.f32 %v7357, %v8109
    %v8111 = vpop.f32.mrf.mxu0
    %8112 = vmatprep.mubr.bf16.mxu0 %v5070
    %8113 = vmatmul.mubr.bf16.gmra.mxu0 %v5069
    %v8114 = vpop.f32.mrf.mxu0
    %v8115 = vadd.f32 %v7362, %v8114
    %v8116 = vpop.f32.mrf.mxu0
    %v8117 = vpop.f32.mrf.mxu0
    %v8118 = vadd.f32 %v7365, %v8117
    %v8119 = vpop.f32.mrf.mxu0
    %8120 = vmatprep.mubr.bf16.mxu0 %v5080
    %8121 = vmatmul.mubr.bf16.gmra.mxu0 %v5079
    %v8122 = vpop.f32.mrf.mxu0
    %v8123 = vadd.f32 %v7370, %v8122
    %v8124 = vpop.f32.mrf.mxu0
    %v8125 = vpop.f32.mrf.mxu0
    %v8126 = vadd.f32 %v7373, %v8125
    %v8127 = vpop.f32.mrf.mxu0
    %8128 = vmatprep.mubr.bf16.mxu0 %v5090
    %8129 = vmatmul.mubr.bf16.gmra.mxu0 %v5089
    %v8130 = vpop.f32.mrf.mxu0
    %v8131 = vadd.f32 %v7378, %v8130
    %v8132 = vpop.f32.mrf.mxu0
    %v8133 = vpop.f32.mrf.mxu0
    %v8134 = vadd.f32 %v7381, %v8133
    %v8135 = vpop.f32.mrf.mxu0
    %8136 = vmatprep.mubr.bf16.mxu0 %v5100
    %8137 = vmatmul.mubr.bf16.gmra.mxu0 %v5099
    %v8138 = vpop.f32.mrf.mxu0
    %v8139 = vadd.f32 %v7386, %v8138
    %v8140 = vpop.f32.mrf.mxu0
    %v8141 = vpop.f32.mrf.mxu0
    %v8142 = vadd.f32 %v7389, %v8141
    %v8143 = vpop.f32.mrf.mxu0
    %8144 = vmatprep.mubr.bf16.mxu0 %v5110
    %8145 = vmatmul.mubr.bf16.gmra.mxu0 %v5109
    %v8146 = vpop.f32.mrf.mxu0
    %v8147 = vadd.f32 %v7394, %v8146
    %v8148 = vpop.f32.mrf.mxu0
    %v8149 = vpop.f32.mrf.mxu0
    %v8150 = vadd.f32 %v7397, %v8149
    %v8151 = vpop.f32.mrf.mxu0
    %8152 = vmatprep.mubr.bf16.mxu0 %v5120
    %8153 = vmatmul.mubr.bf16.gmra.mxu0 %v5119
    %v8154 = vpop.f32.mrf.mxu0
    %v8155 = vadd.f32 %v7402, %v8154
    %v8156 = vpop.f32.mrf.mxu0
    %v8157 = vpop.f32.mrf.mxu0
    %v8158 = vadd.f32 %v7405, %v8157
    %v8159 = vpop.f32.mrf.mxu0
    %8160 = vmatprep.mubr.bf16.mxu0 %v5130
    %8161 = vmatmul.mubr.bf16.gmra.mxu0 %v5129
    %v8162 = vpop.f32.mrf.mxu0
    %v8163 = vadd.f32 %v7410, %v8162
    %v8164 = vpop.f32.mrf.mxu0
    %v8165 = vpop.f32.mrf.mxu0
    %v8166 = vadd.f32 %v7413, %v8165
    %v8167 = vpop.f32.mrf.mxu0
    %8168 = vmatprep.mubr.bf16.mxu0 %v5140
    %8169 = vmatmul.mubr.bf16.gmra.mxu0 %v5139
    %v8170 = vpop.f32.mrf.mxu0
    %v8171 = vadd.f32 %v7418, %v8170
    %v8172 = vpop.f32.mrf.mxu0
    %v8173 = vpop.f32.mrf.mxu0
    %v8174 = vadd.f32 %v7421, %v8173
    %v8175 = vpop.f32.mrf.mxu0
    %8176 = vmatprep.mubr.bf16.mxu0 %v5150
    %8177 = vmatmul.mubr.bf16.gmra.mxu0 %v5149
    %v8178 = vpop.f32.mrf.mxu0
    %v8179 = vadd.f32 %v7426, %v8178
    %v8180 = vpop.f32.mrf.mxu0
    %v8181 = vpop.f32.mrf.mxu0
    %v8182 = vadd.f32 %v7429, %v8181
    %v8183 = vpop.f32.mrf.mxu0
    %8184 = vmatprep.mubr.bf16.mxu0 %v5160
    %8185 = vmatmul.mubr.bf16.gmra.mxu0 %v5159
    %v8186 = vpop.f32.mrf.mxu0
    %v8187 = vadd.f32 %v7434, %v8186
    %v8188 = vpop.f32.mrf.mxu0
    %v8189 = vpop.f32.mrf.mxu0
    %v8190 = vadd.f32 %v7437, %v8189
    %v8191 = vpop.f32.mrf.mxu0
    %8192 = vmatprep.mubr.bf16.mxu0 %v5170
    %8193 = vmatmul.mubr.bf16.gmra.mxu0 %v5169
    %v8194 = vpop.f32.mrf.mxu0
    %v8195 = vadd.f32 %v7442, %v8194
    %v8196 = vpop.f32.mrf.mxu0
    %v8197 = vpop.f32.mrf.mxu0
    %v8198 = vadd.f32 %v7445, %v8197
    %v8199 = vpop.f32.mrf.mxu0
    %8200 = vmatprep.mubr.bf16.mxu0 %v5180
    %8201 = vmatmul.mubr.bf16.gmra.mxu0 %v5179
    %v8202 = vpop.f32.mrf.mxu0
    %v8203 = vadd.f32 %v7450, %v8202
    %v8204 = vpop.f32.mrf.mxu0
    %v8205 = vpop.f32.mrf.mxu0
    %v8206 = vadd.f32 %v7453, %v8205
    %v8207 = vpop.f32.mrf.mxu0
    %8208 = vmatprep.mubr.bf16.mxu0 %v5190
    %8209 = vmatmul.mubr.bf16.gmra.mxu0 %v5189
    %v8210 = vpop.f32.mrf.mxu0
    %v8211 = vadd.f32 %v7458, %v8210
    %v8212 = vpop.f32.mrf.mxu0
    %v8213 = vpop.f32.mrf.mxu0
    %v8214 = vadd.f32 %v7461, %v8213
    %v8215 = vpop.f32.mrf.mxu0
    %8216 = vmatprep.mubr.bf16.mxu0 %v5200
    %8217 = vmatmul.mubr.bf16.gmra.mxu0 %v5199
    %v8218 = vpop.f32.mrf.mxu0
    %v8219 = vadd.f32 %v7466, %v8218
    %v8220 = vpop.f32.mrf.mxu0
    %v8221 = vpop.f32.mrf.mxu0
    %v8222 = vadd.f32 %v7469, %v8221
    %v8223 = vpop.f32.mrf.mxu0
    %8224 = vmatprep.mubr.bf16.mxu0 %v5210
    %8225 = vmatmul.mubr.bf16.gmra.mxu0 %v5209
    %v8226 = vpop.f32.mrf.mxu0
    %v8227 = vadd.f32 %v7474, %v8226
    %v8228 = vpop.f32.mrf.mxu0
    %v8229 = vpop.f32.mrf.mxu0
    %v8230 = vadd.f32 %v7477, %v8229
    %v8231 = vpop.f32.mrf.mxu0
    %8232 = vmatprep.mubr.bf16.mxu0 %v5220
    %8233 = vmatmul.mubr.bf16.gmra.mxu0 %v5219
    %v8234 = vpop.f32.mrf.mxu0
    %v8235 = vadd.f32 %v7482, %v8234
    %v8236 = vpop.f32.mrf.mxu0
    %v8237 = vpop.f32.mrf.mxu0
    %v8238 = vadd.f32 %v7485, %v8237
    %v8239 = vpop.f32.mrf.mxu0
    %8240 = vmatprep.mubr.bf16.mxu0 %v5230
    %8241 = vmatmul.mubr.bf16.gmra.mxu0 %v5229
    %v8242 = vpop.f32.mrf.mxu0
    %v8243 = vadd.f32 %v7490, %v8242
    %v8244 = vpop.f32.mrf.mxu0
    %v8245 = vpop.f32.mrf.mxu0
    %v8246 = vadd.f32 %v7493, %v8245
    %v8247 = vpop.f32.mrf.mxu0
    %8248 = vmatprep.mubr.bf16.mxu0 %v5240
    %8249 = vmatmul.mubr.bf16.gmra.mxu0 %v5239
    %v8250 = vpop.f32.mrf.mxu0
    %v8251 = vadd.f32 %v7498, %v8250
    %v8252 = vpop.f32.mrf.mxu0
    %v8253 = vpop.f32.mrf.mxu0
    %v8254 = vadd.f32 %v7501, %v8253
    %v8255 = vpop.f32.mrf.mxu0
    %8256 = vmatprep.mubr.bf16.mxu0 %v5250
    %8257 = vmatmul.mubr.bf16.gmra.mxu0 %v5249
    %v8258 = vpop.f32.mrf.mxu0
    %v8259 = vadd.f32 %v7506, %v8258
    %v8260 = vpop.f32.mrf.mxu0
    %v8261 = vpop.f32.mrf.mxu0
    %v8262 = vadd.f32 %v7509, %v8261
    %v8263 = vpop.f32.mrf.mxu0
    %8264 = vmatprep.mubr.bf16.mxu0 %v5260
    %8265 = vmatmul.mubr.bf16.gmra.mxu0 %v5259
    %v8266 = vpop.f32.mrf.mxu0
    %v8267 = vadd.f32 %v7514, %v8266
    %v8268 = vpop.f32.mrf.mxu0
    %v8269 = vpop.f32.mrf.mxu0
    %v8270 = vadd.f32 %v7517, %v8269
    %v8271 = vpop.f32.mrf.mxu0
    %8272 = vmatprep.mubr.bf16.mxu0 %v5270
    %8273 = vmatmul.mubr.bf16.gmra.mxu0 %v5269
    %v8274 = vpop.f32.mrf.mxu0
    %v8275 = vadd.f32 %v7522, %v8274
    %v8276 = vpop.f32.mrf.mxu0
    %v8277 = vpop.f32.mrf.mxu0
    %v8278 = vadd.f32 %v7525, %v8277
    %v8279 = vpop.f32.mrf.mxu0
    %8280 = vmatprep.mubr.bf16.mxu0 %v5280
    %8281 = vmatmul.mubr.bf16.gmra.mxu0 %v5279
    %v8282 = vpop.f32.mrf.mxu0
    %v8283 = vadd.f32 %v7530, %v8282
    %v8284 = vpop.f32.mrf.mxu0
    %v8285 = vpop.f32.mrf.mxu0
    %v8286 = vadd.f32 %v7533, %v8285
    %v8287 = vpop.f32.mrf.mxu0
    %8288 = vmatprep.mubr.bf16.mxu0 %v5290
    %8289 = vmatmul.mubr.bf16.gmra.mxu0 %v5289
    %v8290 = vpop.f32.mrf.mxu0
    %v8291 = vadd.f32 %v7538, %v8290
    %v8292 = vpop.f32.mrf.mxu0
    %v8293 = vpop.f32.mrf.mxu0
    %v8294 = vadd.f32 %v7541, %v8293
    %v8295 = vpop.f32.mrf.mxu0
    %8296 = vmatprep.mubr.bf16.mxu0 %v5300
    %8297 = vmatmul.mubr.bf16.gmra.mxu0 %v5299
    %v8298 = vpop.f32.mrf.mxu0
    %v8299 = vadd.f32 %v7546, %v8298
    %v8300 = vpop.f32.mrf.mxu0
    %v8301 = vpop.f32.mrf.mxu0
    %v8302 = vadd.f32 %v7549, %v8301
    %v8303 = vpop.f32.mrf.mxu0
    %8304 = vmatprep.mubr.bf16.mxu0 %v5310
    %8305 = vmatmul.mubr.bf16.gmra.mxu0 %v5309
    %v8306 = vpop.f32.mrf.mxu0
    %v8307 = vadd.f32 %v7554, %v8306
    %v8308 = vpop.f32.mrf.mxu0
    %v8309 = vpop.f32.mrf.mxu0
    %v8310 = vadd.f32 %v7557, %v8309
    %v8311 = vpop.f32.mrf.mxu0
    %8312 = vmatprep.mubr.bf16.mxu0 %v5320
    %8313 = vmatmul.mubr.bf16.gmra.mxu0 %v5319
    %v8314 = vpop.f32.mrf.mxu0
    %v8315 = vadd.f32 %v7562, %v8314
    %v8316 = vpop.f32.mrf.mxu0
    %v8317 = vpop.f32.mrf.mxu0
    %v8318 = vadd.f32 %v7565, %v8317
    %v8319 = vpop.f32.mrf.mxu0
    %8320 = vmatprep.mubr.bf16.mxu0 %v5330
    %8321 = vmatmul.mubr.bf16.gmra.mxu0 %v5329
    %v8322 = vpop.f32.mrf.mxu0
    %v8323 = vadd.f32 %v7570, %v8322
    %v8324 = vpop.f32.mrf.mxu0
    %v8325 = vpop.f32.mrf.mxu0
    %v8326 = vadd.f32 %v7573, %v8325
    %v8327 = vpop.f32.mrf.mxu0
    %8328 = vmatprep.mubr.bf16.mxu0 %v5340
    %8329 = vmatmul.mubr.bf16.gmra.mxu0 %v5339
    %v8330 = vpop.f32.mrf.mxu0
    %v8331 = vadd.f32 %v7578, %v8330
    %v8332 = vpop.f32.mrf.mxu0
    %v8333 = vpop.f32.mrf.mxu0
    %v8334 = vadd.f32 %v7581, %v8333
    %v8335 = vpop.f32.mrf.mxu0
    %8336 = vmatprep.mubr.bf16.mxu0 %v5350
    %8337 = vmatmul.mubr.bf16.gmra.mxu0 %v5349
    %v8338 = vpop.f32.mrf.mxu0
    %v8339 = vadd.f32 %v7586, %v8338
    %v8340 = vpop.f32.mrf.mxu0
    %v8341 = vpop.f32.mrf.mxu0
    %v8342 = vadd.f32 %v7589, %v8341
    %v8343 = vpop.f32.mrf.mxu0
    %8344 = vmatprep.mubr.bf16.mxu0 %v5360
    %8345 = vmatmul.mubr.bf16.gmra.mxu0 %v5359
    %v8346 = vpop.f32.mrf.mxu0
    %v8347 = vadd.f32 %v7594, %v8346
    %v8348 = vpop.f32.mrf.mxu0
    %v8349 = vpop.f32.mrf.mxu0
    %v8350 = vadd.f32 %v7597, %v8349
    %v8351 = vpop.f32.mrf.mxu0
    %8352 = vmatprep.mubr.bf16.mxu0 %v5370
    %8353 = vmatmul.mubr.bf16.gmra.mxu0 %v5369
    %v8354 = vpop.f32.mrf.mxu0
    %v8355 = vadd.f32 %v7602, %v8354
    %v8356 = vpop.f32.mrf.mxu0
    %v8357 = vpop.f32.mrf.mxu0
    %v8358 = vadd.f32 %v7605, %v8357
    %v8359 = vpop.f32.mrf.mxu0
    %8360 = vmatprep.mubr.bf16.mxu0 %v5380
    %8361 = vmatmul.mubr.bf16.gmra.mxu0 %v5379
    %v8362 = vpop.f32.mrf.mxu0
    %v8363 = vadd.f32 %v7610, %v8362
    %v8364 = vpop.f32.mrf.mxu0
    %v8365 = vpop.f32.mrf.mxu0
    %v8366 = vadd.f32 %v7613, %v8365
    %v8367 = vpop.f32.mrf.mxu0
    %8368 = vmatprep.mubr.bf16.mxu0 %v5390
    %8369 = vmatmul.mubr.bf16.gmra.mxu0 %v5389
    %v8370 = vpop.f32.mrf.mxu0
    %v8371 = vadd.f32 %v7618, %v8370
    %v8372 = vpop.f32.mrf.mxu0
    %v8373 = vpop.f32.mrf.mxu0
    %v8374 = vadd.f32 %v7621, %v8373
    %v8375 = vpop.f32.mrf.mxu0
    %8376 = vmatprep.mubr.bf16.mxu0 %v5400
    %8377 = vmatmul.mubr.bf16.gmra.mxu0 %v5399
    %v8378 = vpop.f32.mrf.mxu0
    %v8379 = vadd.f32 %v7626, %v8378
    %v8380 = vpop.f32.mrf.mxu0
    %v8381 = vpop.f32.mrf.mxu0
    %v8382 = vadd.f32 %v7629, %v8381
    %v8383 = vpop.f32.mrf.mxu0
    %8384 = vmatprep.mubr.bf16.mxu0 %v5410
    %8385 = vmatmul.mubr.bf16.gmra.mxu0 %v5409
    %v8386 = vpop.f32.mrf.mxu0
    %v8387 = vadd.f32 %v7634, %v8386
    %v8388 = vpop.f32.mrf.mxu0
    %v8389 = vpop.f32.mrf.mxu0
    %v8390 = vadd.f32 %v7637, %v8389
    %v8391 = vpop.f32.mrf.mxu0
    %8392 = vmatprep.mubr.bf16.mxu0 %v5420
    %8393 = vmatmul.mubr.bf16.gmra.mxu0 %v5419
    %v8394 = vpop.f32.mrf.mxu0
    %v8395 = vadd.f32 %v7642, %v8394
    %v8396 = vpop.f32.mrf.mxu0
    %v8397 = vpop.f32.mrf.mxu0
    %v8398 = vadd.f32 %v7645, %v8397
    %v8399 = vpop.f32.mrf.mxu0
    %8400 = vmatprep.mubr.bf16.mxu0 %v5430
    %8401 = vmatmul.mubr.bf16.gmra.mxu0 %v5429
    %v8402 = vpop.f32.mrf.mxu0
    %v8403 = vadd.f32 %v7650, %v8402
    %v8404 = vpop.f32.mrf.mxu0
    %v8405 = vpop.f32.mrf.mxu0
    %v8406 = vadd.f32 %v7653, %v8405
    %v8407 = vpop.f32.mrf.mxu0
    %8408 = vmatprep.mubr.bf16.mxu0 %v5440
    %8409 = vmatmul.mubr.bf16.gmra.mxu0 %v5439
    %v8410 = vpop.f32.mrf.mxu0
    %v8411 = vadd.f32 %v7658, %v8410
    %v8412 = vpop.f32.mrf.mxu0
    %v8413 = vpop.f32.mrf.mxu0
    %v8414 = vadd.f32 %v7661, %v8413
    %v8415 = vpop.f32.mrf.mxu0
    %8416 = vmatprep.mubr.bf16.mxu0 %v5450
    %8417 = vmatmul.mubr.bf16.gmra.mxu0 %v5449
    %v8418 = vpop.f32.mrf.mxu0
    %v8419 = vadd.f32 %v7666, %v8418
    %v8420 = vpop.f32.mrf.mxu0
    %v8421 = vpop.f32.mrf.mxu0
    %v8422 = vadd.f32 %v7669, %v8421
    %v8423 = vpop.f32.mrf.mxu0
    %8424 = vmatprep.mubr.bf16.mxu0 %v5460
    %8425 = vmatmul.mubr.bf16.gmra.mxu0 %v5459
    %v8426 = vpop.f32.mrf.mxu0
    %v8427 = vadd.f32 %v7674, %v8426
    %v8428 = vpop.f32.mrf.mxu0
    %v8429 = vpop.f32.mrf.mxu0
    %v8430 = vadd.f32 %v7677, %v8429
    %v8431 = vpop.f32.mrf.mxu0
    %8432 = vmatprep.mubr.bf16.mxu0 %v5470
    %8433 = vmatmul.mubr.bf16.gmra.mxu0 %v5469
    %v8434 = vpop.f32.mrf.mxu0
    %v8435 = vadd.f32 %v7682, %v8434
    %v8436 = vpop.f32.mrf.mxu0
    %v8437 = vpop.f32.mrf.mxu0
    %v8438 = vadd.f32 %v7685, %v8437
    %v8439 = vpop.f32.mrf.mxu0
    %8440 = vmatprep.mubr.bf16.mxu0 %v5480
    %8441 = vmatmul.mubr.bf16.gmra.mxu0 %v5479
    %v8442 = vpop.f32.mrf.mxu0
    %v8443 = vadd.f32 %v7690, %v8442
    %v8444 = vpop.f32.mrf.mxu0
    %v8445 = vpop.f32.mrf.mxu0
    %v8446 = vadd.f32 %v7693, %v8445
    %v8447 = vpop.f32.mrf.mxu0
    %8448 = vmatprep.mubr.bf16.mxu0 %v5490
    %8449 = vmatmul.mubr.bf16.gmra.mxu0 %v5489
    %v8450 = vpop.f32.mrf.mxu0
    %v8451 = vadd.f32 %v7698, %v8450
    %v8452 = vpop.f32.mrf.mxu0
    %v8453 = vpop.f32.mrf.mxu0
    %v8454 = vadd.f32 %v7701, %v8453
    %v8455 = vpop.f32.mrf.mxu0
    %8456 = vmatprep.mubr.bf16.mxu0 %v5500
    %8457 = vmatmul.mubr.bf16.gmra.mxu0 %v5499
    %v8458 = vpop.f32.mrf.mxu0
    %v8459 = vadd.f32 %v7706, %v8458
    %v8460 = vpop.f32.mrf.mxu0
    %v8461 = vpop.f32.mrf.mxu0
    %v8462 = vadd.f32 %v7709, %v8461
    %v8463 = vpop.f32.mrf.mxu0
    %8464 = vmatprep.mubr.bf16.mxu0 %v5510
    %8465 = vmatmul.mubr.bf16.gmra.mxu0 %v5509
    %v8466 = vpop.f32.mrf.mxu0
    %v8467 = vadd.f32 %v7714, %v8466
    %v8468 = vpop.f32.mrf.mxu0
    %v8469 = vpop.f32.mrf.mxu0
    %v8470 = vadd.f32 %v7717, %v8469
    %v8471 = vpop.f32.mrf.mxu0
    %8472 = vmatprep.mubr.bf16.mxu0 %v5520
    %8473 = vmatmul.mubr.bf16.gmra.mxu0 %v5519
    %v8474 = vpop.f32.mrf.mxu0
    %v8475 = vadd.f32 %v7722, %v8474
    %v8476 = vpop.f32.mrf.mxu0
    %v8477 = vpop.f32.mrf.mxu0
    %v8478 = vadd.f32 %v7725, %v8477
    %v8479 = vpop.f32.mrf.mxu0
    %8480 = vmatprep.mubr.bf16.mxu0 %v5530
    %8481 = vmatmul.mubr.bf16.gmra.mxu0 %v5529
    %v8482 = vpop.f32.mrf.mxu0
    %v8483 = vadd.f32 %v7730, %v8482
    %v8484 = vpop.f32.mrf.mxu0
    %v8485 = vpop.f32.mrf.mxu0
    %v8486 = vadd.f32 %v7733, %v8485
    %v8487 = vpop.f32.mrf.mxu0
    %8488 = vmatprep.mubr.bf16.mxu0 %v5540
    %8489 = vmatmul.mubr.bf16.gmra.mxu0 %v5539
    %v8490 = vpop.f32.mrf.mxu0
    %v8491 = vadd.f32 %v7738, %v8490
    %v8492 = vpop.f32.mrf.mxu0
    %v8493 = vpop.f32.mrf.mxu0
    %v8494 = vadd.f32 %v7741, %v8493
    %v8495 = vpop.f32.mrf.mxu0
    %8496 = vmatprep.mubr.bf16.mxu0 %v5550
    %8497 = vmatmul.mubr.bf16.gmra.mxu0 %v5549
    %v8498 = vpop.f32.mrf.mxu0
    %v8499 = vadd.f32 %v7746, %v8498
    %v8500 = vpop.f32.mrf.mxu0
    %v8501 = vpop.f32.mrf.mxu0
    %v8502 = vadd.f32 %v7749, %v8501
    %v8503 = vpop.f32.mrf.mxu0
    %8504 = vmatprep.mubr.bf16.mxu0 %v5560
    %8505 = vmatmul.mubr.bf16.gmra.mxu0 %v5559
    %v8506 = vpop.f32.mrf.mxu0
    %v8507 = vadd.f32 %v7754, %v8506
    %v8508 = vpop.f32.mrf.mxu0
    %v8509 = vpop.f32.mrf.mxu0
    %v8510 = vadd.f32 %v7757, %v8509
    %v8511 = vpop.f32.mrf.mxu0
    %8512 = vmatprep.mubr.bf16.mxu0 %v5570
    %8513 = vmatmul.mubr.bf16.gmra.mxu0 %v5569
    %v8514 = vpop.f32.mrf.mxu0
    %v8515 = vadd.f32 %v7762, %v8514
    %v8516 = vpop.f32.mrf.mxu0
    %v8517 = vpop.f32.mrf.mxu0
    %v8518 = vadd.f32 %v7765, %v8517
    %v8519 = vpop.f32.mrf.mxu0
    %8520 = vmatprep.mubr.bf16.mxu0 %v5580
    %8521 = vmatmul.mubr.bf16.gmra.mxu0 %v5579
    %v8522 = vpop.f32.mrf.mxu0
    %v8523 = vadd.f32 %v7770, %v8522
    %v8524 = vpop.f32.mrf.mxu0
    %v8525 = vpop.f32.mrf.mxu0
    %v8526 = vadd.f32 %v7773, %v8525
    %v8527 = vpop.f32.mrf.mxu0
    %8528 = vmatprep.mubr.bf16.mxu0 %v5590
    %8529 = vmatmul.mubr.bf16.gmra.mxu0 %v5589
    %v8530 = vpop.f32.mrf.mxu0
    %v8531 = vadd.f32 %v7778, %v8530
    %v8532 = vpop.f32.mrf.mxu0
    %v8533 = vpop.f32.mrf.mxu0
    %v8534 = vadd.f32 %v7781, %v8533
    %v8535 = vpop.f32.mrf.mxu0
    %8536 = vmatprep.mubr.bf16.mxu0 %v5600
    %8537 = vmatmul.mubr.bf16.gmra.mxu0 %v5599
    %v8538 = vpop.f32.mrf.mxu0
    %v8539 = vadd.f32 %v7786, %v8538
    %v8540 = vpop.f32.mrf.mxu0
    %v8541 = vpop.f32.mrf.mxu0
    %v8542 = vadd.f32 %v7789, %v8541
    %v8543 = vpop.f32.mrf.mxu0
    %8544 = vmatprep.mubr.bf16.mxu0 %v5610
    %8545 = vmatmul.mubr.bf16.gmra.mxu0 %v5609
    %v8546 = vpop.f32.mrf.mxu0
    %v8547 = vadd.f32 %v7794, %v8546
    %v8548 = vpop.f32.mrf.mxu0
    %v8549 = vpop.f32.mrf.mxu0
    %v8550 = vadd.f32 %v7797, %v8549
    %v8551 = vpop.f32.mrf.mxu0
    %8552 = vmatprep.mubr.bf16.mxu0 %v5620
    %8553 = vmatmul.mubr.bf16.gmra.mxu0 %v5619
    %v8554 = vpop.f32.mrf.mxu0
    %v8555 = vadd.f32 %v7802, %v8554
    %v8556 = vpop.f32.mrf.mxu0
    %v8557 = vpop.f32.mrf.mxu0
    %v8558 = vadd.f32 %v7805, %v8557
    %v8559 = vpop.f32.mrf.mxu0
    %8560 = vmatprep.mubr.bf16.mxu0 %v5630
    %8561 = vmatmul.mubr.bf16.gmra.mxu0 %v5629
    %v8562 = vpop.f32.mrf.mxu0
    %v8563 = vadd.f32 %v7810, %v8562
    %v8564 = vpop.f32.mrf.mxu0
    %v8565 = vpop.f32.mrf.mxu0
    %v8566 = vadd.f32 %v7813, %v8565
    %v8567 = vpop.f32.mrf.mxu0
    %8568 = vmatprep.mubr.bf16.mxu0 %v5640
    %8569 = vmatmul.mubr.bf16.gmra.mxu0 %v5639
    %v8570 = vpop.f32.mrf.mxu0
    %v8571 = vadd.f32 %v7818, %v8570
    %v8572 = vpop.f32.mrf.mxu0
    %v8573 = vpop.f32.mrf.mxu0
    %v8574 = vadd.f32 %v7821, %v8573
    %v8575 = vpop.f32.mrf.mxu0
    %8576 = vmatprep.mubr.bf16.mxu0 %v5650
    %8577 = vmatmul.mubr.bf16.gmra.mxu0 %v5649
    %v8578 = vpop.f32.mrf.mxu0
    %v8579 = vadd.f32 %v7826, %v8578
    %v8580 = vpop.f32.mrf.mxu0
    %v8581 = vpop.f32.mrf.mxu0
    %v8582 = vadd.f32 %v7829, %v8581
    %v8583 = vpop.f32.mrf.mxu0
    %8584 = vmatprep.mubr.bf16.mxu0 %v5660
    %8585 = vmatmul.mubr.bf16.gmra.mxu0 %v5659
    %v8586 = vpop.f32.mrf.mxu0
    %v8587 = vadd.f32 %v7834, %v8586
    %v8588 = vpop.f32.mrf.mxu0
    %v8589 = vpop.f32.mrf.mxu0
    %v8590 = vadd.f32 %v7837, %v8589
    %v8591 = vpop.f32.mrf.mxu0
    %8592 = vmatprep.mubr.bf16.mxu0 %v5670
    %8593 = vmatmul.mubr.bf16.gmra.mxu0 %v5669
    %v8594 = vpop.f32.mrf.mxu0
    %v8595 = vadd.f32 %v7842, %v8594
    %v8596 = vpop.f32.mrf.mxu0
    %v8597 = vpop.f32.mrf.mxu0
    %v8598 = vadd.f32 %v7845, %v8597
    %v8599 = vpop.f32.mrf.mxu0
    %8600 = vmatprep.mubr.bf16.mxu0 %v5680
    %8601 = vmatmul.mubr.bf16.gmra.mxu0 %v5679
    %v8602 = vpop.f32.mrf.mxu0
    %v8603 = vadd.f32 %v7850, %v8602
    %v8604 = vpop.f32.mrf.mxu0
    %v8605 = vpop.f32.mrf.mxu0
    %v8606 = vadd.f32 %v7853, %v8605
    %v8607 = vpop.f32.mrf.mxu0
    %8608 = vmatprep.mubr.bf16.mxu0 %v5690
    %8609 = vmatmul.mubr.bf16.gmra.mxu0 %v5689
    %v8610 = vpop.f32.mrf.mxu0
    %v8611 = vadd.f32 %v7858, %v8610
    %v8612 = vpop.f32.mrf.mxu0
    %v8613 = vpop.f32.mrf.mxu0
    %v8614 = vadd.f32 %v7861, %v8613
    %v8615 = vpop.f32.mrf.mxu0
    %8616 = vmatprep.mubr.bf16.mxu0 %v5700
    %8617 = vmatmul.mubr.bf16.gmra.mxu0 %v5699
    %v8618 = vpop.f32.mrf.mxu0
    %v8619 = vadd.f32 %v7866, %v8618
    %v8620 = vpop.f32.mrf.mxu0
    %v8621 = vpop.f32.mrf.mxu0
    %v8622 = vadd.f32 %v7869, %v8621
    %v8623 = vpop.f32.mrf.mxu0
    %8624 = vmatprep.mubr.bf16.mxu0 %v5710
    %8625 = vmatmul.mubr.bf16.gmra.mxu0 %v5709
    %v8626 = vpop.f32.mrf.mxu0
    %v8627 = vadd.f32 %v7874, %v8626
    %v8628 = vpop.f32.mrf.mxu0
    %v8629 = vpop.f32.mrf.mxu0
    %v8630 = vadd.f32 %v7877, %v8629
    %v8631 = vpop.f32.mrf.mxu0
    %8632 = vmatprep.mubr.bf16.mxu0 %v5720
    %8633 = vmatmul.mubr.bf16.gmra.mxu0 %v5719
    %v8634 = vpop.f32.mrf.mxu0
    %v8635 = vadd.f32 %v7882, %v8634
    %v8636 = vpop.f32.mrf.mxu0
    %v8637 = vpop.f32.mrf.mxu0
    %v8638 = vadd.f32 %v7885, %v8637
    %v8639 = vpop.f32.mrf.mxu0
    %8640 = vmatprep.mubr.bf16.mxu0 %v5730
    %8641 = vmatmul.mubr.bf16.gmra.mxu0 %v5729
    %v8642 = vpop.f32.mrf.mxu0
    %v8643 = vadd.f32 %v7890, %v8642
    %v8644 = vpop.f32.mrf.mxu0
    %v8645 = vpop.f32.mrf.mxu0
    %v8646 = vadd.f32 %v7893, %v8645
    %v8647 = vpop.f32.mrf.mxu0
    %8648 = vmatprep.mubr.bf16.mxu0 %v5740
    %8649 = vmatmul.mubr.bf16.gmra.mxu0 %v5739
    %v8650 = vpop.f32.mrf.mxu0
    %v8651 = vadd.f32 %v7898, %v8650
    %v8652 = vpop.f32.mrf.mxu0
    %v8653 = vpop.f32.mrf.mxu0
    %v8654 = vadd.f32 %v7901, %v8653
    %v8655 = vpop.f32.mrf.mxu0
    %8656 = vmatprep.mubr.bf16.mxu0 %v5750
    %8657 = vmatmul.mubr.bf16.gmra.mxu0 %v5749
    %v8658 = vpop.f32.mrf.mxu0
    %v8659 = vadd.f32 %v7906, %v8658
    %v8660 = vpop.f32.mrf.mxu0
    %v8661 = vpop.f32.mrf.mxu0
    %v8662 = vadd.f32 %v7909, %v8661
    %v8663 = vpop.f32.mrf.mxu0
    %8664 = vmatprep.mubr.bf16.mxu0 %v5760
    %8665 = vmatmul.mubr.bf16.gmra.mxu0 %v5759
    %v8666 = vpop.f32.mrf.mxu0
    %v8667 = vadd.f32 %v7914, %v8666
    %v8668 = vpop.f32.mrf.mxu0
    %v8669 = vpop.f32.mrf.mxu0
    %v8670 = vadd.f32 %v7917, %v8669
    %v8671 = vpop.f32.mrf.mxu0
    %8672 = vmatprep.mubr.bf16.mxu0 %v5770
    %8673 = vmatmul.mubr.bf16.gmra.mxu0 %v5769
    %v8674 = vpop.f32.mrf.mxu0
    %v8675 = vadd.f32 %v7922, %v8674
    %v8676 = vpop.f32.mrf.mxu0
    %v8677 = vpop.f32.mrf.mxu0
    %v8678 = vadd.f32 %v7925, %v8677
    %v8679 = vpop.f32.mrf.mxu0
    %8680 = vmatprep.mubr.bf16.mxu0 %v5780
    %8681 = vmatmul.mubr.bf16.gmra.mxu0 %v5779
    %v8682 = vpop.f32.mrf.mxu0
    %v8683 = vadd.f32 %v7930, %v8682
    %v8684 = vpop.f32.mrf.mxu0
    %v8685 = vpop.f32.mrf.mxu0
    %v8686 = vadd.f32 %v7933, %v8685
    %v8687 = vpop.f32.mrf.mxu0
    %8688 = vmatprep.mubr.bf16.mxu0 %v5790
    %8689 = vmatmul.mubr.bf16.gmra.mxu0 %v5789
    %v8690 = vpop.f32.mrf.mxu0
    %v8691 = vadd.f32 %v7938, %v8690
    %v8692 = vpop.f32.mrf.mxu0
    %v8693 = vpop.f32.mrf.mxu0
    %v8694 = vadd.f32 %v7941, %v8693
    %v8695 = vpop.f32.mrf.mxu0
    %8696 = vmatprep.mubr.bf16.mxu0 %v5800
    %8697 = vmatmul.mubr.bf16.gmra.mxu0 %v5799
    %v8698 = vpop.f32.mrf.mxu0
    %v8699 = vadd.f32 %v7946, %v8698
    %v8700 = vpop.f32.mrf.mxu0
    %v8701 = vpop.f32.mrf.mxu0
    %v8702 = vadd.f32 %v7949, %v8701
    %v8703 = vpop.f32.mrf.mxu0
    %8704 = vmatprep.mubr.bf16.mxu0 %v5810
    %8705 = vmatmul.mubr.bf16.gmra.mxu0 %v5809
    %v8706 = vpop.f32.mrf.mxu0
    %v8707 = vadd.f32 %v7954, %v8706
    %v8708 = vpop.f32.mrf.mxu0
    %v8709 = vpop.f32.mrf.mxu0
    %v8710 = vadd.f32 %v7957, %v8709
    %v8711 = vpop.f32.mrf.mxu0
    %8712 = vmatprep.mubr.bf16.mxu0 %v5820
    %8713 = vmatmul.mubr.bf16.gmra.mxu0 %v5819
    %v8714 = vpop.f32.mrf.mxu0
    %v8715 = vadd.f32 %v7962, %v8714
    %v8716 = vpop.f32.mrf.mxu0
    %v8717 = vpop.f32.mrf.mxu0
    %v8718 = vadd.f32 %v7965, %v8717
    %v8719 = vpop.f32.mrf.mxu0
    %8720 = vmatprep.mubr.bf16.mxu0 %v5830
    %8721 = vmatmul.mubr.bf16.gmra.mxu0 %v5829
    %v8722 = vpop.f32.mrf.mxu0
    %v8723 = vadd.f32 %v7970, %v8722
    %v8724 = vpop.f32.mrf.mxu0
    %v8725 = vpop.f32.mrf.mxu0
    %v8726 = vadd.f32 %v7973, %v8725
    %v8727 = vpop.f32.mrf.mxu0
    %8728 = vmatprep.mubr.bf16.mxu0 %v5840
    %8729 = vmatmul.mubr.bf16.gmra.mxu0 %v5839
    %v8730 = vpop.f32.mrf.mxu0
    %v8731 = vadd.f32 %v7978, %v8730
    %v8732 = vpop.f32.mrf.mxu0
    %v8733 = vpop.f32.mrf.mxu0
    %v8734 = vadd.f32 %v7981, %v8733
    %v8735 = vpop.f32.mrf.mxu0
    %8736 = vmatprep.mubr.bf16.mxu0 %v5850
    %8737 = vmatmul.mubr.bf16.gmra.mxu0 %v5849
    %v8738 = vpop.f32.mrf.mxu0
    %v8739 = vadd.f32 %v7986, %v8738
    %v8740 = vpop.f32.mrf.mxu0
    %v8741 = vpop.f32.mrf.mxu0
    %v8742 = vadd.f32 %v7989, %v8741
    %v8743 = vpop.f32.mrf.mxu0
    %8744 = vmatprep.mubr.bf16.mxu0 %v5860
    %8745 = vmatmul.mubr.bf16.gmra.mxu0 %v5859
    %v8746 = vpop.f32.mrf.mxu0
    %v8747 = vadd.f32 %v7994, %v8746
    %v8748 = vpop.f32.mrf.mxu0
    %v8749 = vpop.f32.mrf.mxu0
    %v8750 = vadd.f32 %v7997, %v8749
    %v8751 = vpop.f32.mrf.mxu0
    %8752 = vdwg.mxu0
    %8753 = vmatprep.subr.bf16.mxu0 0
    %8754 = vmatpush1.bf16.msra.mxu0 %v7126
    %8755 = vmatprep.subr.bf16.mxu0 0
    %8756 = vmatpush1.bf16.msra.mxu0 %v7125
    %8757 = vmatprep.subr.bf16.mxu0 0
    %8758 = vmatpush1.bf16.msra.mxu0 %v7124
    %8759 = vmatprep.subr.bf16.mxu0 0
    %8760 = vmatpush1.bf16.msra.mxu0 %v7123
    %8761 = vmatprep.subr.bf16.mxu0 0
    %8762 = vmatpush1.bf16.msra.mxu0 %v7122
    %8763 = vmatprep.subr.bf16.mxu0 0
    %8764 = vmatpush1.bf16.msra.mxu0 %v7121
    %8765 = vmatprep.subr.bf16.mxu0 0
    %8766 = vmatpush1.bf16.msra.mxu0 %v7120
    %8767 = vmatprep.subr.bf16.mxu0 0
    %8768 = vmatpush1.bf16.msra.mxu0 %v7119
    %8769 = vmatprep.subr.bf16.mxu0 0
    %8770 = vmatpush2.bf16.msra.mxu0 %v7134
    %8771 = vmatprep.subr.bf16.mxu0 0
    %8772 = vmatpush2.bf16.msra.mxu0 %v7133
    %8773 = vmatprep.subr.bf16.mxu0 0
    %8774 = vmatpush2.bf16.msra.mxu0 %v7132
    %8775 = vmatprep.subr.bf16.mxu0 0
    %8776 = vmatpush2.bf16.msra.mxu0 %v7131
    %8777 = vmatprep.subr.bf16.mxu0 0
    %8778 = vmatpush2.bf16.msra.mxu0 %v7130
    %8779 = vmatprep.subr.bf16.mxu0 0
    %8780 = vmatpush2.bf16.msra.mxu0 %v7129
    %8781 = vmatprep.subr.bf16.mxu0 0
    %8782 = vmatpush2.bf16.msra.mxu0 %v7128
    %8783 = vmatprep.subr.bf16.mxu0 0
    %8784 = vmatpush2.bf16.msra.mxu0 %v7127
    %8785 = vmatprep.mubr.bf16.mxu0 %v4972
    %8786 = vmatmul.mubr.bf16.gmra.mxu0 %v4971
    %v8787 = vpop.f32.mrf.mxu0
    %v8788 = vadd.f32 %v8035, %v8787
    %v8789 = vpop.f32.mrf.mxu0
    %v8790 = vpop.f32.mrf.mxu0
    %v8791 = vadd.f32 %v8038, %v8790
    %v8792 = vpop.f32.mrf.mxu0
    %8793 = vmatprep.mubr.bf16.mxu0 %v4982
    %8794 = vmatmul.mubr.bf16.gmra.mxu0 %v4981
    %v8795 = vpop.f32.mrf.mxu0
    %v8796 = vadd.f32 %v8043, %v8795
    %v8797 = vpop.f32.mrf.mxu0
    %v8798 = vpop.f32.mrf.mxu0
    %v8799 = vadd.f32 %v8046, %v8798
    %v8800 = vpop.f32.mrf.mxu0
    %8801 = vmatprep.mubr.bf16.mxu0 %v4992
    %8802 = vmatmul.mubr.bf16.gmra.mxu0 %v4991
    %v8803 = vpop.f32.mrf.mxu0
    %v8804 = vadd.f32 %v8051, %v8803
    %v8805 = vpop.f32.mrf.mxu0
    %v8806 = vpop.f32.mrf.mxu0
    %v8807 = vadd.f32 %v8054, %v8806
    %v8808 = vpop.f32.mrf.mxu0
    %8809 = vmatprep.mubr.bf16.mxu0 %v5002
    %8810 = vmatmul.mubr.bf16.gmra.mxu0 %v5001
    %v8811 = vpop.f32.mrf.mxu0
    %v8812 = vadd.f32 %v8059, %v8811
    %v8813 = vpop.f32.mrf.mxu0
    %v8814 = vpop.f32.mrf.mxu0
    %v8815 = vadd.f32 %v8062, %v8814
    %v8816 = vpop.f32.mrf.mxu0
    %8817 = vmatprep.mubr.bf16.mxu0 %v5012
    %8818 = vmatmul.mubr.bf16.gmra.mxu0 %v5011
    %v8819 = vpop.f32.mrf.mxu0
    %v8820 = vadd.f32 %v8067, %v8819
    %v8821 = vpop.f32.mrf.mxu0
    %v8822 = vpop.f32.mrf.mxu0
    %v8823 = vadd.f32 %v8070, %v8822
    %v8824 = vpop.f32.mrf.mxu0
    %8825 = vmatprep.mubr.bf16.mxu0 %v5022
    %8826 = vmatmul.mubr.bf16.gmra.mxu0 %v5021
    %v8827 = vpop.f32.mrf.mxu0
    %v8828 = vadd.f32 %v8075, %v8827
    %v8829 = vpop.f32.mrf.mxu0
    %v8830 = vpop.f32.mrf.mxu0
    %v8831 = vadd.f32 %v8078, %v8830
    %v8832 = vpop.f32.mrf.mxu0
    %8833 = vmatprep.mubr.bf16.mxu0 %v5032
    %8834 = vmatmul.mubr.bf16.gmra.mxu0 %v5031
    %v8835 = vpop.f32.mrf.mxu0
    %v8836 = vadd.f32 %v8083, %v8835
    %v8837 = vpop.f32.mrf.mxu0
    %v8838 = vpop.f32.mrf.mxu0
    %v8839 = vadd.f32 %v8086, %v8838
    %v8840 = vpop.f32.mrf.mxu0
    %8841 = vmatprep.mubr.bf16.mxu0 %v5042
    %8842 = vmatmul.mubr.bf16.gmra.mxu0 %v5041
    %v8843 = vpop.f32.mrf.mxu0
    %v8844 = vadd.f32 %v8091, %v8843
    %v8845 = vpop.f32.mrf.mxu0
    %v8846 = vpop.f32.mrf.mxu0
    %v8847 = vadd.f32 %v8094, %v8846
    %v8848 = vpop.f32.mrf.mxu0
    %8849 = vmatprep.mubr.bf16.mxu0 %v5052
    %8850 = vmatmul.mubr.bf16.gmra.mxu0 %v5051
    %v8851 = vpop.f32.mrf.mxu0
    %v8852 = vadd.f32 %v8099, %v8851
    %v8853 = vpop.f32.mrf.mxu0
    %v8854 = vpop.f32.mrf.mxu0
    %v8855 = vadd.f32 %v8102, %v8854
    %v8856 = vpop.f32.mrf.mxu0
    %8857 = vmatprep.mubr.bf16.mxu0 %v5062
    %8858 = vmatmul.mubr.bf16.gmra.mxu0 %v5061
    %v8859 = vpop.f32.mrf.mxu0
    %v8860 = vadd.f32 %v8107, %v8859
    %v8861 = vpop.f32.mrf.mxu0
    %v8862 = vpop.f32.mrf.mxu0
    %v8863 = vadd.f32 %v8110, %v8862
    %v8864 = vpop.f32.mrf.mxu0
    %8865 = vmatprep.mubr.bf16.mxu0 %v5072
    %8866 = vmatmul.mubr.bf16.gmra.mxu0 %v5071
    %v8867 = vpop.f32.mrf.mxu0
    %v8868 = vadd.f32 %v8115, %v8867
    %v8869 = vpop.f32.mrf.mxu0
    %v8870 = vpop.f32.mrf.mxu0
    %v8871 = vadd.f32 %v8118, %v8870
    %v8872 = vpop.f32.mrf.mxu0
    %8873 = vmatprep.mubr.bf16.mxu0 %v5082
    %8874 = vmatmul.mubr.bf16.gmra.mxu0 %v5081
    %v8875 = vpop.f32.mrf.mxu0
    %v8876 = vadd.f32 %v8123, %v8875
    %v8877 = vpop.f32.mrf.mxu0
    %v8878 = vpop.f32.mrf.mxu0
    %v8879 = vadd.f32 %v8126, %v8878
    %v8880 = vpop.f32.mrf.mxu0
    %8881 = vmatprep.mubr.bf16.mxu0 %v5092
    %8882 = vmatmul.mubr.bf16.gmra.mxu0 %v5091
    %v8883 = vpop.f32.mrf.mxu0
    %v8884 = vadd.f32 %v8131, %v8883
    %v8885 = vpop.f32.mrf.mxu0
    %v8886 = vpop.f32.mrf.mxu0
    %v8887 = vadd.f32 %v8134, %v8886
    %v8888 = vpop.f32.mrf.mxu0
    %8889 = vmatprep.mubr.bf16.mxu0 %v5102
    %8890 = vmatmul.mubr.bf16.gmra.mxu0 %v5101
    %v8891 = vpop.f32.mrf.mxu0
    %v8892 = vadd.f32 %v8139, %v8891
    %v8893 = vpop.f32.mrf.mxu0
    %v8894 = vpop.f32.mrf.mxu0
    %v8895 = vadd.f32 %v8142, %v8894
    %v8896 = vpop.f32.mrf.mxu0
    %8897 = vmatprep.mubr.bf16.mxu0 %v5112
    %8898 = vmatmul.mubr.bf16.gmra.mxu0 %v5111
    %v8899 = vpop.f32.mrf.mxu0
    %v8900 = vadd.f32 %v8147, %v8899
    %v8901 = vpop.f32.mrf.mxu0
    %v8902 = vpop.f32.mrf.mxu0
    %v8903 = vadd.f32 %v8150, %v8902
    %v8904 = vpop.f32.mrf.mxu0
    %8905 = vmatprep.mubr.bf16.mxu0 %v5122
    %8906 = vmatmul.mubr.bf16.gmra.mxu0 %v5121
    %v8907 = vpop.f32.mrf.mxu0
    %v8908 = vadd.f32 %v8155, %v8907
    %v8909 = vpop.f32.mrf.mxu0
    %v8910 = vpop.f32.mrf.mxu0
    %v8911 = vadd.f32 %v8158, %v8910
    %v8912 = vpop.f32.mrf.mxu0
    %8913 = vmatprep.mubr.bf16.mxu0 %v5132
    %8914 = vmatmul.mubr.bf16.gmra.mxu0 %v5131
    %v8915 = vpop.f32.mrf.mxu0
    %v8916 = vadd.f32 %v8163, %v8915
    %v8917 = vpop.f32.mrf.mxu0
    %v8918 = vpop.f32.mrf.mxu0
    %v8919 = vadd.f32 %v8166, %v8918
    %v8920 = vpop.f32.mrf.mxu0
    %8921 = vmatprep.mubr.bf16.mxu0 %v5142
    %8922 = vmatmul.mubr.bf16.gmra.mxu0 %v5141
    %v8923 = vpop.f32.mrf.mxu0
    %v8924 = vadd.f32 %v8171, %v8923
    %v8925 = vpop.f32.mrf.mxu0
    %v8926 = vpop.f32.mrf.mxu0
    %v8927 = vadd.f32 %v8174, %v8926
    %v8928 = vpop.f32.mrf.mxu0
    %8929 = vmatprep.mubr.bf16.mxu0 %v5152
    %8930 = vmatmul.mubr.bf16.gmra.mxu0 %v5151
    %v8931 = vpop.f32.mrf.mxu0
    %v8932 = vadd.f32 %v8179, %v8931
    %v8933 = vpop.f32.mrf.mxu0
    %v8934 = vpop.f32.mrf.mxu0
    %v8935 = vadd.f32 %v8182, %v8934
    %v8936 = vpop.f32.mrf.mxu0
    %8937 = vmatprep.mubr.bf16.mxu0 %v5162
    %8938 = vmatmul.mubr.bf16.gmra.mxu0 %v5161
    %v8939 = vpop.f32.mrf.mxu0
    %v8940 = vadd.f32 %v8187, %v8939
    %v8941 = vpop.f32.mrf.mxu0
    %v8942 = vpop.f32.mrf.mxu0
    %v8943 = vadd.f32 %v8190, %v8942
    %v8944 = vpop.f32.mrf.mxu0
    %8945 = vmatprep.mubr.bf16.mxu0 %v5172
    %8946 = vmatmul.mubr.bf16.gmra.mxu0 %v5171
    %v8947 = vpop.f32.mrf.mxu0
    %v8948 = vadd.f32 %v8195, %v8947
    %v8949 = vpop.f32.mrf.mxu0
    %v8950 = vpop.f32.mrf.mxu0
    %v8951 = vadd.f32 %v8198, %v8950
    %v8952 = vpop.f32.mrf.mxu0
    %8953 = vmatprep.mubr.bf16.mxu0 %v5182
    %8954 = vmatmul.mubr.bf16.gmra.mxu0 %v5181
    %v8955 = vpop.f32.mrf.mxu0
    %v8956 = vadd.f32 %v8203, %v8955
    %v8957 = vpop.f32.mrf.mxu0
    %v8958 = vpop.f32.mrf.mxu0
    %v8959 = vadd.f32 %v8206, %v8958
    %v8960 = vpop.f32.mrf.mxu0
    %8961 = vmatprep.mubr.bf16.mxu0 %v5192
    %8962 = vmatmul.mubr.bf16.gmra.mxu0 %v5191
    %v8963 = vpop.f32.mrf.mxu0
    %v8964 = vadd.f32 %v8211, %v8963
    %v8965 = vpop.f32.mrf.mxu0
    %v8966 = vpop.f32.mrf.mxu0
    %v8967 = vadd.f32 %v8214, %v8966
    %v8968 = vpop.f32.mrf.mxu0
    %8969 = vmatprep.mubr.bf16.mxu0 %v5202
    %8970 = vmatmul.mubr.bf16.gmra.mxu0 %v5201
    %v8971 = vpop.f32.mrf.mxu0
    %v8972 = vadd.f32 %v8219, %v8971
    %v8973 = vpop.f32.mrf.mxu0
    %v8974 = vpop.f32.mrf.mxu0
    %v8975 = vadd.f32 %v8222, %v8974
    %v8976 = vpop.f32.mrf.mxu0
    %8977 = vmatprep.mubr.bf16.mxu0 %v5212
    %8978 = vmatmul.mubr.bf16.gmra.mxu0 %v5211
    %v8979 = vpop.f32.mrf.mxu0
    %v8980 = vadd.f32 %v8227, %v8979
    %v8981 = vpop.f32.mrf.mxu0
    %v8982 = vpop.f32.mrf.mxu0
    %v8983 = vadd.f32 %v8230, %v8982
    %v8984 = vpop.f32.mrf.mxu0
    %8985 = vmatprep.mubr.bf16.mxu0 %v5222
    %8986 = vmatmul.mubr.bf16.gmra.mxu0 %v5221
    %v8987 = vpop.f32.mrf.mxu0
    %v8988 = vadd.f32 %v8235, %v8987
    %v8989 = vpop.f32.mrf.mxu0
    %v8990 = vpop.f32.mrf.mxu0
    %v8991 = vadd.f32 %v8238, %v8990
    %v8992 = vpop.f32.mrf.mxu0
    %8993 = vmatprep.mubr.bf16.mxu0 %v5232
    %8994 = vmatmul.mubr.bf16.gmra.mxu0 %v5231
    %v8995 = vpop.f32.mrf.mxu0
    %v8996 = vadd.f32 %v8243, %v8995
    %v8997 = vpop.f32.mrf.mxu0
    %v8998 = vpop.f32.mrf.mxu0
    %v8999 = vadd.f32 %v8246, %v8998
    %v9000 = vpop.f32.mrf.mxu0
    %9001 = vmatprep.mubr.bf16.mxu0 %v5242
    %9002 = vmatmul.mubr.bf16.gmra.mxu0 %v5241
    %v9003 = vpop.f32.mrf.mxu0
    %v9004 = vadd.f32 %v8251, %v9003
    %v9005 = vpop.f32.mrf.mxu0
    %v9006 = vpop.f32.mrf.mxu0
    %v9007 = vadd.f32 %v8254, %v9006
    %v9008 = vpop.f32.mrf.mxu0
    %9009 = vmatprep.mubr.bf16.mxu0 %v5252
    %9010 = vmatmul.mubr.bf16.gmra.mxu0 %v5251
    %v9011 = vpop.f32.mrf.mxu0
    %v9012 = vadd.f32 %v8259, %v9011
    %v9013 = vpop.f32.mrf.mxu0
    %v9014 = vpop.f32.mrf.mxu0
    %v9015 = vadd.f32 %v8262, %v9014
    %v9016 = vpop.f32.mrf.mxu0
    %9017 = vmatprep.mubr.bf16.mxu0 %v5262
    %9018 = vmatmul.mubr.bf16.gmra.mxu0 %v5261
    %v9019 = vpop.f32.mrf.mxu0
    %v9020 = vadd.f32 %v8267, %v9019
    %v9021 = vpop.f32.mrf.mxu0
    %v9022 = vpop.f32.mrf.mxu0
    %v9023 = vadd.f32 %v8270, %v9022
    %v9024 = vpop.f32.mrf.mxu0
    %9025 = vmatprep.mubr.bf16.mxu0 %v5272
    %9026 = vmatmul.mubr.bf16.gmra.mxu0 %v5271
    %v9027 = vpop.f32.mrf.mxu0
    %v9028 = vadd.f32 %v8275, %v9027
    %v9029 = vpop.f32.mrf.mxu0
    %v9030 = vpop.f32.mrf.mxu0
    %v9031 = vadd.f32 %v8278, %v9030
    %v9032 = vpop.f32.mrf.mxu0
    %9033 = vmatprep.mubr.bf16.mxu0 %v5282
    %9034 = vmatmul.mubr.bf16.gmra.mxu0 %v5281
    %v9035 = vpop.f32.mrf.mxu0
    %v9036 = vadd.f32 %v8283, %v9035
    %v9037 = vpop.f32.mrf.mxu0
    %v9038 = vpop.f32.mrf.mxu0
    %v9039 = vadd.f32 %v8286, %v9038
    %v9040 = vpop.f32.mrf.mxu0
    %9041 = vmatprep.mubr.bf16.mxu0 %v5292
    %9042 = vmatmul.mubr.bf16.gmra.mxu0 %v5291
    %v9043 = vpop.f32.mrf.mxu0
    %v9044 = vadd.f32 %v8291, %v9043
    %v9045 = vpop.f32.mrf.mxu0
    %v9046 = vpop.f32.mrf.mxu0
    %v9047 = vadd.f32 %v8294, %v9046
    %v9048 = vpop.f32.mrf.mxu0
    %9049 = vmatprep.mubr.bf16.mxu0 %v5302
    %9050 = vmatmul.mubr.bf16.gmra.mxu0 %v5301
    %v9051 = vpop.f32.mrf.mxu0
    %v9052 = vadd.f32 %v8299, %v9051
    %v9053 = vpop.f32.mrf.mxu0
    %v9054 = vpop.f32.mrf.mxu0
    %v9055 = vadd.f32 %v8302, %v9054
    %v9056 = vpop.f32.mrf.mxu0
    %9057 = vmatprep.mubr.bf16.mxu0 %v5312
    %9058 = vmatmul.mubr.bf16.gmra.mxu0 %v5311
    %v9059 = vpop.f32.mrf.mxu0
    %v9060 = vadd.f32 %v8307, %v9059
    %v9061 = vpop.f32.mrf.mxu0
    %v9062 = vpop.f32.mrf.mxu0
    %v9063 = vadd.f32 %v8310, %v9062
    %v9064 = vpop.f32.mrf.mxu0
    %9065 = vmatprep.mubr.bf16.mxu0 %v5322
    %9066 = vmatmul.mubr.bf16.gmra.mxu0 %v5321
    %v9067 = vpop.f32.mrf.mxu0
    %v9068 = vadd.f32 %v8315, %v9067
    %v9069 = vpop.f32.mrf.mxu0
    %v9070 = vpop.f32.mrf.mxu0
    %v9071 = vadd.f32 %v8318, %v9070
    %v9072 = vpop.f32.mrf.mxu0
    %9073 = vmatprep.mubr.bf16.mxu0 %v5332
    %9074 = vmatmul.mubr.bf16.gmra.mxu0 %v5331
    %v9075 = vpop.f32.mrf.mxu0
    %v9076 = vadd.f32 %v8323, %v9075
    %v9077 = vpop.f32.mrf.mxu0
    %v9078 = vpop.f32.mrf.mxu0
    %v9079 = vadd.f32 %v8326, %v9078
    %v9080 = vpop.f32.mrf.mxu0
    %9081 = vmatprep.mubr.bf16.mxu0 %v5342
    %9082 = vmatmul.mubr.bf16.gmra.mxu0 %v5341
    %v9083 = vpop.f32.mrf.mxu0
    %v9084 = vadd.f32 %v8331, %v9083
    %v9085 = vpop.f32.mrf.mxu0
    %v9086 = vpop.f32.mrf.mxu0
    %v9087 = vadd.f32 %v8334, %v9086
    %v9088 = vpop.f32.mrf.mxu0
    %9089 = vmatprep.mubr.bf16.mxu0 %v5352
    %9090 = vmatmul.mubr.bf16.gmra.mxu0 %v5351
    %v9091 = vpop.f32.mrf.mxu0
    %v9092 = vadd.f32 %v8339, %v9091
    %v9093 = vpop.f32.mrf.mxu0
    %v9094 = vpop.f32.mrf.mxu0
    %v9095 = vadd.f32 %v8342, %v9094
    %v9096 = vpop.f32.mrf.mxu0
    %9097 = vmatprep.mubr.bf16.mxu0 %v5362
    %9098 = vmatmul.mubr.bf16.gmra.mxu0 %v5361
    %v9099 = vpop.f32.mrf.mxu0
    %v9100 = vadd.f32 %v8347, %v9099
    %v9101 = vpop.f32.mrf.mxu0
    %v9102 = vpop.f32.mrf.mxu0
    %v9103 = vadd.f32 %v8350, %v9102
    %v9104 = vpop.f32.mrf.mxu0
    %9105 = vmatprep.mubr.bf16.mxu0 %v5372
    %9106 = vmatmul.mubr.bf16.gmra.mxu0 %v5371
    %v9107 = vpop.f32.mrf.mxu0
    %v9108 = vadd.f32 %v8355, %v9107
    %v9109 = vpop.f32.mrf.mxu0
    %v9110 = vpop.f32.mrf.mxu0
    %v9111 = vadd.f32 %v8358, %v9110
    %v9112 = vpop.f32.mrf.mxu0
    %9113 = vmatprep.mubr.bf16.mxu0 %v5382
    %9114 = vmatmul.mubr.bf16.gmra.mxu0 %v5381
    %v9115 = vpop.f32.mrf.mxu0
    %v9116 = vadd.f32 %v8363, %v9115
    %v9117 = vpop.f32.mrf.mxu0
    %v9118 = vpop.f32.mrf.mxu0
    %v9119 = vadd.f32 %v8366, %v9118
    %v9120 = vpop.f32.mrf.mxu0
    %9121 = vmatprep.mubr.bf16.mxu0 %v5392
    %9122 = vmatmul.mubr.bf16.gmra.mxu0 %v5391
    %v9123 = vpop.f32.mrf.mxu0
    %v9124 = vadd.f32 %v8371, %v9123
    %v9125 = vpop.f32.mrf.mxu0
    %v9126 = vpop.f32.mrf.mxu0
    %v9127 = vadd.f32 %v8374, %v9126
    %v9128 = vpop.f32.mrf.mxu0
    %9129 = vmatprep.mubr.bf16.mxu0 %v5402
    %9130 = vmatmul.mubr.bf16.gmra.mxu0 %v5401
    %v9131 = vpop.f32.mrf.mxu0
    %v9132 = vadd.f32 %v8379, %v9131
    %v9133 = vpop.f32.mrf.mxu0
    %v9134 = vpop.f32.mrf.mxu0
    %v9135 = vadd.f32 %v8382, %v9134
    %v9136 = vpop.f32.mrf.mxu0
    %9137 = vmatprep.mubr.bf16.mxu0 %v5412
    %9138 = vmatmul.mubr.bf16.gmra.mxu0 %v5411
    %v9139 = vpop.f32.mrf.mxu0
    %v9140 = vadd.f32 %v8387, %v9139
    %v9141 = vpop.f32.mrf.mxu0
    %v9142 = vpop.f32.mrf.mxu0
    %v9143 = vadd.f32 %v8390, %v9142
    %v9144 = vpop.f32.mrf.mxu0
    %9145 = vmatprep.mubr.bf16.mxu0 %v5422
    %9146 = vmatmul.mubr.bf16.gmra.mxu0 %v5421
    %v9147 = vpop.f32.mrf.mxu0
    %v9148 = vadd.f32 %v8395, %v9147
    %v9149 = vpop.f32.mrf.mxu0
    %v9150 = vpop.f32.mrf.mxu0
    %v9151 = vadd.f32 %v8398, %v9150
    %v9152 = vpop.f32.mrf.mxu0
    %9153 = vmatprep.mubr.bf16.mxu0 %v5432
    %9154 = vmatmul.mubr.bf16.gmra.mxu0 %v5431
    %v9155 = vpop.f32.mrf.mxu0
    %v9156 = vadd.f32 %v8403, %v9155
    %v9157 = vpop.f32.mrf.mxu0
    %v9158 = vpop.f32.mrf.mxu0
    %v9159 = vadd.f32 %v8406, %v9158
    %v9160 = vpop.f32.mrf.mxu0
    %9161 = vmatprep.mubr.bf16.mxu0 %v5442
    %9162 = vmatmul.mubr.bf16.gmra.mxu0 %v5441
    %v9163 = vpop.f32.mrf.mxu0
    %v9164 = vadd.f32 %v8411, %v9163
    %v9165 = vpop.f32.mrf.mxu0
    %v9166 = vpop.f32.mrf.mxu0
    %v9167 = vadd.f32 %v8414, %v9166
    %v9168 = vpop.f32.mrf.mxu0
    %9169 = vmatprep.mubr.bf16.mxu0 %v5452
    %9170 = vmatmul.mubr.bf16.gmra.mxu0 %v5451
    %v9171 = vpop.f32.mrf.mxu0
    %v9172 = vadd.f32 %v8419, %v9171
    %v9173 = vpop.f32.mrf.mxu0
    %v9174 = vpop.f32.mrf.mxu0
    %v9175 = vadd.f32 %v8422, %v9174
    %v9176 = vpop.f32.mrf.mxu0
    %9177 = vmatprep.mubr.bf16.mxu0 %v5462
    %9178 = vmatmul.mubr.bf16.gmra.mxu0 %v5461
    %v9179 = vpop.f32.mrf.mxu0
    %v9180 = vadd.f32 %v8427, %v9179
    %v9181 = vpop.f32.mrf.mxu0
    %v9182 = vpop.f32.mrf.mxu0
    %v9183 = vadd.f32 %v8430, %v9182
    %v9184 = vpop.f32.mrf.mxu0
    %9185 = vmatprep.mubr.bf16.mxu0 %v5472
    %9186 = vmatmul.mubr.bf16.gmra.mxu0 %v5471
    %v9187 = vpop.f32.mrf.mxu0
    %v9188 = vadd.f32 %v8435, %v9187
    %v9189 = vpop.f32.mrf.mxu0
    %v9190 = vpop.f32.mrf.mxu0
    %v9191 = vadd.f32 %v8438, %v9190
    %v9192 = vpop.f32.mrf.mxu0
    %9193 = vmatprep.mubr.bf16.mxu0 %v5482
    %9194 = vmatmul.mubr.bf16.gmra.mxu0 %v5481
    %v9195 = vpop.f32.mrf.mxu0
    %v9196 = vadd.f32 %v8443, %v9195
    %v9197 = vpop.f32.mrf.mxu0
    %v9198 = vpop.f32.mrf.mxu0
    %v9199 = vadd.f32 %v8446, %v9198
    %v9200 = vpop.f32.mrf.mxu0
    %9201 = vmatprep.mubr.bf16.mxu0 %v5492
    %9202 = vmatmul.mubr.bf16.gmra.mxu0 %v5491
    %v9203 = vpop.f32.mrf.mxu0
    %v9204 = vadd.f32 %v8451, %v9203
    %v9205 = vpop.f32.mrf.mxu0
    %v9206 = vpop.f32.mrf.mxu0
    %v9207 = vadd.f32 %v8454, %v9206
    %v9208 = vpop.f32.mrf.mxu0
    %9209 = vmatprep.mubr.bf16.mxu0 %v5502
    %9210 = vmatmul.mubr.bf16.gmra.mxu0 %v5501
    %v9211 = vpop.f32.mrf.mxu0
    %v9212 = vadd.f32 %v8459, %v9211
    %v9213 = vpop.f32.mrf.mxu0
    %v9214 = vpop.f32.mrf.mxu0
    %v9215 = vadd.f32 %v8462, %v9214
    %v9216 = vpop.f32.mrf.mxu0
    %9217 = vmatprep.mubr.bf16.mxu0 %v5512
    %9218 = vmatmul.mubr.bf16.gmra.mxu0 %v5511
    %v9219 = vpop.f32.mrf.mxu0
    %v9220 = vadd.f32 %v8467, %v9219
    %v9221 = vpop.f32.mrf.mxu0
    %v9222 = vpop.f32.mrf.mxu0
    %v9223 = vadd.f32 %v8470, %v9222
    %v9224 = vpop.f32.mrf.mxu0
    %9225 = vmatprep.mubr.bf16.mxu0 %v5522
    %9226 = vmatmul.mubr.bf16.gmra.mxu0 %v5521
    %v9227 = vpop.f32.mrf.mxu0
    %v9228 = vadd.f32 %v8475, %v9227
    %v9229 = vpop.f32.mrf.mxu0
    %v9230 = vpop.f32.mrf.mxu0
    %v9231 = vadd.f32 %v8478, %v9230
    %v9232 = vpop.f32.mrf.mxu0
    %9233 = vmatprep.mubr.bf16.mxu0 %v5532
    %9234 = vmatmul.mubr.bf16.gmra.mxu0 %v5531
    %v9235 = vpop.f32.mrf.mxu0
    %v9236 = vadd.f32 %v8483, %v9235
    %v9237 = vpop.f32.mrf.mxu0
    %v9238 = vpop.f32.mrf.mxu0
    %v9239 = vadd.f32 %v8486, %v9238
    %v9240 = vpop.f32.mrf.mxu0
    %9241 = vmatprep.mubr.bf16.mxu0 %v5542
    %9242 = vmatmul.mubr.bf16.gmra.mxu0 %v5541
    %v9243 = vpop.f32.mrf.mxu0
    %v9244 = vadd.f32 %v8491, %v9243
    %v9245 = vpop.f32.mrf.mxu0
    %v9246 = vpop.f32.mrf.mxu0
    %v9247 = vadd.f32 %v8494, %v9246
    %v9248 = vpop.f32.mrf.mxu0
    %9249 = vmatprep.mubr.bf16.mxu0 %v5552
    %9250 = vmatmul.mubr.bf16.gmra.mxu0 %v5551
    %v9251 = vpop.f32.mrf.mxu0
    %v9252 = vadd.f32 %v8499, %v9251
    %v9253 = vpop.f32.mrf.mxu0
    %v9254 = vpop.f32.mrf.mxu0
    %v9255 = vadd.f32 %v8502, %v9254
    %v9256 = vpop.f32.mrf.mxu0
    %9257 = vmatprep.mubr.bf16.mxu0 %v5562
    %9258 = vmatmul.mubr.bf16.gmra.mxu0 %v5561
    %v9259 = vpop.f32.mrf.mxu0
    %v9260 = vadd.f32 %v8507, %v9259
    %v9261 = vpop.f32.mrf.mxu0
    %v9262 = vpop.f32.mrf.mxu0
    %v9263 = vadd.f32 %v8510, %v9262
    %v9264 = vpop.f32.mrf.mxu0
    %9265 = vmatprep.mubr.bf16.mxu0 %v5572
    %9266 = vmatmul.mubr.bf16.gmra.mxu0 %v5571
    %v9267 = vpop.f32.mrf.mxu0
    %v9268 = vadd.f32 %v8515, %v9267
    %v9269 = vpop.f32.mrf.mxu0
    %v9270 = vpop.f32.mrf.mxu0
    %v9271 = vadd.f32 %v8518, %v9270
    %v9272 = vpop.f32.mrf.mxu0
    %9273 = vmatprep.mubr.bf16.mxu0 %v5582
    %9274 = vmatmul.mubr.bf16.gmra.mxu0 %v5581
    %v9275 = vpop.f32.mrf.mxu0
    %v9276 = vadd.f32 %v8523, %v9275
    %v9277 = vpop.f32.mrf.mxu0
    %v9278 = vpop.f32.mrf.mxu0
    %v9279 = vadd.f32 %v8526, %v9278
    %v9280 = vpop.f32.mrf.mxu0
    %9281 = vmatprep.mubr.bf16.mxu0 %v5592
    %9282 = vmatmul.mubr.bf16.gmra.mxu0 %v5591
    %v9283 = vpop.f32.mrf.mxu0
    %v9284 = vadd.f32 %v8531, %v9283
    %v9285 = vpop.f32.mrf.mxu0
    %v9286 = vpop.f32.mrf.mxu0
    %v9287 = vadd.f32 %v8534, %v9286
    %v9288 = vpop.f32.mrf.mxu0
    %9289 = vmatprep.mubr.bf16.mxu0 %v5602
    %9290 = vmatmul.mubr.bf16.gmra.mxu0 %v5601
    %v9291 = vpop.f32.mrf.mxu0
    %v9292 = vadd.f32 %v8539, %v9291
    %v9293 = vpop.f32.mrf.mxu0
    %v9294 = vpop.f32.mrf.mxu0
    %v9295 = vadd.f32 %v8542, %v9294
    %v9296 = vpop.f32.mrf.mxu0
    %9297 = vmatprep.mubr.bf16.mxu0 %v5612
    %9298 = vmatmul.mubr.bf16.gmra.mxu0 %v5611
    %v9299 = vpop.f32.mrf.mxu0
    %v9300 = vadd.f32 %v8547, %v9299
    %v9301 = vpop.f32.mrf.mxu0
    %v9302 = vpop.f32.mrf.mxu0
    %v9303 = vadd.f32 %v8550, %v9302
    %v9304 = vpop.f32.mrf.mxu0
    %9305 = vmatprep.mubr.bf16.mxu0 %v5622
    %9306 = vmatmul.mubr.bf16.gmra.mxu0 %v5621
    %v9307 = vpop.f32.mrf.mxu0
    %v9308 = vadd.f32 %v8555, %v9307
    %v9309 = vpop.f32.mrf.mxu0
    %v9310 = vpop.f32.mrf.mxu0
    %v9311 = vadd.f32 %v8558, %v9310
    %v9312 = vpop.f32.mrf.mxu0
    %9313 = vmatprep.mubr.bf16.mxu0 %v5632
    %9314 = vmatmul.mubr.bf16.gmra.mxu0 %v5631
    %v9315 = vpop.f32.mrf.mxu0
    %v9316 = vadd.f32 %v8563, %v9315
    %v9317 = vpop.f32.mrf.mxu0
    %v9318 = vpop.f32.mrf.mxu0
    %v9319 = vadd.f32 %v8566, %v9318
    %v9320 = vpop.f32.mrf.mxu0
    %9321 = vmatprep.mubr.bf16.mxu0 %v5642
    %9322 = vmatmul.mubr.bf16.gmra.mxu0 %v5641
    %v9323 = vpop.f32.mrf.mxu0
    %v9324 = vadd.f32 %v8571, %v9323
    %v9325 = vpop.f32.mrf.mxu0
    %v9326 = vpop.f32.mrf.mxu0
    %v9327 = vadd.f32 %v8574, %v9326
    %v9328 = vpop.f32.mrf.mxu0
    %9329 = vmatprep.mubr.bf16.mxu0 %v5652
    %9330 = vmatmul.mubr.bf16.gmra.mxu0 %v5651
    %v9331 = vpop.f32.mrf.mxu0
    %v9332 = vadd.f32 %v8579, %v9331
    %v9333 = vpop.f32.mrf.mxu0
    %v9334 = vpop.f32.mrf.mxu0
    %v9335 = vadd.f32 %v8582, %v9334
    %v9336 = vpop.f32.mrf.mxu0
    %9337 = vmatprep.mubr.bf16.mxu0 %v5662
    %9338 = vmatmul.mubr.bf16.gmra.mxu0 %v5661
    %v9339 = vpop.f32.mrf.mxu0
    %v9340 = vadd.f32 %v8587, %v9339
    %v9341 = vpop.f32.mrf.mxu0
    %v9342 = vpop.f32.mrf.mxu0
    %v9343 = vadd.f32 %v8590, %v9342
    %v9344 = vpop.f32.mrf.mxu0
    %9345 = vmatprep.mubr.bf16.mxu0 %v5672
    %9346 = vmatmul.mubr.bf16.gmra.mxu0 %v5671
    %v9347 = vpop.f32.mrf.mxu0
    %v9348 = vadd.f32 %v8595, %v9347
    %v9349 = vpop.f32.mrf.mxu0
    %v9350 = vpop.f32.mrf.mxu0
    %v9351 = vadd.f32 %v8598, %v9350
    %v9352 = vpop.f32.mrf.mxu0
    %9353 = vmatprep.mubr.bf16.mxu0 %v5682
    %9354 = vmatmul.mubr.bf16.gmra.mxu0 %v5681
    %v9355 = vpop.f32.mrf.mxu0
    %v9356 = vadd.f32 %v8603, %v9355
    %v9357 = vpop.f32.mrf.mxu0
    %v9358 = vpop.f32.mrf.mxu0
    %v9359 = vadd.f32 %v8606, %v9358
    %v9360 = vpop.f32.mrf.mxu0
    %9361 = vmatprep.mubr.bf16.mxu0 %v5692
    %9362 = vmatmul.mubr.bf16.gmra.mxu0 %v5691
    %v9363 = vpop.f32.mrf.mxu0
    %v9364 = vadd.f32 %v8611, %v9363
    %v9365 = vpop.f32.mrf.mxu0
    %v9366 = vpop.f32.mrf.mxu0
    %v9367 = vadd.f32 %v8614, %v9366
    %v9368 = vpop.f32.mrf.mxu0
    %9369 = vmatprep.mubr.bf16.mxu0 %v5702
    %9370 = vmatmul.mubr.bf16.gmra.mxu0 %v5701
    %v9371 = vpop.f32.mrf.mxu0
    %v9372 = vadd.f32 %v8619, %v9371
    %v9373 = vpop.f32.mrf.mxu0
    %v9374 = vpop.f32.mrf.mxu0
    %v9375 = vadd.f32 %v8622, %v9374
    %v9376 = vpop.f32.mrf.mxu0
    %9377 = vmatprep.mubr.bf16.mxu0 %v5712
    %9378 = vmatmul.mubr.bf16.gmra.mxu0 %v5711
    %v9379 = vpop.f32.mrf.mxu0
    %v9380 = vadd.f32 %v8627, %v9379
    %v9381 = vpop.f32.mrf.mxu0
    %v9382 = vpop.f32.mrf.mxu0
    %v9383 = vadd.f32 %v8630, %v9382
    %v9384 = vpop.f32.mrf.mxu0
    %9385 = vmatprep.mubr.bf16.mxu0 %v5722
    %9386 = vmatmul.mubr.bf16.gmra.mxu0 %v5721
    %v9387 = vpop.f32.mrf.mxu0
    %v9388 = vadd.f32 %v8635, %v9387
    %v9389 = vpop.f32.mrf.mxu0
    %v9390 = vpop.f32.mrf.mxu0
    %v9391 = vadd.f32 %v8638, %v9390
    %v9392 = vpop.f32.mrf.mxu0
    %9393 = vmatprep.mubr.bf16.mxu0 %v5732
    %9394 = vmatmul.mubr.bf16.gmra.mxu0 %v5731
    %v9395 = vpop.f32.mrf.mxu0
    %v9396 = vadd.f32 %v8643, %v9395
    %v9397 = vpop.f32.mrf.mxu0
    %v9398 = vpop.f32.mrf.mxu0
    %v9399 = vadd.f32 %v8646, %v9398
    %v9400 = vpop.f32.mrf.mxu0
    %9401 = vmatprep.mubr.bf16.mxu0 %v5742
    %9402 = vmatmul.mubr.bf16.gmra.mxu0 %v5741
    %v9403 = vpop.f32.mrf.mxu0
    %v9404 = vadd.f32 %v8651, %v9403
    %v9405 = vpop.f32.mrf.mxu0
    %v9406 = vpop.f32.mrf.mxu0
    %v9407 = vadd.f32 %v8654, %v9406
    %v9408 = vpop.f32.mrf.mxu0
    %9409 = vmatprep.mubr.bf16.mxu0 %v5752
    %9410 = vmatmul.mubr.bf16.gmra.mxu0 %v5751
    %v9411 = vpop.f32.mrf.mxu0
    %v9412 = vadd.f32 %v8659, %v9411
    %v9413 = vpop.f32.mrf.mxu0
    %v9414 = vpop.f32.mrf.mxu0
    %v9415 = vadd.f32 %v8662, %v9414
    %v9416 = vpop.f32.mrf.mxu0
    %9417 = vmatprep.mubr.bf16.mxu0 %v5762
    %9418 = vmatmul.mubr.bf16.gmra.mxu0 %v5761
    %v9419 = vpop.f32.mrf.mxu0
    %v9420 = vadd.f32 %v8667, %v9419
    %v9421 = vpop.f32.mrf.mxu0
    %v9422 = vpop.f32.mrf.mxu0
    %v9423 = vadd.f32 %v8670, %v9422
    %v9424 = vpop.f32.mrf.mxu0
    %9425 = vmatprep.mubr.bf16.mxu0 %v5772
    %9426 = vmatmul.mubr.bf16.gmra.mxu0 %v5771
    %v9427 = vpop.f32.mrf.mxu0
    %v9428 = vadd.f32 %v8675, %v9427
    %v9429 = vpop.f32.mrf.mxu0
    %v9430 = vpop.f32.mrf.mxu0
    %v9431 = vadd.f32 %v8678, %v9430
    %v9432 = vpop.f32.mrf.mxu0
    %9433 = vmatprep.mubr.bf16.mxu0 %v5782
    %9434 = vmatmul.mubr.bf16.gmra.mxu0 %v5781
    %v9435 = vpop.f32.mrf.mxu0
    %v9436 = vadd.f32 %v8683, %v9435
    %v9437 = vpop.f32.mrf.mxu0
    %v9438 = vpop.f32.mrf.mxu0
    %v9439 = vadd.f32 %v8686, %v9438
    %v9440 = vpop.f32.mrf.mxu0
    %9441 = vmatprep.mubr.bf16.mxu0 %v5792
    %9442 = vmatmul.mubr.bf16.gmra.mxu0 %v5791
    %v9443 = vpop.f32.mrf.mxu0
    %v9444 = vadd.f32 %v8691, %v9443
    %v9445 = vpop.f32.mrf.mxu0
    %v9446 = vpop.f32.mrf.mxu0
    %v9447 = vadd.f32 %v8694, %v9446
    %v9448 = vpop.f32.mrf.mxu0
    %9449 = vmatprep.mubr.bf16.mxu0 %v5802
    %9450 = vmatmul.mubr.bf16.gmra.mxu0 %v5801
    %v9451 = vpop.f32.mrf.mxu0
    %v9452 = vadd.f32 %v8699, %v9451
    %v9453 = vpop.f32.mrf.mxu0
    %v9454 = vpop.f32.mrf.mxu0
    %v9455 = vadd.f32 %v8702, %v9454
    %v9456 = vpop.f32.mrf.mxu0
    %9457 = vmatprep.mubr.bf16.mxu0 %v5812
    %9458 = vmatmul.mubr.bf16.gmra.mxu0 %v5811
    %v9459 = vpop.f32.mrf.mxu0
    %v9460 = vadd.f32 %v8707, %v9459
    %v9461 = vpop.f32.mrf.mxu0
    %v9462 = vpop.f32.mrf.mxu0
    %v9463 = vadd.f32 %v8710, %v9462
    %v9464 = vpop.f32.mrf.mxu0
    %9465 = vmatprep.mubr.bf16.mxu0 %v5822
    %9466 = vmatmul.mubr.bf16.gmra.mxu0 %v5821
    %v9467 = vpop.f32.mrf.mxu0
    %v9468 = vadd.f32 %v8715, %v9467
    %v9469 = vpop.f32.mrf.mxu0
    %v9470 = vpop.f32.mrf.mxu0
    %v9471 = vadd.f32 %v8718, %v9470
    %v9472 = vpop.f32.mrf.mxu0
    %9473 = vmatprep.mubr.bf16.mxu0 %v5832
    %9474 = vmatmul.mubr.bf16.gmra.mxu0 %v5831
    %v9475 = vpop.f32.mrf.mxu0
    %v9476 = vadd.f32 %v8723, %v9475
    %v9477 = vpop.f32.mrf.mxu0
    %v9478 = vpop.f32.mrf.mxu0
    %v9479 = vadd.f32 %v8726, %v9478
    %v9480 = vpop.f32.mrf.mxu0
    %9481 = vmatprep.mubr.bf16.mxu0 %v5842
    %9482 = vmatmul.mubr.bf16.gmra.mxu0 %v5841
    %v9483 = vpop.f32.mrf.mxu0
    %v9484 = vadd.f32 %v8731, %v9483
    %v9485 = vpop.f32.mrf.mxu0
    %v9486 = vpop.f32.mrf.mxu0
    %v9487 = vadd.f32 %v8734, %v9486
    %v9488 = vpop.f32.mrf.mxu0
    %9489 = vmatprep.mubr.bf16.mxu0 %v5852
    %9490 = vmatmul.mubr.bf16.gmra.mxu0 %v5851
    %v9491 = vpop.f32.mrf.mxu0
    %v9492 = vadd.f32 %v8739, %v9491
    %v9493 = vpop.f32.mrf.mxu0
    %v9494 = vpop.f32.mrf.mxu0
    %v9495 = vadd.f32 %v8742, %v9494
    %v9496 = vpop.f32.mrf.mxu0
    %9497 = vmatprep.mubr.bf16.mxu0 %v5862
    %9498 = vmatmul.mubr.bf16.gmra.mxu0 %v5861
    %v9499 = vpop.f32.mrf.mxu0
    %v9500 = vadd.f32 %v8747, %v9499
    %v9501 = vpop.f32.mrf.mxu0
    %v9502 = vpop.f32.mrf.mxu0
    %v9503 = vadd.f32 %v8750, %v9502
    %v9504 = vpop.f32.mrf.mxu0
    %9505 = vdwg.mxu0
    %9506 = vmatprep.subr.bf16.mxu0 0
    %9507 = vmatpush1.bf16.msra.mxu0 %v7142
    %9508 = vmatprep.subr.bf16.mxu0 0
    %9509 = vmatpush1.bf16.msra.mxu0 %v7141
    %9510 = vmatprep.subr.bf16.mxu0 0
    %9511 = vmatpush1.bf16.msra.mxu0 %v7140
    %9512 = vmatprep.subr.bf16.mxu0 0
    %9513 = vmatpush1.bf16.msra.mxu0 %v7139
    %9514 = vmatprep.subr.bf16.mxu0 0
    %9515 = vmatpush1.bf16.msra.mxu0 %v7138
    %9516 = vmatprep.subr.bf16.mxu0 0
    %9517 = vmatpush1.bf16.msra.mxu0 %v7137
    %9518 = vmatprep.subr.bf16.mxu0 0
    %9519 = vmatpush1.bf16.msra.mxu0 %v7136
    %9520 = vmatprep.subr.bf16.mxu0 0
    %9521 = vmatpush1.bf16.msra.mxu0 %v7135
    %9522 = vmatprep.subr.bf16.mxu0 0
    %9523 = vmatpush2.bf16.msra.mxu0 %v7150
    %9524 = vmatprep.subr.bf16.mxu0 0
    %9525 = vmatpush2.bf16.msra.mxu0 %v7149
    %9526 = vmatprep.subr.bf16.mxu0 0
    %9527 = vmatpush2.bf16.msra.mxu0 %v7148
    %9528 = vmatprep.subr.bf16.mxu0 0
    %9529 = vmatpush2.bf16.msra.mxu0 %v7147
    %9530 = vmatprep.subr.bf16.mxu0 0
    %9531 = vmatpush2.bf16.msra.mxu0 %v7146
    %9532 = vmatprep.subr.bf16.mxu0 0
    %9533 = vmatpush2.bf16.msra.mxu0 %v7145
    %9534 = vmatprep.subr.bf16.mxu0 0
    %9535 = vmatpush2.bf16.msra.mxu0 %v7144
    %9536 = vmatprep.subr.bf16.mxu0 0
    %9537 = vmatpush2.bf16.msra.mxu0 %v7143
    %9538 = vmatprep.mubr.bf16.mxu0 %v4974
    %9539 = vmatmul.mubr.bf16.gmra.mxu0 %v4973
    %v9540 = vpop.f32.mrf.mxu0
    %v9541 = vadd.f32 %v8788, %v9540
    %v9542 = vpop.f32.mrf.mxu0
    %v9543 = vpop.f32.mrf.mxu0
    %v9544 = vadd.f32 %v8791, %v9543
    %v9545 = vpop.f32.mrf.mxu0
    %9546 = vmatprep.mubr.bf16.mxu0 %v4984
    %9547 = vmatmul.mubr.bf16.gmra.mxu0 %v4983
    %v9548 = vpop.f32.mrf.mxu0
    %v9549 = vadd.f32 %v8796, %v9548
    %v9550 = vpop.f32.mrf.mxu0
    %v9551 = vpop.f32.mrf.mxu0
    %v9552 = vadd.f32 %v8799, %v9551
    %v9553 = vpop.f32.mrf.mxu0
    %9554 = vmatprep.mubr.bf16.mxu0 %v4994
    %9555 = vmatmul.mubr.bf16.gmra.mxu0 %v4993
    %v9556 = vpop.f32.mrf.mxu0
    %v9557 = vadd.f32 %v8804, %v9556
    %v9558 = vpop.f32.mrf.mxu0
    %v9559 = vpop.f32.mrf.mxu0
    %v9560 = vadd.f32 %v8807, %v9559
    %v9561 = vpop.f32.mrf.mxu0
    %9562 = vmatprep.mubr.bf16.mxu0 %v5004
    %9563 = vmatmul.mubr.bf16.gmra.mxu0 %v5003
    %v9564 = vpop.f32.mrf.mxu0
    %v9565 = vadd.f32 %v8812, %v9564
    %v9566 = vpop.f32.mrf.mxu0
    %v9567 = vpop.f32.mrf.mxu0
    %v9568 = vadd.f32 %v8815, %v9567
    %v9569 = vpop.f32.mrf.mxu0
    %9570 = vmatprep.mubr.bf16.mxu0 %v5014
    %9571 = vmatmul.mubr.bf16.gmra.mxu0 %v5013
    %v9572 = vpop.f32.mrf.mxu0
    %v9573 = vadd.f32 %v8820, %v9572
    %v9574 = vpop.f32.mrf.mxu0
    %v9575 = vpop.f32.mrf.mxu0
    %v9576 = vadd.f32 %v8823, %v9575
    %v9577 = vpop.f32.mrf.mxu0
    %9578 = vmatprep.mubr.bf16.mxu0 %v5024
    %9579 = vmatmul.mubr.bf16.gmra.mxu0 %v5023
    %v9580 = vpop.f32.mrf.mxu0
    %v9581 = vadd.f32 %v8828, %v9580
    %v9582 = vpop.f32.mrf.mxu0
    %v9583 = vpop.f32.mrf.mxu0
    %v9584 = vadd.f32 %v8831, %v9583
    %v9585 = vpop.f32.mrf.mxu0
    %9586 = vmatprep.mubr.bf16.mxu0 %v5034
    %9587 = vmatmul.mubr.bf16.gmra.mxu0 %v5033
    %v9588 = vpop.f32.mrf.mxu0
    %v9589 = vadd.f32 %v8836, %v9588
    %v9590 = vpop.f32.mrf.mxu0
    %v9591 = vpop.f32.mrf.mxu0
    %v9592 = vadd.f32 %v8839, %v9591
    %v9593 = vpop.f32.mrf.mxu0
    %9594 = vmatprep.mubr.bf16.mxu0 %v5044
    %9595 = vmatmul.mubr.bf16.gmra.mxu0 %v5043
    %v9596 = vpop.f32.mrf.mxu0
    %v9597 = vadd.f32 %v8844, %v9596
    %v9598 = vpop.f32.mrf.mxu0
    %v9599 = vpop.f32.mrf.mxu0
    %v9600 = vadd.f32 %v8847, %v9599
    %v9601 = vpop.f32.mrf.mxu0
    %9602 = vmatprep.mubr.bf16.mxu0 %v5054
    %9603 = vmatmul.mubr.bf16.gmra.mxu0 %v5053
    %v9604 = vpop.f32.mrf.mxu0
    %v9605 = vadd.f32 %v8852, %v9604
    %v9606 = vpop.f32.mrf.mxu0
    %v9607 = vpop.f32.mrf.mxu0
    %v9608 = vadd.f32 %v8855, %v9607
    %v9609 = vpop.f32.mrf.mxu0
    %9610 = vmatprep.mubr.bf16.mxu0 %v5064
    %9611 = vmatmul.mubr.bf16.gmra.mxu0 %v5063
    %v9612 = vpop.f32.mrf.mxu0
    %v9613 = vadd.f32 %v8860, %v9612
    %v9614 = vpop.f32.mrf.mxu0
    %v9615 = vpop.f32.mrf.mxu0
    %v9616 = vadd.f32 %v8863, %v9615
    %v9617 = vpop.f32.mrf.mxu0
    %9618 = vmatprep.mubr.bf16.mxu0 %v5074
    %9619 = vmatmul.mubr.bf16.gmra.mxu0 %v5073
    %v9620 = vpop.f32.mrf.mxu0
    %v9621 = vadd.f32 %v8868, %v9620
    %v9622 = vpop.f32.mrf.mxu0
    %v9623 = vpop.f32.mrf.mxu0
    %v9624 = vadd.f32 %v8871, %v9623
    %v9625 = vpop.f32.mrf.mxu0
    %9626 = vmatprep.mubr.bf16.mxu0 %v5084
    %9627 = vmatmul.mubr.bf16.gmra.mxu0 %v5083
    %v9628 = vpop.f32.mrf.mxu0
    %v9629 = vadd.f32 %v8876, %v9628
    %v9630 = vpop.f32.mrf.mxu0
    %v9631 = vpop.f32.mrf.mxu0
    %v9632 = vadd.f32 %v8879, %v9631
    %v9633 = vpop.f32.mrf.mxu0
    %9634 = vmatprep.mubr.bf16.mxu0 %v5094
    %9635 = vmatmul.mubr.bf16.gmra.mxu0 %v5093
    %v9636 = vpop.f32.mrf.mxu0
    %v9637 = vadd.f32 %v8884, %v9636
    %v9638 = vpop.f32.mrf.mxu0
    %v9639 = vpop.f32.mrf.mxu0
    %v9640 = vadd.f32 %v8887, %v9639
    %v9641 = vpop.f32.mrf.mxu0
    %9642 = vmatprep.mubr.bf16.mxu0 %v5104
    %9643 = vmatmul.mubr.bf16.gmra.mxu0 %v5103
    %v9644 = vpop.f32.mrf.mxu0
    %v9645 = vadd.f32 %v8892, %v9644
    %v9646 = vpop.f32.mrf.mxu0
    %v9647 = vpop.f32.mrf.mxu0
    %v9648 = vadd.f32 %v8895, %v9647
    %v9649 = vpop.f32.mrf.mxu0
    %9650 = vmatprep.mubr.bf16.mxu0 %v5114
    %9651 = vmatmul.mubr.bf16.gmra.mxu0 %v5113
    %v9652 = vpop.f32.mrf.mxu0
    %v9653 = vadd.f32 %v8900, %v9652
    %v9654 = vpop.f32.mrf.mxu0
    %v9655 = vpop.f32.mrf.mxu0
    %v9656 = vadd.f32 %v8903, %v9655
    %v9657 = vpop.f32.mrf.mxu0
    %9658 = vmatprep.mubr.bf16.mxu0 %v5124
    %9659 = vmatmul.mubr.bf16.gmra.mxu0 %v5123
    %v9660 = vpop.f32.mrf.mxu0
    %v9661 = vadd.f32 %v8908, %v9660
    %v9662 = vpop.f32.mrf.mxu0
    %v9663 = vpop.f32.mrf.mxu0
    %v9664 = vadd.f32 %v8911, %v9663
    %v9665 = vpop.f32.mrf.mxu0
    %9666 = vmatprep.mubr.bf16.mxu0 %v5134
    %9667 = vmatmul.mubr.bf16.gmra.mxu0 %v5133
    %v9668 = vpop.f32.mrf.mxu0
    %v9669 = vadd.f32 %v8916, %v9668
    %v9670 = vpop.f32.mrf.mxu0
    %v9671 = vpop.f32.mrf.mxu0
    %v9672 = vadd.f32 %v8919, %v9671
    %v9673 = vpop.f32.mrf.mxu0
    %9674 = vmatprep.mubr.bf16.mxu0 %v5144
    %9675 = vmatmul.mubr.bf16.gmra.mxu0 %v5143
    %v9676 = vpop.f32.mrf.mxu0
    %v9677 = vadd.f32 %v8924, %v9676
    %v9678 = vpop.f32.mrf.mxu0
    %v9679 = vpop.f32.mrf.mxu0
    %v9680 = vadd.f32 %v8927, %v9679
    %v9681 = vpop.f32.mrf.mxu0
    %9682 = vmatprep.mubr.bf16.mxu0 %v5154
    %9683 = vmatmul.mubr.bf16.gmra.mxu0 %v5153
    %v9684 = vpop.f32.mrf.mxu0
    %v9685 = vadd.f32 %v8932, %v9684
    %v9686 = vpop.f32.mrf.mxu0
    %v9687 = vpop.f32.mrf.mxu0
    %v9688 = vadd.f32 %v8935, %v9687
    %v9689 = vpop.f32.mrf.mxu0
    %9690 = vmatprep.mubr.bf16.mxu0 %v5164
    %9691 = vmatmul.mubr.bf16.gmra.mxu0 %v5163
    %v9692 = vpop.f32.mrf.mxu0
    %v9693 = vadd.f32 %v8940, %v9692
    %v9694 = vpop.f32.mrf.mxu0
    %v9695 = vpop.f32.mrf.mxu0
    %v9696 = vadd.f32 %v8943, %v9695
    %v9697 = vpop.f32.mrf.mxu0
    %9698 = vmatprep.mubr.bf16.mxu0 %v5174
    %9699 = vmatmul.mubr.bf16.gmra.mxu0 %v5173
    %v9700 = vpop.f32.mrf.mxu0
    %v9701 = vadd.f32 %v8948, %v9700
    %v9702 = vpop.f32.mrf.mxu0
    %v9703 = vpop.f32.mrf.mxu0
    %v9704 = vadd.f32 %v8951, %v9703
    %v9705 = vpop.f32.mrf.mxu0
    %9706 = vmatprep.mubr.bf16.mxu0 %v5184
    %9707 = vmatmul.mubr.bf16.gmra.mxu0 %v5183
    %v9708 = vpop.f32.mrf.mxu0
    %v9709 = vadd.f32 %v8956, %v9708
    %v9710 = vpop.f32.mrf.mxu0
    %v9711 = vpop.f32.mrf.mxu0
    %v9712 = vadd.f32 %v8959, %v9711
    %v9713 = vpop.f32.mrf.mxu0
    %9714 = vmatprep.mubr.bf16.mxu0 %v5194
    %9715 = vmatmul.mubr.bf16.gmra.mxu0 %v5193
    %v9716 = vpop.f32.mrf.mxu0
    %v9717 = vadd.f32 %v8964, %v9716
    %v9718 = vpop.f32.mrf.mxu0
    %v9719 = vpop.f32.mrf.mxu0
    %v9720 = vadd.f32 %v8967, %v9719
    %v9721 = vpop.f32.mrf.mxu0
    %9722 = vmatprep.mubr.bf16.mxu0 %v5204
    %9723 = vmatmul.mubr.bf16.gmra.mxu0 %v5203
    %v9724 = vpop.f32.mrf.mxu0
    %v9725 = vadd.f32 %v8972, %v9724
    %v9726 = vpop.f32.mrf.mxu0
    %v9727 = vpop.f32.mrf.mxu0
    %v9728 = vadd.f32 %v8975, %v9727
    %v9729 = vpop.f32.mrf.mxu0
    %9730 = vmatprep.mubr.bf16.mxu0 %v5214
    %9731 = vmatmul.mubr.bf16.gmra.mxu0 %v5213
    %v9732 = vpop.f32.mrf.mxu0
    %v9733 = vadd.f32 %v8980, %v9732
    %v9734 = vpop.f32.mrf.mxu0
    %v9735 = vpop.f32.mrf.mxu0
    %v9736 = vadd.f32 %v8983, %v9735
    %v9737 = vpop.f32.mrf.mxu0
    %9738 = vmatprep.mubr.bf16.mxu0 %v5224
    %9739 = vmatmul.mubr.bf16.gmra.mxu0 %v5223
    %v9740 = vpop.f32.mrf.mxu0
    %v9741 = vadd.f32 %v8988, %v9740
    %v9742 = vpop.f32.mrf.mxu0
    %v9743 = vpop.f32.mrf.mxu0
    %v9744 = vadd.f32 %v8991, %v9743
    %v9745 = vpop.f32.mrf.mxu0
    %9746 = vmatprep.mubr.bf16.mxu0 %v5234
    %9747 = vmatmul.mubr.bf16.gmra.mxu0 %v5233
    %v9748 = vpop.f32.mrf.mxu0
    %v9749 = vadd.f32 %v8996, %v9748
    %v9750 = vpop.f32.mrf.mxu0
    %v9751 = vpop.f32.mrf.mxu0
    %v9752 = vadd.f32 %v8999, %v9751
    %v9753 = vpop.f32.mrf.mxu0
    %9754 = vmatprep.mubr.bf16.mxu0 %v5244
    %9755 = vmatmul.mubr.bf16.gmra.mxu0 %v5243
    %v9756 = vpop.f32.mrf.mxu0
    %v9757 = vadd.f32 %v9004, %v9756
    %v9758 = vpop.f32.mrf.mxu0
    %v9759 = vpop.f32.mrf.mxu0
    %v9760 = vadd.f32 %v9007, %v9759
    %v9761 = vpop.f32.mrf.mxu0
    %9762 = vmatprep.mubr.bf16.mxu0 %v5254
    %9763 = vmatmul.mubr.bf16.gmra.mxu0 %v5253
    %v9764 = vpop.f32.mrf.mxu0
    %v9765 = vadd.f32 %v9012, %v9764
    %v9766 = vpop.f32.mrf.mxu0
    %v9767 = vpop.f32.mrf.mxu0
    %v9768 = vadd.f32 %v9015, %v9767
    %v9769 = vpop.f32.mrf.mxu0
    %9770 = vmatprep.mubr.bf16.mxu0 %v5264
    %9771 = vmatmul.mubr.bf16.gmra.mxu0 %v5263
    %v9772 = vpop.f32.mrf.mxu0
    %v9773 = vadd.f32 %v9020, %v9772
    %v9774 = vpop.f32.mrf.mxu0
    %v9775 = vpop.f32.mrf.mxu0
    %v9776 = vadd.f32 %v9023, %v9775
    %v9777 = vpop.f32.mrf.mxu0
    %9778 = vmatprep.mubr.bf16.mxu0 %v5274
    %9779 = vmatmul.mubr.bf16.gmra.mxu0 %v5273
    %v9780 = vpop.f32.mrf.mxu0
    %v9781 = vadd.f32 %v9028, %v9780
    %v9782 = vpop.f32.mrf.mxu0
    %v9783 = vpop.f32.mrf.mxu0
    %v9784 = vadd.f32 %v9031, %v9783
    %v9785 = vpop.f32.mrf.mxu0
    %9786 = vmatprep.mubr.bf16.mxu0 %v5284
    %9787 = vmatmul.mubr.bf16.gmra.mxu0 %v5283
    %v9788 = vpop.f32.mrf.mxu0
    %v9789 = vadd.f32 %v9036, %v9788
    %v9790 = vpop.f32.mrf.mxu0
    %v9791 = vpop.f32.mrf.mxu0
    %v9792 = vadd.f32 %v9039, %v9791
    %v9793 = vpop.f32.mrf.mxu0
    %9794 = vmatprep.mubr.bf16.mxu0 %v5294
    %9795 = vmatmul.mubr.bf16.gmra.mxu0 %v5293
    %v9796 = vpop.f32.mrf.mxu0
    %v9797 = vadd.f32 %v9044, %v9796
    %v9798 = vpop.f32.mrf.mxu0
    %v9799 = vpop.f32.mrf.mxu0
    %v9800 = vadd.f32 %v9047, %v9799
    %v9801 = vpop.f32.mrf.mxu0
    %9802 = vmatprep.mubr.bf16.mxu0 %v5304
    %9803 = vmatmul.mubr.bf16.gmra.mxu0 %v5303
    %v9804 = vpop.f32.mrf.mxu0
    %v9805 = vadd.f32 %v9052, %v9804
    %v9806 = vpop.f32.mrf.mxu0
    %v9807 = vpop.f32.mrf.mxu0
    %v9808 = vadd.f32 %v9055, %v9807
    %v9809 = vpop.f32.mrf.mxu0
    %9810 = vmatprep.mubr.bf16.mxu0 %v5314
    %9811 = vmatmul.mubr.bf16.gmra.mxu0 %v5313
    %v9812 = vpop.f32.mrf.mxu0
    %v9813 = vadd.f32 %v9060, %v9812
    %v9814 = vpop.f32.mrf.mxu0
    %v9815 = vpop.f32.mrf.mxu0
    %v9816 = vadd.f32 %v9063, %v9815
    %v9817 = vpop.f32.mrf.mxu0
    %9818 = vmatprep.mubr.bf16.mxu0 %v5324
    %9819 = vmatmul.mubr.bf16.gmra.mxu0 %v5323
    %v9820 = vpop.f32.mrf.mxu0
    %v9821 = vadd.f32 %v9068, %v9820
    %v9822 = vpop.f32.mrf.mxu0
    %v9823 = vpop.f32.mrf.mxu0
    %v9824 = vadd.f32 %v9071, %v9823
    %v9825 = vpop.f32.mrf.mxu0
    %9826 = vmatprep.mubr.bf16.mxu0 %v5334
    %9827 = vmatmul.mubr.bf16.gmra.mxu0 %v5333
    %v9828 = vpop.f32.mrf.mxu0
    %v9829 = vadd.f32 %v9076, %v9828
    %v9830 = vpop.f32.mrf.mxu0
    %v9831 = vpop.f32.mrf.mxu0
    %v9832 = vadd.f32 %v9079, %v9831
    %v9833 = vpop.f32.mrf.mxu0
    %9834 = vmatprep.mubr.bf16.mxu0 %v5344
    %9835 = vmatmul.mubr.bf16.gmra.mxu0 %v5343
    %v9836 = vpop.f32.mrf.mxu0
    %v9837 = vadd.f32 %v9084, %v9836
    %v9838 = vpop.f32.mrf.mxu0
    %v9839 = vpop.f32.mrf.mxu0
    %v9840 = vadd.f32 %v9087, %v9839
    %v9841 = vpop.f32.mrf.mxu0
    %9842 = vmatprep.mubr.bf16.mxu0 %v5354
    %9843 = vmatmul.mubr.bf16.gmra.mxu0 %v5353
    %v9844 = vpop.f32.mrf.mxu0
    %v9845 = vadd.f32 %v9092, %v9844
    %v9846 = vpop.f32.mrf.mxu0
    %v9847 = vpop.f32.mrf.mxu0
    %v9848 = vadd.f32 %v9095, %v9847
    %v9849 = vpop.f32.mrf.mxu0
    %9850 = vmatprep.mubr.bf16.mxu0 %v5364
    %9851 = vmatmul.mubr.bf16.gmra.mxu0 %v5363
    %v9852 = vpop.f32.mrf.mxu0
    %v9853 = vadd.f32 %v9100, %v9852
    %v9854 = vpop.f32.mrf.mxu0
    %v9855 = vpop.f32.mrf.mxu0
    %v9856 = vadd.f32 %v9103, %v9855
    %v9857 = vpop.f32.mrf.mxu0
    %9858 = vmatprep.mubr.bf16.mxu0 %v5374
    %9859 = vmatmul.mubr.bf16.gmra.mxu0 %v5373
    %v9860 = vpop.f32.mrf.mxu0
    %v9861 = vadd.f32 %v9108, %v9860
    %v9862 = vpop.f32.mrf.mxu0
    %v9863 = vpop.f32.mrf.mxu0
    %v9864 = vadd.f32 %v9111, %v9863
    %v9865 = vpop.f32.mrf.mxu0
    %9866 = vmatprep.mubr.bf16.mxu0 %v5384
    %9867 = vmatmul.mubr.bf16.gmra.mxu0 %v5383
    %v9868 = vpop.f32.mrf.mxu0
    %v9869 = vadd.f32 %v9116, %v9868
    %v9870 = vpop.f32.mrf.mxu0
    %v9871 = vpop.f32.mrf.mxu0
    %v9872 = vadd.f32 %v9119, %v9871
    %v9873 = vpop.f32.mrf.mxu0
    %9874 = vmatprep.mubr.bf16.mxu0 %v5394
    %9875 = vmatmul.mubr.bf16.gmra.mxu0 %v5393
    %v9876 = vpop.f32.mrf.mxu0
    %v9877 = vadd.f32 %v9124, %v9876
    %v9878 = vpop.f32.mrf.mxu0
    %v9879 = vpop.f32.mrf.mxu0
    %v9880 = vadd.f32 %v9127, %v9879
    %v9881 = vpop.f32.mrf.mxu0
    %9882 = vmatprep.mubr.bf16.mxu0 %v5404
    %9883 = vmatmul.mubr.bf16.gmra.mxu0 %v5403
    %v9884 = vpop.f32.mrf.mxu0
    %v9885 = vadd.f32 %v9132, %v9884
    %v9886 = vpop.f32.mrf.mxu0
    %v9887 = vpop.f32.mrf.mxu0
    %v9888 = vadd.f32 %v9135, %v9887
    %v9889 = vpop.f32.mrf.mxu0
    %9890 = vmatprep.mubr.bf16.mxu0 %v5414
    %9891 = vmatmul.mubr.bf16.gmra.mxu0 %v5413
    %v9892 = vpop.f32.mrf.mxu0
    %v9893 = vadd.f32 %v9140, %v9892
    %v9894 = vpop.f32.mrf.mxu0
    %v9895 = vpop.f32.mrf.mxu0
    %v9896 = vadd.f32 %v9143, %v9895
    %v9897 = vpop.f32.mrf.mxu0
    %9898 = vmatprep.mubr.bf16.mxu0 %v5424
    %9899 = vmatmul.mubr.bf16.gmra.mxu0 %v5423
    %v9900 = vpop.f32.mrf.mxu0
    %v9901 = vadd.f32 %v9148, %v9900
    %v9902 = vpop.f32.mrf.mxu0
    %v9903 = vpop.f32.mrf.mxu0
    %v9904 = vadd.f32 %v9151, %v9903
    %v9905 = vpop.f32.mrf.mxu0
    %9906 = vmatprep.mubr.bf16.mxu0 %v5434
    %9907 = vmatmul.mubr.bf16.gmra.mxu0 %v5433
    %v9908 = vpop.f32.mrf.mxu0
    %v9909 = vadd.f32 %v9156, %v9908
    %v9910 = vpop.f32.mrf.mxu0
    %v9911 = vpop.f32.mrf.mxu0
    %v9912 = vadd.f32 %v9159, %v9911
    %v9913 = vpop.f32.mrf.mxu0
    %9914 = vmatprep.mubr.bf16.mxu0 %v5444
    %9915 = vmatmul.mubr.bf16.gmra.mxu0 %v5443
    %v9916 = vpop.f32.mrf.mxu0
    %v9917 = vadd.f32 %v9164, %v9916
    %v9918 = vpop.f32.mrf.mxu0
    %v9919 = vpop.f32.mrf.mxu0
    %v9920 = vadd.f32 %v9167, %v9919
    %v9921 = vpop.f32.mrf.mxu0
    %9922 = vmatprep.mubr.bf16.mxu0 %v5454
    %9923 = vmatmul.mubr.bf16.gmra.mxu0 %v5453
    %v9924 = vpop.f32.mrf.mxu0
    %v9925 = vadd.f32 %v9172, %v9924
    %v9926 = vpop.f32.mrf.mxu0
    %v9927 = vpop.f32.mrf.mxu0
    %v9928 = vadd.f32 %v9175, %v9927
    %v9929 = vpop.f32.mrf.mxu0
    %9930 = vmatprep.mubr.bf16.mxu0 %v5464
    %9931 = vmatmul.mubr.bf16.gmra.mxu0 %v5463
    %v9932 = vpop.f32.mrf.mxu0
    %v9933 = vadd.f32 %v9180, %v9932
    %v9934 = vpop.f32.mrf.mxu0
    %v9935 = vpop.f32.mrf.mxu0
    %v9936 = vadd.f32 %v9183, %v9935
    %v9937 = vpop.f32.mrf.mxu0
    %9938 = vmatprep.mubr.bf16.mxu0 %v5474
    %9939 = vmatmul.mubr.bf16.gmra.mxu0 %v5473
    %v9940 = vpop.f32.mrf.mxu0
    %v9941 = vadd.f32 %v9188, %v9940
    %v9942 = vpop.f32.mrf.mxu0
    %v9943 = vpop.f32.mrf.mxu0
    %v9944 = vadd.f32 %v9191, %v9943
    %v9945 = vpop.f32.mrf.mxu0
    %9946 = vmatprep.mubr.bf16.mxu0 %v5484
    %9947 = vmatmul.mubr.bf16.gmra.mxu0 %v5483
    %v9948 = vpop.f32.mrf.mxu0
    %v9949 = vadd.f32 %v9196, %v9948
    %v9950 = vpop.f32.mrf.mxu0
    %v9951 = vpop.f32.mrf.mxu0
    %v9952 = vadd.f32 %v9199, %v9951
    %v9953 = vpop.f32.mrf.mxu0
    %9954 = vmatprep.mubr.bf16.mxu0 %v5494
    %9955 = vmatmul.mubr.bf16.gmra.mxu0 %v5493
    %v9956 = vpop.f32.mrf.mxu0
    %v9957 = vadd.f32 %v9204, %v9956
    %v9958 = vpop.f32.mrf.mxu0
    %v9959 = vpop.f32.mrf.mxu0
    %v9960 = vadd.f32 %v9207, %v9959
    %v9961 = vpop.f32.mrf.mxu0
    %9962 = vmatprep.mubr.bf16.mxu0 %v5504
    %9963 = vmatmul.mubr.bf16.gmra.mxu0 %v5503
    %v9964 = vpop.f32.mrf.mxu0
    %v9965 = vadd.f32 %v9212, %v9964
    %v9966 = vpop.f32.mrf.mxu0
    %v9967 = vpop.f32.mrf.mxu0
    %v9968 = vadd.f32 %v9215, %v9967
    %v9969 = vpop.f32.mrf.mxu0
    %9970 = vmatprep.mubr.bf16.mxu0 %v5514
    %9971 = vmatmul.mubr.bf16.gmra.mxu0 %v5513
    %v9972 = vpop.f32.mrf.mxu0
    %v9973 = vadd.f32 %v9220, %v9972
    %v9974 = vpop.f32.mrf.mxu0
    %v9975 = vpop.f32.mrf.mxu0
    %v9976 = vadd.f32 %v9223, %v9975
    %v9977 = vpop.f32.mrf.mxu0
    %9978 = vmatprep.mubr.bf16.mxu0 %v5524
    %9979 = vmatmul.mubr.bf16.gmra.mxu0 %v5523
    %v9980 = vpop.f32.mrf.mxu0
    %v9981 = vadd.f32 %v9228, %v9980
    %v9982 = vpop.f32.mrf.mxu0
    %v9983 = vpop.f32.mrf.mxu0
    %v9984 = vadd.f32 %v9231, %v9983
    %v9985 = vpop.f32.mrf.mxu0
    %9986 = vmatprep.mubr.bf16.mxu0 %v5534
    %9987 = vmatmul.mubr.bf16.gmra.mxu0 %v5533
    %v9988 = vpop.f32.mrf.mxu0
    %v9989 = vadd.f32 %v9236, %v9988
    %v9990 = vpop.f32.mrf.mxu0
    %v9991 = vpop.f32.mrf.mxu0
    %v9992 = vadd.f32 %v9239, %v9991
    %v9993 = vpop.f32.mrf.mxu0
    %9994 = vmatprep.mubr.bf16.mxu0 %v5544
    %9995 = vmatmul.mubr.bf16.gmra.mxu0 %v5543
    %v9996 = vpop.f32.mrf.mxu0
    %v9997 = vadd.f32 %v9244, %v9996
    %v9998 = vpop.f32.mrf.mxu0
    %v9999 = vpop.f32.mrf.mxu0
    %v10000 = vadd.f32 %v9247, %v9999
    %v10001 = vpop.f32.mrf.mxu0
    %10002 = vmatprep.mubr.bf16.mxu0 %v5554
    %10003 = vmatmul.mubr.bf16.gmra.mxu0 %v5553
    %v10004 = vpop.f32.mrf.mxu0
    %v10005 = vadd.f32 %v9252, %v10004
    %v10006 = vpop.f32.mrf.mxu0
    %v10007 = vpop.f32.mrf.mxu0
    %v10008 = vadd.f32 %v9255, %v10007
    %v10009 = vpop.f32.mrf.mxu0
    %10010 = vmatprep.mubr.bf16.mxu0 %v5564
    %10011 = vmatmul.mubr.bf16.gmra.mxu0 %v5563
    %v10012 = vpop.f32.mrf.mxu0
    %v10013 = vadd.f32 %v9260, %v10012
    %v10014 = vpop.f32.mrf.mxu0
    %v10015 = vpop.f32.mrf.mxu0
    %v10016 = vadd.f32 %v9263, %v10015
    %v10017 = vpop.f32.mrf.mxu0
    %10018 = vmatprep.mubr.bf16.mxu0 %v5574
    %10019 = vmatmul.mubr.bf16.gmra.mxu0 %v5573
    %v10020 = vpop.f32.mrf.mxu0
    %v10021 = vadd.f32 %v9268, %v10020
    %v10022 = vpop.f32.mrf.mxu0
    %v10023 = vpop.f32.mrf.mxu0
    %v10024 = vadd.f32 %v9271, %v10023
    %v10025 = vpop.f32.mrf.mxu0
    %10026 = vmatprep.mubr.bf16.mxu0 %v5584
    %10027 = vmatmul.mubr.bf16.gmra.mxu0 %v5583
    %v10028 = vpop.f32.mrf.mxu0
    %v10029 = vadd.f32 %v9276, %v10028
    %v10030 = vpop.f32.mrf.mxu0
    %v10031 = vpop.f32.mrf.mxu0
    %v10032 = vadd.f32 %v9279, %v10031
    %v10033 = vpop.f32.mrf.mxu0
    %10034 = vmatprep.mubr.bf16.mxu0 %v5594
    %10035 = vmatmul.mubr.bf16.gmra.mxu0 %v5593
    %v10036 = vpop.f32.mrf.mxu0
    %v10037 = vadd.f32 %v9284, %v10036
    %v10038 = vpop.f32.mrf.mxu0
    %v10039 = vpop.f32.mrf.mxu0
    %v10040 = vadd.f32 %v9287, %v10039
    %v10041 = vpop.f32.mrf.mxu0
    %10042 = vmatprep.mubr.bf16.mxu0 %v5604
    %10043 = vmatmul.mubr.bf16.gmra.mxu0 %v5603
    %v10044 = vpop.f32.mrf.mxu0
    %v10045 = vadd.f32 %v9292, %v10044
    %v10046 = vpop.f32.mrf.mxu0
    %v10047 = vpop.f32.mrf.mxu0
    %v10048 = vadd.f32 %v9295, %v10047
    %v10049 = vpop.f32.mrf.mxu0
    %10050 = vmatprep.mubr.bf16.mxu0 %v5614
    %10051 = vmatmul.mubr.bf16.gmra.mxu0 %v5613
    %v10052 = vpop.f32.mrf.mxu0
    %v10053 = vadd.f32 %v9300, %v10052
    %v10054 = vpop.f32.mrf.mxu0
    %v10055 = vpop.f32.mrf.mxu0
    %v10056 = vadd.f32 %v9303, %v10055
    %v10057 = vpop.f32.mrf.mxu0
    %10058 = vmatprep.mubr.bf16.mxu0 %v5624
    %10059 = vmatmul.mubr.bf16.gmra.mxu0 %v5623
    %v10060 = vpop.f32.mrf.mxu0
    %v10061 = vadd.f32 %v9308, %v10060
    %v10062 = vpop.f32.mrf.mxu0
    %v10063 = vpop.f32.mrf.mxu0
    %v10064 = vadd.f32 %v9311, %v10063
    %v10065 = vpop.f32.mrf.mxu0
    %10066 = vmatprep.mubr.bf16.mxu0 %v5634
    %10067 = vmatmul.mubr.bf16.gmra.mxu0 %v5633
    %v10068 = vpop.f32.mrf.mxu0
    %v10069 = vadd.f32 %v9316, %v10068
    %v10070 = vpop.f32.mrf.mxu0
    %v10071 = vpop.f32.mrf.mxu0
    %v10072 = vadd.f32 %v9319, %v10071
    %v10073 = vpop.f32.mrf.mxu0
    %10074 = vmatprep.mubr.bf16.mxu0 %v5644
    %10075 = vmatmul.mubr.bf16.gmra.mxu0 %v5643
    %v10076 = vpop.f32.mrf.mxu0
    %v10077 = vadd.f32 %v9324, %v10076
    %v10078 = vpop.f32.mrf.mxu0
    %v10079 = vpop.f32.mrf.mxu0
    %v10080 = vadd.f32 %v9327, %v10079
    %v10081 = vpop.f32.mrf.mxu0
    %10082 = vmatprep.mubr.bf16.mxu0 %v5654
    %10083 = vmatmul.mubr.bf16.gmra.mxu0 %v5653
    %v10084 = vpop.f32.mrf.mxu0
    %v10085 = vadd.f32 %v9332, %v10084
    %v10086 = vpop.f32.mrf.mxu0
    %v10087 = vpop.f32.mrf.mxu0
    %v10088 = vadd.f32 %v9335, %v10087
    %v10089 = vpop.f32.mrf.mxu0
    %10090 = vmatprep.mubr.bf16.mxu0 %v5664
    %10091 = vmatmul.mubr.bf16.gmra.mxu0 %v5663
    %v10092 = vpop.f32.mrf.mxu0
    %v10093 = vadd.f32 %v9340, %v10092
    %v10094 = vpop.f32.mrf.mxu0
    %v10095 = vpop.f32.mrf.mxu0
    %v10096 = vadd.f32 %v9343, %v10095
    %v10097 = vpop.f32.mrf.mxu0
    %10098 = vmatprep.mubr.bf16.mxu0 %v5674
    %10099 = vmatmul.mubr.bf16.gmra.mxu0 %v5673
    %v10100 = vpop.f32.mrf.mxu0
    %v10101 = vadd.f32 %v9348, %v10100
    %v10102 = vpop.f32.mrf.mxu0
    %v10103 = vpop.f32.mrf.mxu0
    %v10104 = vadd.f32 %v9351, %v10103
    %v10105 = vpop.f32.mrf.mxu0
    %10106 = vmatprep.mubr.bf16.mxu0 %v5684
    %10107 = vmatmul.mubr.bf16.gmra.mxu0 %v5683
    %v10108 = vpop.f32.mrf.mxu0
    %v10109 = vadd.f32 %v9356, %v10108
    %v10110 = vpop.f32.mrf.mxu0
    %v10111 = vpop.f32.mrf.mxu0
    %v10112 = vadd.f32 %v9359, %v10111
    %v10113 = vpop.f32.mrf.mxu0
    %10114 = vmatprep.mubr.bf16.mxu0 %v5694
    %10115 = vmatmul.mubr.bf16.gmra.mxu0 %v5693
    %v10116 = vpop.f32.mrf.mxu0
    %v10117 = vadd.f32 %v9364, %v10116
    %v10118 = vpop.f32.mrf.mxu0
    %v10119 = vpop.f32.mrf.mxu0
    %v10120 = vadd.f32 %v9367, %v10119
    %v10121 = vpop.f32.mrf.mxu0
    %10122 = vmatprep.mubr.bf16.mxu0 %v5704
    %10123 = vmatmul.mubr.bf16.gmra.mxu0 %v5703
    %v10124 = vpop.f32.mrf.mxu0
    %v10125 = vadd.f32 %v9372, %v10124
    %v10126 = vpop.f32.mrf.mxu0
    %v10127 = vpop.f32.mrf.mxu0
    %v10128 = vadd.f32 %v9375, %v10127
    %v10129 = vpop.f32.mrf.mxu0
    %10130 = vmatprep.mubr.bf16.mxu0 %v5714
    %10131 = vmatmul.mubr.bf16.gmra.mxu0 %v5713
    %v10132 = vpop.f32.mrf.mxu0
    %v10133 = vadd.f32 %v9380, %v10132
    %v10134 = vpop.f32.mrf.mxu0
    %v10135 = vpop.f32.mrf.mxu0
    %v10136 = vadd.f32 %v9383, %v10135
    %v10137 = vpop.f32.mrf.mxu0
    %10138 = vmatprep.mubr.bf16.mxu0 %v5724
    %10139 = vmatmul.mubr.bf16.gmra.mxu0 %v5723
    %v10140 = vpop.f32.mrf.mxu0
    %v10141 = vadd.f32 %v9388, %v10140
    %v10142 = vpop.f32.mrf.mxu0
    %v10143 = vpop.f32.mrf.mxu0
    %v10144 = vadd.f32 %v9391, %v10143
    %v10145 = vpop.f32.mrf.mxu0
    %10146 = vmatprep.mubr.bf16.mxu0 %v5734
    %10147 = vmatmul.mubr.bf16.gmra.mxu0 %v5733
    %v10148 = vpop.f32.mrf.mxu0
    %v10149 = vadd.f32 %v9396, %v10148
    %v10150 = vpop.f32.mrf.mxu0
    %v10151 = vpop.f32.mrf.mxu0
    %v10152 = vadd.f32 %v9399, %v10151
    %v10153 = vpop.f32.mrf.mxu0
    %10154 = vmatprep.mubr.bf16.mxu0 %v5744
    %10155 = vmatmul.mubr.bf16.gmra.mxu0 %v5743
    %v10156 = vpop.f32.mrf.mxu0
    %v10157 = vadd.f32 %v9404, %v10156
    %v10158 = vpop.f32.mrf.mxu0
    %v10159 = vpop.f32.mrf.mxu0
    %v10160 = vadd.f32 %v9407, %v10159
    %v10161 = vpop.f32.mrf.mxu0
    %10162 = vmatprep.mubr.bf16.mxu0 %v5754
    %10163 = vmatmul.mubr.bf16.gmra.mxu0 %v5753
    %v10164 = vpop.f32.mrf.mxu0
    %v10165 = vadd.f32 %v9412, %v10164
    %v10166 = vpop.f32.mrf.mxu0
    %v10167 = vpop.f32.mrf.mxu0
    %v10168 = vadd.f32 %v9415, %v10167
    %v10169 = vpop.f32.mrf.mxu0
    %10170 = vmatprep.mubr.bf16.mxu0 %v5764
    %10171 = vmatmul.mubr.bf16.gmra.mxu0 %v5763
    %v10172 = vpop.f32.mrf.mxu0
    %v10173 = vadd.f32 %v9420, %v10172
    %v10174 = vpop.f32.mrf.mxu0
    %v10175 = vpop.f32.mrf.mxu0
    %v10176 = vadd.f32 %v9423, %v10175
    %v10177 = vpop.f32.mrf.mxu0
    %10178 = vmatprep.mubr.bf16.mxu0 %v5774
    %10179 = vmatmul.mubr.bf16.gmra.mxu0 %v5773
    %v10180 = vpop.f32.mrf.mxu0
    %v10181 = vadd.f32 %v9428, %v10180
    %v10182 = vpop.f32.mrf.mxu0
    %v10183 = vpop.f32.mrf.mxu0
    %v10184 = vadd.f32 %v9431, %v10183
    %v10185 = vpop.f32.mrf.mxu0
    %10186 = vmatprep.mubr.bf16.mxu0 %v5784
    %10187 = vmatmul.mubr.bf16.gmra.mxu0 %v5783
    %v10188 = vpop.f32.mrf.mxu0
    %v10189 = vadd.f32 %v9436, %v10188
    %v10190 = vpop.f32.mrf.mxu0
    %v10191 = vpop.f32.mrf.mxu0
    %v10192 = vadd.f32 %v9439, %v10191
    %v10193 = vpop.f32.mrf.mxu0
    %10194 = vmatprep.mubr.bf16.mxu0 %v5794
    %10195 = vmatmul.mubr.bf16.gmra.mxu0 %v5793
    %v10196 = vpop.f32.mrf.mxu0
    %v10197 = vadd.f32 %v9444, %v10196
    %v10198 = vpop.f32.mrf.mxu0
    %v10199 = vpop.f32.mrf.mxu0
    %v10200 = vadd.f32 %v9447, %v10199
    %v10201 = vpop.f32.mrf.mxu0
    %10202 = vmatprep.mubr.bf16.mxu0 %v5804
    %10203 = vmatmul.mubr.bf16.gmra.mxu0 %v5803
    %v10204 = vpop.f32.mrf.mxu0
    %v10205 = vadd.f32 %v9452, %v10204
    %v10206 = vpop.f32.mrf.mxu0
    %v10207 = vpop.f32.mrf.mxu0
    %v10208 = vadd.f32 %v9455, %v10207
    %v10209 = vpop.f32.mrf.mxu0
    %10210 = vmatprep.mubr.bf16.mxu0 %v5814
    %10211 = vmatmul.mubr.bf16.gmra.mxu0 %v5813
    %v10212 = vpop.f32.mrf.mxu0
    %v10213 = vadd.f32 %v9460, %v10212
    %v10214 = vpop.f32.mrf.mxu0
    %v10215 = vpop.f32.mrf.mxu0
    %v10216 = vadd.f32 %v9463, %v10215
    %v10217 = vpop.f32.mrf.mxu0
    %10218 = vmatprep.mubr.bf16.mxu0 %v5824
    %10219 = vmatmul.mubr.bf16.gmra.mxu0 %v5823
    %v10220 = vpop.f32.mrf.mxu0
    %v10221 = vadd.f32 %v9468, %v10220
    %v10222 = vpop.f32.mrf.mxu0
    %v10223 = vpop.f32.mrf.mxu0
    %v10224 = vadd.f32 %v9471, %v10223
    %v10225 = vpop.f32.mrf.mxu0
    %10226 = vmatprep.mubr.bf16.mxu0 %v5834
    %10227 = vmatmul.mubr.bf16.gmra.mxu0 %v5833
    %v10228 = vpop.f32.mrf.mxu0
    %v10229 = vadd.f32 %v9476, %v10228
    %v10230 = vpop.f32.mrf.mxu0
    %v10231 = vpop.f32.mrf.mxu0
    %v10232 = vadd.f32 %v9479, %v10231
    %v10233 = vpop.f32.mrf.mxu0
    %10234 = vmatprep.mubr.bf16.mxu0 %v5844
    %10235 = vmatmul.mubr.bf16.gmra.mxu0 %v5843
    %v10236 = vpop.f32.mrf.mxu0
    %v10237 = vadd.f32 %v9484, %v10236
    %v10238 = vpop.f32.mrf.mxu0
    %v10239 = vpop.f32.mrf.mxu0
    %v10240 = vadd.f32 %v9487, %v10239
    %v10241 = vpop.f32.mrf.mxu0
    %10242 = vmatprep.mubr.bf16.mxu0 %v5854
    %10243 = vmatmul.mubr.bf16.gmra.mxu0 %v5853
    %v10244 = vpop.f32.mrf.mxu0
    %v10245 = vadd.f32 %v9492, %v10244
    %v10246 = vpop.f32.mrf.mxu0
    %v10247 = vpop.f32.mrf.mxu0
    %v10248 = vadd.f32 %v9495, %v10247
    %v10249 = vpop.f32.mrf.mxu0
    %10250 = vmatprep.mubr.bf16.mxu0 %v5864
    %10251 = vmatmul.mubr.bf16.gmra.mxu0 %v5863
    %v10252 = vpop.f32.mrf.mxu0
    %v10253 = vadd.f32 %v9500, %v10252
    %v10254 = vpop.f32.mrf.mxu0
    %v10255 = vpop.f32.mrf.mxu0
    %v10256 = vadd.f32 %v9503, %v10255
    %v10257 = vpop.f32.mrf.mxu0
    %10258 = vdwg.mxu0
    %10259 = vmatprep.subr.bf16.mxu0 0
    %10260 = vmatpush1.bf16.msra.mxu0 %v7158
    %10261 = vmatprep.subr.bf16.mxu0 0
    %10262 = vmatpush1.bf16.msra.mxu0 %v7157
    %10263 = vmatprep.subr.bf16.mxu0 0
    %10264 = vmatpush1.bf16.msra.mxu0 %v7156
    %10265 = vmatprep.subr.bf16.mxu0 0
    %10266 = vmatpush1.bf16.msra.mxu0 %v7155
    %10267 = vmatprep.subr.bf16.mxu0 0
    %10268 = vmatpush1.bf16.msra.mxu0 %v7154
    %10269 = vmatprep.subr.bf16.mxu0 0
    %10270 = vmatpush1.bf16.msra.mxu0 %v7153
    %10271 = vmatprep.subr.bf16.mxu0 0
    %10272 = vmatpush1.bf16.msra.mxu0 %v7152
    %10273 = vmatprep.subr.bf16.mxu0 0
    %10274 = vmatpush1.bf16.msra.mxu0 %v7151
    %10275 = vmatprep.subr.bf16.mxu0 0
    %10276 = vmatpush2.bf16.msra.mxu0 %v7166
    %10277 = vmatprep.subr.bf16.mxu0 0
    %10278 = vmatpush2.bf16.msra.mxu0 %v7165
    %10279 = vmatprep.subr.bf16.mxu0 0
    %10280 = vmatpush2.bf16.msra.mxu0 %v7164
    %10281 = vmatprep.subr.bf16.mxu0 0
    %10282 = vmatpush2.bf16.msra.mxu0 %v7163
    %10283 = vmatprep.subr.bf16.mxu0 0
    %10284 = vmatpush2.bf16.msra.mxu0 %v7162
    %10285 = vmatprep.subr.bf16.mxu0 0
    %10286 = vmatpush2.bf16.msra.mxu0 %v7161
    %10287 = vmatprep.subr.bf16.mxu0 0
    %10288 = vmatpush2.bf16.msra.mxu0 %v7160
    %10289 = vmatprep.subr.bf16.mxu0 0
    %10290 = vmatpush2.bf16.msra.mxu0 %v7159
    %10291 = vmatprep.mubr.bf16.mxu0 %v4976
    %10292 = vmatmul.mubr.bf16.gmra.mxu0 %v4975
    %v10293 = vpop.f32.mrf.mxu0
    %v10294 = vadd.f32 %v9541, %v10293
    %v10295 = vpop.f32.mrf.mxu0
    %v10296 = vpop.f32.mrf.mxu0
    %v10297 = vadd.f32 %v9544, %v10296
    %v10298 = vpop.f32.mrf.mxu0
    %10299 = vmatprep.mubr.bf16.mxu0 %v4986
    %10300 = vmatmul.mubr.bf16.gmra.mxu0 %v4985
    %v10301 = vpop.f32.mrf.mxu0
    %v10302 = vadd.f32 %v9549, %v10301
    %v10303 = vpop.f32.mrf.mxu0
    %v10304 = vpop.f32.mrf.mxu0
    %v10305 = vadd.f32 %v9552, %v10304
    %v10306 = vpop.f32.mrf.mxu0
    %10307 = vmatprep.mubr.bf16.mxu0 %v4996
    %10308 = vmatmul.mubr.bf16.gmra.mxu0 %v4995
    %v10309 = vpop.f32.mrf.mxu0
    %v10310 = vadd.f32 %v9557, %v10309
    %v10311 = vpop.f32.mrf.mxu0
    %v10312 = vpop.f32.mrf.mxu0
    %v10313 = vadd.f32 %v9560, %v10312
    %v10314 = vpop.f32.mrf.mxu0
    %10315 = vmatprep.mubr.bf16.mxu0 %v5006
    %10316 = vmatmul.mubr.bf16.gmra.mxu0 %v5005
    %v10317 = vpop.f32.mrf.mxu0
    %v10318 = vadd.f32 %v9565, %v10317
    %v10319 = vpop.f32.mrf.mxu0
    %v10320 = vpop.f32.mrf.mxu0
    %v10321 = vadd.f32 %v9568, %v10320
    %v10322 = vpop.f32.mrf.mxu0
    %10323 = vmatprep.mubr.bf16.mxu0 %v5016
    %10324 = vmatmul.mubr.bf16.gmra.mxu0 %v5015
    %v10325 = vpop.f32.mrf.mxu0
    %v10326 = vadd.f32 %v9573, %v10325
    %v10327 = vpop.f32.mrf.mxu0
    %v10328 = vpop.f32.mrf.mxu0
    %v10329 = vadd.f32 %v9576, %v10328
    %v10330 = vpop.f32.mrf.mxu0
    %10331 = vmatprep.mubr.bf16.mxu0 %v5026
    %10332 = vmatmul.mubr.bf16.gmra.mxu0 %v5025
    %v10333 = vpop.f32.mrf.mxu0
    %v10334 = vadd.f32 %v9581, %v10333
    %v10335 = vpop.f32.mrf.mxu0
    %v10336 = vpop.f32.mrf.mxu0
    %v10337 = vadd.f32 %v9584, %v10336
    %v10338 = vpop.f32.mrf.mxu0
    %10339 = vmatprep.mubr.bf16.mxu0 %v5036
    %10340 = vmatmul.mubr.bf16.gmra.mxu0 %v5035
    %v10341 = vpop.f32.mrf.mxu0
    %v10342 = vadd.f32 %v9589, %v10341
    %v10343 = vpop.f32.mrf.mxu0
    %v10344 = vpop.f32.mrf.mxu0
    %v10345 = vadd.f32 %v9592, %v10344
    %v10346 = vpop.f32.mrf.mxu0
    %10347 = vmatprep.mubr.bf16.mxu0 %v5046
    %10348 = vmatmul.mubr.bf16.gmra.mxu0 %v5045
    %v10349 = vpop.f32.mrf.mxu0
    %v10350 = vadd.f32 %v9597, %v10349
    %v10351 = vpop.f32.mrf.mxu0
    %v10352 = vpop.f32.mrf.mxu0
    %v10353 = vadd.f32 %v9600, %v10352
    %v10354 = vpop.f32.mrf.mxu0
    %10355 = vmatprep.mubr.bf16.mxu0 %v5056
    %10356 = vmatmul.mubr.bf16.gmra.mxu0 %v5055
    %v10357 = vpop.f32.mrf.mxu0
    %v10358 = vadd.f32 %v9605, %v10357
    %v10359 = vpop.f32.mrf.mxu0
    %v10360 = vpop.f32.mrf.mxu0
    %v10361 = vadd.f32 %v9608, %v10360
    %v10362 = vpop.f32.mrf.mxu0
    %10363 = vmatprep.mubr.bf16.mxu0 %v5066
    %10364 = vmatmul.mubr.bf16.gmra.mxu0 %v5065
    %v10365 = vpop.f32.mrf.mxu0
    %v10366 = vadd.f32 %v9613, %v10365
    %v10367 = vpop.f32.mrf.mxu0
    %v10368 = vpop.f32.mrf.mxu0
    %v10369 = vadd.f32 %v9616, %v10368
    %v10370 = vpop.f32.mrf.mxu0
    %10371 = vmatprep.mubr.bf16.mxu0 %v5076
    %10372 = vmatmul.mubr.bf16.gmra.mxu0 %v5075
    %v10373 = vpop.f32.mrf.mxu0
    %v10374 = vadd.f32 %v9621, %v10373
    %v10375 = vpop.f32.mrf.mxu0
    %v10376 = vpop.f32.mrf.mxu0
    %v10377 = vadd.f32 %v9624, %v10376
    %v10378 = vpop.f32.mrf.mxu0
    %10379 = vmatprep.mubr.bf16.mxu0 %v5086
    %10380 = vmatmul.mubr.bf16.gmra.mxu0 %v5085
    %v10381 = vpop.f32.mrf.mxu0
    %v10382 = vadd.f32 %v9629, %v10381
    %v10383 = vpop.f32.mrf.mxu0
    %v10384 = vpop.f32.mrf.mxu0
    %v10385 = vadd.f32 %v9632, %v10384
    %v10386 = vpop.f32.mrf.mxu0
    %10387 = vmatprep.mubr.bf16.mxu0 %v5096
    %10388 = vmatmul.mubr.bf16.gmra.mxu0 %v5095
    %v10389 = vpop.f32.mrf.mxu0
    %v10390 = vadd.f32 %v9637, %v10389
    %v10391 = vpop.f32.mrf.mxu0
    %v10392 = vpop.f32.mrf.mxu0
    %v10393 = vadd.f32 %v9640, %v10392
    %v10394 = vpop.f32.mrf.mxu0
    %10395 = vmatprep.mubr.bf16.mxu0 %v5106
    %10396 = vmatmul.mubr.bf16.gmra.mxu0 %v5105
    %v10397 = vpop.f32.mrf.mxu0
    %v10398 = vadd.f32 %v9645, %v10397
    %v10399 = vpop.f32.mrf.mxu0
    %v10400 = vpop.f32.mrf.mxu0
    %v10401 = vadd.f32 %v9648, %v10400
    %v10402 = vpop.f32.mrf.mxu0
    %10403 = vmatprep.mubr.bf16.mxu0 %v5116
    %10404 = vmatmul.mubr.bf16.gmra.mxu0 %v5115
    %v10405 = vpop.f32.mrf.mxu0
    %v10406 = vadd.f32 %v9653, %v10405
    %v10407 = vpop.f32.mrf.mxu0
    %v10408 = vpop.f32.mrf.mxu0
    %v10409 = vadd.f32 %v9656, %v10408
    %v10410 = vpop.f32.mrf.mxu0
    %10411 = vmatprep.mubr.bf16.mxu0 %v5126
    %10412 = vmatmul.mubr.bf16.gmra.mxu0 %v5125
    %v10413 = vpop.f32.mrf.mxu0
    %v10414 = vadd.f32 %v9661, %v10413
    %v10415 = vpop.f32.mrf.mxu0
    %v10416 = vpop.f32.mrf.mxu0
    %v10417 = vadd.f32 %v9664, %v10416
    %v10418 = vpop.f32.mrf.mxu0
    %10419 = vmatprep.mubr.bf16.mxu0 %v5136
    %10420 = vmatmul.mubr.bf16.gmra.mxu0 %v5135
    %v10421 = vpop.f32.mrf.mxu0
    %v10422 = vadd.f32 %v9669, %v10421
    %v10423 = vpop.f32.mrf.mxu0
    %v10424 = vpop.f32.mrf.mxu0
    %v10425 = vadd.f32 %v9672, %v10424
    %v10426 = vpop.f32.mrf.mxu0
    %10427 = vmatprep.mubr.bf16.mxu0 %v5146
    %10428 = vmatmul.mubr.bf16.gmra.mxu0 %v5145
    %v10429 = vpop.f32.mrf.mxu0
    %v10430 = vadd.f32 %v9677, %v10429
    %v10431 = vpop.f32.mrf.mxu0
    %v10432 = vpop.f32.mrf.mxu0
    %v10433 = vadd.f32 %v9680, %v10432
    %v10434 = vpop.f32.mrf.mxu0
    %10435 = vmatprep.mubr.bf16.mxu0 %v5156
    %10436 = vmatmul.mubr.bf16.gmra.mxu0 %v5155
    %v10437 = vpop.f32.mrf.mxu0
    %v10438 = vadd.f32 %v9685, %v10437
    %v10439 = vpop.f32.mrf.mxu0
    %v10440 = vpop.f32.mrf.mxu0
    %v10441 = vadd.f32 %v9688, %v10440
    %v10442 = vpop.f32.mrf.mxu0
    %10443 = vmatprep.mubr.bf16.mxu0 %v5166
    %10444 = vmatmul.mubr.bf16.gmra.mxu0 %v5165
    %v10445 = vpop.f32.mrf.mxu0
    %v10446 = vadd.f32 %v9693, %v10445
    %v10447 = vpop.f32.mrf.mxu0
    %v10448 = vpop.f32.mrf.mxu0
    %v10449 = vadd.f32 %v9696, %v10448
    %v10450 = vpop.f32.mrf.mxu0
    %10451 = vmatprep.mubr.bf16.mxu0 %v5176
    %10452 = vmatmul.mubr.bf16.gmra.mxu0 %v5175
    %v10453 = vpop.f32.mrf.mxu0
    %v10454 = vadd.f32 %v9701, %v10453
    %v10455 = vpop.f32.mrf.mxu0
    %v10456 = vpop.f32.mrf.mxu0
    %v10457 = vadd.f32 %v9704, %v10456
    %v10458 = vpop.f32.mrf.mxu0
    %10459 = vmatprep.mubr.bf16.mxu0 %v5186
    %10460 = vmatmul.mubr.bf16.gmra.mxu0 %v5185
    %v10461 = vpop.f32.mrf.mxu0
    %v10462 = vadd.f32 %v9709, %v10461
    %v10463 = vpop.f32.mrf.mxu0
    %v10464 = vpop.f32.mrf.mxu0
    %v10465 = vadd.f32 %v9712, %v10464
    %v10466 = vpop.f32.mrf.mxu0
    %10467 = vmatprep.mubr.bf16.mxu0 %v5196
    %10468 = vmatmul.mubr.bf16.gmra.mxu0 %v5195
    %v10469 = vpop.f32.mrf.mxu0
    %v10470 = vadd.f32 %v9717, %v10469
    %v10471 = vpop.f32.mrf.mxu0
    %v10472 = vpop.f32.mrf.mxu0
    %v10473 = vadd.f32 %v9720, %v10472
    %v10474 = vpop.f32.mrf.mxu0
    %10475 = vmatprep.mubr.bf16.mxu0 %v5206
    %10476 = vmatmul.mubr.bf16.gmra.mxu0 %v5205
    %v10477 = vpop.f32.mrf.mxu0
    %v10478 = vadd.f32 %v9725, %v10477
    %v10479 = vpop.f32.mrf.mxu0
    %v10480 = vpop.f32.mrf.mxu0
    %v10481 = vadd.f32 %v9728, %v10480
    %v10482 = vpop.f32.mrf.mxu0
    %10483 = vmatprep.mubr.bf16.mxu0 %v5216
    %10484 = vmatmul.mubr.bf16.gmra.mxu0 %v5215
    %v10485 = vpop.f32.mrf.mxu0
    %v10486 = vadd.f32 %v9733, %v10485
    %v10487 = vpop.f32.mrf.mxu0
    %v10488 = vpop.f32.mrf.mxu0
    %v10489 = vadd.f32 %v9736, %v10488
    %v10490 = vpop.f32.mrf.mxu0
    %10491 = vmatprep.mubr.bf16.mxu0 %v5226
    %10492 = vmatmul.mubr.bf16.gmra.mxu0 %v5225
    %v10493 = vpop.f32.mrf.mxu0
    %v10494 = vadd.f32 %v9741, %v10493
    %v10495 = vpop.f32.mrf.mxu0
    %v10496 = vpop.f32.mrf.mxu0
    %v10497 = vadd.f32 %v9744, %v10496
    %v10498 = vpop.f32.mrf.mxu0
    %10499 = vmatprep.mubr.bf16.mxu0 %v5236
    %10500 = vmatmul.mubr.bf16.gmra.mxu0 %v5235
    %v10501 = vpop.f32.mrf.mxu0
    %v10502 = vadd.f32 %v9749, %v10501
    %v10503 = vpop.f32.mrf.mxu0
    %v10504 = vpop.f32.mrf.mxu0
    %v10505 = vadd.f32 %v9752, %v10504
    %v10506 = vpop.f32.mrf.mxu0
    %10507 = vmatprep.mubr.bf16.mxu0 %v5246
    %10508 = vmatmul.mubr.bf16.gmra.mxu0 %v5245
    %v10509 = vpop.f32.mrf.mxu0
    %v10510 = vadd.f32 %v9757, %v10509
    %v10511 = vpop.f32.mrf.mxu0
    %v10512 = vpop.f32.mrf.mxu0
    %v10513 = vadd.f32 %v9760, %v10512
    %v10514 = vpop.f32.mrf.mxu0
    %10515 = vmatprep.mubr.bf16.mxu0 %v5256
    %10516 = vmatmul.mubr.bf16.gmra.mxu0 %v5255
    %v10517 = vpop.f32.mrf.mxu0
    %v10518 = vadd.f32 %v9765, %v10517
    %v10519 = vpop.f32.mrf.mxu0
    %v10520 = vpop.f32.mrf.mxu0
    %v10521 = vadd.f32 %v9768, %v10520
    %v10522 = vpop.f32.mrf.mxu0
    %10523 = vmatprep.mubr.bf16.mxu0 %v5266
    %10524 = vmatmul.mubr.bf16.gmra.mxu0 %v5265
    %v10525 = vpop.f32.mrf.mxu0
    %v10526 = vadd.f32 %v9773, %v10525
    %v10527 = vpop.f32.mrf.mxu0
    %v10528 = vpop.f32.mrf.mxu0
    %v10529 = vadd.f32 %v9776, %v10528
    %v10530 = vpop.f32.mrf.mxu0
    %10531 = vmatprep.mubr.bf16.mxu0 %v5276
    %10532 = vmatmul.mubr.bf16.gmra.mxu0 %v5275
    %v10533 = vpop.f32.mrf.mxu0
    %v10534 = vadd.f32 %v9781, %v10533
    %v10535 = vpop.f32.mrf.mxu0
    %v10536 = vpop.f32.mrf.mxu0
    %v10537 = vadd.f32 %v9784, %v10536
    %v10538 = vpop.f32.mrf.mxu0
    %10539 = vmatprep.mubr.bf16.mxu0 %v5286
    %10540 = vmatmul.mubr.bf16.gmra.mxu0 %v5285
    %v10541 = vpop.f32.mrf.mxu0
    %v10542 = vadd.f32 %v9789, %v10541
    %v10543 = vpop.f32.mrf.mxu0
    %v10544 = vpop.f32.mrf.mxu0
    %v10545 = vadd.f32 %v9792, %v10544
    %v10546 = vpop.f32.mrf.mxu0
    %10547 = vmatprep.mubr.bf16.mxu0 %v5296
    %10548 = vmatmul.mubr.bf16.gmra.mxu0 %v5295
    %v10549 = vpop.f32.mrf.mxu0
    %v10550 = vadd.f32 %v9797, %v10549
    %v10551 = vpop.f32.mrf.mxu0
    %v10552 = vpop.f32.mrf.mxu0
    %v10553 = vadd.f32 %v9800, %v10552
    %v10554 = vpop.f32.mrf.mxu0
    %10555 = vmatprep.mubr.bf16.mxu0 %v5306
    %10556 = vmatmul.mubr.bf16.gmra.mxu0 %v5305
    %v10557 = vpop.f32.mrf.mxu0
    %v10558 = vadd.f32 %v9805, %v10557
    %v10559 = vpop.f32.mrf.mxu0
    %v10560 = vpop.f32.mrf.mxu0
    %v10561 = vadd.f32 %v9808, %v10560
    %v10562 = vpop.f32.mrf.mxu0
    %10563 = vmatprep.mubr.bf16.mxu0 %v5316
    %10564 = vmatmul.mubr.bf16.gmra.mxu0 %v5315
    %v10565 = vpop.f32.mrf.mxu0
    %v10566 = vadd.f32 %v9813, %v10565
    %v10567 = vpop.f32.mrf.mxu0
    %v10568 = vpop.f32.mrf.mxu0
    %v10569 = vadd.f32 %v9816, %v10568
    %v10570 = vpop.f32.mrf.mxu0
    %10571 = vmatprep.mubr.bf16.mxu0 %v5326
    %10572 = vmatmul.mubr.bf16.gmra.mxu0 %v5325
    %v10573 = vpop.f32.mrf.mxu0
    %v10574 = vadd.f32 %v9821, %v10573
    %v10575 = vpop.f32.mrf.mxu0
    %v10576 = vpop.f32.mrf.mxu0
    %v10577 = vadd.f32 %v9824, %v10576
    %v10578 = vpop.f32.mrf.mxu0
    %10579 = vmatprep.mubr.bf16.mxu0 %v5336
    %10580 = vmatmul.mubr.bf16.gmra.mxu0 %v5335
    %v10581 = vpop.f32.mrf.mxu0
    %v10582 = vadd.f32 %v9829, %v10581
    %v10583 = vpop.f32.mrf.mxu0
    %v10584 = vpop.f32.mrf.mxu0
    %v10585 = vadd.f32 %v9832, %v10584
    %v10586 = vpop.f32.mrf.mxu0
    %10587 = vmatprep.mubr.bf16.mxu0 %v5346
    %10588 = vmatmul.mubr.bf16.gmra.mxu0 %v5345
    %v10589 = vpop.f32.mrf.mxu0
    %v10590 = vadd.f32 %v9837, %v10589
    %v10591 = vpop.f32.mrf.mxu0
    %v10592 = vpop.f32.mrf.mxu0
    %v10593 = vadd.f32 %v9840, %v10592
    %v10594 = vpop.f32.mrf.mxu0
    %10595 = vmatprep.mubr.bf16.mxu0 %v5356
    %10596 = vmatmul.mubr.bf16.gmra.mxu0 %v5355
    %v10597 = vpop.f32.mrf.mxu0
    %v10598 = vadd.f32 %v9845, %v10597
    %v10599 = vpop.f32.mrf.mxu0
    %v10600 = vpop.f32.mrf.mxu0
    %v10601 = vadd.f32 %v9848, %v10600
    %v10602 = vpop.f32.mrf.mxu0
    %10603 = vmatprep.mubr.bf16.mxu0 %v5366
    %10604 = vmatmul.mubr.bf16.gmra.mxu0 %v5365
    %v10605 = vpop.f32.mrf.mxu0
    %v10606 = vadd.f32 %v9853, %v10605
    %v10607 = vpop.f32.mrf.mxu0
    %v10608 = vpop.f32.mrf.mxu0
    %v10609 = vadd.f32 %v9856, %v10608
    %v10610 = vpop.f32.mrf.mxu0
    %10611 = vmatprep.mubr.bf16.mxu0 %v5376
    %10612 = vmatmul.mubr.bf16.gmra.mxu0 %v5375
    %v10613 = vpop.f32.mrf.mxu0
    %v10614 = vadd.f32 %v9861, %v10613
    %v10615 = vpop.f32.mrf.mxu0
    %v10616 = vpop.f32.mrf.mxu0
    %v10617 = vadd.f32 %v9864, %v10616
    %v10618 = vpop.f32.mrf.mxu0
    %10619 = vmatprep.mubr.bf16.mxu0 %v5386
    %10620 = vmatmul.mubr.bf16.gmra.mxu0 %v5385
    %v10621 = vpop.f32.mrf.mxu0
    %v10622 = vadd.f32 %v9869, %v10621
    %v10623 = vpop.f32.mrf.mxu0
    %v10624 = vpop.f32.mrf.mxu0
    %v10625 = vadd.f32 %v9872, %v10624
    %v10626 = vpop.f32.mrf.mxu0
    %10627 = vmatprep.mubr.bf16.mxu0 %v5396
    %10628 = vmatmul.mubr.bf16.gmra.mxu0 %v5395
    %v10629 = vpop.f32.mrf.mxu0
    %v10630 = vadd.f32 %v9877, %v10629
    %v10631 = vpop.f32.mrf.mxu0
    %v10632 = vpop.f32.mrf.mxu0
    %v10633 = vadd.f32 %v9880, %v10632
    %v10634 = vpop.f32.mrf.mxu0
    %10635 = vmatprep.mubr.bf16.mxu0 %v5406
    %10636 = vmatmul.mubr.bf16.gmra.mxu0 %v5405
    %v10637 = vpop.f32.mrf.mxu0
    %v10638 = vadd.f32 %v9885, %v10637
    %v10639 = vpop.f32.mrf.mxu0
    %v10640 = vpop.f32.mrf.mxu0
    %v10641 = vadd.f32 %v9888, %v10640
    %v10642 = vpop.f32.mrf.mxu0
    %10643 = vmatprep.mubr.bf16.mxu0 %v5416
    %10644 = vmatmul.mubr.bf16.gmra.mxu0 %v5415
    %v10645 = vpop.f32.mrf.mxu0
    %v10646 = vadd.f32 %v9893, %v10645
    %v10647 = vpop.f32.mrf.mxu0
    %v10648 = vpop.f32.mrf.mxu0
    %v10649 = vadd.f32 %v9896, %v10648
    %v10650 = vpop.f32.mrf.mxu0
    %10651 = vmatprep.mubr.bf16.mxu0 %v5426
    %10652 = vmatmul.mubr.bf16.gmra.mxu0 %v5425
    %v10653 = vpop.f32.mrf.mxu0
    %v10654 = vadd.f32 %v9901, %v10653
    %v10655 = vpop.f32.mrf.mxu0
    %v10656 = vpop.f32.mrf.mxu0
    %v10657 = vadd.f32 %v9904, %v10656
    %v10658 = vpop.f32.mrf.mxu0
    %10659 = vmatprep.mubr.bf16.mxu0 %v5436
    %10660 = vmatmul.mubr.bf16.gmra.mxu0 %v5435
    %v10661 = vpop.f32.mrf.mxu0
    %v10662 = vadd.f32 %v9909, %v10661
    %v10663 = vpop.f32.mrf.mxu0
    %v10664 = vpop.f32.mrf.mxu0
    %v10665 = vadd.f32 %v9912, %v10664
    %v10666 = vpop.f32.mrf.mxu0
    %10667 = vmatprep.mubr.bf16.mxu0 %v5446
    %10668 = vmatmul.mubr.bf16.gmra.mxu0 %v5445
    %v10669 = vpop.f32.mrf.mxu0
    %v10670 = vadd.f32 %v9917, %v10669
    %v10671 = vpop.f32.mrf.mxu0
    %v10672 = vpop.f32.mrf.mxu0
    %v10673 = vadd.f32 %v9920, %v10672
    %v10674 = vpop.f32.mrf.mxu0
    %10675 = vmatprep.mubr.bf16.mxu0 %v5456
    %10676 = vmatmul.mubr.bf16.gmra.mxu0 %v5455
    %v10677 = vpop.f32.mrf.mxu0
    %v10678 = vadd.f32 %v9925, %v10677
    %v10679 = vpop.f32.mrf.mxu0
    %v10680 = vpop.f32.mrf.mxu0
    %v10681 = vadd.f32 %v9928, %v10680
    %v10682 = vpop.f32.mrf.mxu0
    %10683 = vmatprep.mubr.bf16.mxu0 %v5466
    %10684 = vmatmul.mubr.bf16.gmra.mxu0 %v5465
    %v10685 = vpop.f32.mrf.mxu0
    %v10686 = vadd.f32 %v9933, %v10685
    %v10687 = vpop.f32.mrf.mxu0
    %v10688 = vpop.f32.mrf.mxu0
    %v10689 = vadd.f32 %v9936, %v10688
    %v10690 = vpop.f32.mrf.mxu0
    %10691 = vmatprep.mubr.bf16.mxu0 %v5476
    %10692 = vmatmul.mubr.bf16.gmra.mxu0 %v5475
    %v10693 = vpop.f32.mrf.mxu0
    %v10694 = vadd.f32 %v9941, %v10693
    %v10695 = vpop.f32.mrf.mxu0
    %v10696 = vpop.f32.mrf.mxu0
    %v10697 = vadd.f32 %v9944, %v10696
    %v10698 = vpop.f32.mrf.mxu0
    %10699 = vmatprep.mubr.bf16.mxu0 %v5486
    %10700 = vmatmul.mubr.bf16.gmra.mxu0 %v5485
    %v10701 = vpop.f32.mrf.mxu0
    %v10702 = vadd.f32 %v9949, %v10701
    %v10703 = vpop.f32.mrf.mxu0
    %v10704 = vpop.f32.mrf.mxu0
    %v10705 = vadd.f32 %v9952, %v10704
    %v10706 = vpop.f32.mrf.mxu0
    %10707 = vmatprep.mubr.bf16.mxu0 %v5496
    %10708 = vmatmul.mubr.bf16.gmra.mxu0 %v5495
    %v10709 = vpop.f32.mrf.mxu0
    %v10710 = vadd.f32 %v9957, %v10709
    %v10711 = vpop.f32.mrf.mxu0
    %v10712 = vpop.f32.mrf.mxu0
    %v10713 = vadd.f32 %v9960, %v10712
    %v10714 = vpop.f32.mrf.mxu0
    %10715 = vmatprep.mubr.bf16.mxu0 %v5506
    %10716 = vmatmul.mubr.bf16.gmra.mxu0 %v5505
    %v10717 = vpop.f32.mrf.mxu0
    %v10718 = vadd.f32 %v9965, %v10717
    %v10719 = vpop.f32.mrf.mxu0
    %v10720 = vpop.f32.mrf.mxu0
    %v10721 = vadd.f32 %v9968, %v10720
    %v10722 = vpop.f32.mrf.mxu0
    %10723 = vmatprep.mubr.bf16.mxu0 %v5516
    %10724 = vmatmul.mubr.bf16.gmra.mxu0 %v5515
    %v10725 = vpop.f32.mrf.mxu0
    %v10726 = vadd.f32 %v9973, %v10725
    %v10727 = vpop.f32.mrf.mxu0
    %v10728 = vpop.f32.mrf.mxu0
    %v10729 = vadd.f32 %v9976, %v10728
    %v10730 = vpop.f32.mrf.mxu0
    %10731 = vmatprep.mubr.bf16.mxu0 %v5526
    %10732 = vmatmul.mubr.bf16.gmra.mxu0 %v5525
    %v10733 = vpop.f32.mrf.mxu0
    %v10734 = vadd.f32 %v9981, %v10733
    %v10735 = vpop.f32.mrf.mxu0
    %v10736 = vpop.f32.mrf.mxu0
    %v10737 = vadd.f32 %v9984, %v10736
    %v10738 = vpop.f32.mrf.mxu0
    %10739 = vmatprep.mubr.bf16.mxu0 %v5536
    %10740 = vmatmul.mubr.bf16.gmra.mxu0 %v5535
    %v10741 = vpop.f32.mrf.mxu0
    %v10742 = vadd.f32 %v9989, %v10741
    %v10743 = vpop.f32.mrf.mxu0
    %v10744 = vpop.f32.mrf.mxu0
    %v10745 = vadd.f32 %v9992, %v10744
    %v10746 = vpop.f32.mrf.mxu0
    %10747 = vmatprep.mubr.bf16.mxu0 %v5546
    %10748 = vmatmul.mubr.bf16.gmra.mxu0 %v5545
    %v10749 = vpop.f32.mrf.mxu0
    %v10750 = vadd.f32 %v9997, %v10749
    %v10751 = vpop.f32.mrf.mxu0
    %v10752 = vpop.f32.mrf.mxu0
    %v10753 = vadd.f32 %v10000, %v10752
    %v10754 = vpop.f32.mrf.mxu0
    %10755 = vmatprep.mubr.bf16.mxu0 %v5556
    %10756 = vmatmul.mubr.bf16.gmra.mxu0 %v5555
    %v10757 = vpop.f32.mrf.mxu0
    %v10758 = vadd.f32 %v10005, %v10757
    %v10759 = vpop.f32.mrf.mxu0
    %v10760 = vpop.f32.mrf.mxu0
    %v10761 = vadd.f32 %v10008, %v10760
    %v10762 = vpop.f32.mrf.mxu0
    %10763 = vmatprep.mubr.bf16.mxu0 %v5566
    %10764 = vmatmul.mubr.bf16.gmra.mxu0 %v5565
    %v10765 = vpop.f32.mrf.mxu0
    %v10766 = vadd.f32 %v10013, %v10765
    %v10767 = vpop.f32.mrf.mxu0
    %v10768 = vpop.f32.mrf.mxu0
    %v10769 = vadd.f32 %v10016, %v10768
    %v10770 = vpop.f32.mrf.mxu0
    %10771 = vmatprep.mubr.bf16.mxu0 %v5576
    %10772 = vmatmul.mubr.bf16.gmra.mxu0 %v5575
    %v10773 = vpop.f32.mrf.mxu0
    %v10774 = vadd.f32 %v10021, %v10773
    %v10775 = vpop.f32.mrf.mxu0
    %v10776 = vpop.f32.mrf.mxu0
    %v10777 = vadd.f32 %v10024, %v10776
    %v10778 = vpop.f32.mrf.mxu0
    %10779 = vmatprep.mubr.bf16.mxu0 %v5586
    %10780 = vmatmul.mubr.bf16.gmra.mxu0 %v5585
    %v10781 = vpop.f32.mrf.mxu0
    %v10782 = vadd.f32 %v10029, %v10781
    %v10783 = vpop.f32.mrf.mxu0
    %v10784 = vpop.f32.mrf.mxu0
    %v10785 = vadd.f32 %v10032, %v10784
    %v10786 = vpop.f32.mrf.mxu0
    %10787 = vmatprep.mubr.bf16.mxu0 %v5596
    %10788 = vmatmul.mubr.bf16.gmra.mxu0 %v5595
    %v10789 = vpop.f32.mrf.mxu0
    %v10790 = vadd.f32 %v10037, %v10789
    %v10791 = vpop.f32.mrf.mxu0
    %v10792 = vpop.f32.mrf.mxu0
    %v10793 = vadd.f32 %v10040, %v10792
    %v10794 = vpop.f32.mrf.mxu0
    %10795 = vmatprep.mubr.bf16.mxu0 %v5606
    %10796 = vmatmul.mubr.bf16.gmra.mxu0 %v5605
    %v10797 = vpop.f32.mrf.mxu0
    %v10798 = vadd.f32 %v10045, %v10797
    %v10799 = vpop.f32.mrf.mxu0
    %v10800 = vpop.f32.mrf.mxu0
    %v10801 = vadd.f32 %v10048, %v10800
    %v10802 = vpop.f32.mrf.mxu0
    %10803 = vmatprep.mubr.bf16.mxu0 %v5616
    %10804 = vmatmul.mubr.bf16.gmra.mxu0 %v5615
    %v10805 = vpop.f32.mrf.mxu0
    %v10806 = vadd.f32 %v10053, %v10805
    %v10807 = vpop.f32.mrf.mxu0
    %v10808 = vpop.f32.mrf.mxu0
    %v10809 = vadd.f32 %v10056, %v10808
    %v10810 = vpop.f32.mrf.mxu0
    %10811 = vmatprep.mubr.bf16.mxu0 %v5626
    %10812 = vmatmul.mubr.bf16.gmra.mxu0 %v5625
    %v10813 = vpop.f32.mrf.mxu0
    %v10814 = vadd.f32 %v10061, %v10813
    %v10815 = vpop.f32.mrf.mxu0
    %v10816 = vpop.f32.mrf.mxu0
    %v10817 = vadd.f32 %v10064, %v10816
    %v10818 = vpop.f32.mrf.mxu0
    %10819 = vmatprep.mubr.bf16.mxu0 %v5636
    %10820 = vmatmul.mubr.bf16.gmra.mxu0 %v5635
    %v10821 = vpop.f32.mrf.mxu0
    %v10822 = vadd.f32 %v10069, %v10821
    %v10823 = vpop.f32.mrf.mxu0
    %v10824 = vpop.f32.mrf.mxu0
    %v10825 = vadd.f32 %v10072, %v10824
    %v10826 = vpop.f32.mrf.mxu0
    %10827 = vmatprep.mubr.bf16.mxu0 %v5646
    %10828 = vmatmul.mubr.bf16.gmra.mxu0 %v5645
    %v10829 = vpop.f32.mrf.mxu0
    %v10830 = vadd.f32 %v10077, %v10829
    %v10831 = vpop.f32.mrf.mxu0
    %v10832 = vpop.f32.mrf.mxu0
    %v10833 = vadd.f32 %v10080, %v10832
    %v10834 = vpop.f32.mrf.mxu0
    %10835 = vmatprep.mubr.bf16.mxu0 %v5656
    %10836 = vmatmul.mubr.bf16.gmra.mxu0 %v5655
    %v10837 = vpop.f32.mrf.mxu0
    %v10838 = vadd.f32 %v10085, %v10837
    %v10839 = vpop.f32.mrf.mxu0
    %v10840 = vpop.f32.mrf.mxu0
    %v10841 = vadd.f32 %v10088, %v10840
    %v10842 = vpop.f32.mrf.mxu0
    %10843 = vmatprep.mubr.bf16.mxu0 %v5666
    %10844 = vmatmul.mubr.bf16.gmra.mxu0 %v5665
    %v10845 = vpop.f32.mrf.mxu0
    %v10846 = vadd.f32 %v10093, %v10845
    %v10847 = vpop.f32.mrf.mxu0
    %v10848 = vpop.f32.mrf.mxu0
    %v10849 = vadd.f32 %v10096, %v10848
    %v10850 = vpop.f32.mrf.mxu0
    %10851 = vmatprep.mubr.bf16.mxu0 %v5676
    %10852 = vmatmul.mubr.bf16.gmra.mxu0 %v5675
    %v10853 = vpop.f32.mrf.mxu0
    %v10854 = vadd.f32 %v10101, %v10853
    %v10855 = vpop.f32.mrf.mxu0
    %v10856 = vpop.f32.mrf.mxu0
    %v10857 = vadd.f32 %v10104, %v10856
    %v10858 = vpop.f32.mrf.mxu0
    %10859 = vmatprep.mubr.bf16.mxu0 %v5686
    %10860 = vmatmul.mubr.bf16.gmra.mxu0 %v5685
    %v10861 = vpop.f32.mrf.mxu0
    %v10862 = vadd.f32 %v10109, %v10861
    %v10863 = vpop.f32.mrf.mxu0
    %v10864 = vpop.f32.mrf.mxu0
    %v10865 = vadd.f32 %v10112, %v10864
    %v10866 = vpop.f32.mrf.mxu0
    %10867 = vmatprep.mubr.bf16.mxu0 %v5696
    %10868 = vmatmul.mubr.bf16.gmra.mxu0 %v5695
    %v10869 = vpop.f32.mrf.mxu0
    %v10870 = vadd.f32 %v10117, %v10869
    %v10871 = vpop.f32.mrf.mxu0
    %v10872 = vpop.f32.mrf.mxu0
    %v10873 = vadd.f32 %v10120, %v10872
    %v10874 = vpop.f32.mrf.mxu0
    %10875 = vmatprep.mubr.bf16.mxu0 %v5706
    %10876 = vmatmul.mubr.bf16.gmra.mxu0 %v5705
    %v10877 = vpop.f32.mrf.mxu0
    %v10878 = vadd.f32 %v10125, %v10877
    %v10879 = vpop.f32.mrf.mxu0
    %v10880 = vpop.f32.mrf.mxu0
    %v10881 = vadd.f32 %v10128, %v10880
    %v10882 = vpop.f32.mrf.mxu0
    %10883 = vmatprep.mubr.bf16.mxu0 %v5716
    %10884 = vmatmul.mubr.bf16.gmra.mxu0 %v5715
    %v10885 = vpop.f32.mrf.mxu0
    %v10886 = vadd.f32 %v10133, %v10885
    %v10887 = vpop.f32.mrf.mxu0
    %v10888 = vpop.f32.mrf.mxu0
    %v10889 = vadd.f32 %v10136, %v10888
    %v10890 = vpop.f32.mrf.mxu0
    %10891 = vmatprep.mubr.bf16.mxu0 %v5726
    %10892 = vmatmul.mubr.bf16.gmra.mxu0 %v5725
    %v10893 = vpop.f32.mrf.mxu0
    %v10894 = vadd.f32 %v10141, %v10893
    %v10895 = vpop.f32.mrf.mxu0
    %v10896 = vpop.f32.mrf.mxu0
    %v10897 = vadd.f32 %v10144, %v10896
    %v10898 = vpop.f32.mrf.mxu0
    %10899 = vmatprep.mubr.bf16.mxu0 %v5736
    %10900 = vmatmul.mubr.bf16.gmra.mxu0 %v5735
    %v10901 = vpop.f32.mrf.mxu0
    %v10902 = vadd.f32 %v10149, %v10901
    %v10903 = vpop.f32.mrf.mxu0
    %v10904 = vpop.f32.mrf.mxu0
    %v10905 = vadd.f32 %v10152, %v10904
    %v10906 = vpop.f32.mrf.mxu0
    %10907 = vmatprep.mubr.bf16.mxu0 %v5746
    %10908 = vmatmul.mubr.bf16.gmra.mxu0 %v5745
    %v10909 = vpop.f32.mrf.mxu0
    %v10910 = vadd.f32 %v10157, %v10909
    %v10911 = vpop.f32.mrf.mxu0
    %v10912 = vpop.f32.mrf.mxu0
    %v10913 = vadd.f32 %v10160, %v10912
    %v10914 = vpop.f32.mrf.mxu0
    %10915 = vmatprep.mubr.bf16.mxu0 %v5756
    %10916 = vmatmul.mubr.bf16.gmra.mxu0 %v5755
    %v10917 = vpop.f32.mrf.mxu0
    %v10918 = vadd.f32 %v10165, %v10917
    %v10919 = vpop.f32.mrf.mxu0
    %v10920 = vpop.f32.mrf.mxu0
    %v10921 = vadd.f32 %v10168, %v10920
    %v10922 = vpop.f32.mrf.mxu0
    %10923 = vmatprep.mubr.bf16.mxu0 %v5766
    %10924 = vmatmul.mubr.bf16.gmra.mxu0 %v5765
    %v10925 = vpop.f32.mrf.mxu0
    %v10926 = vadd.f32 %v10173, %v10925
    %v10927 = vpop.f32.mrf.mxu0
    %v10928 = vpop.f32.mrf.mxu0
    %v10929 = vadd.f32 %v10176, %v10928
    %v10930 = vpop.f32.mrf.mxu0
    %10931 = vmatprep.mubr.bf16.mxu0 %v5776
    %10932 = vmatmul.mubr.bf16.gmra.mxu0 %v5775
    %v10933 = vpop.f32.mrf.mxu0
    %v10934 = vadd.f32 %v10181, %v10933
    %v10935 = vpop.f32.mrf.mxu0
    %v10936 = vpop.f32.mrf.mxu0
    %v10937 = vadd.f32 %v10184, %v10936
    %v10938 = vpop.f32.mrf.mxu0
    %10939 = vmatprep.mubr.bf16.mxu0 %v5786
    %10940 = vmatmul.mubr.bf16.gmra.mxu0 %v5785
    %v10941 = vpop.f32.mrf.mxu0
    %v10942 = vadd.f32 %v10189, %v10941
    %v10943 = vpop.f32.mrf.mxu0
    %v10944 = vpop.f32.mrf.mxu0
    %v10945 = vadd.f32 %v10192, %v10944
    %v10946 = vpop.f32.mrf.mxu0
    %10947 = vmatprep.mubr.bf16.mxu0 %v5796
    %10948 = vmatmul.mubr.bf16.gmra.mxu0 %v5795
    %v10949 = vpop.f32.mrf.mxu0
    %v10950 = vadd.f32 %v10197, %v10949
    %v10951 = vpop.f32.mrf.mxu0
    %v10952 = vpop.f32.mrf.mxu0
    %v10953 = vadd.f32 %v10200, %v10952
    %v10954 = vpop.f32.mrf.mxu0
    %10955 = vmatprep.mubr.bf16.mxu0 %v5806
    %10956 = vmatmul.mubr.bf16.gmra.mxu0 %v5805
    %v10957 = vpop.f32.mrf.mxu0
    %v10958 = vadd.f32 %v10205, %v10957
    %v10959 = vpop.f32.mrf.mxu0
    %v10960 = vpop.f32.mrf.mxu0
    %v10961 = vadd.f32 %v10208, %v10960
    %v10962 = vpop.f32.mrf.mxu0
    %10963 = vmatprep.mubr.bf16.mxu0 %v5816
    %10964 = vmatmul.mubr.bf16.gmra.mxu0 %v5815
    %v10965 = vpop.f32.mrf.mxu0
    %v10966 = vadd.f32 %v10213, %v10965
    %v10967 = vpop.f32.mrf.mxu0
    %v10968 = vpop.f32.mrf.mxu0
    %v10969 = vadd.f32 %v10216, %v10968
    %v10970 = vpop.f32.mrf.mxu0
    %10971 = vmatprep.mubr.bf16.mxu0 %v5826
    %10972 = vmatmul.mubr.bf16.gmra.mxu0 %v5825
    %v10973 = vpop.f32.mrf.mxu0
    %v10974 = vadd.f32 %v10221, %v10973
    %v10975 = vpop.f32.mrf.mxu0
    %v10976 = vpop.f32.mrf.mxu0
    %v10977 = vadd.f32 %v10224, %v10976
    %v10978 = vpop.f32.mrf.mxu0
    %10979 = vmatprep.mubr.bf16.mxu0 %v5836
    %10980 = vmatmul.mubr.bf16.gmra.mxu0 %v5835
    %v10981 = vpop.f32.mrf.mxu0
    %v10982 = vadd.f32 %v10229, %v10981
    %v10983 = vpop.f32.mrf.mxu0
    %v10984 = vpop.f32.mrf.mxu0
    %v10985 = vadd.f32 %v10232, %v10984
    %v10986 = vpop.f32.mrf.mxu0
    %10987 = vmatprep.mubr.bf16.mxu0 %v5846
    %10988 = vmatmul.mubr.bf16.gmra.mxu0 %v5845
    %v10989 = vpop.f32.mrf.mxu0
    %v10990 = vadd.f32 %v10237, %v10989
    %v10991 = vpop.f32.mrf.mxu0
    %v10992 = vpop.f32.mrf.mxu0
    %v10993 = vadd.f32 %v10240, %v10992
    %v10994 = vpop.f32.mrf.mxu0
    %10995 = vmatprep.mubr.bf16.mxu0 %v5856
    %10996 = vmatmul.mubr.bf16.gmra.mxu0 %v5855
    %v10997 = vpop.f32.mrf.mxu0
    %v10998 = vadd.f32 %v10245, %v10997
    %v10999 = vpop.f32.mrf.mxu0
    %v11000 = vpop.f32.mrf.mxu0
    %v11001 = vadd.f32 %v10248, %v11000
    %v11002 = vpop.f32.mrf.mxu0
    %11003 = vmatprep.mubr.bf16.mxu0 %v5866
    %11004 = vmatmul.mubr.bf16.gmra.mxu0 %v5865
    %v11005 = vpop.f32.mrf.mxu0
    %v11006 = vadd.f32 %v10253, %v11005
    %v11007 = vpop.f32.mrf.mxu0
    %v11008 = vpop.f32.mrf.mxu0
    %v11009 = vadd.f32 %v10256, %v11008
    %v11010 = vpop.f32.mrf.mxu0
    %11011 = vdwg.mxu0
    %v11012 = vmax.f32 %v10294, 0.0
    %v11013 = vmax.f32 %v10297, 0.0
    %v11014 = vmax.f32 %v10302, 0.0
    %v11015 = vmax.f32 %v10305, 0.0
    %v11016 = vmax.f32 %v10310, 0.0
    %v11017 = vmax.f32 %v10313, 0.0
    %v11018 = vmax.f32 %v10318, 0.0
    %v11019 = vmax.f32 %v10321, 0.0
    %v11020 = vmax.f32 %v10326, 0.0
    %v11021 = vmax.f32 %v10329, 0.0
    %v11022 = vmax.f32 %v10334, 0.0
    %v11023 = vmax.f32 %v10337, 0.0
    %v11024 = vmax.f32 %v10342, 0.0
    %v11025 = vmax.f32 %v10345, 0.0
    %v11026 = vmax.f32 %v10350, 0.0
    %v11027 = vmax.f32 %v10353, 0.0
    %v11028 = vmax.f32 %v10358, 0.0
    %v11029 = vmax.f32 %v10361, 0.0
    %v11030 = vmax.f32 %v10366, 0.0
    %v11031 = vmax.f32 %v10369, 0.0
    %v11032 = vmax.f32 %v10374, 0.0
    %v11033 = vmax.f32 %v10377, 0.0
    %v11034 = vmax.f32 %v10382, 0.0
    %v11035 = vmax.f32 %v10385, 0.0
    %v11036 = vmax.f32 %v10390, 0.0
    %v11037 = vmax.f32 %v10393, 0.0
    %v11038 = vmax.f32 %v10398, 0.0
    %v11039 = vmax.f32 %v10401, 0.0
    %v11040 = vmax.f32 %v10406, 0.0
    %v11041 = vmax.f32 %v10409, 0.0
    %v11042 = vmax.f32 %v10414, 0.0
    %v11043 = vmax.f32 %v10417, 0.0
    %v11044 = vmax.f32 %v10422, 0.0
    %v11045 = vmax.f32 %v10425, 0.0
    %v11046 = vmax.f32 %v10430, 0.0
    %v11047 = vmax.f32 %v10433, 0.0
    %v11048 = vmax.f32 %v10438, 0.0
    %v11049 = vmax.f32 %v10441, 0.0
    %v11050 = vmax.f32 %v10446, 0.0
    %v11051 = vmax.f32 %v10449, 0.0
    %v11052 = vmax.f32 %v10454, 0.0
    %v11053 = vmax.f32 %v10457, 0.0
    %v11054 = vmax.f32 %v10462, 0.0
    %v11055 = vmax.f32 %v10465, 0.0
    %v11056 = vmax.f32 %v10470, 0.0
    %v11057 = vmax.f32 %v10473, 0.0
    %v11058 = vmax.f32 %v10478, 0.0
    %v11059 = vmax.f32 %v10481, 0.0
    %v11060 = vmax.f32 %v10486, 0.0
    %v11061 = vmax.f32 %v10489, 0.0
    %v11062 = vmax.f32 %v10494, 0.0
    %v11063 = vmax.f32 %v10497, 0.0
    %v11064 = vmax.f32 %v10502, 0.0
    %v11065 = vmax.f32 %v10505, 0.0
    %v11066 = vmax.f32 %v10510, 0.0
    %v11067 = vmax.f32 %v10513, 0.0
    %v11068 = vmax.f32 %v10518, 0.0
    %v11069 = vmax.f32 %v10521, 0.0
    %v11070 = vmax.f32 %v10526, 0.0
    %v11071 = vmax.f32 %v10529, 0.0
    %v11072 = vmax.f32 %v10534, 0.0
    %v11073 = vmax.f32 %v10537, 0.0
    %v11074 = vmax.f32 %v10542, 0.0
    %v11075 = vmax.f32 %v10545, 0.0
    %v11076 = vmax.f32 %v10550, 0.0
    %v11077 = vmax.f32 %v10553, 0.0
    %v11078 = vmax.f32 %v10558, 0.0
    %v11079 = vmax.f32 %v10561, 0.0
    %v11080 = vmax.f32 %v10566, 0.0
    %v11081 = vmax.f32 %v10569, 0.0
    %v11082 = vmax.f32 %v10574, 0.0
    %v11083 = vmax.f32 %v10577, 0.0
    %v11084 = vmax.f32 %v10582, 0.0
    %v11085 = vmax.f32 %v10585, 0.0
    %v11086 = vmax.f32 %v10590, 0.0
    %v11087 = vmax.f32 %v10593, 0.0
    %v11088 = vmax.f32 %v10598, 0.0
    %v11089 = vmax.f32 %v10601, 0.0
    %v11090 = vmax.f32 %v10606, 0.0
    %v11091 = vmax.f32 %v10609, 0.0
    %v11092 = vmax.f32 %v10614, 0.0
    %v11093 = vmax.f32 %v10617, 0.0
    %v11094 = vmax.f32 %v10622, 0.0
    %v11095 = vmax.f32 %v10625, 0.0
    %v11096 = vmax.f32 %v10630, 0.0
    %v11097 = vmax.f32 %v10633, 0.0
    %v11098 = vmax.f32 %v10638, 0.0
    %v11099 = vmax.f32 %v10641, 0.0
    %v11100 = vmax.f32 %v10646, 0.0
    %v11101 = vmax.f32 %v10649, 0.0
    %v11102 = vmax.f32 %v10654, 0.0
    %v11103 = vmax.f32 %v10657, 0.0
    %v11104 = vmax.f32 %v10662, 0.0
    %v11105 = vmax.f32 %v10665, 0.0
    %v11106 = vmax.f32 %v10670, 0.0
    %v11107 = vmax.f32 %v10673, 0.0
    %v11108 = vmax.f32 %v10678, 0.0
    %v11109 = vmax.f32 %v10681, 0.0
    %v11110 = vmax.f32 %v10686, 0.0
    %v11111 = vmax.f32 %v10689, 0.0
    %v11112 = vmax.f32 %v10694, 0.0
    %v11113 = vmax.f32 %v10697, 0.0
    %v11114 = vmax.f32 %v10702, 0.0
    %v11115 = vmax.f32 %v10705, 0.0
    %v11116 = vmax.f32 %v10710, 0.0
    %v11117 = vmax.f32 %v10713, 0.0
    %v11118 = vmax.f32 %v10718, 0.0
    %v11119 = vmax.f32 %v10721, 0.0
    %v11120 = vmax.f32 %v10726, 0.0
    %v11121 = vmax.f32 %v10729, 0.0
    %v11122 = vmax.f32 %v10734, 0.0
    %v11123 = vmax.f32 %v10737, 0.0
    %v11124 = vmax.f32 %v10742, 0.0
    %v11125 = vmax.f32 %v10745, 0.0
    %v11126 = vmax.f32 %v10750, 0.0
    %v11127 = vmax.f32 %v10753, 0.0
    %v11128 = vmax.f32 %v10758, 0.0
    %v11129 = vmax.f32 %v10761, 0.0
    %v11130 = vmax.f32 %v10766, 0.0
    %v11131 = vmax.f32 %v10769, 0.0
    %v11132 = vmax.f32 %v10774, 0.0
    %v11133 = vmax.f32 %v10777, 0.0
    %v11134 = vmax.f32 %v10782, 0.0
    %v11135 = vmax.f32 %v10785, 0.0
    %v11136 = vmax.f32 %v10790, 0.0
    %v11137 = vmax.f32 %v10793, 0.0
    %v11138 = vmax.f32 %v10798, 0.0
    %v11139 = vmax.f32 %v10801, 0.0
    %v11140 = vmax.f32 %v10806, 0.0
    %v11141 = vmax.f32 %v10809, 0.0
    %v11142 = vmax.f32 %v10814, 0.0
    %v11143 = vmax.f32 %v10817, 0.0
    %v11144 = vmax.f32 %v10822, 0.0
    %v11145 = vmax.f32 %v10825, 0.0
    %v11146 = vmax.f32 %v10830, 0.0
    %v11147 = vmax.f32 %v10833, 0.0
    %v11148 = vmax.f32 %v10838, 0.0
    %v11149 = vmax.f32 %v10841, 0.0
    %v11150 = vmax.f32 %v10846, 0.0
    %v11151 = vmax.f32 %v10849, 0.0
    %v11152 = vmax.f32 %v10854, 0.0
    %v11153 = vmax.f32 %v10857, 0.0
    %v11154 = vmax.f32 %v10862, 0.0
    %v11155 = vmax.f32 %v10865, 0.0
    %v11156 = vmax.f32 %v10870, 0.0
    %v11157 = vmax.f32 %v10873, 0.0
    %v11158 = vmax.f32 %v10878, 0.0
    %v11159 = vmax.f32 %v10881, 0.0
    %v11160 = vmax.f32 %v10886, 0.0
    %v11161 = vmax.f32 %v10889, 0.0
    %v11162 = vmax.f32 %v10894, 0.0
    %v11163 = vmax.f32 %v10897, 0.0
    %v11164 = vmax.f32 %v10902, 0.0
    %v11165 = vmax.f32 %v10905, 0.0
    %v11166 = vmax.f32 %v10910, 0.0
    %v11167 = vmax.f32 %v10913, 0.0
    %v11168 = vmax.f32 %v10918, 0.0
    %v11169 = vmax.f32 %v10921, 0.0
    %v11170 = vmax.f32 %v10926, 0.0
    %v11171 = vmax.f32 %v10929, 0.0
    %v11172 = vmax.f32 %v10934, 0.0
    %v11173 = vmax.f32 %v10937, 0.0
    %v11174 = vmax.f32 %v10942, 0.0
    %v11175 = vmax.f32 %v10945, 0.0
    %v11176 = vmax.f32 %v10950, 0.0
    %v11177 = vmax.f32 %v10953, 0.0
    %v11178 = vmax.f32 %v10958, 0.0
    %v11179 = vmax.f32 %v10961, 0.0
    %v11180 = vmax.f32 %v10966, 0.0
    %v11181 = vmax.f32 %v10969, 0.0
    %v11182 = vmax.f32 %v10974, 0.0
    %v11183 = vmax.f32 %v10977, 0.0
    %v11184 = vmax.f32 %v10982, 0.0
    %v11185 = vmax.f32 %v10985, 0.0
    %v11186 = vmax.f32 %v10990, 0.0
    %v11187 = vmax.f32 %v10993, 0.0
    %v11188 = vmax.f32 %v10998, 0.0
    %v11189 = vmax.f32 %v11001, 0.0
    %v11190 = vmax.f32 %v11006, 0.0
    %v11191 = vmax.f32 %v11009, 0.0
    %v11192 = vld [vmem:[#allocation5] sm:$0xff]
    %v11193 = vld [vmem:[#allocation5 + $0x8] sm:$0xff]
    %v11194 = vld [vmem:[#allocation5 + $0x10] sm:$0xff]
    %v11195 = vld [vmem:[#allocation5 + $0x18] sm:$0xff]
    %v11196 = vld [vmem:[#allocation5 + $0x20] sm:$0xff]
    %v11197 = vld [vmem:[#allocation5 + $0x28] sm:$0xff]
    %v11198 = vld [vmem:[#allocation5 + $0x30] sm:$0xff]
    %v11199 = vld [vmem:[#allocation5 + $0x38] sm:$0xff]
    %v11200 = vld [vmem:[#allocation5 + $0x40] sm:$0xff]
    %v11201 = vld [vmem:[#allocation5 + $0x48] sm:$0xff]
    %v11202 = vld [vmem:[#allocation5 + $0x50] sm:$0xff]
    %v11203 = vld [vmem:[#allocation5 + $0x58] sm:$0xff]
    %v11204 = vld [vmem:[#allocation5 + $0x60] sm:$0xff]
    %v11205 = vld [vmem:[#allocation5 + $0x68] sm:$0xff]
    %v11206 = vld [vmem:[#allocation5 + $0x70] sm:$0xff]
    %v11207 = vld [vmem:[#allocation5 + $0x78] sm:$0xff]
    %v11208 = vld [vmem:[#allocation5 + $0x80] sm:$0xff]
    %v11209 = vld [vmem:[#allocation5 + $0x88] sm:$0xff]
    %v11210 = vld [vmem:[#allocation5 + $0x90] sm:$0xff]
    %v11211 = vld [vmem:[#allocation5 + $0x98] sm:$0xff]
    %v11212 = vld [vmem:[#allocation5 + $0xa0] sm:$0xff]
    %v11213 = vld [vmem:[#allocation5 + $0xa8] sm:$0xff]
    %v11214 = vld [vmem:[#allocation5 + $0xb0] sm:$0xff]
    %v11215 = vld [vmem:[#allocation5 + $0xb8] sm:$0xff]
    %v11216 = vld [vmem:[#allocation5 + $0xc0] sm:$0xff]
    %v11217 = vld [vmem:[#allocation5 + $0xc8] sm:$0xff]
    %v11218 = vld [vmem:[#allocation5 + $0xd0] sm:$0xff]
    %v11219 = vld [vmem:[#allocation5 + $0xd8] sm:$0xff]
    %v11220 = vld [vmem:[#allocation5 + $0xe0] sm:$0xff]
    %v11221 = vld [vmem:[#allocation5 + $0xe8] sm:$0xff]
    %v11222 = vld [vmem:[#allocation5 + $0xf0] sm:$0xff]
    %v11223 = vld [vmem:[#allocation5 + $0xf8] sm:$0xff]
    %v11224 = vld [vmem:[#allocation5 + $0x100] sm:$0xff]
    %v11225 = vld [vmem:[#allocation5 + $0x108] sm:$0xff]
    %v11226 = vld [vmem:[#allocation5 + $0x110] sm:$0xff]
    %v11227 = vld [vmem:[#allocation5 + $0x118] sm:$0xff]
    %v11228 = vld [vmem:[#allocation5 + $0x120] sm:$0xff]
    %v11229 = vld [vmem:[#allocation5 + $0x128] sm:$0xff]
    %v11230 = vld [vmem:[#allocation5 + $0x130] sm:$0xff]
    %v11231 = vld [vmem:[#allocation5 + $0x138] sm:$0xff]
    %v11232 = vld [vmem:[#allocation5 + $0x140] sm:$0xff]
    %v11233 = vld [vmem:[#allocation5 + $0x148] sm:$0xff]
    %v11234 = vld [vmem:[#allocation5 + $0x150] sm:$0xff]
    %v11235 = vld [vmem:[#allocation5 + $0x158] sm:$0xff]
    %v11236 = vld [vmem:[#allocation5 + $0x160] sm:$0xff]
    %v11237 = vld [vmem:[#allocation5 + $0x168] sm:$0xff]
    %v11238 = vld [vmem:[#allocation5 + $0x170] sm:$0xff]
    %v11239 = vld [vmem:[#allocation5 + $0x178] sm:$0xff]
    %v11240 = vld [vmem:[#allocation5 + $0x180] sm:$0xff]
    %v11241 = vld [vmem:[#allocation5 + $0x188] sm:$0xff]
    %v11242 = vld [vmem:[#allocation5 + $0x190] sm:$0xff]
    %v11243 = vld [vmem:[#allocation5 + $0x198] sm:$0xff]
    %v11244 = vld [vmem:[#allocation5 + $0x1a0] sm:$0xff]
    %v11245 = vld [vmem:[#allocation5 + $0x1a8] sm:$0xff]
    %v11246 = vld [vmem:[#allocation5 + $0x1b0] sm:$0xff]
    %v11247 = vld [vmem:[#allocation5 + $0x1b8] sm:$0xff]
    %v11248 = vld [vmem:[#allocation5 + $0x1c0] sm:$0xff]
    %v11249 = vld [vmem:[#allocation5 + $0x1c8] sm:$0xff]
    %v11250 = vld [vmem:[#allocation5 + $0x1d0] sm:$0xff]
    %v11251 = vld [vmem:[#allocation5 + $0x1d8] sm:$0xff]
    %v11252 = vld [vmem:[#allocation5 + $0x1e0] sm:$0xff]
    %v11253 = vld [vmem:[#allocation5 + $0x1e8] sm:$0xff]
    %v11254 = vld [vmem:[#allocation5 + $0x1f0] sm:$0xff]
    %v11255 = vld [vmem:[#allocation5 + $0x1f8] sm:$0xff]
    %v11256 = vld [vmem:[#allocation5 + $0x200] sm:$0xff]
    %v11257 = vld [vmem:[#allocation5 + $0x208] sm:$0xff]
    %v11258 = vld [vmem:[#allocation5 + $0x210] sm:$0xff]
    %v11259 = vld [vmem:[#allocation5 + $0x218] sm:$0xff]
    %v11260 = vld [vmem:[#allocation5 + $0x220] sm:$0xff]
    %v11261 = vld [vmem:[#allocation5 + $0x228] sm:$0xff]
    %v11262 = vld [vmem:[#allocation5 + $0x230] sm:$0xff]
    %v11263 = vld [vmem:[#allocation5 + $0x238] sm:$0xff]
    %v11264 = vld [vmem:[#allocation5 + $0x240] sm:$0xff]
    %v11265 = vld [vmem:[#allocation5 + $0x248] sm:$0xff]
    %v11266 = vld [vmem:[#allocation5 + $0x250] sm:$0xff]
    %v11267 = vld [vmem:[#allocation5 + $0x258] sm:$0xff]
    %v11268 = vld [vmem:[#allocation5 + $0x260] sm:$0xff]
    %v11269 = vld [vmem:[#allocation5 + $0x268] sm:$0xff]
    %v11270 = vld [vmem:[#allocation5 + $0x270] sm:$0xff]
    %v11271 = vld [vmem:[#allocation5 + $0x278] sm:$0xff]
    %v11272 = vld [vmem:[#allocation5 + $0x280] sm:$0xff]
    %v11273 = vld [vmem:[#allocation5 + $0x288] sm:$0xff]
    %v11274 = vld [vmem:[#allocation5 + $0x290] sm:$0xff]
    %v11275 = vld [vmem:[#allocation5 + $0x298] sm:$0xff]
    %v11276 = vld [vmem:[#allocation5 + $0x2a0] sm:$0xff]
    %v11277 = vld [vmem:[#allocation5 + $0x2a8] sm:$0xff]
    %v11278 = vld [vmem:[#allocation5 + $0x2b0] sm:$0xff]
    %v11279 = vld [vmem:[#allocation5 + $0x2b8] sm:$0xff]
    %v11280 = vld [vmem:[#allocation5 + $0x2c0] sm:$0xff]
    %v11281 = vld [vmem:[#allocation5 + $0x2c8] sm:$0xff]
    %v11282 = vld [vmem:[#allocation5 + $0x2d0] sm:$0xff]
    %v11283 = vld [vmem:[#allocation5 + $0x2d8] sm:$0xff]
    %v11284 = vld [vmem:[#allocation5 + $0x2e0] sm:$0xff]
    %v11285 = vld [vmem:[#allocation5 + $0x2e8] sm:$0xff]
    %v11286 = vld [vmem:[#allocation5 + $0x2f0] sm:$0xff]
    %v11287 = vld [vmem:[#allocation5 + $0x2f8] sm:$0xff]
    %v11288 = vld [vmem:[#allocation5 + $0x300] sm:$0xff]
    %v11289 = vld [vmem:[#allocation5 + $0x308] sm:$0xff]
    %v11290 = vld [vmem:[#allocation5 + $0x310] sm:$0xff]
    %v11291 = vld [vmem:[#allocation5 + $0x318] sm:$0xff]
    %v11292 = vld [vmem:[#allocation5 + $0x320] sm:$0xff]
    %v11293 = vld [vmem:[#allocation5 + $0x328] sm:$0xff]
    %v11294 = vld [vmem:[#allocation5 + $0x330] sm:$0xff]
    %v11295 = vld [vmem:[#allocation5 + $0x338] sm:$0xff]
    %v11296 = vld [vmem:[#allocation5 + $0x340] sm:$0xff]
    %v11297 = vld [vmem:[#allocation5 + $0x348] sm:$0xff]
    %v11298 = vld [vmem:[#allocation5 + $0x350] sm:$0xff]
    %v11299 = vld [vmem:[#allocation5 + $0x358] sm:$0xff]
    %v11300 = vld [vmem:[#allocation5 + $0x360] sm:$0xff]
    %v11301 = vld [vmem:[#allocation5 + $0x368] sm:$0xff]
    %v11302 = vld [vmem:[#allocation5 + $0x370] sm:$0xff]
    %v11303 = vld [vmem:[#allocation5 + $0x378] sm:$0xff]
    %v11304 = vld [vmem:[#allocation5 + $0x380] sm:$0xff]
    %v11305 = vld [vmem:[#allocation5 + $0x388] sm:$0xff]
    %v11306 = vld [vmem:[#allocation5 + $0x390] sm:$0xff]
    %v11307 = vld [vmem:[#allocation5 + $0x398] sm:$0xff]
    %v11308 = vld [vmem:[#allocation5 + $0x3a0] sm:$0xff]
    %v11309 = vld [vmem:[#allocation5 + $0x3a8] sm:$0xff]
    %v11310 = vld [vmem:[#allocation5 + $0x3b0] sm:$0xff]
    %v11311 = vld [vmem:[#allocation5 + $0x3b8] sm:$0xff]
    %v11312 = vld [vmem:[#allocation5 + $0x3c0] sm:$0xff]
    %v11313 = vld [vmem:[#allocation5 + $0x3c8] sm:$0xff]
    %v11314 = vld [vmem:[#allocation5 + $0x3d0] sm:$0xff]
    %v11315 = vld [vmem:[#allocation5 + $0x3d8] sm:$0xff]
    %v11316 = vld [vmem:[#allocation5 + $0x3e0] sm:$0xff]
    %v11317 = vld [vmem:[#allocation5 + $0x3e8] sm:$0xff]
    %v11318 = vld [vmem:[#allocation5 + $0x3f0] sm:$0xff]
    %v11319 = vld [vmem:[#allocation5 + $0x3f8] sm:$0xff]
    %v11320 = vld [vmem:[#allocation5 + $0x400] sm:$0xff]
    %v11321 = vld [vmem:[#allocation5 + $0x408] sm:$0xff]
    %v11322 = vld [vmem:[#allocation5 + $0x410] sm:$0xff]
    %v11323 = vld [vmem:[#allocation5 + $0x418] sm:$0xff]
    %v11324 = vld [vmem:[#allocation5 + $0x420] sm:$0xff]
    %v11325 = vld [vmem:[#allocation5 + $0x428] sm:$0xff]
    %v11326 = vld [vmem:[#allocation5 + $0x430] sm:$0xff]
    %v11327 = vld [vmem:[#allocation5 + $0x438] sm:$0xff]
    %v11328 = vld [vmem:[#allocation5 + $0x440] sm:$0xff]
    %v11329 = vld [vmem:[#allocation5 + $0x448] sm:$0xff]
    %v11330 = vld [vmem:[#allocation5 + $0x450] sm:$0xff]
    %v11331 = vld [vmem:[#allocation5 + $0x458] sm:$0xff]
    %v11332 = vld [vmem:[#allocation5 + $0x460] sm:$0xff]
    %v11333 = vld [vmem:[#allocation5 + $0x468] sm:$0xff]
    %v11334 = vld [vmem:[#allocation5 + $0x470] sm:$0xff]
    %v11335 = vld [vmem:[#allocation5 + $0x478] sm:$0xff]
    %v11336 = vld [vmem:[#allocation5 + $0x480] sm:$0xff]
    %v11337 = vld [vmem:[#allocation5 + $0x488] sm:$0xff]
    %v11338 = vld [vmem:[#allocation5 + $0x490] sm:$0xff]
    %v11339 = vld [vmem:[#allocation5 + $0x498] sm:$0xff]
    %v11340 = vld [vmem:[#allocation5 + $0x4a0] sm:$0xff]
    %v11341 = vld [vmem:[#allocation5 + $0x4a8] sm:$0xff]
    %v11342 = vpack.c.bf16 %v11013, %v11012
    %v11343 = vpack.c.bf16 %v11015, %v11014
    %v11344 = vpack.c.bf16 %v11017, %v11016
    %v11345 = vpack.c.bf16 %v11019, %v11018
    %v11346 = vpack.c.bf16 %v11021, %v11020
    %v11347 = vpack.c.bf16 %v11023, %v11022
    %v11348 = vpack.c.bf16 %v11025, %v11024
    %v11349 = vpack.c.bf16 %v11027, %v11026
    %v11350 = vpack.c.bf16 %v11029, %v11028
    %v11351 = vpack.c.bf16 %v11031, %v11030
    %v11352 = vpack.c.bf16 %v11033, %v11032
    %v11353 = vpack.c.bf16 %v11035, %v11034
    %v11354 = vpack.c.bf16 %v11037, %v11036
    %v11355 = vpack.c.bf16 %v11039, %v11038
    %v11356 = vpack.c.bf16 %v11041, %v11040
    %v11357 = vpack.c.bf16 %v11043, %v11042
    %v11358 = vpack.c.bf16 %v11045, %v11044
    %v11359 = vpack.c.bf16 %v11047, %v11046
    %v11360 = vpack.c.bf16 %v11049, %v11048
    %v11361 = vpack.c.bf16 %v11051, %v11050
    %v11362 = vpack.c.bf16 %v11053, %v11052
    %v11363 = vpack.c.bf16 %v11055, %v11054
    %v11364 = vpack.c.bf16 %v11057, %v11056
    %v11365 = vpack.c.bf16 %v11059, %v11058
    %v11366 = vpack.c.bf16 %v11061, %v11060
    %v11367 = vpack.c.bf16 %v11063, %v11062
    %v11368 = vpack.c.bf16 %v11065, %v11064
    %v11369 = vpack.c.bf16 %v11067, %v11066
    %v11370 = vpack.c.bf16 %v11069, %v11068
    %v11371 = vpack.c.bf16 %v11071, %v11070
    %v11372 = vpack.c.bf16 %v11073, %v11072
    %v11373 = vpack.c.bf16 %v11075, %v11074
    %v11374 = vpack.c.bf16 %v11077, %v11076
    %v11375 = vpack.c.bf16 %v11079, %v11078
    %v11376 = vpack.c.bf16 %v11081, %v11080
    %v11377 = vpack.c.bf16 %v11083, %v11082
    %v11378 = vpack.c.bf16 %v11085, %v11084
    %v11379 = vpack.c.bf16 %v11087, %v11086
    %v11380 = vpack.c.bf16 %v11089, %v11088
    %v11381 = vpack.c.bf16 %v11091, %v11090
    %v11382 = vpack.c.bf16 %v11093, %v11092
    %v11383 = vpack.c.bf16 %v11095, %v11094
    %v11384 = vpack.c.bf16 %v11097, %v11096
    %v11385 = vpack.c.bf16 %v11099, %v11098
    %v11386 = vpack.c.bf16 %v11101, %v11100
    %v11387 = vpack.c.bf16 %v11103, %v11102
    %v11388 = vpack.c.bf16 %v11105, %v11104
    %v11389 = vpack.c.bf16 %v11107, %v11106
    %v11390 = vpack.c.bf16 %v11109, %v11108
    %v11391 = vpack.c.bf16 %v11111, %v11110
    %v11392 = vpack.c.bf16 %v11113, %v11112
    %v11393 = vpack.c.bf16 %v11115, %v11114
    %v11394 = vpack.c.bf16 %v11117, %v11116
    %v11395 = vpack.c.bf16 %v11119, %v11118
    %v11396 = vpack.c.bf16 %v11121, %v11120
    %v11397 = vpack.c.bf16 %v11123, %v11122
    %v11398 = vpack.c.bf16 %v11125, %v11124
    %v11399 = vpack.c.bf16 %v11127, %v11126
    %v11400 = vpack.c.bf16 %v11129, %v11128
    %v11401 = vpack.c.bf16 %v11131, %v11130
    %v11402 = vpack.c.bf16 %v11133, %v11132
    %v11403 = vpack.c.bf16 %v11135, %v11134
    %v11404 = vpack.c.bf16 %v11137, %v11136
    %v11405 = vpack.c.bf16 %v11139, %v11138
    %v11406 = vpack.c.bf16 %v11141, %v11140
    %v11407 = vpack.c.bf16 %v11143, %v11142
    %v11408 = vpack.c.bf16 %v11145, %v11144
    %v11409 = vpack.c.bf16 %v11147, %v11146
    %v11410 = vpack.c.bf16 %v11149, %v11148
    %v11411 = vpack.c.bf16 %v11151, %v11150
    %v11412 = vpack.c.bf16 %v11153, %v11152
    %v11413 = vpack.c.bf16 %v11155, %v11154
    %v11414 = vpack.c.bf16 %v11157, %v11156
    %v11415 = vpack.c.bf16 %v11159, %v11158
    %v11416 = vpack.c.bf16 %v11161, %v11160
    %v11417 = vpack.c.bf16 %v11163, %v11162
    %v11418 = vpack.c.bf16 %v11165, %v11164
    %v11419 = vpack.c.bf16 %v11167, %v11166
    %v11420 = vpack.c.bf16 %v11169, %v11168
    %v11421 = vpack.c.bf16 %v11171, %v11170
    %v11422 = vpack.c.bf16 %v11173, %v11172
    %v11423 = vpack.c.bf16 %v11175, %v11174
    %v11424 = vpack.c.bf16 %v11177, %v11176
    %v11425 = vpack.c.bf16 %v11179, %v11178
    %v11426 = vpack.c.bf16 %v11181, %v11180
    %v11427 = vpack.c.bf16 %v11183, %v11182
    %v11428 = vpack.c.bf16 %v11185, %v11184
    %v11429 = vpack.c.bf16 %v11187, %v11186
    %v11430 = vpack.c.bf16 %v11189, %v11188
    %v11431 = vpack.c.bf16 %v11191, %v11190
    %v11432 = vld [vmem:[%s4] sm:$0xff]
    %v11433 = vld [vmem:[%s4 + $0x8] sm:$0xff]
    %v11434 = vld [vmem:[%s4 + $0x10] sm:$0xff]
    %v11435 = vld [vmem:[%s4 + $0x18] sm:$0xff]
    %v11436 = vld [vmem:[%s4 + $0x20] sm:$0xff]
    %v11437 = vld [vmem:[%s4 + $0x28] sm:$0xff]
    %v11438 = vld [vmem:[%s4 + $0x30] sm:$0xff]
    %v11439 = vld [vmem:[%s4 + $0x38] sm:$0xff]
    %v11440 = vld [vmem:[%s4 + $0x40] sm:$0xff]
    %v11441 = vld [vmem:[%s4 + $0x48] sm:$0xff]
    %v11442 = vld [vmem:[%s4 + $0x50] sm:$0xff]
    %v11443 = vld [vmem:[%s4 + $0x58] sm:$0xff]
    %v11444 = vld [vmem:[%s4 + $0x60] sm:$0xff]
    %v11445 = vld [vmem:[%s4 + $0x68] sm:$0xff]
    %v11446 = vld [vmem:[%s4 + $0x70] sm:$0xff]
    %v11447 = vld [vmem:[%s4 + $0x78] sm:$0xff]
    %v11448 = vld [vmem:[%s4 + $0x80] sm:$0xff]
    %v11449 = vld [vmem:[%s4 + $0x88] sm:$0xff]
    %v11450 = vld [vmem:[%s4 + $0x90] sm:$0xff]
    %v11451 = vld [vmem:[%s4 + $0x98] sm:$0xff]
    %v11452 = vld [vmem:[%s4 + $0xa0] sm:$0xff]
    %v11453 = vld [vmem:[%s4 + $0xa8] sm:$0xff]
    %v11454 = vld [vmem:[%s4 + $0xb0] sm:$0xff]
    %v11455 = vld [vmem:[%s4 + $0xb8] sm:$0xff]
    %v11456 = vld [vmem:[%s4 + $0xc0] sm:$0xff]
    %11458 = vset.pattern.permute.xlu0 0
    %11459 = vperm.xlu0 %11458, %v11432
    %v11460 = vpop.permute.xlu0 %11459
    %11463 = vset.pattern.permute.xlu0 0
    %11464 = vperm.xlu0 %11463, %v11433
    %v11465 = vpop.permute.xlu0 %11464
    %11468 = vset.pattern.permute.xlu0 0
    %11469 = vperm.xlu0 %11468, %v11434
    %v11470 = vpop.permute.xlu0 %11469
    %11473 = vset.pattern.permute.xlu0 0
    %11474 = vperm.xlu0 %11473, %v11435
    %v11475 = vpop.permute.xlu0 %11474
    %11478 = vset.pattern.permute.xlu0 0
    %11479 = vperm.xlu0 %11478, %v11436
    %v11480 = vpop.permute.xlu0 %11479
    %11483 = vset.pattern.permute.xlu0 0
    %11484 = vperm.xlu0 %11483, %v11437
    %v11485 = vpop.permute.xlu0 %11484
    %11488 = vset.pattern.permute.xlu0 0
    %11489 = vperm.xlu0 %11488, %v11438
    %v11490 = vpop.permute.xlu0 %11489
    %11493 = vset.pattern.permute.xlu0 0
    %11494 = vperm.xlu0 %11493, %v11439
    %v11495 = vpop.permute.xlu0 %11494
    %11498 = vset.pattern.permute.xlu0 0
    %11499 = vperm.xlu0 %11498, %v11440
    %v11500 = vpop.permute.xlu0 %11499
    %11503 = vset.pattern.permute.xlu0 0
    %11504 = vperm.xlu0 %11503, %v11441
    %v11505 = vpop.permute.xlu0 %11504
    %11508 = vset.pattern.permute.xlu0 0
    %11509 = vperm.xlu0 %11508, %v11442
    %v11510 = vpop.permute.xlu0 %11509
    %11513 = vset.pattern.permute.xlu0 0
    %11514 = vperm.xlu0 %11513, %v11443
    %v11515 = vpop.permute.xlu0 %11514
    %11518 = vset.pattern.permute.xlu0 0
    %11519 = vperm.xlu0 %11518, %v11444
    %v11520 = vpop.permute.xlu0 %11519
    %11523 = vset.pattern.permute.xlu0 0
    %11524 = vperm.xlu0 %11523, %v11445
    %v11525 = vpop.permute.xlu0 %11524
    %11528 = vset.pattern.permute.xlu0 0
    %11529 = vperm.xlu0 %11528, %v11446
    %v11530 = vpop.permute.xlu0 %11529
    %11533 = vset.pattern.permute.xlu0 0
    %11534 = vperm.xlu0 %11533, %v11447
    %v11535 = vpop.permute.xlu0 %11534
    %11538 = vset.pattern.permute.xlu0 0
    %11539 = vperm.xlu0 %11538, %v11448
    %v11540 = vpop.permute.xlu0 %11539
    %11543 = vset.pattern.permute.xlu0 0
    %11544 = vperm.xlu0 %11543, %v11449
    %v11545 = vpop.permute.xlu0 %11544
    %11548 = vset.pattern.permute.xlu0 0
    %11549 = vperm.xlu0 %11548, %v11450
    %v11550 = vpop.permute.xlu0 %11549
    %11553 = vset.pattern.permute.xlu0 0
    %11554 = vperm.xlu0 %11553, %v11451
    %v11555 = vpop.permute.xlu0 %11554
    %11558 = vset.pattern.permute.xlu0 0
    %11559 = vperm.xlu0 %11558, %v11452
    %v11560 = vpop.permute.xlu0 %11559
    %11563 = vset.pattern.permute.xlu0 0
    %11564 = vperm.xlu0 %11563, %v11453
    %v11565 = vpop.permute.xlu0 %11564
    %11568 = vset.pattern.permute.xlu0 0
    %11569 = vperm.xlu0 %11568, %v11454
    %v11570 = vpop.permute.xlu0 %11569
    %11573 = vset.pattern.permute.xlu0 0
    %11574 = vperm.xlu0 %11573, %v11455
    %v11575 = vpop.permute.xlu0 %11574
    %11578 = vset.pattern.permute.xlu0 0
    %11579 = vperm.xlu0 %11578, %v11456
    %v11580 = vpop.permute.xlu0 %11579
    %v11732 = vunpack.c.l.b16 %v11192
    %v11733 = vunpack.c.h.b16 %v11192
    %v11734 = vunpack.c.l.b16 %v11193
    %v11735 = vunpack.c.h.b16 %v11193
    %v11736 = vunpack.c.l.b16 %v11194
    %v11737 = vunpack.c.h.b16 %v11194
    %v11738 = vunpack.c.l.b16 %v11195
    %v11739 = vunpack.c.h.b16 %v11195
    %v11740 = vunpack.c.l.b16 %v11196
    %v11741 = vunpack.c.h.b16 %v11196
    %v11742 = vunpack.c.l.b16 %v11197
    %v11743 = vunpack.c.h.b16 %v11197
    %v11744 = vunpack.c.l.b16 %v11198
    %v11745 = vunpack.c.h.b16 %v11198
    %v11746 = vunpack.c.l.b16 %v11199
    %v11747 = vunpack.c.h.b16 %v11199
    %v11748 = vunpack.c.l.b16 %v11200
    %v11749 = vunpack.c.h.b16 %v11200
    %v11750 = vunpack.c.l.b16 %v11201
    %v11751 = vunpack.c.h.b16 %v11201
    %v11752 = vunpack.c.l.b16 %v11202
    %v11753 = vunpack.c.h.b16 %v11202
    %v11754 = vunpack.c.l.b16 %v11203
    %v11755 = vunpack.c.h.b16 %v11203
    %v11756 = vunpack.c.l.b16 %v11204
    %v11757 = vunpack.c.h.b16 %v11204
    %v11758 = vunpack.c.l.b16 %v11205
    %v11759 = vunpack.c.h.b16 %v11205
    %v11760 = vunpack.c.l.b16 %v11206
    %v11761 = vunpack.c.h.b16 %v11206
    %v11762 = vunpack.c.l.b16 %v11207
    %v11763 = vunpack.c.h.b16 %v11207
    %v11764 = vunpack.c.l.b16 %v11208
    %v11765 = vunpack.c.h.b16 %v11208
    %v11766 = vunpack.c.l.b16 %v11209
    %v11767 = vunpack.c.h.b16 %v11209
    %v11768 = vunpack.c.l.b16 %v11210
    %v11769 = vunpack.c.h.b16 %v11210
    %v11770 = vunpack.c.l.b16 %v11211
    %v11771 = vunpack.c.h.b16 %v11211
    %v11772 = vunpack.c.l.b16 %v11212
    %v11773 = vunpack.c.h.b16 %v11212
    %v11774 = vunpack.c.l.b16 %v11213
    %v11775 = vunpack.c.h.b16 %v11213
    %v11776 = vunpack.c.l.b16 %v11214
    %v11777 = vunpack.c.h.b16 %v11214
    %v11778 = vunpack.c.l.b16 %v11215
    %v11779 = vunpack.c.h.b16 %v11215
    %v11780 = vunpack.c.l.b16 %v11216
    %v11781 = vunpack.c.h.b16 %v11216
    %v11782 = vunpack.c.l.b16 %v11217
    %v11783 = vunpack.c.h.b16 %v11217
    %v11784 = vunpack.c.l.b16 %v11218
    %v11785 = vunpack.c.h.b16 %v11218
    %v11786 = vunpack.c.l.b16 %v11219
    %v11787 = vunpack.c.h.b16 %v11219
    %v11788 = vunpack.c.l.b16 %v11220
    %v11789 = vunpack.c.h.b16 %v11220
    %v11790 = vunpack.c.l.b16 %v11221
    %v11791 = vunpack.c.h.b16 %v11221
    %v11792 = vunpack.c.l.b16 %v11222
    %v11793 = vunpack.c.h.b16 %v11222
    %v11794 = vunpack.c.l.b16 %v11223
    %v11795 = vunpack.c.h.b16 %v11223
    %v11796 = vunpack.c.l.b16 %v11224
    %v11797 = vunpack.c.h.b16 %v11224
    %v11798 = vunpack.c.l.b16 %v11225
    %v11799 = vunpack.c.h.b16 %v11225
    %v11800 = vunpack.c.l.b16 %v11226
    %v11801 = vunpack.c.h.b16 %v11226
    %v11802 = vunpack.c.l.b16 %v11227
    %v11803 = vunpack.c.h.b16 %v11227
    %v11804 = vunpack.c.l.b16 %v11228
    %v11805 = vunpack.c.h.b16 %v11228
    %v11806 = vunpack.c.l.b16 %v11229
    %v11807 = vunpack.c.h.b16 %v11229
    %v11808 = vunpack.c.l.b16 %v11230
    %v11809 = vunpack.c.h.b16 %v11230
    %v11810 = vunpack.c.l.b16 %v11231
    %v11811 = vunpack.c.h.b16 %v11231
    %v11812 = vunpack.c.l.b16 %v11232
    %v11813 = vunpack.c.h.b16 %v11232
    %v11814 = vunpack.c.l.b16 %v11233
    %v11815 = vunpack.c.h.b16 %v11233
    %v11816 = vunpack.c.l.b16 %v11234
    %v11817 = vunpack.c.h.b16 %v11234
    %v11818 = vunpack.c.l.b16 %v11235
    %v11819 = vunpack.c.h.b16 %v11235
    %v11820 = vunpack.c.l.b16 %v11236
    %v11821 = vunpack.c.h.b16 %v11236
    %v11822 = vunpack.c.l.b16 %v11237
    %v11823 = vunpack.c.h.b16 %v11237
    %v11824 = vunpack.c.l.b16 %v11238
    %v11825 = vunpack.c.h.b16 %v11238
    %v11826 = vunpack.c.l.b16 %v11239
    %v11827 = vunpack.c.h.b16 %v11239
    %v11828 = vunpack.c.l.b16 %v11240
    %v11829 = vunpack.c.h.b16 %v11240
    %v11830 = vunpack.c.l.b16 %v11241
    %v11831 = vunpack.c.h.b16 %v11241
    %v11832 = vunpack.c.l.b16 %v11242
    %v11833 = vunpack.c.h.b16 %v11242
    %v11834 = vunpack.c.l.b16 %v11243
    %v11835 = vunpack.c.h.b16 %v11243
    %v11836 = vunpack.c.l.b16 %v11244
    %v11837 = vunpack.c.h.b16 %v11244
    %v11838 = vunpack.c.l.b16 %v11245
    %v11839 = vunpack.c.h.b16 %v11245
    %v11840 = vunpack.c.l.b16 %v11246
    %v11841 = vunpack.c.h.b16 %v11246
    %v11842 = vunpack.c.l.b16 %v11247
    %v11843 = vunpack.c.h.b16 %v11247
    %v11844 = vunpack.c.l.b16 %v11248
    %v11845 = vunpack.c.h.b16 %v11248
    %v11846 = vunpack.c.l.b16 %v11249
    %v11847 = vunpack.c.h.b16 %v11249
    %v11848 = vunpack.c.l.b16 %v11250
    %v11849 = vunpack.c.h.b16 %v11250
    %v11850 = vunpack.c.l.b16 %v11251
    %v11851 = vunpack.c.h.b16 %v11251
    %v11852 = vunpack.c.l.b16 %v11252
    %v11853 = vunpack.c.h.b16 %v11252
    %v11854 = vunpack.c.l.b16 %v11253
    %v11855 = vunpack.c.h.b16 %v11253
    %v11856 = vunpack.c.l.b16 %v11254
    %v11857 = vunpack.c.h.b16 %v11254
    %v11858 = vunpack.c.l.b16 %v11255
    %v11859 = vunpack.c.h.b16 %v11255
    %v11860 = vunpack.c.l.b16 %v11256
    %v11861 = vunpack.c.h.b16 %v11256
    %v11862 = vunpack.c.l.b16 %v11257
    %v11863 = vunpack.c.h.b16 %v11257
    %v11864 = vunpack.c.l.b16 %v11258
    %v11865 = vunpack.c.h.b16 %v11258
    %v11866 = vunpack.c.l.b16 %v11259
    %v11867 = vunpack.c.h.b16 %v11259
    %v11868 = vunpack.c.l.b16 %v11260
    %v11869 = vunpack.c.h.b16 %v11260
    %v11870 = vunpack.c.l.b16 %v11261
    %v11871 = vunpack.c.h.b16 %v11261
    %v11872 = vunpack.c.l.b16 %v11262
    %v11873 = vunpack.c.h.b16 %v11262
    %v11874 = vunpack.c.l.b16 %v11263
    %v11875 = vunpack.c.h.b16 %v11263
    %v11876 = vunpack.c.l.b16 %v11264
    %v11877 = vunpack.c.h.b16 %v11264
    %v11878 = vunpack.c.l.b16 %v11265
    %v11879 = vunpack.c.h.b16 %v11265
    %v11880 = vunpack.c.l.b16 %v11266
    %v11881 = vunpack.c.h.b16 %v11266
    %v11882 = vunpack.c.l.b16 %v11267
    %v11883 = vunpack.c.h.b16 %v11267
    %v11884 = vunpack.c.l.b16 %v11268
    %v11885 = vunpack.c.h.b16 %v11268
    %v11886 = vunpack.c.l.b16 %v11269
    %v11887 = vunpack.c.h.b16 %v11269
    %v11888 = vunpack.c.l.b16 %v11270
    %v11889 = vunpack.c.h.b16 %v11270
    %v11890 = vunpack.c.l.b16 %v11271
    %v11891 = vunpack.c.h.b16 %v11271
    %v11892 = vunpack.c.l.b16 %v11272
    %v11893 = vunpack.c.h.b16 %v11272
    %v11894 = vunpack.c.l.b16 %v11273
    %v11895 = vunpack.c.h.b16 %v11273
    %v11896 = vunpack.c.l.b16 %v11274
    %v11897 = vunpack.c.h.b16 %v11274
    %v11898 = vunpack.c.l.b16 %v11275
    %v11899 = vunpack.c.h.b16 %v11275
    %v11900 = vunpack.c.l.b16 %v11276
    %v11901 = vunpack.c.h.b16 %v11276
    %v11902 = vunpack.c.l.b16 %v11277
    %v11903 = vunpack.c.h.b16 %v11277
    %v11904 = vunpack.c.l.b16 %v11278
    %v11905 = vunpack.c.h.b16 %v11278
    %v11906 = vunpack.c.l.b16 %v11279
    %v11907 = vunpack.c.h.b16 %v11279
    %v11908 = vunpack.c.l.b16 %v11280
    %v11909 = vunpack.c.h.b16 %v11280
    %v11910 = vunpack.c.l.b16 %v11281
    %v11911 = vunpack.c.h.b16 %v11281
    %v11912 = vunpack.c.l.b16 %v11282
    %v11913 = vunpack.c.h.b16 %v11282
    %v11914 = vunpack.c.l.b16 %v11283
    %v11915 = vunpack.c.h.b16 %v11283
    %v11916 = vunpack.c.l.b16 %v11284
    %v11917 = vunpack.c.h.b16 %v11284
    %v11918 = vunpack.c.l.b16 %v11285
    %v11919 = vunpack.c.h.b16 %v11285
    %v11920 = vunpack.c.l.b16 %v11286
    %v11921 = vunpack.c.h.b16 %v11286
    %v11922 = vunpack.c.l.b16 %v11287
    %v11923 = vunpack.c.h.b16 %v11287
    %v11924 = vunpack.c.l.b16 %v11288
    %v11925 = vunpack.c.h.b16 %v11288
    %v11926 = vunpack.c.l.b16 %v11289
    %v11927 = vunpack.c.h.b16 %v11289
    %v11928 = vunpack.c.l.b16 %v11290
    %v11929 = vunpack.c.h.b16 %v11290
    %v11930 = vunpack.c.l.b16 %v11291
    %v11931 = vunpack.c.h.b16 %v11291
    %v11932 = vunpack.c.l.b16 %v11292
    %v11933 = vunpack.c.h.b16 %v11292
    %v11934 = vunpack.c.l.b16 %v11293
    %v11935 = vunpack.c.h.b16 %v11293
    %v11936 = vunpack.c.l.b16 %v11294
    %v11937 = vunpack.c.h.b16 %v11294
    %v11938 = vunpack.c.l.b16 %v11295
    %v11939 = vunpack.c.h.b16 %v11295
    %v11940 = vunpack.c.l.b16 %v11296
    %v11941 = vunpack.c.h.b16 %v11296
    %v11942 = vunpack.c.l.b16 %v11297
    %v11943 = vunpack.c.h.b16 %v11297
    %v11944 = vunpack.c.l.b16 %v11298
    %v11945 = vunpack.c.h.b16 %v11298
    %v11946 = vunpack.c.l.b16 %v11299
    %v11947 = vunpack.c.h.b16 %v11299
    %v11948 = vunpack.c.l.b16 %v11300
    %v11949 = vunpack.c.h.b16 %v11300
    %v11950 = vunpack.c.l.b16 %v11301
    %v11951 = vunpack.c.h.b16 %v11301
    %v11952 = vunpack.c.l.b16 %v11302
    %v11953 = vunpack.c.h.b16 %v11302
    %v11954 = vunpack.c.l.b16 %v11303
    %v11955 = vunpack.c.h.b16 %v11303
    %v11956 = vunpack.c.l.b16 %v11304
    %v11957 = vunpack.c.h.b16 %v11304
    %v11958 = vunpack.c.l.b16 %v11305
    %v11959 = vunpack.c.h.b16 %v11305
    %v11960 = vunpack.c.l.b16 %v11306
    %v11961 = vunpack.c.h.b16 %v11306
    %v11962 = vunpack.c.l.b16 %v11307
    %v11963 = vunpack.c.h.b16 %v11307
    %v11964 = vunpack.c.l.b16 %v11308
    %v11965 = vunpack.c.h.b16 %v11308
    %v11966 = vunpack.c.l.b16 %v11309
    %v11967 = vunpack.c.h.b16 %v11309
    %v11968 = vunpack.c.l.b16 %v11310
    %v11969 = vunpack.c.h.b16 %v11310
    %v11970 = vunpack.c.l.b16 %v11311
    %v11971 = vunpack.c.h.b16 %v11311
    %v11972 = vunpack.c.l.b16 %v11312
    %v11973 = vunpack.c.h.b16 %v11312
    %v11974 = vunpack.c.l.b16 %v11313
    %v11975 = vunpack.c.h.b16 %v11313
    %v11976 = vunpack.c.l.b16 %v11314
    %v11977 = vunpack.c.h.b16 %v11314
    %v11978 = vunpack.c.l.b16 %v11315
    %v11979 = vunpack.c.h.b16 %v11315
    %v11980 = vunpack.c.l.b16 %v11316
    %v11981 = vunpack.c.h.b16 %v11316
    %v11982 = vunpack.c.l.b16 %v11317
    %v11983 = vunpack.c.h.b16 %v11317
    %v11984 = vunpack.c.l.b16 %v11318
    %v11985 = vunpack.c.h.b16 %v11318
    %v11986 = vunpack.c.l.b16 %v11319
    %v11987 = vunpack.c.h.b16 %v11319
    %v11988 = vunpack.c.l.b16 %v11320
    %v11989 = vunpack.c.h.b16 %v11320
    %v11990 = vunpack.c.l.b16 %v11321
    %v11991 = vunpack.c.h.b16 %v11321
    %v11992 = vunpack.c.l.b16 %v11322
    %v11993 = vunpack.c.h.b16 %v11322
    %v11994 = vunpack.c.l.b16 %v11323
    %v11995 = vunpack.c.h.b16 %v11323
    %v11996 = vunpack.c.l.b16 %v11324
    %v11997 = vunpack.c.h.b16 %v11324
    %v11998 = vunpack.c.l.b16 %v11325
    %v11999 = vunpack.c.h.b16 %v11325
    %v12000 = vunpack.c.l.b16 %v11326
    %v12001 = vunpack.c.h.b16 %v11326
    %v12002 = vunpack.c.l.b16 %v11327
    %v12003 = vunpack.c.h.b16 %v11327
    %v12004 = vunpack.c.l.b16 %v11328
    %v12005 = vunpack.c.h.b16 %v11328
    %v12006 = vunpack.c.l.b16 %v11329
    %v12007 = vunpack.c.h.b16 %v11329
    %v12008 = vunpack.c.l.b16 %v11330
    %v12009 = vunpack.c.h.b16 %v11330
    %v12010 = vunpack.c.l.b16 %v11331
    %v12011 = vunpack.c.h.b16 %v11331
    %v12012 = vunpack.c.l.b16 %v11332
    %v12013 = vunpack.c.h.b16 %v11332
    %v12014 = vunpack.c.l.b16 %v11333
    %v12015 = vunpack.c.h.b16 %v11333
    %v12016 = vunpack.c.l.b16 %v11334
    %v12017 = vunpack.c.h.b16 %v11334
    %v12018 = vunpack.c.l.b16 %v11335
    %v12019 = vunpack.c.h.b16 %v11335
    %v12020 = vunpack.c.l.b16 %v11336
    %v12021 = vunpack.c.h.b16 %v11336
    %v12022 = vunpack.c.l.b16 %v11337
    %v12023 = vunpack.c.h.b16 %v11337
    %v12024 = vunpack.c.l.b16 %v11338
    %v12025 = vunpack.c.h.b16 %v11338
    %v12026 = vunpack.c.l.b16 %v11339
    %v12027 = vunpack.c.h.b16 %v11339
    %v12028 = vunpack.c.l.b16 %v11340
    %v12029 = vunpack.c.h.b16 %v11340
    %v12030 = vunpack.c.l.b16 %v11341
    %v12031 = vunpack.c.h.b16 %v11341
    %v12032 = vpack.c.b16 %v11744, %v11732
    %v12033 = vpack.c.b16 %v11745, %v11733
    %v12034 = vpack.c.b16 %v11746, %v11734
    %v12035 = vpack.c.b16 %v11747, %v11735
    %v12036 = vpack.c.b16 %v11748, %v11736
    %v12037 = vpack.c.b16 %v11749, %v11737
    %v12038 = vpack.c.b16 %v11750, %v11738
    %v12039 = vpack.c.b16 %v11751, %v11739
    %v12040 = vpack.c.b16 %v11752, %v11740
    %v12041 = vpack.c.b16 %v11753, %v11741
    %v12042 = vpack.c.b16 %v11754, %v11742
    %v12043 = vpack.c.b16 %v11755, %v11743
    %v12044 = vpack.c.b16 %v11768, %v11756
    %v12045 = vpack.c.b16 %v11769, %v11757
    %v12046 = vpack.c.b16 %v11770, %v11758
    %v12047 = vpack.c.b16 %v11771, %v11759
    %v12048 = vpack.c.b16 %v11772, %v11760
    %v12049 = vpack.c.b16 %v11773, %v11761
    %v12050 = vpack.c.b16 %v11774, %v11762
    %v12051 = vpack.c.b16 %v11775, %v11763
    %v12052 = vpack.c.b16 %v11776, %v11764
    %v12053 = vpack.c.b16 %v11777, %v11765
    %v12054 = vpack.c.b16 %v11778, %v11766
    %v12055 = vpack.c.b16 %v11779, %v11767
    %v12056 = vpack.c.b16 %v11792, %v11780
    %v12057 = vpack.c.b16 %v11793, %v11781
    %v12058 = vpack.c.b16 %v11794, %v11782
    %v12059 = vpack.c.b16 %v11795, %v11783
    %v12060 = vpack.c.b16 %v11796, %v11784
    %v12061 = vpack.c.b16 %v11797, %v11785
    %v12062 = vpack.c.b16 %v11798, %v11786
    %v12063 = vpack.c.b16 %v11799, %v11787
    %v12064 = vpack.c.b16 %v11800, %v11788
    %v12065 = vpack.c.b16 %v11801, %v11789
    %v12066 = vpack.c.b16 %v11802, %v11790
    %v12067 = vpack.c.b16 %v11803, %v11791
    %v12068 = vpack.c.b16 %v11816, %v11804
    %v12069 = vpack.c.b16 %v11817, %v11805
    %v12070 = vpack.c.b16 %v11818, %v11806
    %v12071 = vpack.c.b16 %v11819, %v11807
    %v12072 = vpack.c.b16 %v11820, %v11808
    %v12073 = vpack.c.b16 %v11821, %v11809
    %v12074 = vpack.c.b16 %v11822, %v11810
    %v12075 = vpack.c.b16 %v11823, %v11811
    %v12076 = vpack.c.b16 %v11824, %v11812
    %v12077 = vpack.c.b16 %v11825, %v11813
    %v12078 = vpack.c.b16 %v11826, %v11814
    %v12079 = vpack.c.b16 %v11827, %v11815
    %v12080 = vpack.c.b16 %v11840, %v11828
    %v12081 = vpack.c.b16 %v11841, %v11829
    %v12082 = vpack.c.b16 %v11842, %v11830
    %v12083 = vpack.c.b16 %v11843, %v11831
    %v12084 = vpack.c.b16 %v11844, %v11832
    %v12085 = vpack.c.b16 %v11845, %v11833
    %v12086 = vpack.c.b16 %v11846, %v11834
    %v12087 = vpack.c.b16 %v11847, %v11835
    %v12088 = vpack.c.b16 %v11848, %v11836
    %v12089 = vpack.c.b16 %v11849, %v11837
    %v12090 = vpack.c.b16 %v11850, %v11838
    %v12091 = vpack.c.b16 %v11851, %v11839
    %v12092 = vpack.c.b16 %v11864, %v11852
    %v12093 = vpack.c.b16 %v11865, %v11853
    %v12094 = vpack.c.b16 %v11866, %v11854
    %v12095 = vpack.c.b16 %v11867, %v11855
    %v12096 = vpack.c.b16 %v11868, %v11856
    %v12097 = vpack.c.b16 %v11869, %v11857
    %v12098 = vpack.c.b16 %v11870, %v11858
    %v12099 = vpack.c.b16 %v11871, %v11859
    %v12100 = vpack.c.b16 %v11872, %v11860
    %v12101 = vpack.c.b16 %v11873, %v11861
    %v12102 = vpack.c.b16 %v11874, %v11862
    %v12103 = vpack.c.b16 %v11875, %v11863
    %v12104 = vpack.c.b16 %v11888, %v11876
    %v12105 = vpack.c.b16 %v11889, %v11877
    %v12106 = vpack.c.b16 %v11890, %v11878
    %v12107 = vpack.c.b16 %v11891, %v11879
    %v12108 = vpack.c.b16 %v11892, %v11880
    %v12109 = vpack.c.b16 %v11893, %v11881
    %v12110 = vpack.c.b16 %v11894, %v11882
    %v12111 = vpack.c.b16 %v11895, %v11883
    %v12112 = vpack.c.b16 %v11896, %v11884
    %v12113 = vpack.c.b16 %v11897, %v11885
    %v12114 = vpack.c.b16 %v11898, %v11886
    %v12115 = vpack.c.b16 %v11899, %v11887
    %v12116 = vpack.c.b16 %v11912, %v11900
    %v12117 = vpack.c.b16 %v11913, %v11901
    %v12118 = vpack.c.b16 %v11914, %v11902
    %v12119 = vpack.c.b16 %v11915, %v11903
    %v12120 = vpack.c.b16 %v11916, %v11904
    %v12121 = vpack.c.b16 %v11917, %v11905
    %v12122 = vpack.c.b16 %v11918, %v11906
    %v12123 = vpack.c.b16 %v11919, %v11907
    %v12124 = vpack.c.b16 %v11920, %v11908
    %v12125 = vpack.c.b16 %v11921, %v11909
    %v12126 = vpack.c.b16 %v11922, %v11910
    %v12127 = vpack.c.b16 %v11923, %v11911
    %v12128 = vpack.c.b16 %v11936, %v11924
    %v12129 = vpack.c.b16 %v11937, %v11925
    %v12130 = vpack.c.b16 %v11938, %v11926
    %v12131 = vpack.c.b16 %v11939, %v11927
    %v12132 = vpack.c.b16 %v11940, %v11928
    %v12133 = vpack.c.b16 %v11941, %v11929
    %v12134 = vpack.c.b16 %v11942, %v11930
    %v12135 = vpack.c.b16 %v11943, %v11931
    %v12136 = vpack.c.b16 %v11944, %v11932
    %v12137 = vpack.c.b16 %v11945, %v11933
    %v12138 = vpack.c.b16 %v11946, %v11934
    %v12139 = vpack.c.b16 %v11947, %v11935
    %v12140 = vpack.c.b16 %v11960, %v11948
    %v12141 = vpack.c.b16 %v11961, %v11949
    %v12142 = vpack.c.b16 %v11962, %v11950
    %v12143 = vpack.c.b16 %v11963, %v11951
    %v12144 = vpack.c.b16 %v11964, %v11952
    %v12145 = vpack.c.b16 %v11965, %v11953
    %v12146 = vpack.c.b16 %v11966, %v11954
    %v12147 = vpack.c.b16 %v11967, %v11955
    %v12148 = vpack.c.b16 %v11968, %v11956
    %v12149 = vpack.c.b16 %v11969, %v11957
    %v12150 = vpack.c.b16 %v11970, %v11958
    %v12151 = vpack.c.b16 %v11971, %v11959
    %v12152 = vpack.c.b16 %v11984, %v11972
    %v12153 = vpack.c.b16 %v11985, %v11973
    %v12154 = vpack.c.b16 %v11986, %v11974
    %v12155 = vpack.c.b16 %v11987, %v11975
    %v12156 = vpack.c.b16 %v11988, %v11976
    %v12157 = vpack.c.b16 %v11989, %v11977
    %v12158 = vpack.c.b16 %v11990, %v11978
    %v12159 = vpack.c.b16 %v11991, %v11979
    %v12160 = vpack.c.b16 %v11992, %v11980
    %v12161 = vpack.c.b16 %v11993, %v11981
    %v12162 = vpack.c.b16 %v11994, %v11982
    %v12163 = vpack.c.b16 %v11995, %v11983
    %v12164 = vpack.c.b16 %v12008, %v11996
    %v12165 = vpack.c.b16 %v12009, %v11997
    %v12166 = vpack.c.b16 %v12010, %v11998
    %v12167 = vpack.c.b16 %v12011, %v11999
    %v12168 = vpack.c.b16 %v12012, %v12000
    %v12169 = vpack.c.b16 %v12013, %v12001
    %v12170 = vpack.c.b16 %v12014, %v12002
    %v12171 = vpack.c.b16 %v12015, %v12003
    %v12172 = vpack.c.b16 %v12016, %v12004
    %v12173 = vpack.c.b16 %v12017, %v12005
    %v12174 = vpack.c.b16 %v12018, %v12006
    %v12175 = vpack.c.b16 %v12019, %v12007
    %v12176 = vpack.c.b16 %v12020, %v12020
    %v12177 = vpack.c.b16 %v12021, %v12021
    %v12178 = vpack.c.b16 %v12022, %v12022
    %v12179 = vpack.c.b16 %v12023, %v12023
    %v12180 = vpack.c.b16 %v12024, %v12024
    %v12181 = vpack.c.b16 %v12025, %v12025
    %v12182 = vpack.c.b16 %v12026, %v12026
    %v12183 = vpack.c.b16 %v12027, %v12027
    %v12184 = vpack.c.b16 %v12028, %v12028
    %v12185 = vpack.c.b16 %v12029, %v12029
    %v12186 = vpack.c.b16 %v12030, %v12030
    %v12187 = vpack.c.b16 %v12031, %v12031
    %vm12331 = vcmask 261120
    %v12333 = vsel %vm12331, %v12043, 0
    %v12336 = vsel %vm12331, %v12055, 0
    %v12339 = vsel %vm12331, %v12067, 0
    %v12342 = vsel %vm12331, %v12079, 0
    %v12345 = vsel %vm12331, %v12091, 0
    %v12348 = vsel %vm12331, %v12103, 0
    %v12351 = vsel %vm12331, %v12115, 0
    %v12354 = vsel %vm12331, %v12127, 0
    %v12357 = vsel %vm12331, %v12139, 0
    %v12360 = vsel %vm12331, %v12151, 0
    %v12363 = vsel %vm12331, %v12163, 0
    %v12366 = vsel %vm12331, %v12175, 0
    %v12369 = vsel %vm12331, %v12187, 0
    %12371 = vmatprep.subr.bf16.mxu0 0
    %12372 = vmatpush1.bf16.msra.mxu0 %v11349
    %12373 = vmatprep.subr.bf16.mxu0 0
    %12374 = vmatpush1.bf16.msra.mxu0 %v11348
    %12375 = vmatprep.subr.bf16.mxu0 0
    %12376 = vmatpush1.bf16.msra.mxu0 %v11347
    %12377 = vmatprep.subr.bf16.mxu0 0
    %12378 = vmatpush1.bf16.msra.mxu0 %v11346
    %12379 = vmatprep.subr.bf16.mxu0 0
    %12380 = vmatpush1.bf16.msra.mxu0 %v11345
    %12381 = vmatprep.subr.bf16.mxu0 0
    %12382 = vmatpush1.bf16.msra.mxu0 %v11344
    %12383 = vmatprep.subr.bf16.mxu0 0
    %12384 = vmatpush1.bf16.msra.mxu0 %v11343
    %12385 = vmatprep.subr.bf16.mxu0 0
    %12386 = vmatpush1.bf16.msra.mxu0 %v11342
    %12387 = vmatprep.subr.bf16.mxu0 0
    %12388 = vmatpush2.bf16.msra.mxu0 %v11357
    %12389 = vmatprep.subr.bf16.mxu0 0
    %12390 = vmatpush2.bf16.msra.mxu0 %v11356
    %12391 = vmatprep.subr.bf16.mxu0 0
    %12392 = vmatpush2.bf16.msra.mxu0 %v11355
    %12393 = vmatprep.subr.bf16.mxu0 0
    %12394 = vmatpush2.bf16.msra.mxu0 %v11354
    %12395 = vmatprep.subr.bf16.mxu0 0
    %12396 = vmatpush2.bf16.msra.mxu0 %v11353
    %12397 = vmatprep.subr.bf16.mxu0 0
    %12398 = vmatpush2.bf16.msra.mxu0 %v11352
    %12399 = vmatprep.subr.bf16.mxu0 0
    %12400 = vmatpush2.bf16.msra.mxu0 %v11351
    %12401 = vmatprep.subr.bf16.mxu0 0
    %12402 = vmatpush2.bf16.msra.mxu0 %v11350
    %12403 = vmatprep.mubr.bf16.mxu0 %v12033
    %12404 = vmatmul.mubr.bf16.gmra.mxu0 %v12032
    %v12405 = vpop.f32.mrf.mxu0
    %v12406 = vadd.f32 %v11460, %v12405
    %v12407 = vpop.f32.mrf.mxu0
    %v12408 = vpop.f32.mrf.mxu0
    %v12409 = vadd.f32 %v11465, %v12408
    %v12410 = vpop.f32.mrf.mxu0
    %12411 = vmatprep.mubr.bf16.mxu0 %v12045
    %12412 = vmatmul.mubr.bf16.gmra.mxu0 %v12044
    %v12413 = vpop.f32.mrf.mxu0
    %v12414 = vadd.f32 %v11470, %v12413
    %v12415 = vpop.f32.mrf.mxu0
    %v12416 = vpop.f32.mrf.mxu0
    %v12417 = vadd.f32 %v11475, %v12416
    %v12418 = vpop.f32.mrf.mxu0
    %12419 = vmatprep.mubr.bf16.mxu0 %v12057
    %12420 = vmatmul.mubr.bf16.gmra.mxu0 %v12056
    %v12421 = vpop.f32.mrf.mxu0
    %v12422 = vadd.f32 %v11480, %v12421
    %v12423 = vpop.f32.mrf.mxu0
    %v12424 = vpop.f32.mrf.mxu0
    %v12425 = vadd.f32 %v11485, %v12424
    %v12426 = vpop.f32.mrf.mxu0
    %12427 = vmatprep.mubr.bf16.mxu0 %v12069
    %12428 = vmatmul.mubr.bf16.gmra.mxu0 %v12068
    %v12429 = vpop.f32.mrf.mxu0
    %v12430 = vadd.f32 %v11490, %v12429
    %v12431 = vpop.f32.mrf.mxu0
    %v12432 = vpop.f32.mrf.mxu0
    %v12433 = vadd.f32 %v11495, %v12432
    %v12434 = vpop.f32.mrf.mxu0
    %12435 = vmatprep.mubr.bf16.mxu0 %v12081
    %12436 = vmatmul.mubr.bf16.gmra.mxu0 %v12080
    %v12437 = vpop.f32.mrf.mxu0
    %v12438 = vadd.f32 %v11500, %v12437
    %v12439 = vpop.f32.mrf.mxu0
    %v12440 = vpop.f32.mrf.mxu0
    %v12441 = vadd.f32 %v11505, %v12440
    %v12442 = vpop.f32.mrf.mxu0
    %12443 = vmatprep.mubr.bf16.mxu0 %v12093
    %12444 = vmatmul.mubr.bf16.gmra.mxu0 %v12092
    %v12445 = vpop.f32.mrf.mxu0
    %v12446 = vadd.f32 %v11510, %v12445
    %v12447 = vpop.f32.mrf.mxu0
    %v12448 = vpop.f32.mrf.mxu0
    %v12449 = vadd.f32 %v11515, %v12448
    %v12450 = vpop.f32.mrf.mxu0
    %12451 = vmatprep.mubr.bf16.mxu0 %v12105
    %12452 = vmatmul.mubr.bf16.gmra.mxu0 %v12104
    %v12453 = vpop.f32.mrf.mxu0
    %v12454 = vadd.f32 %v11520, %v12453
    %v12455 = vpop.f32.mrf.mxu0
    %v12456 = vpop.f32.mrf.mxu0
    %v12457 = vadd.f32 %v11525, %v12456
    %v12458 = vpop.f32.mrf.mxu0
    %12459 = vmatprep.mubr.bf16.mxu0 %v12117
    %12460 = vmatmul.mubr.bf16.gmra.mxu0 %v12116
    %v12461 = vpop.f32.mrf.mxu0
    %v12462 = vadd.f32 %v11530, %v12461
    %v12463 = vpop.f32.mrf.mxu0
    %v12464 = vpop.f32.mrf.mxu0
    %v12465 = vadd.f32 %v11535, %v12464
    %v12466 = vpop.f32.mrf.mxu0
    %12467 = vmatprep.mubr.bf16.mxu0 %v12129
    %12468 = vmatmul.mubr.bf16.gmra.mxu0 %v12128
    %v12469 = vpop.f32.mrf.mxu0
    %v12470 = vadd.f32 %v11540, %v12469
    %v12471 = vpop.f32.mrf.mxu0
    %v12472 = vpop.f32.mrf.mxu0
    %v12473 = vadd.f32 %v11545, %v12472
    %v12474 = vpop.f32.mrf.mxu0
    %12475 = vmatprep.mubr.bf16.mxu0 %v12141
    %12476 = vmatmul.mubr.bf16.gmra.mxu0 %v12140
    %v12477 = vpop.f32.mrf.mxu0
    %v12478 = vadd.f32 %v11550, %v12477
    %v12479 = vpop.f32.mrf.mxu0
    %v12480 = vpop.f32.mrf.mxu0
    %v12481 = vadd.f32 %v11555, %v12480
    %v12482 = vpop.f32.mrf.mxu0
    %12483 = vmatprep.mubr.bf16.mxu0 %v12153
    %12484 = vmatmul.mubr.bf16.gmra.mxu0 %v12152
    %v12485 = vpop.f32.mrf.mxu0
    %v12486 = vadd.f32 %v11560, %v12485
    %v12487 = vpop.f32.mrf.mxu0
    %v12488 = vpop.f32.mrf.mxu0
    %v12489 = vadd.f32 %v11565, %v12488
    %v12490 = vpop.f32.mrf.mxu0
    %12491 = vmatprep.mubr.bf16.mxu0 %v12165
    %12492 = vmatmul.mubr.bf16.gmra.mxu0 %v12164
    %v12493 = vpop.f32.mrf.mxu0
    %v12494 = vadd.f32 %v11570, %v12493
    %v12495 = vpop.f32.mrf.mxu0
    %v12496 = vpop.f32.mrf.mxu0
    %v12497 = vadd.f32 %v11575, %v12496
    %v12498 = vpop.f32.mrf.mxu0
    %12499 = vmatprep.mubr.bf16.mxu0 %v12177
    %12500 = vmatmul.mubr.bf16.gmra.mxu0 %v12176
    %v12501 = vpop.f32.mrf.mxu0
    %v12502 = vadd.f32 %v11580, %v12501
    %v12503 = vpop.f32.mrf.mxu0
    %v12504 = vpop.f32.mrf.mxu0
    %v12505 = vpop.f32.mrf.mxu0
    %12506 = vdwg.mxu0
    %12507 = vmatprep.subr.bf16.mxu0 0
    %12508 = vmatpush1.bf16.msra.mxu0 %v11365
    %12509 = vmatprep.subr.bf16.mxu0 0
    %12510 = vmatpush1.bf16.msra.mxu0 %v11364
    %12511 = vmatprep.subr.bf16.mxu0 0
    %12512 = vmatpush1.bf16.msra.mxu0 %v11363
    %12513 = vmatprep.subr.bf16.mxu0 0
    %12514 = vmatpush1.bf16.msra.mxu0 %v11362
    %12515 = vmatprep.subr.bf16.mxu0 0
    %12516 = vmatpush1.bf16.msra.mxu0 %v11361
    %12517 = vmatprep.subr.bf16.mxu0 0
    %12518 = vmatpush1.bf16.msra.mxu0 %v11360
    %12519 = vmatprep.subr.bf16.mxu0 0
    %12520 = vmatpush1.bf16.msra.mxu0 %v11359
    %12521 = vmatprep.subr.bf16.mxu0 0
    %12522 = vmatpush1.bf16.msra.mxu0 %v11358
    %12523 = vmatprep.subr.bf16.mxu0 0
    %12524 = vmatpush2.bf16.msra.mxu0 %v11373
    %12525 = vmatprep.subr.bf16.mxu0 0
    %12526 = vmatpush2.bf16.msra.mxu0 %v11372
    %12527 = vmatprep.subr.bf16.mxu0 0
    %12528 = vmatpush2.bf16.msra.mxu0 %v11371
    %12529 = vmatprep.subr.bf16.mxu0 0
    %12530 = vmatpush2.bf16.msra.mxu0 %v11370
    %12531 = vmatprep.subr.bf16.mxu0 0
    %12532 = vmatpush2.bf16.msra.mxu0 %v11369
    %12533 = vmatprep.subr.bf16.mxu0 0
    %12534 = vmatpush2.bf16.msra.mxu0 %v11368
    %12535 = vmatprep.subr.bf16.mxu0 0
    %12536 = vmatpush2.bf16.msra.mxu0 %v11367
    %12537 = vmatprep.subr.bf16.mxu0 0
    %12538 = vmatpush2.bf16.msra.mxu0 %v11366
    %12539 = vmatprep.mubr.bf16.mxu0 %v12035
    %12540 = vmatmul.mubr.bf16.gmra.mxu0 %v12034
    %v12541 = vpop.f32.mrf.mxu0
    %v12542 = vadd.f32 %v12406, %v12541
    %v12543 = vpop.f32.mrf.mxu0
    %v12544 = vpop.f32.mrf.mxu0
    %v12545 = vadd.f32 %v12409, %v12544
    %v12546 = vpop.f32.mrf.mxu0
    %12547 = vmatprep.mubr.bf16.mxu0 %v12047
    %12548 = vmatmul.mubr.bf16.gmra.mxu0 %v12046
    %v12549 = vpop.f32.mrf.mxu0
    %v12550 = vadd.f32 %v12414, %v12549
    %v12551 = vpop.f32.mrf.mxu0
    %v12552 = vpop.f32.mrf.mxu0
    %v12553 = vadd.f32 %v12417, %v12552
    %v12554 = vpop.f32.mrf.mxu0
    %12555 = vmatprep.mubr.bf16.mxu0 %v12059
    %12556 = vmatmul.mubr.bf16.gmra.mxu0 %v12058
    %v12557 = vpop.f32.mrf.mxu0
    %v12558 = vadd.f32 %v12422, %v12557
    %v12559 = vpop.f32.mrf.mxu0
    %v12560 = vpop.f32.mrf.mxu0
    %v12561 = vadd.f32 %v12425, %v12560
    %v12562 = vpop.f32.mrf.mxu0
    %12563 = vmatprep.mubr.bf16.mxu0 %v12071
    %12564 = vmatmul.mubr.bf16.gmra.mxu0 %v12070
    %v12565 = vpop.f32.mrf.mxu0
    %v12566 = vadd.f32 %v12430, %v12565
    %v12567 = vpop.f32.mrf.mxu0
    %v12568 = vpop.f32.mrf.mxu0
    %v12569 = vadd.f32 %v12433, %v12568
    %v12570 = vpop.f32.mrf.mxu0
    %12571 = vmatprep.mubr.bf16.mxu0 %v12083
    %12572 = vmatmul.mubr.bf16.gmra.mxu0 %v12082
    %v12573 = vpop.f32.mrf.mxu0
    %v12574 = vadd.f32 %v12438, %v12573
    %v12575 = vpop.f32.mrf.mxu0
    %v12576 = vpop.f32.mrf.mxu0
    %v12577 = vadd.f32 %v12441, %v12576
    %v12578 = vpop.f32.mrf.mxu0
    %12579 = vmatprep.mubr.bf16.mxu0 %v12095
    %12580 = vmatmul.mubr.bf16.gmra.mxu0 %v12094
    %v12581 = vpop.f32.mrf.mxu0
    %v12582 = vadd.f32 %v12446, %v12581
    %v12583 = vpop.f32.mrf.mxu0
    %v12584 = vpop.f32.mrf.mxu0
    %v12585 = vadd.f32 %v12449, %v12584
    %v12586 = vpop.f32.mrf.mxu0
    %12587 = vmatprep.mubr.bf16.mxu0 %v12107
    %12588 = vmatmul.mubr.bf16.gmra.mxu0 %v12106
    %v12589 = vpop.f32.mrf.mxu0
    %v12590 = vadd.f32 %v12454, %v12589
    %v12591 = vpop.f32.mrf.mxu0
    %v12592 = vpop.f32.mrf.mxu0
    %v12593 = vadd.f32 %v12457, %v12592
    %v12594 = vpop.f32.mrf.mxu0
    %12595 = vmatprep.mubr.bf16.mxu0 %v12119
    %12596 = vmatmul.mubr.bf16.gmra.mxu0 %v12118
    %v12597 = vpop.f32.mrf.mxu0
    %v12598 = vadd.f32 %v12462, %v12597
    %v12599 = vpop.f32.mrf.mxu0
    %v12600 = vpop.f32.mrf.mxu0
    %v12601 = vadd.f32 %v12465, %v12600
    %v12602 = vpop.f32.mrf.mxu0
    %12603 = vmatprep.mubr.bf16.mxu0 %v12131
    %12604 = vmatmul.mubr.bf16.gmra.mxu0 %v12130
    %v12605 = vpop.f32.mrf.mxu0
    %v12606 = vadd.f32 %v12470, %v12605
    %v12607 = vpop.f32.mrf.mxu0
    %v12608 = vpop.f32.mrf.mxu0
    %v12609 = vadd.f32 %v12473, %v12608
    %v12610 = vpop.f32.mrf.mxu0
    %12611 = vmatprep.mubr.bf16.mxu0 %v12143
    %12612 = vmatmul.mubr.bf16.gmra.mxu0 %v12142
    %v12613 = vpop.f32.mrf.mxu0
    %v12614 = vadd.f32 %v12478, %v12613
    %v12615 = vpop.f32.mrf.mxu0
    %v12616 = vpop.f32.mrf.mxu0
    %v12617 = vadd.f32 %v12481, %v12616
    %v12618 = vpop.f32.mrf.mxu0
    %12619 = vmatprep.mubr.bf16.mxu0 %v12155
    %12620 = vmatmul.mubr.bf16.gmra.mxu0 %v12154
    %v12621 = vpop.f32.mrf.mxu0
    %v12622 = vadd.f32 %v12486, %v12621
    %v12623 = vpop.f32.mrf.mxu0
    %v12624 = vpop.f32.mrf.mxu0
    %v12625 = vadd.f32 %v12489, %v12624
    %v12626 = vpop.f32.mrf.mxu0
    %12627 = vmatprep.mubr.bf16.mxu0 %v12167
    %12628 = vmatmul.mubr.bf16.gmra.mxu0 %v12166
    %v12629 = vpop.f32.mrf.mxu0
    %v12630 = vadd.f32 %v12494, %v12629
    %v12631 = vpop.f32.mrf.mxu0
    %v12632 = vpop.f32.mrf.mxu0
    %v12633 = vadd.f32 %v12497, %v12632
    %v12634 = vpop.f32.mrf.mxu0
    %12635 = vmatprep.mubr.bf16.mxu0 %v12179
    %12636 = vmatmul.mubr.bf16.gmra.mxu0 %v12178
    %v12637 = vpop.f32.mrf.mxu0
    %v12638 = vadd.f32 %v12502, %v12637
    %v12639 = vpop.f32.mrf.mxu0
    %v12640 = vpop.f32.mrf.mxu0
    %v12641 = vpop.f32.mrf.mxu0
    %12642 = vdwg.mxu0
    %12643 = vmatprep.subr.bf16.mxu0 0
    %12644 = vmatpush1.bf16.msra.mxu0 %v11381
    %12645 = vmatprep.subr.bf16.mxu0 0
    %12646 = vmatpush1.bf16.msra.mxu0 %v11380
    %12647 = vmatprep.subr.bf16.mxu0 0
    %12648 = vmatpush1.bf16.msra.mxu0 %v11379
    %12649 = vmatprep.subr.bf16.mxu0 0
    %12650 = vmatpush1.bf16.msra.mxu0 %v11378
    %12651 = vmatprep.subr.bf16.mxu0 0
    %12652 = vmatpush1.bf16.msra.mxu0 %v11377
    %12653 = vmatprep.subr.bf16.mxu0 0
    %12654 = vmatpush1.bf16.msra.mxu0 %v11376
    %12655 = vmatprep.subr.bf16.mxu0 0
    %12656 = vmatpush1.bf16.msra.mxu0 %v11375
    %12657 = vmatprep.subr.bf16.mxu0 0
    %12658 = vmatpush1.bf16.msra.mxu0 %v11374
    %12659 = vmatprep.subr.bf16.mxu0 0
    %12660 = vmatpush2.bf16.msra.mxu0 %v11389
    %12661 = vmatprep.subr.bf16.mxu0 0
    %12662 = vmatpush2.bf16.msra.mxu0 %v11388
    %12663 = vmatprep.subr.bf16.mxu0 0
    %12664 = vmatpush2.bf16.msra.mxu0 %v11387
    %12665 = vmatprep.subr.bf16.mxu0 0
    %12666 = vmatpush2.bf16.msra.mxu0 %v11386
    %12667 = vmatprep.subr.bf16.mxu0 0
    %12668 = vmatpush2.bf16.msra.mxu0 %v11385
    %12669 = vmatprep.subr.bf16.mxu0 0
    %12670 = vmatpush2.bf16.msra.mxu0 %v11384
    %12671 = vmatprep.subr.bf16.mxu0 0
    %12672 = vmatpush2.bf16.msra.mxu0 %v11383
    %12673 = vmatprep.subr.bf16.mxu0 0
    %12674 = vmatpush2.bf16.msra.mxu0 %v11382
    %12675 = vmatprep.mubr.bf16.mxu0 %v12037
    %12676 = vmatmul.mubr.bf16.gmra.mxu0 %v12036
    %v12677 = vpop.f32.mrf.mxu0
    %v12678 = vadd.f32 %v12542, %v12677
    %v12679 = vpop.f32.mrf.mxu0
    %v12680 = vpop.f32.mrf.mxu0
    %v12681 = vadd.f32 %v12545, %v12680
    %v12682 = vpop.f32.mrf.mxu0
    %12683 = vmatprep.mubr.bf16.mxu0 %v12049
    %12684 = vmatmul.mubr.bf16.gmra.mxu0 %v12048
    %v12685 = vpop.f32.mrf.mxu0
    %v12686 = vadd.f32 %v12550, %v12685
    %v12687 = vpop.f32.mrf.mxu0
    %v12688 = vpop.f32.mrf.mxu0
    %v12689 = vadd.f32 %v12553, %v12688
    %v12690 = vpop.f32.mrf.mxu0
    %12691 = vmatprep.mubr.bf16.mxu0 %v12061
    %12692 = vmatmul.mubr.bf16.gmra.mxu0 %v12060
    %v12693 = vpop.f32.mrf.mxu0
    %v12694 = vadd.f32 %v12558, %v12693
    %v12695 = vpop.f32.mrf.mxu0
    %v12696 = vpop.f32.mrf.mxu0
    %v12697 = vadd.f32 %v12561, %v12696
    %v12698 = vpop.f32.mrf.mxu0
    %12699 = vmatprep.mubr.bf16.mxu0 %v12073
    %12700 = vmatmul.mubr.bf16.gmra.mxu0 %v12072
    %v12701 = vpop.f32.mrf.mxu0
    %v12702 = vadd.f32 %v12566, %v12701
    %v12703 = vpop.f32.mrf.mxu0
    %v12704 = vpop.f32.mrf.mxu0
    %v12705 = vadd.f32 %v12569, %v12704
    %v12706 = vpop.f32.mrf.mxu0
    %12707 = vmatprep.mubr.bf16.mxu0 %v12085
    %12708 = vmatmul.mubr.bf16.gmra.mxu0 %v12084
    %v12709 = vpop.f32.mrf.mxu0
    %v12710 = vadd.f32 %v12574, %v12709
    %v12711 = vpop.f32.mrf.mxu0
    %v12712 = vpop.f32.mrf.mxu0
    %v12713 = vadd.f32 %v12577, %v12712
    %v12714 = vpop.f32.mrf.mxu0
    %12715 = vmatprep.mubr.bf16.mxu0 %v12097
    %12716 = vmatmul.mubr.bf16.gmra.mxu0 %v12096
    %v12717 = vpop.f32.mrf.mxu0
    %v12718 = vadd.f32 %v12582, %v12717
    %v12719 = vpop.f32.mrf.mxu0
    %v12720 = vpop.f32.mrf.mxu0
    %v12721 = vadd.f32 %v12585, %v12720
    %v12722 = vpop.f32.mrf.mxu0
    %12723 = vmatprep.mubr.bf16.mxu0 %v12109
    %12724 = vmatmul.mubr.bf16.gmra.mxu0 %v12108
    %v12725 = vpop.f32.mrf.mxu0
    %v12726 = vadd.f32 %v12590, %v12725
    %v12727 = vpop.f32.mrf.mxu0
    %v12728 = vpop.f32.mrf.mxu0
    %v12729 = vadd.f32 %v12593, %v12728
    %v12730 = vpop.f32.mrf.mxu0
    %12731 = vmatprep.mubr.bf16.mxu0 %v12121
    %12732 = vmatmul.mubr.bf16.gmra.mxu0 %v12120
    %v12733 = vpop.f32.mrf.mxu0
    %v12734 = vadd.f32 %v12598, %v12733
    %v12735 = vpop.f32.mrf.mxu0
    %v12736 = vpop.f32.mrf.mxu0
    %v12737 = vadd.f32 %v12601, %v12736
    %v12738 = vpop.f32.mrf.mxu0
    %12739 = vmatprep.mubr.bf16.mxu0 %v12133
    %12740 = vmatmul.mubr.bf16.gmra.mxu0 %v12132
    %v12741 = vpop.f32.mrf.mxu0
    %v12742 = vadd.f32 %v12606, %v12741
    %v12743 = vpop.f32.mrf.mxu0
    %v12744 = vpop.f32.mrf.mxu0
    %v12745 = vadd.f32 %v12609, %v12744
    %v12746 = vpop.f32.mrf.mxu0
    %12747 = vmatprep.mubr.bf16.mxu0 %v12145
    %12748 = vmatmul.mubr.bf16.gmra.mxu0 %v12144
    %v12749 = vpop.f32.mrf.mxu0
    %v12750 = vadd.f32 %v12614, %v12749
    %v12751 = vpop.f32.mrf.mxu0
    %v12752 = vpop.f32.mrf.mxu0
    %v12753 = vadd.f32 %v12617, %v12752
    %v12754 = vpop.f32.mrf.mxu0
    %12755 = vmatprep.mubr.bf16.mxu0 %v12157
    %12756 = vmatmul.mubr.bf16.gmra.mxu0 %v12156
    %v12757 = vpop.f32.mrf.mxu0
    %v12758 = vadd.f32 %v12622, %v12757
    %v12759 = vpop.f32.mrf.mxu0
    %v12760 = vpop.f32.mrf.mxu0
    %v12761 = vadd.f32 %v12625, %v12760
    %v12762 = vpop.f32.mrf.mxu0
    %12763 = vmatprep.mubr.bf16.mxu0 %v12169
    %12764 = vmatmul.mubr.bf16.gmra.mxu0 %v12168
    %v12765 = vpop.f32.mrf.mxu0
    %v12766 = vadd.f32 %v12630, %v12765
    %v12767 = vpop.f32.mrf.mxu0
    %v12768 = vpop.f32.mrf.mxu0
    %v12769 = vadd.f32 %v12633, %v12768
    %v12770 = vpop.f32.mrf.mxu0
    %12771 = vmatprep.mubr.bf16.mxu0 %v12181
    %12772 = vmatmul.mubr.bf16.gmra.mxu0 %v12180
    %v12773 = vpop.f32.mrf.mxu0
    %v12774 = vadd.f32 %v12638, %v12773
    %v12775 = vpop.f32.mrf.mxu0
    %v12776 = vpop.f32.mrf.mxu0
    %v12777 = vpop.f32.mrf.mxu0
    %12778 = vdwg.mxu0
    %12779 = vmatprep.subr.bf16.mxu0 0
    %12780 = vmatpush1.bf16.msra.mxu0 %v11397
    %12781 = vmatprep.subr.bf16.mxu0 0
    %12782 = vmatpush1.bf16.msra.mxu0 %v11396
    %12783 = vmatprep.subr.bf16.mxu0 0
    %12784 = vmatpush1.bf16.msra.mxu0 %v11395
    %12785 = vmatprep.subr.bf16.mxu0 0
    %12786 = vmatpush1.bf16.msra.mxu0 %v11394
    %12787 = vmatprep.subr.bf16.mxu0 0
    %12788 = vmatpush1.bf16.msra.mxu0 %v11393
    %12789 = vmatprep.subr.bf16.mxu0 0
    %12790 = vmatpush1.bf16.msra.mxu0 %v11392
    %12791 = vmatprep.subr.bf16.mxu0 0
    %12792 = vmatpush1.bf16.msra.mxu0 %v11391
    %12793 = vmatprep.subr.bf16.mxu0 0
    %12794 = vmatpush1.bf16.msra.mxu0 %v11390
    %12795 = vmatprep.subr.bf16.mxu0 0
    %12796 = vmatpush2.bf16.msra.mxu0 %v11405
    %12797 = vmatprep.subr.bf16.mxu0 0
    %12798 = vmatpush2.bf16.msra.mxu0 %v11404
    %12799 = vmatprep.subr.bf16.mxu0 0
    %12800 = vmatpush2.bf16.msra.mxu0 %v11403
    %12801 = vmatprep.subr.bf16.mxu0 0
    %12802 = vmatpush2.bf16.msra.mxu0 %v11402
    %12803 = vmatprep.subr.bf16.mxu0 0
    %12804 = vmatpush2.bf16.msra.mxu0 %v11401
    %12805 = vmatprep.subr.bf16.mxu0 0
    %12806 = vmatpush2.bf16.msra.mxu0 %v11400
    %12807 = vmatprep.subr.bf16.mxu0 0
    %12808 = vmatpush2.bf16.msra.mxu0 %v11399
    %12809 = vmatprep.subr.bf16.mxu0 0
    %12810 = vmatpush2.bf16.msra.mxu0 %v11398
    %12811 = vmatprep.mubr.bf16.mxu0 %v12039
    %12812 = vmatmul.mubr.bf16.gmra.mxu0 %v12038
    %v12813 = vpop.f32.mrf.mxu0
    %v12814 = vadd.f32 %v12678, %v12813
    %v12815 = vpop.f32.mrf.mxu0
    %v12816 = vpop.f32.mrf.mxu0
    %v12817 = vadd.f32 %v12681, %v12816
    %v12818 = vpop.f32.mrf.mxu0
    %12819 = vmatprep.mubr.bf16.mxu0 %v12051
    %12820 = vmatmul.mubr.bf16.gmra.mxu0 %v12050
    %v12821 = vpop.f32.mrf.mxu0
    %v12822 = vadd.f32 %v12686, %v12821
    %v12823 = vpop.f32.mrf.mxu0
    %v12824 = vpop.f32.mrf.mxu0
    %v12825 = vadd.f32 %v12689, %v12824
    %v12826 = vpop.f32.mrf.mxu0
    %12827 = vmatprep.mubr.bf16.mxu0 %v12063
    %12828 = vmatmul.mubr.bf16.gmra.mxu0 %v12062
    %v12829 = vpop.f32.mrf.mxu0
    %v12830 = vadd.f32 %v12694, %v12829
    %v12831 = vpop.f32.mrf.mxu0
    %v12832 = vpop.f32.mrf.mxu0
    %v12833 = vadd.f32 %v12697, %v12832
    %v12834 = vpop.f32.mrf.mxu0
    %12835 = vmatprep.mubr.bf16.mxu0 %v12075
    %12836 = vmatmul.mubr.bf16.gmra.mxu0 %v12074
    %v12837 = vpop.f32.mrf.mxu0
    %v12838 = vadd.f32 %v12702, %v12837
    %v12839 = vpop.f32.mrf.mxu0
    %v12840 = vpop.f32.mrf.mxu0
    %v12841 = vadd.f32 %v12705, %v12840
    %v12842 = vpop.f32.mrf.mxu0
    %12843 = vmatprep.mubr.bf16.mxu0 %v12087
    %12844 = vmatmul.mubr.bf16.gmra.mxu0 %v12086
    %v12845 = vpop.f32.mrf.mxu0
    %v12846 = vadd.f32 %v12710, %v12845
    %v12847 = vpop.f32.mrf.mxu0
    %v12848 = vpop.f32.mrf.mxu0
    %v12849 = vadd.f32 %v12713, %v12848
    %v12850 = vpop.f32.mrf.mxu0
    %12851 = vmatprep.mubr.bf16.mxu0 %v12099
    %12852 = vmatmul.mubr.bf16.gmra.mxu0 %v12098
    %v12853 = vpop.f32.mrf.mxu0
    %v12854 = vadd.f32 %v12718, %v12853
    %v12855 = vpop.f32.mrf.mxu0
    %v12856 = vpop.f32.mrf.mxu0
    %v12857 = vadd.f32 %v12721, %v12856
    %v12858 = vpop.f32.mrf.mxu0
    %12859 = vmatprep.mubr.bf16.mxu0 %v12111
    %12860 = vmatmul.mubr.bf16.gmra.mxu0 %v12110
    %v12861 = vpop.f32.mrf.mxu0
    %v12862 = vadd.f32 %v12726, %v12861
    %v12863 = vpop.f32.mrf.mxu0
    %v12864 = vpop.f32.mrf.mxu0
    %v12865 = vadd.f32 %v12729, %v12864
    %v12866 = vpop.f32.mrf.mxu0
    %12867 = vmatprep.mubr.bf16.mxu0 %v12123
    %12868 = vmatmul.mubr.bf16.gmra.mxu0 %v12122
    %v12869 = vpop.f32.mrf.mxu0
    %v12870 = vadd.f32 %v12734, %v12869
    %v12871 = vpop.f32.mrf.mxu0
    %v12872 = vpop.f32.mrf.mxu0
    %v12873 = vadd.f32 %v12737, %v12872
    %v12874 = vpop.f32.mrf.mxu0
    %12875 = vmatprep.mubr.bf16.mxu0 %v12135
    %12876 = vmatmul.mubr.bf16.gmra.mxu0 %v12134
    %v12877 = vpop.f32.mrf.mxu0
    %v12878 = vadd.f32 %v12742, %v12877
    %v12879 = vpop.f32.mrf.mxu0
    %v12880 = vpop.f32.mrf.mxu0
    %v12881 = vadd.f32 %v12745, %v12880
    %v12882 = vpop.f32.mrf.mxu0
    %12883 = vmatprep.mubr.bf16.mxu0 %v12147
    %12884 = vmatmul.mubr.bf16.gmra.mxu0 %v12146
    %v12885 = vpop.f32.mrf.mxu0
    %v12886 = vadd.f32 %v12750, %v12885
    %v12887 = vpop.f32.mrf.mxu0
    %v12888 = vpop.f32.mrf.mxu0
    %v12889 = vadd.f32 %v12753, %v12888
    %v12890 = vpop.f32.mrf.mxu0
    %12891 = vmatprep.mubr.bf16.mxu0 %v12159
    %12892 = vmatmul.mubr.bf16.gmra.mxu0 %v12158
    %v12893 = vpop.f32.mrf.mxu0
    %v12894 = vadd.f32 %v12758, %v12893
    %v12895 = vpop.f32.mrf.mxu0
    %v12896 = vpop.f32.mrf.mxu0
    %v12897 = vadd.f32 %v12761, %v12896
    %v12898 = vpop.f32.mrf.mxu0
    %12899 = vmatprep.mubr.bf16.mxu0 %v12171
    %12900 = vmatmul.mubr.bf16.gmra.mxu0 %v12170
    %v12901 = vpop.f32.mrf.mxu0
    %v12902 = vadd.f32 %v12766, %v12901
    %v12903 = vpop.f32.mrf.mxu0
    %v12904 = vpop.f32.mrf.mxu0
    %v12905 = vadd.f32 %v12769, %v12904
    %v12906 = vpop.f32.mrf.mxu0
    %12907 = vmatprep.mubr.bf16.mxu0 %v12183
    %12908 = vmatmul.mubr.bf16.gmra.mxu0 %v12182
    %v12909 = vpop.f32.mrf.mxu0
    %v12910 = vadd.f32 %v12774, %v12909
    %v12911 = vpop.f32.mrf.mxu0
    %v12912 = vpop.f32.mrf.mxu0
    %v12913 = vpop.f32.mrf.mxu0
    %12914 = vdwg.mxu0
    %12915 = vmatprep.subr.bf16.mxu0 0
    %12916 = vmatpush1.bf16.msra.mxu0 %v11413
    %12917 = vmatprep.subr.bf16.mxu0 0
    %12918 = vmatpush1.bf16.msra.mxu0 %v11412
    %12919 = vmatprep.subr.bf16.mxu0 0
    %12920 = vmatpush1.bf16.msra.mxu0 %v11411
    %12921 = vmatprep.subr.bf16.mxu0 0
    %12922 = vmatpush1.bf16.msra.mxu0 %v11410
    %12923 = vmatprep.subr.bf16.mxu0 0
    %12924 = vmatpush1.bf16.msra.mxu0 %v11409
    %12925 = vmatprep.subr.bf16.mxu0 0
    %12926 = vmatpush1.bf16.msra.mxu0 %v11408
    %12927 = vmatprep.subr.bf16.mxu0 0
    %12928 = vmatpush1.bf16.msra.mxu0 %v11407
    %12929 = vmatprep.subr.bf16.mxu0 0
    %12930 = vmatpush1.bf16.msra.mxu0 %v11406
    %12931 = vmatprep.subr.bf16.mxu0 0
    %12932 = vmatpush2.bf16.msra.mxu0 %v11421
    %12933 = vmatprep.subr.bf16.mxu0 0
    %12934 = vmatpush2.bf16.msra.mxu0 %v11420
    %12935 = vmatprep.subr.bf16.mxu0 0
    %12936 = vmatpush2.bf16.msra.mxu0 %v11419
    %12937 = vmatprep.subr.bf16.mxu0 0
    %12938 = vmatpush2.bf16.msra.mxu0 %v11418
    %12939 = vmatprep.subr.bf16.mxu0 0
    %12940 = vmatpush2.bf16.msra.mxu0 %v11417
    %12941 = vmatprep.subr.bf16.mxu0 0
    %12942 = vmatpush2.bf16.msra.mxu0 %v11416
    %12943 = vmatprep.subr.bf16.mxu0 0
    %12944 = vmatpush2.bf16.msra.mxu0 %v11415
    %12945 = vmatprep.subr.bf16.mxu0 0
    %12946 = vmatpush2.bf16.msra.mxu0 %v11414
    %12947 = vmatprep.mubr.bf16.mxu0 %v12041
    %12948 = vmatmul.mubr.bf16.gmra.mxu0 %v12040
    %v12949 = vpop.f32.mrf.mxu0
    %v12950 = vadd.f32 %v12814, %v12949
    %v12951 = vpop.f32.mrf.mxu0
    %v12952 = vpop.f32.mrf.mxu0
    %v12953 = vadd.f32 %v12817, %v12952
    %v12954 = vpop.f32.mrf.mxu0
    %12955 = vmatprep.mubr.bf16.mxu0 %v12053
    %12956 = vmatmul.mubr.bf16.gmra.mxu0 %v12052
    %v12957 = vpop.f32.mrf.mxu0
    %v12958 = vadd.f32 %v12822, %v12957
    %v12959 = vpop.f32.mrf.mxu0
    %v12960 = vpop.f32.mrf.mxu0
    %v12961 = vadd.f32 %v12825, %v12960
    %v12962 = vpop.f32.mrf.mxu0
    %12963 = vmatprep.mubr.bf16.mxu0 %v12065
    %12964 = vmatmul.mubr.bf16.gmra.mxu0 %v12064
    %v12965 = vpop.f32.mrf.mxu0
    %v12966 = vadd.f32 %v12830, %v12965
    %v12967 = vpop.f32.mrf.mxu0
    %v12968 = vpop.f32.mrf.mxu0
    %v12969 = vadd.f32 %v12833, %v12968
    %v12970 = vpop.f32.mrf.mxu0
    %12971 = vmatprep.mubr.bf16.mxu0 %v12077
    %12972 = vmatmul.mubr.bf16.gmra.mxu0 %v12076
    %v12973 = vpop.f32.mrf.mxu0
    %v12974 = vadd.f32 %v12838, %v12973
    %v12975 = vpop.f32.mrf.mxu0
    %v12976 = vpop.f32.mrf.mxu0
    %v12977 = vadd.f32 %v12841, %v12976
    %v12978 = vpop.f32.mrf.mxu0
    %12979 = vmatprep.mubr.bf16.mxu0 %v12089
    %12980 = vmatmul.mubr.bf16.gmra.mxu0 %v12088
    %v12981 = vpop.f32.mrf.mxu0
    %v12982 = vadd.f32 %v12846, %v12981
    %v12983 = vpop.f32.mrf.mxu0
    %v12984 = vpop.f32.mrf.mxu0
    %v12985 = vadd.f32 %v12849, %v12984
    %v12986 = vpop.f32.mrf.mxu0
    %12987 = vmatprep.mubr.bf16.mxu0 %v12101
    %12988 = vmatmul.mubr.bf16.gmra.mxu0 %v12100
    %v12989 = vpop.f32.mrf.mxu0
    %v12990 = vadd.f32 %v12854, %v12989
    %v12991 = vpop.f32.mrf.mxu0
    %v12992 = vpop.f32.mrf.mxu0
    %v12993 = vadd.f32 %v12857, %v12992
    %v12994 = vpop.f32.mrf.mxu0
    %12995 = vmatprep.mubr.bf16.mxu0 %v12113
    %12996 = vmatmul.mubr.bf16.gmra.mxu0 %v12112
    %v12997 = vpop.f32.mrf.mxu0
    %v12998 = vadd.f32 %v12862, %v12997
    %v12999 = vpop.f32.mrf.mxu0
    %v13000 = vpop.f32.mrf.mxu0
    %v13001 = vadd.f32 %v12865, %v13000
    %v13002 = vpop.f32.mrf.mxu0
    %13003 = vmatprep.mubr.bf16.mxu0 %v12125
    %13004 = vmatmul.mubr.bf16.gmra.mxu0 %v12124
    %v13005 = vpop.f32.mrf.mxu0
    %v13006 = vadd.f32 %v12870, %v13005
    %v13007 = vpop.f32.mrf.mxu0
    %v13008 = vpop.f32.mrf.mxu0
    %v13009 = vadd.f32 %v12873, %v13008
    %v13010 = vpop.f32.mrf.mxu0
    %13011 = vmatprep.mubr.bf16.mxu0 %v12137
    %13012 = vmatmul.mubr.bf16.gmra.mxu0 %v12136
    %v13013 = vpop.f32.mrf.mxu0
    %v13014 = vadd.f32 %v12878, %v13013
    %v13015 = vpop.f32.mrf.mxu0
    %v13016 = vpop.f32.mrf.mxu0
    %v13017 = vadd.f32 %v12881, %v13016
    %v13018 = vpop.f32.mrf.mxu0
    %13019 = vmatprep.mubr.bf16.mxu0 %v12149
    %13020 = vmatmul.mubr.bf16.gmra.mxu0 %v12148
    %v13021 = vpop.f32.mrf.mxu0
    %v13022 = vadd.f32 %v12886, %v13021
    %v13023 = vpop.f32.mrf.mxu0
    %v13024 = vpop.f32.mrf.mxu0
    %v13025 = vadd.f32 %v12889, %v13024
    %v13026 = vpop.f32.mrf.mxu0
    %13027 = vmatprep.mubr.bf16.mxu0 %v12161
    %13028 = vmatmul.mubr.bf16.gmra.mxu0 %v12160
    %v13029 = vpop.f32.mrf.mxu0
    %v13030 = vadd.f32 %v12894, %v13029
    %v13031 = vpop.f32.mrf.mxu0
    %v13032 = vpop.f32.mrf.mxu0
    %v13033 = vadd.f32 %v12897, %v13032
    %v13034 = vpop.f32.mrf.mxu0
    %13035 = vmatprep.mubr.bf16.mxu0 %v12173
    %13036 = vmatmul.mubr.bf16.gmra.mxu0 %v12172
    %v13037 = vpop.f32.mrf.mxu0
    %v13038 = vadd.f32 %v12902, %v13037
    %v13039 = vpop.f32.mrf.mxu0
    %v13040 = vpop.f32.mrf.mxu0
    %v13041 = vadd.f32 %v12905, %v13040
    %v13042 = vpop.f32.mrf.mxu0
    %13043 = vmatprep.mubr.bf16.mxu0 %v12185
    %13044 = vmatmul.mubr.bf16.gmra.mxu0 %v12184
    %v13045 = vpop.f32.mrf.mxu0
    %v13046 = vadd.f32 %v12910, %v13045
    %v13047 = vpop.f32.mrf.mxu0
    %v13048 = vpop.f32.mrf.mxu0
    %v13049 = vpop.f32.mrf.mxu0
    %13050 = vdwg.mxu0
    %13051 = vmatprep.subr.bf16.mxu0 0
    %13052 = vmatpush1.bf16.msra.mxu0 %v11429
    %13053 = vmatprep.subr.bf16.mxu0 0
    %13054 = vmatpush1.bf16.msra.mxu0 %v11428
    %13055 = vmatprep.subr.bf16.mxu0 0
    %13056 = vmatpush1.bf16.msra.mxu0 %v11427
    %13057 = vmatprep.subr.bf16.mxu0 0
    %13058 = vmatpush1.bf16.msra.mxu0 %v11426
    %13059 = vmatprep.subr.bf16.mxu0 0
    %13060 = vmatpush1.bf16.msra.mxu0 %v11425
    %13061 = vmatprep.subr.bf16.mxu0 0
    %13062 = vmatpush1.bf16.msra.mxu0 %v11424
    %13063 = vmatprep.subr.bf16.mxu0 0
    %13064 = vmatpush1.bf16.msra.mxu0 %v11423
    %13065 = vmatprep.subr.bf16.mxu0 0
    %13066 = vmatpush1.bf16.msra.mxu0 %v11422
    %13067 = vmatprep.subr.bf16.mxu0 0
    %13068 = vmatpush2.bf16.msra.mxu0 0
    %13069 = vmatprep.subr.bf16.mxu0 0
    %13070 = vmatpush2.bf16.msra.mxu0 0
    %13071 = vmatprep.subr.bf16.mxu0 0
    %13072 = vmatpush2.bf16.msra.mxu0 0
    %13073 = vmatprep.subr.bf16.mxu0 0
    %13074 = vmatpush2.bf16.msra.mxu0 0
    %13075 = vmatprep.subr.bf16.mxu0 0
    %13076 = vmatpush2.bf16.msra.mxu0 0
    %13077 = vmatprep.subr.bf16.mxu0 0
    %13078 = vmatpush2.bf16.msra.mxu0 0
    %13079 = vmatprep.subr.bf16.mxu0 0
    %13080 = vmatpush2.bf16.msra.mxu0 %v11431
    %13081 = vmatprep.subr.bf16.mxu0 0
    %13082 = vmatpush2.bf16.msra.mxu0 %v11430
    %13083 = vmatprep.mubr.bf16.mxu0 %v12333
    %13084 = vmatmul.mubr.bf16.gmra.mxu0 %v12042
    %v13085 = vpop.f32.mrf.mxu0
    %v13086 = vadd.f32 %v12950, %v13085
    %v13087 = vpop.f32.mrf.mxu0
    %v13088 = vpop.f32.mrf.mxu0
    %v13089 = vadd.f32 %v12953, %v13088
    %v13090 = vpop.f32.mrf.mxu0
    %13091 = vmatprep.mubr.bf16.mxu0 %v12336
    %13092 = vmatmul.mubr.bf16.gmra.mxu0 %v12054
    %v13093 = vpop.f32.mrf.mxu0
    %v13094 = vadd.f32 %v12958, %v13093
    %v13095 = vpop.f32.mrf.mxu0
    %v13096 = vpop.f32.mrf.mxu0
    %v13097 = vadd.f32 %v12961, %v13096
    %v13098 = vpop.f32.mrf.mxu0
    %13099 = vmatprep.mubr.bf16.mxu0 %v12339
    %13100 = vmatmul.mubr.bf16.gmra.mxu0 %v12066
    %v13101 = vpop.f32.mrf.mxu0
    %v13102 = vadd.f32 %v12966, %v13101
    %v13103 = vpop.f32.mrf.mxu0
    %v13104 = vpop.f32.mrf.mxu0
    %v13105 = vadd.f32 %v12969, %v13104
    %v13106 = vpop.f32.mrf.mxu0
    %13107 = vmatprep.mubr.bf16.mxu0 %v12342
    %13108 = vmatmul.mubr.bf16.gmra.mxu0 %v12078
    %v13109 = vpop.f32.mrf.mxu0
    %v13110 = vadd.f32 %v12974, %v13109
    %v13111 = vpop.f32.mrf.mxu0
    %v13112 = vpop.f32.mrf.mxu0
    %v13113 = vadd.f32 %v12977, %v13112
    %v13114 = vpop.f32.mrf.mxu0
    %13115 = vmatprep.mubr.bf16.mxu0 %v12345
    %13116 = vmatmul.mubr.bf16.gmra.mxu0 %v12090
    %v13117 = vpop.f32.mrf.mxu0
    %v13118 = vadd.f32 %v12982, %v13117
    %v13119 = vpop.f32.mrf.mxu0
    %v13120 = vpop.f32.mrf.mxu0
    %v13121 = vadd.f32 %v12985, %v13120
    %v13122 = vpop.f32.mrf.mxu0
    %13123 = vmatprep.mubr.bf16.mxu0 %v12348
    %13124 = vmatmul.mubr.bf16.gmra.mxu0 %v12102
    %v13125 = vpop.f32.mrf.mxu0
    %v13126 = vadd.f32 %v12990, %v13125
    %v13127 = vpop.f32.mrf.mxu0
    %v13128 = vpop.f32.mrf.mxu0
    %v13129 = vadd.f32 %v12993, %v13128
    %v13130 = vpop.f32.mrf.mxu0
    %13131 = vmatprep.mubr.bf16.mxu0 %v12351
    %13132 = vmatmul.mubr.bf16.gmra.mxu0 %v12114
    %v13133 = vpop.f32.mrf.mxu0
    %v13134 = vadd.f32 %v12998, %v13133
    %v13135 = vpop.f32.mrf.mxu0
    %v13136 = vpop.f32.mrf.mxu0
    %v13137 = vadd.f32 %v13001, %v13136
    %v13138 = vpop.f32.mrf.mxu0
    %13139 = vmatprep.mubr.bf16.mxu0 %v12354
    %13140 = vmatmul.mubr.bf16.gmra.mxu0 %v12126
    %v13141 = vpop.f32.mrf.mxu0
    %v13142 = vadd.f32 %v13006, %v13141
    %v13143 = vpop.f32.mrf.mxu0
    %v13144 = vpop.f32.mrf.mxu0
    %v13145 = vadd.f32 %v13009, %v13144
    %v13146 = vpop.f32.mrf.mxu0
    %13147 = vmatprep.mubr.bf16.mxu0 %v12357
    %13148 = vmatmul.mubr.bf16.gmra.mxu0 %v12138
    %v13149 = vpop.f32.mrf.mxu0
    %v13150 = vadd.f32 %v13014, %v13149
    %v13151 = vpop.f32.mrf.mxu0
    %v13152 = vpop.f32.mrf.mxu0
    %v13153 = vadd.f32 %v13017, %v13152
    %v13154 = vpop.f32.mrf.mxu0
    %13155 = vmatprep.mubr.bf16.mxu0 %v12360
    %13156 = vmatmul.mubr.bf16.gmra.mxu0 %v12150
    %v13157 = vpop.f32.mrf.mxu0
    %v13158 = vadd.f32 %v13022, %v13157
    %v13159 = vpop.f32.mrf.mxu0
    %v13160 = vpop.f32.mrf.mxu0
    %v13161 = vadd.f32 %v13025, %v13160
    %v13162 = vpop.f32.mrf.mxu0
    %13163 = vmatprep.mubr.bf16.mxu0 %v12363
    %13164 = vmatmul.mubr.bf16.gmra.mxu0 %v12162
    %v13165 = vpop.f32.mrf.mxu0
    %v13166 = vadd.f32 %v13030, %v13165
    %v13167 = vpop.f32.mrf.mxu0
    %v13168 = vpop.f32.mrf.mxu0
    %v13169 = vadd.f32 %v13033, %v13168
    %v13170 = vpop.f32.mrf.mxu0
    %13171 = vmatprep.mubr.bf16.mxu0 %v12366
    %13172 = vmatmul.mubr.bf16.gmra.mxu0 %v12174
    %v13173 = vpop.f32.mrf.mxu0
    %v13174 = vadd.f32 %v13038, %v13173
    %v13175 = vpop.f32.mrf.mxu0
    %v13176 = vpop.f32.mrf.mxu0
    %v13177 = vadd.f32 %v13041, %v13176
    %v13178 = vpop.f32.mrf.mxu0
    %13179 = vmatprep.mubr.bf16.mxu0 %v12369
    %13180 = vmatmul.mubr.bf16.gmra.mxu0 %v12186
    %v13181 = vpop.f32.mrf.mxu0
    %v13182 = vadd.f32 %v13046, %v13181
    %v13183 = vpop.f32.mrf.mxu0
    %v13184 = vpop.f32.mrf.mxu0
    %v13185 = vpop.f32.mrf.mxu0
    %13186 = vdwg.mxu0
    %v13187 = vmax.f32 %v13086, 0.0
    %v13188 = vmax.f32 %v13089, 0.0
    %v13189 = vmax.f32 %v13094, 0.0
    %v13190 = vmax.f32 %v13097, 0.0
    %v13191 = vmax.f32 %v13102, 0.0
    %v13192 = vmax.f32 %v13105, 0.0
    %v13193 = vmax.f32 %v13110, 0.0
    %v13194 = vmax.f32 %v13113, 0.0
    %v13195 = vmax.f32 %v13118, 0.0
    %v13196 = vmax.f32 %v13121, 0.0
    %v13197 = vmax.f32 %v13126, 0.0
    %v13198 = vmax.f32 %v13129, 0.0
    %v13199 = vmax.f32 %v13134, 0.0
    %v13200 = vmax.f32 %v13137, 0.0
    %v13201 = vmax.f32 %v13142, 0.0
    %v13202 = vmax.f32 %v13145, 0.0
    %v13203 = vmax.f32 %v13150, 0.0
    %v13204 = vmax.f32 %v13153, 0.0
    %v13205 = vmax.f32 %v13158, 0.0
    %v13206 = vmax.f32 %v13161, 0.0
    %v13207 = vmax.f32 %v13166, 0.0
    %v13208 = vmax.f32 %v13169, 0.0
    %v13209 = vmax.f32 %v13174, 0.0
    %v13210 = vmax.f32 %v13177, 0.0
    %v13211 = vmax.f32 %v13182, 0.0
    %v13212 = vld [vmem:[#allocation7] sm:$0xff]
    %v13213 = vld [vmem:[#allocation7 + $0x8] sm:$0xff]
    %v13214 = vld [vmem:[#allocation7 + $0x10] sm:$0xff]
    %v13215 = vld [vmem:[#allocation7 + $0x18] sm:$0xff]
    %v13216 = vld [vmem:[#allocation7 + $0x20] sm:$0xff]
    %v13217 = vld [vmem:[#allocation7 + $0x28] sm:$0xff]
    %v13218 = vld [vmem:[#allocation7 + $0x30] sm:$0xff]
    %v13219 = vld [vmem:[#allocation7 + $0x38] sm:$0xff]
    %v13220 = vpack.c.bf16 %v13188, %v13187
    %v13221 = vpack.c.bf16 %v13190, %v13189
    %v13222 = vpack.c.bf16 %v13192, %v13191
    %v13223 = vpack.c.bf16 %v13194, %v13193
    %v13224 = vpack.c.bf16 %v13196, %v13195
    %v13225 = vpack.c.bf16 %v13198, %v13197
    %v13226 = vpack.c.bf16 %v13200, %v13199
    %v13227 = vpack.c.bf16 %v13202, %v13201
    %v13228 = vpack.c.bf16 %v13204, %v13203
    %v13229 = vpack.c.bf16 %v13206, %v13205
    %v13230 = vpack.c.bf16 %v13208, %v13207
    %v13231 = vpack.c.bf16 %v13210, %v13209
    %v13232 = vpack.c.bf16 %v13211, %v13211
    %v13233 = vld [vmem:[%s6] sm:$0xff]
    %v13234 = vld [vmem:[%s6 + $0x8] sm:$0xff]
    %v13235 = vld [vmem:[%s6 + $0x10] sm:$0xff]
    %v13236 = vld [vmem:[%s6 + $0x18] sm:$0xff]
    %v13237 = vld [vmem:[%s6 + $0x20] sm:$0xff]
    %v13238 = vld [vmem:[%s6 + $0x28] sm:$0xff]
    %v13239 = vld [vmem:[%s6 + $0x30] sm:$0xff]
    %v13240 = vld [vmem:[%s6 + $0x38] sm:$0xff]
    %13242 = vset.pattern.permute.xlu0 0
    %13243 = vperm.xlu0 %13242, %v13233
    %v13244 = vpop.permute.xlu0 %13243
    %13247 = vset.pattern.permute.xlu0 0
    %13248 = vperm.xlu0 %13247, %v13234
    %v13249 = vpop.permute.xlu0 %13248
    %13252 = vset.pattern.permute.xlu0 0
    %13253 = vperm.xlu0 %13252, %v13235
    %v13254 = vpop.permute.xlu0 %13253
    %13257 = vset.pattern.permute.xlu0 0
    %13258 = vperm.xlu0 %13257, %v13236
    %v13259 = vpop.permute.xlu0 %13258
    %13262 = vset.pattern.permute.xlu0 0
    %13263 = vperm.xlu0 %13262, %v13237
    %v13264 = vpop.permute.xlu0 %13263
    %13267 = vset.pattern.permute.xlu0 0
    %13268 = vperm.xlu0 %13267, %v13238
    %v13269 = vpop.permute.xlu0 %13268
    %13272 = vset.pattern.permute.xlu0 0
    %13273 = vperm.xlu0 %13272, %v13239
    %v13274 = vpop.permute.xlu0 %13273
    %13277 = vset.pattern.permute.xlu0 0
    %13278 = vperm.xlu0 %13277, %v13240
    %v13279 = vpop.permute.xlu0 %13278
    %v13289 = vunpack.c.l.b16 %v13212
    %v13290 = vunpack.c.h.b16 %v13212
    %v13291 = vunpack.c.l.b16 %v13213
    %v13292 = vunpack.c.h.b16 %v13213
    %v13293 = vunpack.c.l.b16 %v13214
    %v13294 = vunpack.c.h.b16 %v13214
    %v13295 = vunpack.c.l.b16 %v13215
    %v13296 = vunpack.c.h.b16 %v13215
    %v13297 = vunpack.c.l.b16 %v13216
    %v13298 = vunpack.c.h.b16 %v13216
    %v13299 = vunpack.c.l.b16 %v13217
    %v13300 = vunpack.c.h.b16 %v13217
    %v13301 = vunpack.c.l.b16 %v13218
    %v13302 = vunpack.c.h.b16 %v13218
    %v13303 = vunpack.c.l.b16 %v13219
    %v13304 = vunpack.c.h.b16 %v13219
    %v13305 = vpack.c.b16 %v13291, %v13289
    %v13306 = vpack.c.b16 %v13292, %v13290
    %v13307 = vpack.c.b16 %v13295, %v13293
    %v13308 = vpack.c.b16 %v13296, %v13294
    %v13309 = vpack.c.b16 %v13299, %v13297
    %v13310 = vpack.c.b16 %v13300, %v13298
    %v13311 = vpack.c.b16 %v13303, %v13301
    %v13312 = vpack.c.b16 %v13304, %v13302
    %vm13317 = vcmask 588800
    %v13319 = vsel %vm13317, %v13306, 0
    %v13322 = vsel %vm13317, %v13308, 0
    %v13325 = vsel %vm13317, %v13310, 0
    %v13328 = vsel %vm13317, %v13312, 0
    %vm13330 = vcmask 1043456
    %v13332 = vsel %vm13330, %v13232, 0
    %13334 = vmatprep.subr.bf16.mxu0 0
    %13335 = vmatpush1.bf16.msra.mxu0 %v13227
    %13336 = vmatprep.subr.bf16.mxu0 0
    %13337 = vmatpush1.bf16.msra.mxu0 %v13226
    %13338 = vmatprep.subr.bf16.mxu0 0
    %13339 = vmatpush1.bf16.msra.mxu0 %v13225
    %13340 = vmatprep.subr.bf16.mxu0 0
    %13341 = vmatpush1.bf16.msra.mxu0 %v13224
    %13342 = vmatprep.subr.bf16.mxu0 0
    %13343 = vmatpush1.bf16.msra.mxu0 %v13223
    %13344 = vmatprep.subr.bf16.mxu0 0
    %13345 = vmatpush1.bf16.msra.mxu0 %v13222
    %13346 = vmatprep.subr.bf16.mxu0 0
    %13347 = vmatpush1.bf16.msra.mxu0 %v13221
    %13348 = vmatprep.subr.bf16.mxu0 0
    %13349 = vmatpush1.bf16.msra.mxu0 %v13220
    %13350 = vmatprep.subr.bf16.mxu0 0
    %13351 = vmatpush2.bf16.msra.mxu0 0
    %13352 = vmatprep.subr.bf16.mxu0 0
    %13353 = vmatpush2.bf16.msra.mxu0 0
    %13354 = vmatprep.subr.bf16.mxu0 0
    %13355 = vmatpush2.bf16.msra.mxu0 0
    %13356 = vmatprep.subr.bf16.mxu0 0
    %13357 = vmatpush2.bf16.msra.mxu0 %v13332
    %13358 = vmatprep.subr.bf16.mxu0 0
    %13359 = vmatpush2.bf16.msra.mxu0 %v13231
    %13360 = vmatprep.subr.bf16.mxu0 0
    %13361 = vmatpush2.bf16.msra.mxu0 %v13230
    %13362 = vmatprep.subr.bf16.mxu0 0
    %13363 = vmatpush2.bf16.msra.mxu0 %v13229
    %13364 = vmatprep.subr.bf16.mxu0 0
    %13365 = vmatpush2.bf16.msra.mxu0 %v13228
    %13366 = vmatprep.mubr.bf16.mxu0 %v13319
    %13367 = vmatmul.mubr.bf16.gmra.mxu0 %v13305
    %v13368 = vpop.f32.mrf.mxu0
    %v13369 = vadd.f32 %v13244, %v13368
    %v13370 = vpop.f32.mrf.mxu0
    %v13371 = vpop.f32.mrf.mxu0
    %v13372 = vadd.f32 %v13249, %v13371
    %v13373 = vpop.f32.mrf.mxu0
    %13374 = vmatprep.mubr.bf16.mxu0 %v13322
    %13375 = vmatmul.mubr.bf16.gmra.mxu0 %v13307
    %v13376 = vpop.f32.mrf.mxu0
    %v13377 = vadd.f32 %v13254, %v13376
    %v13378 = vpop.f32.mrf.mxu0
    %v13379 = vpop.f32.mrf.mxu0
    %v13380 = vadd.f32 %v13259, %v13379
    %v13381 = vpop.f32.mrf.mxu0
    %13382 = vmatprep.mubr.bf16.mxu0 %v13325
    %13383 = vmatmul.mubr.bf16.gmra.mxu0 %v13309
    %v13384 = vpop.f32.mrf.mxu0
    %v13385 = vadd.f32 %v13264, %v13384
    %v13386 = vpop.f32.mrf.mxu0
    %v13387 = vpop.f32.mrf.mxu0
    %v13388 = vadd.f32 %v13269, %v13387
    %v13389 = vpop.f32.mrf.mxu0
    %13390 = vmatprep.mubr.bf16.mxu0 %v13328
    %13391 = vmatmul.mubr.bf16.gmra.mxu0 %v13311
    %v13392 = vpop.f32.mrf.mxu0
    %v13393 = vadd.f32 %v13274, %v13392
    %v13394 = vpop.f32.mrf.mxu0
    %v13395 = vpop.f32.mrf.mxu0
    %v13396 = vadd.f32 %v13279, %v13395
    %v13397 = vpop.f32.mrf.mxu0
    %13398 = vdwg.mxu0
    %v13399 = vtanh.pop %v13369
    %v13400 = vtanh.pop %v13372
    %v13401 = vtanh.pop %v13377
    %v13402 = vtanh.pop %v13380
    %v13403 = vtanh.pop %v13385
    %v13404 = vtanh.pop %v13388
    %v13405 = vtanh.pop %v13393
    %v13406 = vtanh.pop %v13396
    %v13407 = vld [vmem:[#allocation8] sm:$0xf]
    %v13408 = vld [vmem:[#allocation8 + $0x4] sm:$0xf]
    %v13409 = vld [vmem:[#allocation8 + $0x8] sm:$0xf]
    %v13410 = vld [vmem:[#allocation8 + $0xc] sm:$0xf]
    %v13411 = vld [vmem:[#allocation8 + $0x10] sm:$0xf]
    %v13412 = vld [vmem:[#allocation8 + $0x14] sm:$0xf]
    %v13413 = vld [vmem:[#allocation8 + $0x18] sm:$0xf]
    %v13414 = vld [vmem:[#allocation8 + $0x1c] sm:$0xf]
    %v13415 = vpack.c.bf16 %v13400, %v13399
    %v13416 = vpack.c.bf16 %v13402, %v13401
    %v13417 = vpack.c.bf16 %v13404, %v13403
    %v13418 = vpack.c.bf16 %v13406, %v13405
    %v13419 = vld [vmem:[%s8] sm:$0xff]
    %v13420 = vld [vmem:[%s8 + $0x8] sm:$0xff]
    %v13421 = vld [vmem:[%s8 + $0x10] sm:$0xff]
    %v13422 = vld [vmem:[%s8 + $0x18] sm:$0xff]
    %v13423 = vld [vmem:[%s8 + $0x20] sm:$0xff]
    %v13424 = vld [vmem:[%s8 + $0x28] sm:$0xff]
    %v13425 = vld [vmem:[%s8 + $0x30] sm:$0xff]
    %v13426 = vld [vmem:[%s8 + $0x38] sm:$0xff]
    %13428 = vset.pattern.permute.xlu0 0
    %13429 = vperm.xlu0 %13428, %v13419
    %v13430 = vpop.permute.xlu0 %13429
    %13433 = vset.pattern.permute.xlu0 0
    %13434 = vperm.xlu0 %13433, %v13420
    %v13435 = vpop.permute.xlu0 %13434
    %13438 = vset.pattern.permute.xlu0 0
    %13439 = vperm.xlu0 %13438, %v13421
    %v13440 = vpop.permute.xlu0 %13439
    %13443 = vset.pattern.permute.xlu0 0
    %13444 = vperm.xlu0 %13443, %v13422
    %v13445 = vpop.permute.xlu0 %13444
    %13448 = vset.pattern.permute.xlu0 0
    %13449 = vperm.xlu0 %13448, %v13423
    %v13450 = vpop.permute.xlu0 %13449
    %13453 = vset.pattern.permute.xlu0 0
    %13454 = vperm.xlu0 %13453, %v13424
    %v13455 = vpop.permute.xlu0 %13454
    %13458 = vset.pattern.permute.xlu0 0
    %13459 = vperm.xlu0 %13458, %v13425
    %v13460 = vpop.permute.xlu0 %13459
    %13463 = vset.pattern.permute.xlu0 0
    %13464 = vperm.xlu0 %13463, %v13426
    %v13465 = vpop.permute.xlu0 %13464
    %v13475 = vunpack.c.l.b16 %v13407
    %v13476 = vunpack.c.l.b16 %v13408
    %v13477 = vunpack.c.l.b16 %v13409
    %v13478 = vunpack.c.l.b16 %v13410
    %v13479 = vunpack.c.l.b16 %v13411
    %v13480 = vunpack.c.l.b16 %v13412
    %v13481 = vunpack.c.l.b16 %v13413
    %v13482 = vunpack.c.l.b16 %v13414
    %v13483 = vpack.c.b16 %v13476, %v13475
    %v13484 = vpack.c.b16 %v13478, %v13477
    %v13485 = vpack.c.b16 %v13480, %v13479
    %v13486 = vpack.c.b16 %v13482, %v13481
    %vm13487 = vcmask 523264
    %v13489 = vsel %vm13487, %v13483, 0
    %v13492 = vsel %vm13487, %v13484, 0
    %v13495 = vsel %vm13487, %v13485, 0
    %v13498 = vsel %vm13487, %v13486, 0
    %13500 = vmatprep.subr.bf16.mxu0 0
    %13501 = vmatpush1.bf16.msra.mxu0 0
    %13502 = vmatprep.subr.bf16.mxu0 0
    %13503 = vmatpush1.bf16.msra.mxu0 0
    %13504 = vmatprep.subr.bf16.mxu0 0
    %13505 = vmatpush1.bf16.msra.mxu0 0
    %13506 = vmatprep.subr.bf16.mxu0 0
    %13507 = vmatpush1.bf16.msra.mxu0 0
    %13508 = vmatprep.subr.bf16.mxu0 0
    %13509 = vmatpush1.bf16.msra.mxu0 %v13418
    %13510 = vmatprep.subr.bf16.mxu0 0
    %13511 = vmatpush1.bf16.msra.mxu0 %v13417
    %13512 = vmatprep.subr.bf16.mxu0 0
    %13513 = vmatpush1.bf16.msra.mxu0 %v13416
    %13514 = vmatprep.subr.bf16.mxu0 0
    %13515 = vmatpush1.bf16.msra.mxu0 %v13415
    %13516 = vmatprep.subr.bf16.mxu0 0
    %13517 = vmatpush2.bf16.msra.mxu0 0
    %13518 = vmatprep.subr.bf16.mxu0 0
    %13519 = vmatpush2.bf16.msra.mxu0 0
    %13520 = vmatprep.subr.bf16.mxu0 0
    %13521 = vmatpush2.bf16.msra.mxu0 0
    %13522 = vmatprep.subr.bf16.mxu0 0
    %13523 = vmatpush2.bf16.msra.mxu0 0
    %13524 = vmatprep.subr.bf16.mxu0 0
    %13525 = vmatpush2.bf16.msra.mxu0 0
    %13526 = vmatprep.subr.bf16.mxu0 0
    %13527 = vmatpush2.bf16.msra.mxu0 0
    %13528 = vmatprep.subr.bf16.mxu0 0
    %13529 = vmatpush2.bf16.msra.mxu0 0
    %13530 = vmatprep.subr.bf16.mxu0 0
    %13531 = vmatpush2.bf16.msra.mxu0 0
    %13532 = vmatprep.mubr.bf16.mxu0 0
    %13533 = vmatmul.mubr.bf16.gmra.mxu0 %v13489
    %v13534 = vpop.f32.mrf.mxu0
    %v13535 = vadd.f32 %v13430, %v13534
    %v13536 = vpop.f32.mrf.mxu0
    %v13537 = vpop.f32.mrf.mxu0
    %v13538 = vadd.f32 %v13435, %v13537
    %v13539 = vpop.f32.mrf.mxu0
    %13540 = vmatprep.mubr.bf16.mxu0 0
    %13541 = vmatmul.mubr.bf16.gmra.mxu0 %v13492
    %v13542 = vpop.f32.mrf.mxu0
    %v13543 = vadd.f32 %v13440, %v13542
    %v13544 = vpop.f32.mrf.mxu0
    %v13545 = vpop.f32.mrf.mxu0
    %v13546 = vadd.f32 %v13445, %v13545
    %v13547 = vpop.f32.mrf.mxu0
    %13548 = vmatprep.mubr.bf16.mxu0 0
    %13549 = vmatmul.mubr.bf16.gmra.mxu0 %v13495
    %v13550 = vpop.f32.mrf.mxu0
    %v13551 = vadd.f32 %v13450, %v13550
    %v13552 = vpop.f32.mrf.mxu0
    %v13553 = vpop.f32.mrf.mxu0
    %v13554 = vadd.f32 %v13455, %v13553
    %v13555 = vpop.f32.mrf.mxu0
    %13556 = vmatprep.mubr.bf16.mxu0 0
    %13557 = vmatmul.mubr.bf16.gmra.mxu0 %v13498
    %v13558 = vpop.f32.mrf.mxu0
    %v13559 = vadd.f32 %v13460, %v13558
    %v13560 = vpop.f32.mrf.mxu0
    %v13561 = vpop.f32.mrf.mxu0
    %v13562 = vadd.f32 %v13465, %v13561
    %v13563 = vpop.f32.mrf.mxu0
    %13564 = vdwg.mxu0
    %v13565 = vtanh.pop %v13535
    %v13566 = vtanh.pop %v13538
    %v13567 = vtanh.pop %v13543
    %v13568 = vtanh.pop %v13546
    %v13569 = vtanh.pop %v13551
    %v13570 = vtanh.pop %v13554
    %v13571 = vtanh.pop %v13559
    %v13572 = vtanh.pop %v13562
    %v13573 = vld [vmem:[#allocation10] sm:$0xf]
    %v13574 = vld [vmem:[#allocation10 + $0x4] sm:$0xf]
    %v13575 = vld [vmem:[#allocation10 + $0x8] sm:$0xf]
    %v13576 = vld [vmem:[#allocation10 + $0xc] sm:$0xf]
    %v13577 = vpack.c.bf16 %v13566, %v13565
    %v13578 = vpack.c.bf16 %v13568, %v13567
    %v13579 = vpack.c.bf16 %v13570, %v13569
    %v13580 = vpack.c.bf16 %v13572, %v13571
    %v13581 = vld [vmem:[%s10] sm:$0xff]
    %v13582 = vld [vmem:[%s10 + $0x8] sm:$0xff]
    %v13583 = vld [vmem:[%s10 + $0x10] sm:$0xff]
    %v13584 = vld [vmem:[%s10 + $0x18] sm:$0xff]
    %13586 = vset.pattern.permute.xlu0 0
    %13587 = vperm.xlu0 %13586, %v13581
    %v13588 = vpop.permute.xlu0 %13587
    %13591 = vset.pattern.permute.xlu0 0
    %13592 = vperm.xlu0 %13591, %v13582
    %v13593 = vpop.permute.xlu0 %13592
    %13596 = vset.pattern.permute.xlu0 0
    %13597 = vperm.xlu0 %13596, %v13583
    %v13598 = vpop.permute.xlu0 %13597
    %13601 = vset.pattern.permute.xlu0 0
    %13602 = vperm.xlu0 %13601, %v13584
    %v13603 = vpop.permute.xlu0 %13602
    %v13609 = vunpack.c.l.b16 %v13573
    %v13610 = vunpack.c.l.b16 %v13574
    %v13611 = vunpack.c.l.b16 %v13575
    %v13612 = vunpack.c.l.b16 %v13576
    %v13613 = vpack.c.b16 %v13610, %v13609
    %v13614 = vpack.c.b16 %v13612, %v13611
    %v13616 = vsel %vm13487, %v13613, 0
    %v13619 = vsel %vm13487, %v13614, 0
    %13621 = vmatprep.subr.bf16.mxu0 0
    %13622 = vmatpush1.bf16.msra.mxu0 0
    %13623 = vmatprep.subr.bf16.mxu0 0
    %13624 = vmatpush1.bf16.msra.mxu0 0
    %13625 = vmatprep.subr.bf16.mxu0 0
    %13626 = vmatpush1.bf16.msra.mxu0 0
    %13627 = vmatprep.subr.bf16.mxu0 0
    %13628 = vmatpush1.bf16.msra.mxu0 0
    %13629 = vmatprep.subr.bf16.mxu0 0
    %13630 = vmatpush1.bf16.msra.mxu0 %v13580
    %13631 = vmatprep.subr.bf16.mxu0 0
    %13632 = vmatpush1.bf16.msra.mxu0 %v13579
    %13633 = vmatprep.subr.bf16.mxu0 0
    %13634 = vmatpush1.bf16.msra.mxu0 %v13578
    %13635 = vmatprep.subr.bf16.mxu0 0
    %13636 = vmatpush1.bf16.msra.mxu0 %v13577
    %13637 = vmatprep.subr.bf16.mxu0 0
    %13638 = vmatpush2.bf16.msra.mxu0 0
    %13639 = vmatprep.subr.bf16.mxu0 0
    %13640 = vmatpush2.bf16.msra.mxu0 0
    %13641 = vmatprep.subr.bf16.mxu0 0
    %13642 = vmatpush2.bf16.msra.mxu0 0
    %13643 = vmatprep.subr.bf16.mxu0 0
    %13644 = vmatpush2.bf16.msra.mxu0 0
    %13645 = vmatprep.subr.bf16.mxu0 0
    %13646 = vmatpush2.bf16.msra.mxu0 0
    %13647 = vmatprep.subr.bf16.mxu0 0
    %13648 = vmatpush2.bf16.msra.mxu0 0
    %13649 = vmatprep.subr.bf16.mxu0 0
    %13650 = vmatpush2.bf16.msra.mxu0 0
    %13651 = vmatprep.subr.bf16.mxu0 0
    %13652 = vmatpush2.bf16.msra.mxu0 0
    %13653 = vmatprep.mubr.bf16.mxu0 0
    %13654 = vmatmul.mubr.bf16.gmra.mxu0 %v13616
    %v13655 = vpop.f32.mrf.mxu0
    %v13656 = vadd.f32 %v13588, %v13655
    %v13657 = vpop.f32.mrf.mxu0
    %v13658 = vpop.f32.mrf.mxu0
    %v13659 = vadd.f32 %v13593, %v13658
    %v13660 = vpop.f32.mrf.mxu0
    %13661 = vmatprep.mubr.bf16.mxu0 0
    %13662 = vmatmul.mubr.bf16.gmra.mxu0 %v13619
    %v13663 = vpop.f32.mrf.mxu0
    %v13664 = vadd.f32 %v13598, %v13663
    %v13665 = vpop.f32.mrf.mxu0
    %v13666 = vpop.f32.mrf.mxu0
    %v13667 = vadd.f32 %v13603, %v13666
    %v13668 = vpop.f32.mrf.mxu0
    %13669 = vdwg.mxu0
    %v13670 = vtanh.pop %v13656
    %v13671 = vtanh.pop %v13659
    %v13672 = vtanh.pop %v13664
    %v13673 = vtanh.pop %v13667
    %v13674 = vld [vmem:[#allocation11] sm:$0x1]
    %v13675 = vpack.c.bf16 %v13671, %v13670
    %v13676 = vpack.c.bf16 %v13673, %v13672
    %v13677 = vld [vmem:[#allocation2] sm:$0x1]
    %13679 = vset.pattern.permute.xlu0 0
    %13680 = vperm.xlu0 %13679, %v13677
    %v13681 = vpop.permute.xlu0 %13680
    %v13683 = vlaneseq
    %v13684 = vshrl.u32 %v13683, 7
    %v13685 = vsub.s32 0, %v13684
    %v13686 = vrot.slane %v13681, %v13685
    %v13688 = vsel %vm12331, %v13674, 0
    %13690 = vmatprep.subr.bf16.mxu0 0
    %13691 = vmatpush1.bf16.msra.mxu0 0
    %13692 = vmatprep.subr.bf16.mxu0 0
    %13693 = vmatpush1.bf16.msra.mxu0 0
    %13694 = vmatprep.subr.bf16.mxu0 0
    %13695 = vmatpush1.bf16.msra.mxu0 0
    %13696 = vmatprep.subr.bf16.mxu0 0
    %13697 = vmatpush1.bf16.msra.mxu0 0
    %13698 = vmatprep.subr.bf16.mxu0 0
    %13699 = vmatpush1.bf16.msra.mxu0 0
    %13700 = vmatprep.subr.bf16.mxu0 0
    %13701 = vmatpush1.bf16.msra.mxu0 0
    %13702 = vmatprep.subr.bf16.mxu0 0
    %13703 = vmatpush1.bf16.msra.mxu0 %v13676
    %13704 = vmatprep.subr.bf16.mxu0 0
    %13705 = vmatpush1.bf16.msra.mxu0 %v13675
    %13706 = vmatprep.subr.bf16.mxu0 0
    %13707 = vmatpush2.bf16.msra.mxu0 0
    %13708 = vmatprep.subr.bf16.mxu0 0
    %13709 = vmatpush2.bf16.msra.mxu0 0
    %13710 = vmatprep.subr.bf16.mxu0 0
    %13711 = vmatpush2.bf16.msra.mxu0 0
    %13712 = vmatprep.subr.bf16.mxu0 0
    %13713 = vmatpush2.bf16.msra.mxu0 0
    %13714 = vmatprep.subr.bf16.mxu0 0
    %13715 = vmatpush2.bf16.msra.mxu0 0
    %13716 = vmatprep.subr.bf16.mxu0 0
    %13717 = vmatpush2.bf16.msra.mxu0 0
    %13718 = vmatprep.subr.bf16.mxu0 0
    %13719 = vmatpush2.bf16.msra.mxu0 0
    %13720 = vmatprep.subr.bf16.mxu0 0
    %13721 = vmatpush2.bf16.msra.mxu0 0
    %13722 = vmatprep.mubr.bf16.mxu0 0
    %13723 = vmatmul.mubr.bf16.gmra.mxu0 %v13688
    %v13724 = vpop.f32.mrf.mxu0
    %v13725 = vadd.f32 %v13686, %v13724
    %v13726 = vpop.f32.mrf.mxu0
    %v13727 = vpop.f32.mrf.mxu0
    %v13728 = vpop.f32.mrf.mxu0
    %13729 = vdwg.mxu0
    %v13730 = vtanh.pop %v13725
    %13731 = vst [vmem:[%s13] sm:$0x1] %v13730
    // Predicated region
    $region78: #{image_controller_net_forward.1} parent=1 // pred_check
      _
    $region79: #{image_controller_net_forward.1} parent=1 // pred_check_branch
      %13733 = sbr.rel (0) target = $region81
    $region80: #{image_controller_net_forward.1} parent=1 // pred_region
      _
    $region81: #{image_controller_net_forward.1} parent=1 // pred_fallthru
      _
    // Predicated region
    $region82: #{image_controller_net_forward.1} parent=1 // pred_check
      _
    $region83: #{image_controller_net_forward.1} parent=1 // pred_check_branch
      %13735 = sbr.rel (0) target = $region85
    $region84: #{image_controller_net_forward.1} parent=1 // pred_region
      _
    $region85: #{image_controller_net_forward.1} parent=1 // pred_fallthru
      _
    %13736 = vsyncpa [#allocation4], 1
    %13737 = vsyncpa [#allocation6], 1
    %13738 = vsyncpa [#allocation9], 1
    %13739 = vsyncpa [#allocation12], 1

</llo_original>
